<compile_context>
chip_gen: v6e
topology: v6e:2x2x1
jax: 0.10.0
libtpu: 0.0.40
codegen_flags: <defaults>
</compile_context>

<pallas_src>
import functools

import jax
import jax.numpy as jnp
from jax.experimental import pallas as pl
from jax.experimental.pallas import tpu as pltpu

IN_DIM = 162
HID = 128
X_DIM = 373
MLP_HID = 512
OUT_PAD = 128   # lane-dense padded width of the final (512 -> 1) layer


# ----------------------------------------------------------------------------
# Fused LSTM + MLP kernel (single grid point).
# PyTorch gate order in the packed 4*HID weights: i, f, g, o.
# ----------------------------------------------------------------------------
def make_fused_kernel(B, T):
    def kernel(z_ref, x_ref, wih_ref, whh_ref, bl_ref,
               w1h_ref, w1x_ref, b1_ref,
               w2_hbm, b2_ref, w3_hbm, b3_ref, w4_hbm, b4_ref, w5_hbm, b5_ref,
               w6_hbm, b6_ref,
               out_ref, action_ref,
               w2_v, w3_v, w4_v, w5_v, w6_v, dma_sems):
        # ---- start streaming the late-use weights (w2..w5, w6) now ----------
        copies = []
        for idx, (src, dst) in enumerate(((w2_hbm, w2_v), (w3_hbm, w3_v),
                                          (w4_hbm, w4_v), (w5_hbm, w5_v),
                                          (w6_hbm, w6_v))):
            cp = pltpu.make_async_copy(src, dst, dma_sems.at[idx])
            cp.start()
            copies.append(cp)

        # ---- hoisted input projection: one (T*B,162)x(162,512) matmul -------
        z = z_ref[...]                                  # (T, B, 162) f32
        zf = z.reshape(T * B, IN_DIM)                   # contiguous collapse
        wih = wih_ref[...].astype(jnp.float32)          # bf16 -> f32, once
        zp = (jnp.dot(zf, wih, preferred_element_type=jnp.float32)
              + bl_ref[...])                            # (T*B, 4*HID)

        whh = whh_ref[...].astype(jnp.float32)          # (HID, 4*HID), once
        h = jnp.zeros((B, HID), jnp.float32)
        c = jnp.zeros((B, HID), jnp.float32)

        # ---- recurrence: statically unrolled, carries stay in vregs ---------
        # Time-major zp: step t reads rows [t*B, (t+1)*B) -> contiguous slab.
        # NOTE: W_hh could be held stationary in the MXU (matmul_push_rhs);
        # kept as plain dots for portability/robustness.
        for t in range(T):
            gates = zp[t * B:(t + 1) * B, :] + jnp.dot(
                h, whh, preferred_element_type=jnp.float32)      # (B, 4*HID)
            i_g = jax.nn.sigmoid(gates[:, 0 * HID:1 * HID])
            f_g = jax.nn.sigmoid(gates[:, 1 * HID:2 * HID])
            g_g = jnp.tanh(gates[:, 2 * HID:3 * HID])
            o_g = jax.nn.sigmoid(gates[:, 3 * HID:4 * HID])
            c = f_g * c + i_g * g_g
            h = o_g * jnp.tanh(c)

        # ---- MLP: concat replaced by split dense1 (h-path + x-path) ---------
        # bf16 weights promote to f32 inside the dot; accumulation is f32.
        xv = x_ref[...]                                 # (B, 373) f32
        a = (jnp.dot(h, w1h_ref[...], preferred_element_type=jnp.float32)
             + jnp.dot(xv, w1x_ref[...], preferred_element_type=jnp.float32)
             + b1_ref[...])
        a = jnp.maximum(a, 0.0)

        # dense2..5: wait for each weight only right before its layer.
        for cp, w_v, b_ref in ((copies[0], w2_v, b2_ref),
                               (copies[1], w3_v, b3_ref),
                               (copies[2], w4_v, b4_ref),
                               (copies[3], w5_v, b5_ref)):
            cp.wait()
            a = jnp.maximum(
                jnp.dot(a, w_v[...], preferred_element_type=jnp.float32)
                + b_ref[...], 0.0)

        # lane-dense final layer: (B, 128), real value in column 0
        copies[4].wait()
        res = (jnp.dot(a, w6_v[...], preferred_element_type=jnp.float32)
               + b6_ref[...])                           # (B, OUT_PAD) f32
        out_ref[...] = res.astype(out_ref.dtype)

        # ---- in-kernel greedy argmax over column 0 (first max index) --------
        vals = res[:, :1]                               # (B, 1)
        max_v = jnp.max(vals, axis=0, keepdims=True)    # (1, 1)
        row_ids = jax.lax.broadcasted_iota(
            jnp.int32, (B, 1), 0).astype(jnp.float32)   # (B, 1)
        cand = jnp.where(vals == max_v, row_ids, jnp.float32(B))
        action_ref[...] = jnp.min(cand, axis=0, keepdims=True).astype(jnp.int32)

    return kernel


def run_fused(z_tm, x, params):
    T, B, _ = z_tm.shape
    vmem = pl.BlockSpec(memory_space=pltpu.MemorySpace.VMEM)
    hbm = pl.BlockSpec(memory_space=pl.ANY)
    args = (
        z_tm, x,
        params["w_ih_t"], params["w_hh_t"], params["b_lstm"],
        params["w1_h"], params["w1_x"], params["b1"],
        params["w2"], params["b2"], params["w3"], params["b3"],
        params["w4"], params["b4"], params["w5"], params["b5"],
        params["w6_pad"], params["b6_pad"],
    )
    in_specs = [
        vmem, vmem,                 # z, x
        vmem, vmem, vmem,           # LSTM weights/bias (needed immediately)
        vmem, vmem, vmem,           # dense1 h-path / x-path / bias
        hbm, vmem,                  # w2 (streamed), b2
        hbm, vmem,                  # w3 (streamed), b3
        hbm, vmem,                  # w4 (streamed), b4
        hbm, vmem,                  # w5 (streamed), b5
        hbm, vmem,                  # w6_pad (streamed), b6_pad
    ]
    out_shape = (jax.ShapeDtypeStruct((B, OUT_PAD), jnp.float32),
                 jax.ShapeDtypeStruct((1, 1), jnp.int32))
    out_specs = (vmem, vmem)
    scratch_shapes = (
        [pltpu.VMEM((MLP_HID, MLP_HID), jnp.bfloat16) for _ in range(4)]
        + [pltpu.VMEM((MLP_HID, OUT_PAD), jnp.bfloat16),
           pltpu.SemaphoreType.DMA((5,))]
    )
    return pl.pallas_call(
        make_fused_kernel(B, T),
        out_shape=out_shape,
        in_specs=in_specs,
        out_specs=out_specs,
        scratch_shapes=scratch_shapes,
    )(*args)


# ----------------------------------------------------------------------------
# Full forward (wrapper: only a trivial transpose + (B,1) slice remain outside)
# ----------------------------------------------------------------------------
@functools.partial(jax.jit, static_argnames=("return_value",))
def landlord_lstm_forward(z, x, params, return_value=False):
    z_tm = jnp.transpose(z.astype(jnp.float32), (1, 0, 2))   # (T, B, 162)
    out_pad, action_arr = run_fused(z_tm, x.astype(jnp.float32), params)
    values = out_pad[:, :1]                                   # (B, 1)
    if return_value:
        return values
    # TODO(synk): flags.exp_epsilon exploration branch is host-side np.random
    # control flow; only the greedy argmax path is implemented (in-kernel).
    action = action_arr[0, 0]
    return values, action


# ----------------------------------------------------------------------------
# Parameter construction (kernel layout: transposed weights, dense1 split into
# h/x paths, dense6 padded lane-dense, big weights stored in bf16).
# ----------------------------------------------------------------------------
def init_params(key):
    ks = jax.random.split(key, 20)
    s = 0.05

    def w(k, shape, dtype=jnp.float32):
        return (jax.random.normal(k, shape, dtype=jnp.float32) * s).astype(dtype)

    # LSTM: PyTorch stores W_ih (4H, 162), W_hh (4H, H); we keep transposes.
    params = {
        "w_ih_t": w(ks[0], (IN_DIM, 4 * HID), jnp.bfloat16),
        "w_hh_t": w(ks[1], (HID, 4 * HID), jnp.bfloat16),
        "b_lstm": w(ks[2], (1, 4 * HID)) + w(ks[3], (1, 4 * HID)),  # b_ih+b_hh
        # dense1 split: rows [0:HID] act on lstm_out, rows [HID:] act on x
        "w1_h": w(ks[4], (HID, MLP_HID), jnp.bfloat16),
        "w1_x": w(ks[5], (X_DIM, MLP_HID), jnp.bfloat16),
        "b1": w(ks[6], (1, MLP_HID)),
    }
    for i in range(2, 6):
        params[f"w{i}"] = w(ks[5 + 2 * i], (MLP_HID, MLP_HID), jnp.bfloat16)
        params[f"b{i}"] = w(ks[6 + 2 * i], (1, MLP_HID))

    w6 = w(ks[17], (MLP_HID, 1), jnp.bfloat16)
    b6 = w(ks[18], (1, 1))
    # lane-dense padding of the final layer (column 0 is the real output)
    params["w6_pad"] = (jnp.zeros((MLP_HID, OUT_PAD), jnp.bfloat16)
                        .at[:, :1].set(w6))
    params["b6_pad"] = (jnp.zeros((1, OUT_PAD), jnp.float32)
                        .at[:, :1].set(b6))
    return params


# ----------------------------------------------------------------------------
# Pure-JAX reference (lax.scan LSTM + dense stack) using the same bf16-stored
# weights upcast to f32 — identical math to the kernel.
# ----------------------------------------------------------------------------
def reference_forward(z, x, p):
    f32 = jnp.float32
    wih = p["w_ih_t"].astype(f32)
    whh = p["w_hh_t"].astype(f32)

    def step(carry, z_t):
        h, c = carry
        gates = z_t @ wih + h @ whh + p["b_lstm"][0]
        i_g = jax.nn.sigmoid(gates[:, 0 * HID:1 * HID])
        f_g = jax.nn.sigmoid(gates[:, 1 * HID:2 * HID])
        g_g = jnp.tanh(gates[:, 2 * HID:3 * HID])
        o_g = jax.nn.sigmoid(gates[:, 3 * HID:4 * HID])
        c = f_g * c + i_g * g_g
        h = o_g * jnp.tanh(c)
        return (h, c), None

    B = z.shape[0]
    h0 = jnp.zeros((B, HID), f32)
    (h, _), _ = jax.lax.scan(step, (h0, h0), jnp.transpose(z, (1, 0, 2)))

    a = jnp.maximum(h @ p["w1_h"].astype(f32) + x @ p["w1_x"].astype(f32)
                    + p["b1"][0], 0.0)
    for i in range(2, 6):
        a = jnp.maximum(a @ p[f"w{i}"].astype(f32) + p[f"b{i}"][0], 0.0)
    out = a @ p["w6_pad"].astype(f32) + p["b6_pad"][0]
    return out[:, :1]


if __name__ == "__main__":
    key = jax.random.PRNGKey(0)
    k_p, k_z, k_x = jax.random.split(key, 3)

    B, T = 8, 8
    params = init_params(k_p)
    z = jax.random.normal(k_z, (B, T, IN_DIM), dtype=jnp.float32)
    x = jax.random.normal(k_x, (B, X_DIM), dtype=jnp.float32)

    values, action = landlord_lstm_forward(z, x, params, return_value=False)
    values = jax.block_until_ready(values)
    action = jax.block_until_ready(action)

    ref = reference_forward(z, x, params)
    assert values.shape == (B, 1)
    assert jnp.allclose(values, ref, atol=1e-3, rtol=1e-3), "mismatch vs reference"
    assert int(action) == int(jnp.argmax(ref[:, 0]))

    # return_value=True path
    v_only = jax.block_until_ready(
        landlord_lstm_forward(z, x, params, return_value=True))
    assert jnp.allclose(v_only, ref, atol=1e-3, rtol=1e-3)

    print("KERNEL_OK")
</pallas_src>

<mosaic_0001>
module attributes {stable_mosaic.version = 11 : i64} {
  func.func @kernel(%arg0: memref<8x8x162xf32, #tpu.memory_space<vmem>>, %arg1: memref<8x373xf32, #tpu.memory_space<vmem>>, %arg2: memref<162x512xbf16, #tpu.memory_space<vmem>>, %arg3: memref<128x512xbf16, #tpu.memory_space<vmem>>, %arg4: memref<1x512xf32, #tpu.memory_space<vmem>>, %arg5: memref<128x512xbf16, #tpu.memory_space<vmem>>, %arg6: memref<373x512xbf16, #tpu.memory_space<vmem>>, %arg7: memref<1x512xf32, #tpu.memory_space<vmem>>, %arg8: memref<512x512xbf16, #tpu.memory_space<any>>, %arg9: memref<1x512xf32, #tpu.memory_space<vmem>>, %arg10: memref<512x512xbf16, #tpu.memory_space<any>>, %arg11: memref<1x512xf32, #tpu.memory_space<vmem>>, %arg12: memref<512x512xbf16, #tpu.memory_space<any>>, %arg13: memref<1x512xf32, #tpu.memory_space<vmem>>, %arg14: memref<512x512xbf16, #tpu.memory_space<any>>, %arg15: memref<1x512xf32, #tpu.memory_space<vmem>>, %arg16: memref<512x128xbf16, #tpu.memory_space<any>>, %arg17: memref<1x128xf32, #tpu.memory_space<vmem>>, %arg18: memref<8x128xf32, #tpu.memory_space<vmem>>, %arg19: memref<1x1xi32, #tpu.memory_space<vmem>>, %arg20: memref<512x512xbf16, #tpu.memory_space<vmem>>, %arg21: memref<512x512xbf16, #tpu.memory_space<vmem>>, %arg22: memref<512x512xbf16, #tpu.memory_space<vmem>>, %arg23: memref<512x512xbf16, #tpu.memory_space<vmem>>, %arg24: memref<512x128xbf16, #tpu.memory_space<vmem>>, %arg25: memref<5x!tpu.dma_semaphore, #tpu.memory_space<semaphore_mem>>) attributes {dimension_semantics = [], scalar_prefetch = 0 : i64, scratch_operands = 6 : i64, tpu.core_type = #tpu.core_type<tc>} {
    %c0_i32 = arith.constant 0 : i32
    %0 = tpu.memref_slice %arg25[%c0_i32] : memref<5x!tpu.dma_semaphore, #tpu.memory_space<semaphore_mem>> -> memref<1x!tpu.dma_semaphore, #tpu.memory_space<semaphore_mem>>
    %1 = tpu.memref_squeeze %0 : memref<1x!tpu.dma_semaphore, #tpu.memory_space<semaphore_mem>> -> memref<!tpu.dma_semaphore, #tpu.memory_space<semaphore_mem>>
    tpu.enqueue_dma source(%arg8 : memref<512x512xbf16, #tpu.memory_space<any>>) target(%arg20 : memref<512x512xbf16, #tpu.memory_space<vmem>>) target_semaphore(%1 : memref<!tpu.dma_semaphore, #tpu.memory_space<semaphore_mem>>)
    %c1_i32 = arith.constant 1 : i32
    %2 = tpu.memref_slice %arg25[%c1_i32] : memref<5x!tpu.dma_semaphore, #tpu.memory_space<semaphore_mem>> -> memref<1x!tpu.dma_semaphore, #tpu.memory_space<semaphore_mem>>
    %3 = tpu.memref_squeeze %2 : memref<1x!tpu.dma_semaphore, #tpu.memory_space<semaphore_mem>> -> memref<!tpu.dma_semaphore, #tpu.memory_space<semaphore_mem>>
    tpu.enqueue_dma source(%arg10 : memref<512x512xbf16, #tpu.memory_space<any>>) target(%arg21 : memref<512x512xbf16, #tpu.memory_space<vmem>>) target_semaphore(%3 : memref<!tpu.dma_semaphore, #tpu.memory_space<semaphore_mem>>)
    %c2_i32 = arith.constant 2 : i32
    %4 = tpu.memref_slice %arg25[%c2_i32] : memref<5x!tpu.dma_semaphore, #tpu.memory_space<semaphore_mem>> -> memref<1x!tpu.dma_semaphore, #tpu.memory_space<semaphore_mem>>
    %5 = tpu.memref_squeeze %4 : memref<1x!tpu.dma_semaphore, #tpu.memory_space<semaphore_mem>> -> memref<!tpu.dma_semaphore, #tpu.memory_space<semaphore_mem>>
    tpu.enqueue_dma source(%arg12 : memref<512x512xbf16, #tpu.memory_space<any>>) target(%arg22 : memref<512x512xbf16, #tpu.memory_space<vmem>>) target_semaphore(%5 : memref<!tpu.dma_semaphore, #tpu.memory_space<semaphore_mem>>)
    %c3_i32 = arith.constant 3 : i32
    %6 = tpu.memref_slice %arg25[%c3_i32] : memref<5x!tpu.dma_semaphore, #tpu.memory_space<semaphore_mem>> -> memref<1x!tpu.dma_semaphore, #tpu.memory_space<semaphore_mem>>
    %7 = tpu.memref_squeeze %6 : memref<1x!tpu.dma_semaphore, #tpu.memory_space<semaphore_mem>> -> memref<!tpu.dma_semaphore, #tpu.memory_space<semaphore_mem>>
    tpu.enqueue_dma source(%arg14 : memref<512x512xbf16, #tpu.memory_space<any>>) target(%arg23 : memref<512x512xbf16, #tpu.memory_space<vmem>>) target_semaphore(%7 : memref<!tpu.dma_semaphore, #tpu.memory_space<semaphore_mem>>)
    %c4_i32 = arith.constant 4 : i32
    %8 = tpu.memref_slice %arg25[%c4_i32] : memref<5x!tpu.dma_semaphore, #tpu.memory_space<semaphore_mem>> -> memref<1x!tpu.dma_semaphore, #tpu.memory_space<semaphore_mem>>
    %9 = tpu.memref_squeeze %8 : memref<1x!tpu.dma_semaphore, #tpu.memory_space<semaphore_mem>> -> memref<!tpu.dma_semaphore, #tpu.memory_space<semaphore_mem>>
    tpu.enqueue_dma source(%arg16 : memref<512x128xbf16, #tpu.memory_space<any>>) target(%arg24 : memref<512x128xbf16, #tpu.memory_space<vmem>>) target_semaphore(%9 : memref<!tpu.dma_semaphore, #tpu.memory_space<semaphore_mem>>)
    %c0 = arith.constant 0 : index
    %c0_0 = arith.constant 0 : index
    %c0_1 = arith.constant 0 : index
    %10 = vector.load %arg0[%c0, %c0_0, %c0_1] : memref<8x8x162xf32, #tpu.memory_space<vmem>>, vector<8x8x162xf32>
    %11 = vector.shape_cast %10 : vector<8x8x162xf32> to vector<64x162xf32>
    %c0_2 = arith.constant 0 : index
    %c0_3 = arith.constant 0 : index
    %12 = vector.load %arg2[%c0_2, %c0_3] : memref<162x512xbf16, #tpu.memory_space<vmem>>, vector<162x512xbf16>
    %13 = arith.extf %12 : vector<162x512xbf16> to vector<162x512xf32>
    %cst = arith.constant dense<0.000000e+00> : vector<64x512xf32>
    %14 = tpu.matmul %11, %13, %cst {dimension_numbers = #tpu.dot_dimension_numbers<[1], [0], [0], [1], [0, 0, 1, 1], [], []>} : vector<64x162xf32>, vector<162x512xf32>, vector<64x512xf32> -> vector<64x512xf32>
    %c0_4 = arith.constant 0 : index
    %c0_5 = arith.constant 0 : index
    %15 = vector.load %arg4[%c0_4, %c0_5] : memref<1x512xf32, #tpu.memory_space<vmem>>, vector<1x512xf32>
    %16 = vector.broadcast %15 : vector<1x512xf32> to vector<64x512xf32>
    %17 = arith.addf %14, %16 : vector<64x512xf32>
    %c0_6 = arith.constant 0 : index
    %c0_7 = arith.constant 0 : index
    %18 = vector.load %arg3[%c0_6, %c0_7] : memref<128x512xbf16, #tpu.memory_space<vmem>>, vector<128x512xbf16>
    %19 = arith.extf %18 : vector<128x512xbf16> to vector<128x512xf32>
    %cst_8 = arith.constant 0.000000e+00 : f32
    %20 = vector.broadcast %cst_8 : f32 to vector<8x128xf32>
    %cst_9 = arith.constant 0.000000e+00 : f32
    %21 = vector.broadcast %cst_9 : f32 to vector<8x128xf32>
    %22 = vector.extract_strided_slice %17 {offsets = [0, 0], sizes = [8, 512], strides = [1, 1]} : vector<64x512xf32> to vector<8x512xf32>
    %cst_10 = arith.constant dense<0.000000e+00> : vector<8x512xf32>
    %23 = tpu.matmul %20, %19, %cst_10 {dimension_numbers = #tpu.dot_dimension_numbers<[1], [0], [0], [1], [0, 0, 1, 1], [], []>} : vector<8x128xf32>, vector<128x512xf32>, vector<8x512xf32> -> vector<8x512xf32>
    %24 = arith.addf %22, %23 : vector<8x512xf32>
    %25 = vector.extract_strided_slice %24 {offsets = [0, 0], sizes = [8, 128], strides = [1, 1]} : vector<8x512xf32> to vector<8x128xf32>
    %26 = arith.negf %25 : vector<8x128xf32>
    %27 = math.exp %26 : vector<8x128xf32>
    %cst_11 = arith.constant 1.000000e+00 : f32
    %28 = vector.broadcast %cst_11 : f32 to vector<8x128xf32>
    %29 = arith.addf %28, %27 : vector<8x128xf32>
    %30 = arith.divf %28, %29 : vector<8x128xf32>
    %31 = vector.extract_strided_slice %24 {offsets = [0, 128], sizes = [8, 128], strides = [1, 1]} : vector<8x512xf32> to vector<8x128xf32>
    %32 = arith.negf %31 : vector<8x128xf32>
    %33 = math.exp %32 : vector<8x128xf32>
    %cst_12 = arith.constant 1.000000e+00 : f32
    %34 = vector.broadcast %cst_12 : f32 to vector<8x128xf32>
    %35 = arith.addf %34, %33 : vector<8x128xf32>
    %36 = arith.divf %34, %35 : vector<8x128xf32>
    %37 = vector.extract_strided_slice %24 {offsets = [0, 256], sizes = [8, 128], strides = [1, 1]} : vector<8x512xf32> to vector<8x128xf32>
    %38 = math.tanh %37 : vector<8x128xf32>
    %39 = vector.extract_strided_slice %24 {offsets = [0, 384], sizes = [8, 128], strides = [1, 1]} : vector<8x512xf32> to vector<8x128xf32>
    %40 = arith.negf %39 : vector<8x128xf32>
    %41 = math.exp %40 : vector<8x128xf32>
    %cst_13 = arith.constant 1.000000e+00 : f32
    %42 = vector.broadcast %cst_13 : f32 to vector<8x128xf32>
    %43 = arith.addf %42, %41 : vector<8x128xf32>
    %44 = arith.divf %42, %43 : vector<8x128xf32>
    %45 = arith.mulf %36, %21 : vector<8x128xf32>
    %46 = arith.mulf %30, %38 : vector<8x128xf32>
    %47 = arith.addf %45, %46 : vector<8x128xf32>
    %48 = math.tanh %47 : vector<8x128xf32>
    %49 = arith.mulf %44, %48 : vector<8x128xf32>
    %50 = vector.extract_strided_slice %17 {offsets = [8, 0], sizes = [8, 512], strides = [1, 1]} : vector<64x512xf32> to vector<8x512xf32>
    %cst_14 = arith.constant dense<0.000000e+00> : vector<8x512xf32>
    %51 = tpu.matmul %49, %19, %cst_14 {dimension_numbers = #tpu.dot_dimension_numbers<[1], [0], [0], [1], [0, 0, 1, 1], [], []>} : vector<8x128xf32>, vector<128x512xf32>, vector<8x512xf32> -> vector<8x512xf32>
    %52 = arith.addf %50, %51 : vector<8x512xf32>
    %53 = vector.extract_strided_slice %52 {offsets = [0, 0], sizes = [8, 128], strides = [1, 1]} : vector<8x512xf32> to vector<8x128xf32>
    %54 = arith.negf %53 : vector<8x128xf32>
    %55 = math.exp %54 : vector<8x128xf32>
    %cst_15 = arith.constant 1.000000e+00 : f32
    %56 = vector.broadcast %cst_15 : f32 to vector<8x128xf32>
    %57 = arith.addf %56, %55 : vector<8x128xf32>
    %58 = arith.divf %56, %57 : vector<8x128xf32>
    %59 = vector.extract_strided_slice %52 {offsets = [0, 128], sizes = [8, 128], strides = [1, 1]} : vector<8x512xf32> to vector<8x128xf32>
    %60 = arith.negf %59 : vector<8x128xf32>
    %61 = math.exp %60 : vector<8x128xf32>
    %cst_16 = arith.constant 1.000000e+00 : f32
    %62 = vector.broadcast %cst_16 : f32 to vector<8x128xf32>
    %63 = arith.addf %62, %61 : vector<8x128xf32>
    %64 = arith.divf %62, %63 : vector<8x128xf32>
    %65 = vector.extract_strided_slice %52 {offsets = [0, 256], sizes = [8, 128], strides = [1, 1]} : vector<8x512xf32> to vector<8x128xf32>
    %66 = math.tanh %65 : vector<8x128xf32>
    %67 = vector.extract_strided_slice %52 {offsets = [0, 384], sizes = [8, 128], strides = [1, 1]} : vector<8x512xf32> to vector<8x128xf32>
    %68 = arith.negf %67 : vector<8x128xf32>
    %69 = math.exp %68 : vector<8x128xf32>
    %cst_17 = arith.constant 1.000000e+00 : f32
    %70 = vector.broadcast %cst_17 : f32 to vector<8x128xf32>
    %71 = arith.addf %70, %69 : vector<8x128xf32>
    %72 = arith.divf %70, %71 : vector<8x128xf32>
    %73 = arith.mulf %64, %47 : vector<8x128xf32>
    %74 = arith.mulf %58, %66 : vector<8x128xf32>
    %75 = arith.addf %73, %74 : vector<8x128xf32>
    %76 = math.tanh %75 : vector<8x128xf32>
    %77 = arith.mulf %72, %76 : vector<8x128xf32>
    %78 = vector.extract_strided_slice %17 {offsets = [16, 0], sizes = [8, 512], strides = [1, 1]} : vector<64x512xf32> to vector<8x512xf32>
    %cst_18 = arith.constant dense<0.000000e+00> : vector<8x512xf32>
    %79 = tpu.matmul %77, %19, %cst_18 {dimension_numbers = #tpu.dot_dimension_numbers<[1], [0], [0], [1], [0, 0, 1, 1], [], []>} : vector<8x128xf32>, vector<128x512xf32>, vector<8x512xf32> -> vector<8x512xf32>
    %80 = arith.addf %78, %79 : vector<8x512xf32>
    %81 = vector.extract_strided_slice %80 {offsets = [0, 0], sizes = [8, 128], strides = [1, 1]} : vector<8x512xf32> to vector<8x128xf32>
    %82 = arith.negf %81 : vector<8x128xf32>
    %83 = math.exp %82 : vector<8x128xf32>
    %cst_19 = arith.constant 1.000000e+00 : f32
    %84 = vector.broadcast %cst_19 : f32 to vector<8x128xf32>
    %85 = arith.addf %84, %83 : vector<8x128xf32>
    %86 = arith.divf %84, %85 : vector<8x128xf32>
    %87 = vector.extract_strided_slice %80 {offsets = [0, 128], sizes = [8, 128], strides = [1, 1]} : vector<8x512xf32> to vector<8x128xf32>
    %88 = arith.negf %87 : vector<8x128xf32>
    %89 = math.exp %88 : vector<8x128xf32>
    %cst_20 = arith.constant 1.000000e+00 : f32
    %90 = vector.broadcast %cst_20 : f32 to vector<8x128xf32>
    %91 = arith.addf %90, %89 : vector<8x128xf32>
    %92 = arith.divf %90, %91 : vector<8x128xf32>
    %93 = vector.extract_strided_slice %80 {offsets = [0, 256], sizes = [8, 128], strides = [1, 1]} : vector<8x512xf32> to vector<8x128xf32>
    %94 = math.tanh %93 : vector<8x128xf32>
    %95 = vector.extract_strided_slice %80 {offsets = [0, 384], sizes = [8, 128], strides = [1, 1]} : vector<8x512xf32> to vector<8x128xf32>
    %96 = arith.negf %95 : vector<8x128xf32>
    %97 = math.exp %96 : vector<8x128xf32>
    %cst_21 = arith.constant 1.000000e+00 : f32
    %98 = vector.broadcast %cst_21 : f32 to vector<8x128xf32>
    %99 = arith.addf %98, %97 : vector<8x128xf32>
    %100 = arith.divf %98, %99 : vector<8x128xf32>
    %101 = arith.mulf %92, %75 : vector<8x128xf32>
    %102 = arith.mulf %86, %94 : vector<8x128xf32>
    %103 = arith.addf %101, %102 : vector<8x128xf32>
    %104 = math.tanh %103 : vector<8x128xf32>
    %105 = arith.mulf %100, %104 : vector<8x128xf32>
    %106 = vector.extract_strided_slice %17 {offsets = [24, 0], sizes = [8, 512], strides = [1, 1]} : vector<64x512xf32> to vector<8x512xf32>
    %cst_22 = arith.constant dense<0.000000e+00> : vector<8x512xf32>
    %107 = tpu.matmul %105, %19, %cst_22 {dimension_numbers = #tpu.dot_dimension_numbers<[1], [0], [0], [1], [0, 0, 1, 1], [], []>} : vector<8x128xf32>, vector<128x512xf32>, vector<8x512xf32> -> vector<8x512xf32>
    %108 = arith.addf %106, %107 : vector<8x512xf32>
    %109 = vector.extract_strided_slice %108 {offsets = [0, 0], sizes = [8, 128], strides = [1, 1]} : vector<8x512xf32> to vector<8x128xf32>
    %110 = arith.negf %109 : vector<8x128xf32>
    %111 = math.exp %110 : vector<8x128xf32>
    %cst_23 = arith.constant 1.000000e+00 : f32
    %112 = vector.broadcast %cst_23 : f32 to vector<8x128xf32>
    %113 = arith.addf %112, %111 : vector<8x128xf32>
    %114 = arith.divf %112, %113 : vector<8x128xf32>
    %115 = vector.extract_strided_slice %108 {offsets = [0, 128], sizes = [8, 128], strides = [1, 1]} : vector<8x512xf32> to vector<8x128xf32>
    %116 = arith.negf %115 : vector<8x128xf32>
    %117 = math.exp %116 : vector<8x128xf32>
    %cst_24 = arith.constant 1.000000e+00 : f32
    %118 = vector.broadcast %cst_24 : f32 to vector<8x128xf32>
    %119 = arith.addf %118, %117 : vector<8x128xf32>
    %120 = arith.divf %118, %119 : vector<8x128xf32>
    %121 = vector.extract_strided_slice %108 {offsets = [0, 256], sizes = [8, 128], strides = [1, 1]} : vector<8x512xf32> to vector<8x128xf32>
    %122 = math.tanh %121 : vector<8x128xf32>
    %123 = vector.extract_strided_slice %108 {offsets = [0, 384], sizes = [8, 128], strides = [1, 1]} : vector<8x512xf32> to vector<8x128xf32>
    %124 = arith.negf %123 : vector<8x128xf32>
    %125 = math.exp %124 : vector<8x128xf32>
    %cst_25 = arith.constant 1.000000e+00 : f32
    %126 = vector.broadcast %cst_25 : f32 to vector<8x128xf32>
    %127 = arith.addf %126, %125 : vector<8x128xf32>
    %128 = arith.divf %126, %127 : vector<8x128xf32>
    %129 = arith.mulf %120, %103 : vector<8x128xf32>
    %130 = arith.mulf %114, %122 : vector<8x128xf32>
    %131 = arith.addf %129, %130 : vector<8x128xf32>
    %132 = math.tanh %131 : vector<8x128xf32>
    %133 = arith.mulf %128, %132 : vector<8x128xf32>
    %134 = vector.extract_strided_slice %17 {offsets = [32, 0], sizes = [8, 512], strides = [1, 1]} : vector<64x512xf32> to vector<8x512xf32>
    %cst_26 = arith.constant dense<0.000000e+00> : vector<8x512xf32>
    %135 = tpu.matmul %133, %19, %cst_26 {dimension_numbers = #tpu.dot_dimension_numbers<[1], [0], [0], [1], [0, 0, 1, 1], [], []>} : vector<8x128xf32>, vector<128x512xf32>, vector<8x512xf32> -> vector<8x512xf32>
    %136 = arith.addf %134, %135 : vector<8x512xf32>
    %137 = vector.extract_strided_slice %136 {offsets = [0, 0], sizes = [8, 128], strides = [1, 1]} : vector<8x512xf32> to vector<8x128xf32>
    %138 = arith.negf %137 : vector<8x128xf32>
    %139 = math.exp %138 : vector<8x128xf32>
    %cst_27 = arith.constant 1.000000e+00 : f32
    %140 = vector.broadcast %cst_27 : f32 to vector<8x128xf32>
    %141 = arith.addf %140, %139 : vector<8x128xf32>
    %142 = arith.divf %140, %141 : vector<8x128xf32>
    %143 = vector.extract_strided_slice %136 {offsets = [0, 128], sizes = [8, 128], strides = [1, 1]} : vector<8x512xf32> to vector<8x128xf32>
    %144 = arith.negf %143 : vector<8x128xf32>
    %145 = math.exp %144 : vector<8x128xf32>
    %cst_28 = arith.constant 1.000000e+00 : f32
    %146 = vector.broadcast %cst_28 : f32 to vector<8x128xf32>
    %147 = arith.addf %146, %145 : vector<8x128xf32>
    %148 = arith.divf %146, %147 : vector<8x128xf32>
    %149 = vector.extract_strided_slice %136 {offsets = [0, 256], sizes = [8, 128], strides = [1, 1]} : vector<8x512xf32> to vector<8x128xf32>
    %150 = math.tanh %149 : vector<8x128xf32>
    %151 = vector.extract_strided_slice %136 {offsets = [0, 384], sizes = [8, 128], strides = [1, 1]} : vector<8x512xf32> to vector<8x128xf32>
    %152 = arith.negf %151 : vector<8x128xf32>
    %153 = math.exp %152 : vector<8x128xf32>
    %cst_29 = arith.constant 1.000000e+00 : f32
    %154 = vector.broadcast %cst_29 : f32 to vector<8x128xf32>
    %155 = arith.addf %154, %153 : vector<8x128xf32>
    %156 = arith.divf %154, %155 : vector<8x128xf32>
    %157 = arith.mulf %148, %131 : vector<8x128xf32>
    %158 = arith.mulf %142, %150 : vector<8x128xf32>
    %159 = arith.addf %157, %158 : vector<8x128xf32>
    %160 = math.tanh %159 : vector<8x128xf32>
    %161 = arith.mulf %156, %160 : vector<8x128xf32>
    %162 = vector.extract_strided_slice %17 {offsets = [40, 0], sizes = [8, 512], strides = [1, 1]} : vector<64x512xf32> to vector<8x512xf32>
    %cst_30 = arith.constant dense<0.000000e+00> : vector<8x512xf32>
    %163 = tpu.matmul %161, %19, %cst_30 {dimension_numbers = #tpu.dot_dimension_numbers<[1], [0], [0], [1], [0, 0, 1, 1], [], []>} : vector<8x128xf32>, vector<128x512xf32>, vector<8x512xf32> -> vector<8x512xf32>
    %164 = arith.addf %162, %163 : vector<8x512xf32>
    %165 = vector.extract_strided_slice %164 {offsets = [0, 0], sizes = [8, 128], strides = [1, 1]} : vector<8x512xf32> to vector<8x128xf32>
    %166 = arith.negf %165 : vector<8x128xf32>
    %167 = math.exp %166 : vector<8x128xf32>
    %cst_31 = arith.constant 1.000000e+00 : f32
    %168 = vector.broadcast %cst_31 : f32 to vector<8x128xf32>
    %169 = arith.addf %168, %167 : vector<8x128xf32>
    %170 = arith.divf %168, %169 : vector<8x128xf32>
    %171 = vector.extract_strided_slice %164 {offsets = [0, 128], sizes = [8, 128], strides = [1, 1]} : vector<8x512xf32> to vector<8x128xf32>
    %172 = arith.negf %171 : vector<8x128xf32>
    %173 = math.exp %172 : vector<8x128xf32>
    %cst_32 = arith.constant 1.000000e+00 : f32
    %174 = vector.broadcast %cst_32 : f32 to vector<8x128xf32>
    %175 = arith.addf %174, %173 : vector<8x128xf32>
    %176 = arith.divf %174, %175 : vector<8x128xf32>
    %177 = vector.extract_strided_slice %164 {offsets = [0, 256], sizes = [8, 128], strides = [1, 1]} : vector<8x512xf32> to vector<8x128xf32>
    %178 = math.tanh %177 : vector<8x128xf32>
    %179 = vector.extract_strided_slice %164 {offsets = [0, 384], sizes = [8, 128], strides = [1, 1]} : vector<8x512xf32> to vector<8x128xf32>
    %180 = arith.negf %179 : vector<8x128xf32>
    %181 = math.exp %180 : vector<8x128xf32>
    %cst_33 = arith.constant 1.000000e+00 : f32
    %182 = vector.broadcast %cst_33 : f32 to vector<8x128xf32>
    %183 = arith.addf %182, %181 : vector<8x128xf32>
    %184 = arith.divf %182, %183 : vector<8x128xf32>
    %185 = arith.mulf %176, %159 : vector<8x128xf32>
    %186 = arith.mulf %170, %178 : vector<8x128xf32>
    %187 = arith.addf %185, %186 : vector<8x128xf32>
    %188 = math.tanh %187 : vector<8x128xf32>
    %189 = arith.mulf %184, %188 : vector<8x128xf32>
    %190 = vector.extract_strided_slice %17 {offsets = [48, 0], sizes = [8, 512], strides = [1, 1]} : vector<64x512xf32> to vector<8x512xf32>
    %cst_34 = arith.constant dense<0.000000e+00> : vector<8x512xf32>
    %191 = tpu.matmul %189, %19, %cst_34 {dimension_numbers = #tpu.dot_dimension_numbers<[1], [0], [0], [1], [0, 0, 1, 1], [], []>} : vector<8x128xf32>, vector<128x512xf32>, vector<8x512xf32> -> vector<8x512xf32>
    %192 = arith.addf %190, %191 : vector<8x512xf32>
    %193 = vector.extract_strided_slice %192 {offsets = [0, 0], sizes = [8, 128], strides = [1, 1]} : vector<8x512xf32> to vector<8x128xf32>
    %194 = arith.negf %193 : vector<8x128xf32>
    %195 = math.exp %194 : vector<8x128xf32>
    %cst_35 = arith.constant 1.000000e+00 : f32
    %196 = vector.broadcast %cst_35 : f32 to vector<8x128xf32>
    %197 = arith.addf %196, %195 : vector<8x128xf32>
    %198 = arith.divf %196, %197 : vector<8x128xf32>
    %199 = vector.extract_strided_slice %192 {offsets = [0, 128], sizes = [8, 128], strides = [1, 1]} : vector<8x512xf32> to vector<8x128xf32>
    %200 = arith.negf %199 : vector<8x128xf32>
    %201 = math.exp %200 : vector<8x128xf32>
    %cst_36 = arith.constant 1.000000e+00 : f32
    %202 = vector.broadcast %cst_36 : f32 to vector<8x128xf32>
    %203 = arith.addf %202, %201 : vector<8x128xf32>
    %204 = arith.divf %202, %203 : vector<8x128xf32>
    %205 = vector.extract_strided_slice %192 {offsets = [0, 256], sizes = [8, 128], strides = [1, 1]} : vector<8x512xf32> to vector<8x128xf32>
    %206 = math.tanh %205 : vector<8x128xf32>
    %207 = vector.extract_strided_slice %192 {offsets = [0, 384], sizes = [8, 128], strides = [1, 1]} : vector<8x512xf32> to vector<8x128xf32>
    %208 = arith.negf %207 : vector<8x128xf32>
    %209 = math.exp %208 : vector<8x128xf32>
    %cst_37 = arith.constant 1.000000e+00 : f32
    %210 = vector.broadcast %cst_37 : f32 to vector<8x128xf32>
    %211 = arith.addf %210, %209 : vector<8x128xf32>
    %212 = arith.divf %210, %211 : vector<8x128xf32>
    %213 = arith.mulf %204, %187 : vector<8x128xf32>
    %214 = arith.mulf %198, %206 : vector<8x128xf32>
    %215 = arith.addf %213, %214 : vector<8x128xf32>
    %216 = math.tanh %215 : vector<8x128xf32>
    %217 = arith.mulf %212, %216 : vector<8x128xf32>
    %218 = vector.extract_strided_slice %17 {offsets = [56, 0], sizes = [8, 512], strides = [1, 1]} : vector<64x512xf32> to vector<8x512xf32>
    %cst_38 = arith.constant dense<0.000000e+00> : vector<8x512xf32>
    %219 = tpu.matmul %217, %19, %cst_38 {dimension_numbers = #tpu.dot_dimension_numbers<[1], [0], [0], [1], [0, 0, 1, 1], [], []>} : vector<8x128xf32>, vector<128x512xf32>, vector<8x512xf32> -> vector<8x512xf32>
    %220 = arith.addf %218, %219 : vector<8x512xf32>
    %221 = vector.extract_strided_slice %220 {offsets = [0, 0], sizes = [8, 128], strides = [1, 1]} : vector<8x512xf32> to vector<8x128xf32>
    %222 = arith.negf %221 : vector<8x128xf32>
    %223 = math.exp %222 : vector<8x128xf32>
    %cst_39 = arith.constant 1.000000e+00 : f32
    %224 = vector.broadcast %cst_39 : f32 to vector<8x128xf32>
    %225 = arith.addf %224, %223 : vector<8x128xf32>
    %226 = arith.divf %224, %225 : vector<8x128xf32>
    %227 = vector.extract_strided_slice %220 {offsets = [0, 128], sizes = [8, 128], strides = [1, 1]} : vector<8x512xf32> to vector<8x128xf32>
    %228 = arith.negf %227 : vector<8x128xf32>
    %229 = math.exp %228 : vector<8x128xf32>
    %cst_40 = arith.constant 1.000000e+00 : f32
    %230 = vector.broadcast %cst_40 : f32 to vector<8x128xf32>
    %231 = arith.addf %230, %229 : vector<8x128xf32>
    %232 = arith.divf %230, %231 : vector<8x128xf32>
    %233 = vector.extract_strided_slice %220 {offsets = [0, 256], sizes = [8, 128], strides = [1, 1]} : vector<8x512xf32> to vector<8x128xf32>
    %234 = math.tanh %233 : vector<8x128xf32>
    %235 = vector.extract_strided_slice %220 {offsets = [0, 384], sizes = [8, 128], strides = [1, 1]} : vector<8x512xf32> to vector<8x128xf32>
    %236 = arith.negf %235 : vector<8x128xf32>
    %237 = math.exp %236 : vector<8x128xf32>
    %cst_41 = arith.constant 1.000000e+00 : f32
    %238 = vector.broadcast %cst_41 : f32 to vector<8x128xf32>
    %239 = arith.addf %238, %237 : vector<8x128xf32>
    %240 = arith.divf %238, %239 : vector<8x128xf32>
    %241 = arith.mulf %232, %215 : vector<8x128xf32>
    %242 = arith.mulf %226, %234 : vector<8x128xf32>
    %243 = arith.addf %241, %242 : vector<8x128xf32>
    %244 = math.tanh %243 : vector<8x128xf32>
    %245 = arith.mulf %240, %244 : vector<8x128xf32>
    %c0_42 = arith.constant 0 : index
    %c0_43 = arith.constant 0 : index
    %246 = vector.load %arg1[%c0_42, %c0_43] : memref<8x373xf32, #tpu.memory_space<vmem>>, vector<8x373xf32>
    %c0_44 = arith.constant 0 : index
    %c0_45 = arith.constant 0 : index
    %247 = vector.load %arg5[%c0_44, %c0_45] : memref<128x512xbf16, #tpu.memory_space<vmem>>, vector<128x512xbf16>
    %cst_46 = arith.constant dense<0.000000e+00> : vector<8x512xf32>
    %248 = tpu.matmul %245, %247, %cst_46 {dimension_numbers = #tpu.dot_dimension_numbers<[1], [0], [0], [1], [0, 0, 1, 1], [], []>} : vector<8x128xf32>, vector<128x512xbf16>, vector<8x512xf32> -> vector<8x512xf32>
    %c0_47 = arith.constant 0 : index
    %c0_48 = arith.constant 0 : index
    %249 = vector.load %arg6[%c0_47, %c0_48] : memref<373x512xbf16, #tpu.memory_space<vmem>>, vector<373x512xbf16>
    %cst_49 = arith.constant dense<0.000000e+00> : vector<8x512xf32>
    %250 = tpu.matmul %246, %249, %cst_49 {dimension_numbers = #tpu.dot_dimension_numbers<[1], [0], [0], [1], [0, 0, 1, 1], [], []>} : vector<8x373xf32>, vector<373x512xbf16>, vector<8x512xf32> -> vector<8x512xf32>
    %251 = arith.addf %248, %250 : vector<8x512xf32>
    %c0_50 = arith.constant 0 : index
    %c0_51 = arith.constant 0 : index
    %252 = vector.load %arg7[%c0_50, %c0_51] : memref<1x512xf32, #tpu.memory_space<vmem>>, vector<1x512xf32>
    %253 = vector.broadcast %252 : vector<1x512xf32> to vector<8x512xf32>
    %254 = arith.addf %251, %253 : vector<8x512xf32>
    %cst_52 = arith.constant 0.000000e+00 : f32
    %255 = vector.broadcast %cst_52 : f32 to vector<8x512xf32>
    %256 = arith.maximumf %254, %255 : vector<8x512xf32>
    %c0_i32_53 = arith.constant 0 : i32
    %257 = tpu.memref_slice %arg25[%c0_i32_53] : memref<5x!tpu.dma_semaphore, #tpu.memory_space<semaphore_mem>> -> memref<1x!tpu.dma_semaphore, #tpu.memory_space<semaphore_mem>>
    %258 = tpu.memref_squeeze %257 : memref<1x!tpu.dma_semaphore, #tpu.memory_space<semaphore_mem>> -> memref<!tpu.dma_semaphore, #tpu.memory_space<semaphore_mem>>
    tpu.wait_dma2 semaphore(%258 : memref<!tpu.dma_semaphore, #tpu.memory_space<semaphore_mem>>) src(%arg8 : memref<512x512xbf16, #tpu.memory_space<any>>) dst(%arg20 : memref<512x512xbf16, #tpu.memory_space<vmem>>)
    %c0_54 = arith.constant 0 : index
    %c0_55 = arith.constant 0 : index
    %259 = vector.load %arg20[%c0_54, %c0_55] : memref<512x512xbf16, #tpu.memory_space<vmem>>, vector<512x512xbf16>
    %cst_56 = arith.constant dense<0.000000e+00> : vector<8x512xf32>
    %260 = tpu.matmul %256, %259, %cst_56 {dimension_numbers = #tpu.dot_dimension_numbers<[1], [0], [0], [1], [0, 0, 1, 1], [], []>} : vector<8x512xf32>, vector<512x512xbf16>, vector<8x512xf32> -> vector<8x512xf32>
    %c0_57 = arith.constant 0 : index
    %c0_58 = arith.constant 0 : index
    %261 = vector.load %arg9[%c0_57, %c0_58] : memref<1x512xf32, #tpu.memory_space<vmem>>, vector<1x512xf32>
    %262 = vector.broadcast %261 : vector<1x512xf32> to vector<8x512xf32>
    %263 = arith.addf %260, %262 : vector<8x512xf32>
    %cst_59 = arith.constant 0.000000e+00 : f32
    %264 = vector.broadcast %cst_59 : f32 to vector<8x512xf32>
    %265 = arith.maximumf %263, %264 : vector<8x512xf32>
    %c1_i32_60 = arith.constant 1 : i32
    %266 = tpu.memref_slice %arg25[%c1_i32_60] : memref<5x!tpu.dma_semaphore, #tpu.memory_space<semaphore_mem>> -> memref<1x!tpu.dma_semaphore, #tpu.memory_space<semaphore_mem>>
    %267 = tpu.memref_squeeze %266 : memref<1x!tpu.dma_semaphore, #tpu.memory_space<semaphore_mem>> -> memref<!tpu.dma_semaphore, #tpu.memory_space<semaphore_mem>>
    tpu.wait_dma2 semaphore(%267 : memref<!tpu.dma_semaphore, #tpu.memory_space<semaphore_mem>>) src(%arg10 : memref<512x512xbf16, #tpu.memory_space<any>>) dst(%arg21 : memref<512x512xbf16, #tpu.memory_space<vmem>>)
    %c0_61 = arith.constant 0 : index
    %c0_62 = arith.constant 0 : index
    %268 = vector.load %arg21[%c0_61, %c0_62] : memref<512x512xbf16, #tpu.memory_space<vmem>>, vector<512x512xbf16>
    %cst_63 = arith.constant dense<0.000000e+00> : vector<8x512xf32>
    %269 = tpu.matmul %265, %268, %cst_63 {dimension_numbers = #tpu.dot_dimension_numbers<[1], [0], [0], [1], [0, 0, 1, 1], [], []>} : vector<8x512xf32>, vector<512x512xbf16>, vector<8x512xf32> -> vector<8x512xf32>
    %c0_64 = arith.constant 0 : index
    %c0_65 = arith.constant 0 : index
    %270 = vector.load %arg11[%c0_64, %c0_65] : memref<1x512xf32, #tpu.memory_space<vmem>>, vector<1x512xf32>
    %271 = vector.broadcast %270 : vector<1x512xf32> to vector<8x512xf32>
    %272 = arith.addf %269, %271 : vector<8x512xf32>
    %cst_66 = arith.constant 0.000000e+00 : f32
    %273 = vector.broadcast %cst_66 : f32 to vector<8x512xf32>
    %274 = arith.maximumf %272, %273 : vector<8x512xf32>
    %c2_i32_67 = arith.constant 2 : i32
    %275 = tpu.memref_slice %arg25[%c2_i32_67] : memref<5x!tpu.dma_semaphore, #tpu.memory_space<semaphore_mem>> -> memref<1x!tpu.dma_semaphore, #tpu.memory_space<semaphore_mem>>
    %276 = tpu.memref_squeeze %275 : memref<1x!tpu.dma_semaphore, #tpu.memory_space<semaphore_mem>> -> memref<!tpu.dma_semaphore, #tpu.memory_space<semaphore_mem>>
    tpu.wait_dma2 semaphore(%276 : memref<!tpu.dma_semaphore, #tpu.memory_space<semaphore_mem>>) src(%arg12 : memref<512x512xbf16, #tpu.memory_space<any>>) dst(%arg22 : memref<512x512xbf16, #tpu.memory_space<vmem>>)
    %c0_68 = arith.constant 0 : index
    %c0_69 = arith.constant 0 : index
    %277 = vector.load %arg22[%c0_68, %c0_69] : memref<512x512xbf16, #tpu.memory_space<vmem>>, vector<512x512xbf16>
    %cst_70 = arith.constant dense<0.000000e+00> : vector<8x512xf32>
    %278 = tpu.matmul %274, %277, %cst_70 {dimension_numbers = #tpu.dot_dimension_numbers<[1], [0], [0], [1], [0, 0, 1, 1], [], []>} : vector<8x512xf32>, vector<512x512xbf16>, vector<8x512xf32> -> vector<8x512xf32>
    %c0_71 = arith.constant 0 : index
    %c0_72 = arith.constant 0 : index
    %279 = vector.load %arg13[%c0_71, %c0_72] : memref<1x512xf32, #tpu.memory_space<vmem>>, vector<1x512xf32>
    %280 = vector.broadcast %279 : vector<1x512xf32> to vector<8x512xf32>
    %281 = arith.addf %278, %280 : vector<8x512xf32>
    %cst_73 = arith.constant 0.000000e+00 : f32
    %282 = vector.broadcast %cst_73 : f32 to vector<8x512xf32>
    %283 = arith.maximumf %281, %282 : vector<8x512xf32>
    %c3_i32_74 = arith.constant 3 : i32
    %284 = tpu.memref_slice %arg25[%c3_i32_74] : memref<5x!tpu.dma_semaphore, #tpu.memory_space<semaphore_mem>> -> memref<1x!tpu.dma_semaphore, #tpu.memory_space<semaphore_mem>>
    %285 = tpu.memref_squeeze %284 : memref<1x!tpu.dma_semaphore, #tpu.memory_space<semaphore_mem>> -> memref<!tpu.dma_semaphore, #tpu.memory_space<semaphore_mem>>
    tpu.wait_dma2 semaphore(%285 : memref<!tpu.dma_semaphore, #tpu.memory_space<semaphore_mem>>) src(%arg14 : memref<512x512xbf16, #tpu.memory_space<any>>) dst(%arg23 : memref<512x512xbf16, #tpu.memory_space<vmem>>)
    %c0_75 = arith.constant 0 : index
    %c0_76 = arith.constant 0 : index
    %286 = vector.load %arg23[%c0_75, %c0_76] : memref<512x512xbf16, #tpu.memory_space<vmem>>, vector<512x512xbf16>
    %cst_77 = arith.constant dense<0.000000e+00> : vector<8x512xf32>
    %287 = tpu.matmul %283, %286, %cst_77 {dimension_numbers = #tpu.dot_dimension_numbers<[1], [0], [0], [1], [0, 0, 1, 1], [], []>} : vector<8x512xf32>, vector<512x512xbf16>, vector<8x512xf32> -> vector<8x512xf32>
    %c0_78 = arith.constant 0 : index
    %c0_79 = arith.constant 0 : index
    %288 = vector.load %arg15[%c0_78, %c0_79] : memref<1x512xf32, #tpu.memory_space<vmem>>, vector<1x512xf32>
    %289 = vector.broadcast %288 : vector<1x512xf32> to vector<8x512xf32>
    %290 = arith.addf %287, %289 : vector<8x512xf32>
    %cst_80 = arith.constant 0.000000e+00 : f32
    %291 = vector.broadcast %cst_80 : f32 to vector<8x512xf32>
    %292 = arith.maximumf %290, %291 : vector<8x512xf32>
    %c4_i32_81 = arith.constant 4 : i32
    %293 = tpu.memref_slice %arg25[%c4_i32_81] : memref<5x!tpu.dma_semaphore, #tpu.memory_space<semaphore_mem>> -> memref<1x!tpu.dma_semaphore, #tpu.memory_space<semaphore_mem>>
    %294 = tpu.memref_squeeze %293 : memref<1x!tpu.dma_semaphore, #tpu.memory_space<semaphore_mem>> -> memref<!tpu.dma_semaphore, #tpu.memory_space<semaphore_mem>>
    tpu.wait_dma2 semaphore(%294 : memref<!tpu.dma_semaphore, #tpu.memory_space<semaphore_mem>>) src(%arg16 : memref<512x128xbf16, #tpu.memory_space<any>>) dst(%arg24 : memref<512x128xbf16, #tpu.memory_space<vmem>>)
    %c0_82 = arith.constant 0 : index
    %c0_83 = arith.constant 0 : index
    %295 = vector.load %arg24[%c0_82, %c0_83] : memref<512x128xbf16, #tpu.memory_space<vmem>>, vector<512x128xbf16>
    %cst_84 = arith.constant dense<0.000000e+00> : vector<8x128xf32>
    %296 = tpu.matmul %292, %295, %cst_84 {dimension_numbers = #tpu.dot_dimension_numbers<[1], [0], [0], [1], [0, 0, 1, 1], [], []>} : vector<8x512xf32>, vector<512x128xbf16>, vector<8x128xf32> -> vector<8x128xf32>
    %c0_85 = arith.constant 0 : index
    %c0_86 = arith.constant 0 : index
    %297 = vector.load %arg17[%c0_85, %c0_86] : memref<1x128xf32, #tpu.memory_space<vmem>>, vector<1x128xf32>
    %298 = vector.broadcast %297 : vector<1x128xf32> to vector<8x128xf32>
    %299 = arith.addf %296, %298 : vector<8x128xf32>
    %c0_87 = arith.constant 0 : index
    %c0_88 = arith.constant 0 : index
    %300 = vector.load %arg18[%c0_87, %c0_88] : memref<8x128xf32, #tpu.memory_space<vmem>>, vector<8x128xf32>
    tpu.vector_store %arg18[%c0_87, %c0_88], %299 {strides = array<i32>} : memref<8x128xf32, #tpu.memory_space<vmem>>, vector<8x128xf32>,
    %301 = vector.extract_strided_slice %299 {offsets = [0, 0], sizes = [8, 1], strides = [1, 1]} : vector<8x128xf32> to vector<8x1xf32>
    %cst_89 = arith.constant dense<0xFF800000> : vector<1xf32>
    %302 = vector.multi_reduction <maximumf>, %301, %cst_89 [0] : vector<8x1xf32> to vector<1xf32>
    %303 = vector.shape_cast %302 : vector<1xf32> to vector<1x1xf32>
    %304 = tpu.iota {dimensions = array<i32: 0>} : vector<8x1xi32>
    %305 = arith.sitofp %304 : vector<8x1xi32> to vector<8x1xf32>
    %306 = vector.broadcast %303 : vector<1x1xf32> to vector<8x1xf32>
    %307 = arith.cmpf oeq, %301, %306 : vector<8x1xf32>
    %cst_90 = arith.constant 8.000000e+00 : f32
    %308 = vector.broadcast %cst_90 : f32 to vector<8x1xf32>
    %309 = arith.select %307, %305, %308 : vector<8x1xi1>, vector<8x1xf32>
    %cst_91 = arith.constant dense<0x7F800000> : vector<1xf32>
    %310 = vector.multi_reduction <minimumf>, %309, %cst_91 [0] : vector<8x1xf32> to vector<1xf32>
    %311 = vector.shape_cast %310 : vector<1xf32> to vector<1x1xf32>
    %312 = arith.fptosi %311 : vector<1x1xf32> to vector<1x1xi32>
    %c0_92 = arith.constant 0 : index
    %c0_93 = arith.constant 0 : index
    %313 = vector.load %arg19[%c0_92, %c0_93] : memref<1x1xi32, #tpu.memory_space<vmem>>, vector<1x1xi32>
    tpu.vector_store %arg19[%c0_92, %c0_93], %312 {strides = array<i32>} : memref<1x1xi32, #tpu.memory_space<vmem>>, vector<1x1xi32>,
    return
  }
}

</mosaic_0001>

<llo_original>
// kernel: landlord_lstm_forward.1
$region0: #{landlord_lstm_forward.1}
  #allocation0 [shape = 'u32[]', space=smem, size = 0x4, offset = 0x4, fixed_abs, tag = 'smem constant byte address 0x4 - core index']
  #allocation1 [shape = 'u32[144,128]{1,0:T(1,128)}', space=vmem, size = 0x12000, scoped, tag = 'internal scratch']
  #allocation2 [shape = 'bf16[512,512]{1,0:T(8,128)(2,1)}', space=vmem, size = 0x80000, scoped, tag = 'scratch operand']
  #allocation3 [shape = 'bf16[512,512]{1,0:T(8,128)(2,1)}', space=vmem, size = 0x80000, scoped, tag = 'scratch operand']
  #allocation4 [shape = 'bf16[512,512]{1,0:T(8,128)(2,1)}', space=vmem, size = 0x80000, scoped, tag = 'scratch operand']
  #allocation5 [shape = 'bf16[512,512]{1,0:T(8,128)(2,1)}', space=vmem, size = 0x80000, scoped, tag = 'scratch operand']
  #allocation6 [shape = 'bf16[512,128]{1,0:T(8,128)(2,1)}', space=vmem, size = 0x20000, scoped, tag = 'scratch operand']
  #allocation7 [shape = 's32[5]{0}', space=sflag, size = 0x14, scoped, tag = 'scratch operand']
  #allocation23 [shape = 's32[]', space=sflag, size = 0x4, offset = 0, fixed_abs, tag = 'sflag constant byte address 0x0 - dummy sync flag']
  #allocation24 [shape = 's32[]', space=sflag, size = 0x4, offset = 0, fixed_abs, tag = 'sflag constant byte address 0x0 - dummy sync flag']
  #allocation25 [shape = 'u32[]', space=smem, size = 0x4, offset = 0x44, fixed_abs, tag = 'smem constant byte address 0x44 - assertion arg 0']
  #allocation26 [shape = 'u32[]', space=smem, size = 0x4, offset = 0x48, fixed_abs, tag = 'smem constant byte address 0x48 - assertion arg 1']
  #allocation27 [shape = 's32[]', space=sflag, size = 0x4, offset = 0, fixed_abs, tag = 'sflag constant byte address 0x0 - dummy sync flag']
  #allocation28 [shape = 's32[]', space=sflag, size = 0x4, offset = 0, fixed_abs, tag = 'sflag constant byte address 0x0 - dummy sync flag']
  #allocation29 [shape = 's32[]', space=sflag, size = 0x4, offset = 0, fixed_abs, tag = 'sflag constant byte address 0x0 - dummy sync flag']
  #allocation30 [shape = 's32[]', space=sflag, size = 0x4, offset = 0, fixed_abs, tag = 'sflag constant byte address 0x0 - dummy sync flag']
  #allocation31 [shape = 's32[]', space=sflag, size = 0x4, offset = 0, fixed_abs, tag = 'sflag constant byte address 0x0 - dummy sync flag']
  #allocation32 [shape = 's32[]', space=sflag, size = 0x4, offset = 0, fixed_abs, tag = 'sflag constant byte address 0x0 - dummy sync flag']
  #allocation33 [shape = 's32[]', space=sflag, size = 0x4, offset = 0, fixed_abs, tag = 'sflag constant byte address 0x0 - dummy sync flag']
  #allocation34 [shape = 's32[]', space=sflag, size = 0x4, offset = 0, fixed_abs, tag = 'sflag constant byte address 0x0 - dummy sync flag']
  %s0 = inlined_call_operand.vmem [shape: f32[8,8,162], index: 0, kind: input, shape index: {}]
  %s1 = inlined_call_operand.vmem [shape: f32[8,373], index: 1, kind: input, shape index: {}]
  %s2 = inlined_call_operand.hbm [shape: bf16[162,512], index: 2, kind: input, shape index: {}]
  %s3 = inlined_call_operand.vmem [shape: bf16[128,512], index: 3, kind: input, shape index: {}]
  %s4 = inlined_call_operand.vmem [shape: f32[1,512], index: 4, kind: input, shape index: {}]
  %s5 = inlined_call_operand.hbm [shape: bf16[128,512], index: 5, kind: input, shape index: {}]
  %s6 = inlined_call_operand.hbm [shape: bf16[373,512], index: 6, kind: input, shape index: {}]
  %s7 = inlined_call_operand.hbm [shape: f32[1,512], index: 7, kind: input, shape index: {}]
  %s8 = inlined_call_operand.hbm [shape: bf16[512,512], index: 8, kind: input, shape index: {}]
  %s9 = inlined_call_operand.hbm [shape: f32[1,512], index: 9, kind: input, shape index: {}]
  %s10 = inlined_call_operand.hbm [shape: bf16[512,512], index: 10, kind: input, shape index: {}]
  %s11 = inlined_call_operand.hbm [shape: f32[1,512], index: 11, kind: input, shape index: {}]
  %s12 = inlined_call_operand.hbm [shape: bf16[512,512], index: 12, kind: input, shape index: {}]
  %s13 = inlined_call_operand.hbm [shape: f32[1,512], index: 13, kind: input, shape index: {}]
  %s14 = inlined_call_operand.hbm [shape: bf16[512,512], index: 14, kind: input, shape index: {}]
  %s15 = inlined_call_operand.hbm [shape: f32[1,512], index: 15, kind: input, shape index: {}]
  %s16 = inlined_call_operand.hbm [shape: bf16[512,128], index: 16, kind: input, shape index: {}]
  %s17 = inlined_call_operand.vmem [shape: f32[1,128], index: 17, kind: input, shape index: {}]
  %s18 = inlined_call_operand.vmem [shape: f32[8,128], index: 18, kind: output, shape index: {0}]
  %s19 = inlined_call_operand.hbm [shape: s32[1,1], index: 19, kind: output, shape index: {1}]
  %20 = xla_tuple %s18, %s19
  %s21 = sld [smem:[#allocation0]]
  $region122: #{landlord_lstm_forward.1} parent=0
    _
  %s23 = ssub.s32 1, %s21
  %s24 = scalar_select 0, %s23, %s21
  $region1: #{landlord_lstm_forward.1} parent=0
    #allocation8 [shape = 'u8[172032]{0}', space=vmem, size = 0x2a000, scoped, tag = 'input window, operand 2, single buffered']
    #allocation9 [shape = 's32[1]{0}', space=sflag, size = 0x4, scoped, tag = 'scoped memory for landlord_lstm_forward.1']
    #allocation10 [shape = 's32[1]{0}', space=sflag, size = 0x4, scoped, tag = 'scoped memory for landlord_lstm_forward.1']
    #allocation11 [shape = 'u8[131072]{0}', space=vmem, size = 0x20000, scoped, tag = 'input window, operand 5, single buffered']
    #allocation12 [shape = 's32[1]{0}', space=sflag, size = 0x4, scoped, tag = 'scoped memory for landlord_lstm_forward.1']
    #allocation13 [shape = 'u8[385024]{0}', space=vmem, size = 0x5e000, scoped, tag = 'input window, operand 6, single buffered']
    #allocation14 [shape = 'u8[2048]{0}', space=vmem, size = 0x800, scoped, tag = 'input window, operand 7, single buffered']
    #allocation15 [shape = 's32[1]{0}', space=sflag, size = 0x4, scoped, tag = 'scoped memory for landlord_lstm_forward.1']
    #allocation16 [shape = 'u8[2048]{0}', space=vmem, size = 0x800, scoped, tag = 'input window, operand 9, single buffered']
    #allocation17 [shape = 'u8[2048]{0}', space=vmem, size = 0x800, scoped, tag = 'input window, operand 11, single buffered']
    #allocation18 [shape = 's32[1]{0}', space=sflag, size = 0x4, scoped, tag = 'scoped memory for landlord_lstm_forward.1']
    #allocation19 [shape = 'u8[2048]{0}', space=vmem, size = 0x800, scoped, tag = 'input window, operand 13, single buffered']
    #allocation20 [shape = 'u8[2048]{0}', space=vmem, size = 0x800, scoped, tag = 'input window, operand 15, single buffered']
    #allocation21 [shape = 's32[1]{0}', space=sflag, size = 0x4, scoped, tag = 'scoped memory for landlord_lstm_forward.1']
    #allocation22 [shape = 'u8[512]{0}', space=vmem, size = 0x400, scoped, tag = 'output window, operand 1, single buffered']
    %25 = vsyncpa [#allocation9], 0
    %26 = vsyncpa [#allocation12], 0
    %27 = vsyncpa [#allocation15], 0
    %28 = vsyncpa [#allocation18], 0
    %29 = vsyncpa [#allocation21], 0
    %30 = vsyncpa [#allocation10], 0
    // Predicated region
    $region2: #{landlord_lstm_forward.1} parent=1 // pred_check
      _
    $region3: #{landlord_lstm_forward.1} parent=1 // pred_check_branch
      %32 = sbr.rel (0) target = $region5
    $region4: #{landlord_lstm_forward.1} parent=1 // pred_region
      _
    $region5: #{landlord_lstm_forward.1} parent=1 // pred_fallthru
      _
    // Predicated region
    $region6: #{landlord_lstm_forward.1} parent=1 // pred_check
      _
    $region7: #{landlord_lstm_forward.1} parent=1 // pred_check_branch
      %34 = sbr.rel (0) target = $region9
    $region8: #{landlord_lstm_forward.1} parent=1 // pred_region
      _
    $region9: #{landlord_lstm_forward.1} parent=1 // pred_fallthru
      _
    // Predicated region
    $region10: #{landlord_lstm_forward.1} parent=1 // pred_check
      _
    $region11: #{landlord_lstm_forward.1} parent=1 // pred_check_branch
      %36 = sbr.rel (0) target = $region13
    $region12: #{landlord_lstm_forward.1} parent=1 // pred_region
      %s38 = ssub.s32 5376, 5376
      %39 = vsyncadd [#allocation9], %s38
      %s40 = sshll.u32 [#allocation8], 4
      %s41 = int_to_ptr.vmem [resolvable:$true] %s40
      %46 = dma.hbm_to_vmem [thread:$0]  %s2, 5376, %s41, [#allocation9], 256, 256, 16
    $region13: #{landlord_lstm_forward.1} parent=1 // pred_fallthru
      _
    // Predicated region
    $region14: #{landlord_lstm_forward.1} parent=1 // pred_check
      _
    $region15: #{landlord_lstm_forward.1} parent=1 // pred_check_branch
      %48 = sbr.rel (0) target = $region17
    $region16: #{landlord_lstm_forward.1} parent=1 // pred_region
      _
    $region17: #{landlord_lstm_forward.1} parent=1 // pred_fallthru
      _
    // Predicated region
    $region18: #{landlord_lstm_forward.1} parent=1 // pred_check
      _
    $region19: #{landlord_lstm_forward.1} parent=1 // pred_check_branch
      %50 = sbr.rel (0) target = $region21
    $region20: #{landlord_lstm_forward.1} parent=1 // pred_region
      _
    $region21: #{landlord_lstm_forward.1} parent=1 // pred_fallthru
      _
    // Predicated region
    $region22: #{landlord_lstm_forward.1} parent=1 // pred_check
      _
    $region23: #{landlord_lstm_forward.1} parent=1 // pred_check_branch
      %52 = sbr.rel (0) target = $region25
    $region24: #{landlord_lstm_forward.1} parent=1 // pred_region
      %s54 = ssub.s32 4096, 4096
      %55 = vsyncadd [#allocation12], %s54
      %s56 = sshll.u32 [#allocation11], 4
      %s57 = int_to_ptr.vmem [resolvable:$true] %s56
      %62 = dma.hbm_to_vmem [thread:$0]  %s5, 4096, %s57, [#allocation12], 256, 256, 16
    $region25: #{landlord_lstm_forward.1} parent=1 // pred_fallthru
      _
    // Predicated region
    $region26: #{landlord_lstm_forward.1} parent=1 // pred_check
      _
    $region27: #{landlord_lstm_forward.1} parent=1 // pred_check_branch
      %64 = sbr.rel (0) target = $region29
    $region28: #{landlord_lstm_forward.1} parent=1 // pred_region
      %s66 = ssub.s32 12032, 12032
      %67 = vsyncadd [#allocation12], %s66
      %s68 = sshll.u32 [#allocation13], 4
      %s69 = int_to_ptr.vmem [resolvable:$true] %s68
      %74 = dma.hbm_to_vmem [thread:$0]  %s6, 12032, %s69, [#allocation12], 256, 256, 16
    $region29: #{landlord_lstm_forward.1} parent=1 // pred_fallthru
      _
    // Predicated region
    $region30: #{landlord_lstm_forward.1} parent=1 // pred_check
      _
    $region31: #{landlord_lstm_forward.1} parent=1 // pred_check_branch
      %76 = sbr.rel (0) target = $region33
    $region32: #{landlord_lstm_forward.1} parent=1 // pred_region
      %s78 = ssub.s32 64, 64
      %79 = vsyncadd [#allocation15], %s78
      %s81 = sshll.u32 [#allocation14], 4
      %s82 = int_to_ptr.vmem [resolvable:$true] %s81
      %84 = dma.hbm_to_vmem [thread:$0]  %s7, 64, %s82, [#allocation15]
    $region33: #{landlord_lstm_forward.1} parent=1 // pred_fallthru
      _
    // Predicated region
    $region34: #{landlord_lstm_forward.1} parent=1 // pred_check
      _
    $region35: #{landlord_lstm_forward.1} parent=1 // pred_check_branch
      %86 = sbr.rel (0) target = $region37
    $region36: #{landlord_lstm_forward.1} parent=1 // pred_region
      %s88 = ssub.s32 64, 64
      %89 = vsyncadd [#allocation15], %s88
      %s91 = sshll.u32 [#allocation16], 4
      %s92 = int_to_ptr.vmem [resolvable:$true] %s91
      %94 = dma.hbm_to_vmem [thread:$0]  %s9, 64, %s92, [#allocation15]
    $region37: #{landlord_lstm_forward.1} parent=1 // pred_fallthru
      _
    // Predicated region
    $region38: #{landlord_lstm_forward.1} parent=1 // pred_check
      _
    $region39: #{landlord_lstm_forward.1} parent=1 // pred_check_branch
      %96 = sbr.rel (0) target = $region41
    $region40: #{landlord_lstm_forward.1} parent=1 // pred_region
      %s98 = ssub.s32 64, 64
      %99 = vsyncadd [#allocation18], %s98
      %s101 = sshll.u32 [#allocation17], 4
      %s102 = int_to_ptr.vmem [resolvable:$true] %s101
      %104 = dma.hbm_to_vmem [thread:$0]  %s11, 64, %s102, [#allocation18]
    $region41: #{landlord_lstm_forward.1} parent=1 // pred_fallthru
      _
    // Predicated region
    $region42: #{landlord_lstm_forward.1} parent=1 // pred_check
      _
    $region43: #{landlord_lstm_forward.1} parent=1 // pred_check_branch
      %106 = sbr.rel (0) target = $region45
    $region44: #{landlord_lstm_forward.1} parent=1 // pred_region
      %s108 = ssub.s32 64, 64
      %109 = vsyncadd [#allocation18], %s108
      %s111 = sshll.u32 [#allocation19], 4
      %s112 = int_to_ptr.vmem [resolvable:$true] %s111
      %114 = dma.hbm_to_vmem [thread:$0]  %s13, 64, %s112, [#allocation18]
    $region45: #{landlord_lstm_forward.1} parent=1 // pred_fallthru
      _
    // Predicated region
    $region46: #{landlord_lstm_forward.1} parent=1 // pred_check
      _
    $region47: #{landlord_lstm_forward.1} parent=1 // pred_check_branch
      %116 = sbr.rel (0) target = $region49
    $region48: #{landlord_lstm_forward.1} parent=1 // pred_region
      %s118 = ssub.s32 64, 64
      %119 = vsyncadd [#allocation21], %s118
      %s121 = sshll.u32 [#allocation20], 4
      %s122 = int_to_ptr.vmem [resolvable:$true] %s121
      %124 = dma.hbm_to_vmem [thread:$0]  %s15, 64, %s122, [#allocation21]
    $region49: #{landlord_lstm_forward.1} parent=1 // pred_fallthru
      _
    // Predicated region
    $region50: #{landlord_lstm_forward.1} parent=1 // pred_check
      _
    $region51: #{landlord_lstm_forward.1} parent=1 // pred_check_branch
      %126 = sbr.rel (0) target = $region53
    $region52: #{landlord_lstm_forward.1} parent=1 // pred_region
      _
    $region53: #{landlord_lstm_forward.1} parent=1 // pred_fallthru
      _
    // Predicated region
    $region54: #{landlord_lstm_forward.1} parent=1 // pred_check
      _
    $region55: #{landlord_lstm_forward.1} parent=1 // pred_check_branch
      %128 = sbr.rel (0) target = $region57
    $region56: #{landlord_lstm_forward.1} parent=1 // pred_region
      %129 = dma.done [#allocation9], 5376
    $region57: #{landlord_lstm_forward.1} parent=1 // pred_fallthru
      _
    // Predicated region
    $region58: #{landlord_lstm_forward.1} parent=1 // pred_check
      _
    $region59: #{landlord_lstm_forward.1} parent=1 // pred_check_branch
      %131 = sbr.rel (0) target = $region61
    $region60: #{landlord_lstm_forward.1} parent=1 // pred_region
      %132 = dma.done [#allocation12], 4096
    $region61: #{landlord_lstm_forward.1} parent=1 // pred_fallthru
      _
    // Predicated region
    $region62: #{landlord_lstm_forward.1} parent=1 // pred_check
      _
    $region63: #{landlord_lstm_forward.1} parent=1 // pred_check_branch
      %134 = sbr.rel (0) target = $region65
    $region64: #{landlord_lstm_forward.1} parent=1 // pred_region
      %135 = dma.done [#allocation12], 12032
    $region65: #{landlord_lstm_forward.1} parent=1 // pred_fallthru
      _
    // Predicated region
    $region66: #{landlord_lstm_forward.1} parent=1 // pred_check
      _
    $region67: #{landlord_lstm_forward.1} parent=1 // pred_check_branch
      %137 = sbr.rel (0) target = $region69
    $region68: #{landlord_lstm_forward.1} parent=1 // pred_region
      %138 = dma.done [#allocation15], 64
    $region69: #{landlord_lstm_forward.1} parent=1 // pred_fallthru
      _
    // Predicated region
    $region70: #{landlord_lstm_forward.1} parent=1 // pred_check
      _
    $region71: #{landlord_lstm_forward.1} parent=1 // pred_check_branch
      %140 = sbr.rel (0) target = $region73
    $region72: #{landlord_lstm_forward.1} parent=1 // pred_region
      %141 = dma.done [#allocation15], 64
    $region73: #{landlord_lstm_forward.1} parent=1 // pred_fallthru
      _
    // Predicated region
    $region74: #{landlord_lstm_forward.1} parent=1 // pred_check
      _
    $region75: #{landlord_lstm_forward.1} parent=1 // pred_check_branch
      %143 = sbr.rel (0) target = $region77
    $region76: #{landlord_lstm_forward.1} parent=1 // pred_region
      %144 = dma.done [#allocation18], 64
    $region77: #{landlord_lstm_forward.1} parent=1 // pred_fallthru
      _
    // Predicated region
    $region78: #{landlord_lstm_forward.1} parent=1 // pred_check
      _
    $region79: #{landlord_lstm_forward.1} parent=1 // pred_check_branch
      %146 = sbr.rel (0) target = $region81
    $region80: #{landlord_lstm_forward.1} parent=1 // pred_region
      %147 = dma.done [#allocation18], 64
    $region81: #{landlord_lstm_forward.1} parent=1 // pred_fallthru
      _
    // Predicated region
    $region82: #{landlord_lstm_forward.1} parent=1 // pred_check
      _
    $region83: #{landlord_lstm_forward.1} parent=1 // pred_check_branch
      %149 = sbr.rel (0) target = $region85
    $region84: #{landlord_lstm_forward.1} parent=1 // pred_region
      %150 = dma.done [#allocation21], 64
    $region85: #{landlord_lstm_forward.1} parent=1 // pred_fallthru
      _
    // Predicated region
    $region86: #{landlord_lstm_forward.1} parent=1 // pred_check
      _
    $region87: #{landlord_lstm_forward.1} parent=1 // pred_check_branch
      %153 = sbr.rel target = $region89
    $region88: #{landlord_lstm_forward.1} parent=1 // pred_region
      %154 = sst [smem:[#allocation25]] [#allocation24]
      %155 = sst [smem:[#allocation26]] [#allocation23]
    $region89: #{landlord_lstm_forward.1} parent=1 // pred_fallthru
      _
    %157 = shalt.err (0)
    %s159 = sshll.u32 [#allocation2], 4
    %s160 = int_to_ptr.vmem [resolvable:$true] %s159
    %162 = dma.hbm_to_vmem [thread:$0]  %s8, 16384, %s160, [#allocation7]
    %s163 = scalar_lea.sflag [#allocation7], 1
    // Predicated region
    $region90: #{landlord_lstm_forward.1} parent=1 // pred_check
      _
    $region91: #{landlord_lstm_forward.1} parent=1 // pred_check_branch
      %165 = sbr.rel target = $region93
    $region92: #{landlord_lstm_forward.1} parent=1 // pred_region
      %166 = sst [smem:[#allocation25]] [#allocation28]
      %167 = sst [smem:[#allocation26]] [#allocation27]
    $region93: #{landlord_lstm_forward.1} parent=1 // pred_fallthru
      _
    %169 = shalt.err (0)
    %s171 = sshll.u32 [#allocation3], 4
    %s172 = int_to_ptr.vmem [resolvable:$true] %s171
    %174 = dma.hbm_to_vmem [thread:$0]  %s10, 16384, %s172, %s163
    %s175 = scalar_lea.sflag [#allocation7], 2
    // Predicated region
    $region94: #{landlord_lstm_forward.1} parent=1 // pred_check
      _
    $region95: #{landlord_lstm_forward.1} parent=1 // pred_check_branch
      %177 = sbr.rel target = $region97
    $region96: #{landlord_lstm_forward.1} parent=1 // pred_region
      %178 = sst [smem:[#allocation25]] [#allocation30]
      %179 = sst [smem:[#allocation26]] [#allocation29]
    $region97: #{landlord_lstm_forward.1} parent=1 // pred_fallthru
      _
    %181 = shalt.err (0)
    %s183 = sshll.u32 [#allocation4], 4
    %s184 = int_to_ptr.vmem [resolvable:$true] %s183
    %186 = dma.hbm_to_vmem [thread:$0]  %s12, 16384, %s184, %s175
    %s187 = scalar_lea.sflag [#allocation7], 3
    // Predicated region
    $region98: #{landlord_lstm_forward.1} parent=1 // pred_check
      _
    $region99: #{landlord_lstm_forward.1} parent=1 // pred_check_branch
      %189 = sbr.rel target = $region101
    $region100: #{landlord_lstm_forward.1} parent=1 // pred_region
      %190 = sst [smem:[#allocation25]] [#allocation32]
      %191 = sst [smem:[#allocation26]] [#allocation31]
    $region101: #{landlord_lstm_forward.1} parent=1 // pred_fallthru
      _
    %193 = shalt.err (0)
    %s195 = sshll.u32 [#allocation5], 4
    %s196 = int_to_ptr.vmem [resolvable:$true] %s195
    %198 = dma.hbm_to_vmem [thread:$0]  %s14, 16384, %s196, %s187
    %s199 = scalar_lea.sflag [#allocation7], 4
    // Predicated region
    $region102: #{landlord_lstm_forward.1} parent=1 // pred_check
      _
    $region103: #{landlord_lstm_forward.1} parent=1 // pred_check_branch
      %201 = sbr.rel target = $region105
    $region104: #{landlord_lstm_forward.1} parent=1 // pred_region
      %202 = sst [smem:[#allocation25]] [#allocation34]
      %203 = sst [smem:[#allocation26]] [#allocation33]
    $region105: #{landlord_lstm_forward.1} parent=1 // pred_fallthru
      _
    %205 = shalt.err (0)
    %s207 = sshll.u32 [#allocation6], 4
    %s208 = int_to_ptr.vmem [resolvable:$true] %s207
    %210 = dma.hbm_to_vmem [thread:$0]  %s16, 4096, %s208, %s199
    %v211 = vld [vmem:[%s0] sm:$0xff]
    %v212 = vld [vmem:[%s0 + $0x8] sm:$0xff]
    %v213 = vld [vmem:[%s0 + $0x10] sm:$0xff]
    %v214 = vld [vmem:[%s0 + $0x18] sm:$0xff]
    %v215 = vld [vmem:[%s0 + $0x20] sm:$0xff]
    %v216 = vld [vmem:[%s0 + $0x28] sm:$0xff]
    %v217 = vld [vmem:[%s0 + $0x30] sm:$0xff]
    %v218 = vld [vmem:[%s0 + $0x38] sm:$0xff]
    %v219 = vld [vmem:[%s0 + $0x40] sm:$0xff]
    %v220 = vld [vmem:[%s0 + $0x48] sm:$0xff]
    %v221 = vld [vmem:[%s0 + $0x50] sm:$0xff]
    %v222 = vld [vmem:[%s0 + $0x58] sm:$0xff]
    %v223 = vld [vmem:[%s0 + $0x60] sm:$0xff]
    %v224 = vld [vmem:[%s0 + $0x68] sm:$0xff]
    %v225 = vld [vmem:[%s0 + $0x70] sm:$0xff]
    %v226 = vld [vmem:[%s0 + $0x78] sm:$0xff]
    %v227 = vld [vmem:[#allocation8] sm:$0xff]
    %v228 = vld [vmem:[#allocation8 + $0x8] sm:$0xff]
    %v229 = vld [vmem:[#allocation8 + $0x10] sm:$0xff]
    %v230 = vld [vmem:[#allocation8 + $0x18] sm:$0xff]
    %v231 = vld [vmem:[#allocation8 + $0x20] sm:$0xff]
    %v232 = vld [vmem:[#allocation8 + $0x28] sm:$0xff]
    %v233 = vld [vmem:[#allocation8 + $0x30] sm:$0xff]
    %v234 = vld [vmem:[#allocation8 + $0x38] sm:$0xff]
    %v235 = vld [vmem:[#allocation8 + $0x40] sm:$0xff]
    %v236 = vld [vmem:[#allocation8 + $0x48] sm:$0xff]
    %v237 = vld [vmem:[#allocation8 + $0x50] sm:$0xff]
    %v238 = vld [vmem:[#allocation8 + $0x58] sm:$0xff]
    %v239 = vld [vmem:[#allocation8 + $0x60] sm:$0xff]
    %v240 = vld [vmem:[#allocation8 + $0x68] sm:$0xff]
    %v241 = vld [vmem:[#allocation8 + $0x70] sm:$0xff]
    %v242 = vld [vmem:[#allocation8 + $0x78] sm:$0xff]
    %v243 = vld [vmem:[#allocation8 + $0x80] sm:$0xff]
    %v244 = vld [vmem:[#allocation8 + $0x88] sm:$0xff]
    %v245 = vld [vmem:[#allocation8 + $0x90] sm:$0xff]
    %v246 = vld [vmem:[#allocation8 + $0x98] sm:$0xff]
    %v247 = vld [vmem:[#allocation8 + $0xa0] sm:$0xff]
    %v248 = vld [vmem:[#allocation8 + $0xa8] sm:$0xff]
    %v249 = vld [vmem:[#allocation8 + $0xb0] sm:$0xff]
    %v250 = vld [vmem:[#allocation8 + $0xb8] sm:$0xff]
    %v251 = vld [vmem:[#allocation8 + $0xc0] sm:$0xff]
    %v252 = vld [vmem:[#allocation8 + $0xc8] sm:$0xff]
    %v253 = vld [vmem:[#allocation8 + $0xd0] sm:$0xff]
    %v254 = vld [vmem:[#allocation8 + $0xd8] sm:$0xff]
    %v255 = vld [vmem:[#allocation8 + $0xe0] sm:$0xff]
    %v256 = vld [vmem:[#allocation8 + $0xe8] sm:$0xff]
    %v257 = vld [vmem:[#allocation8 + $0xf0] sm:$0xff]
    %v258 = vld [vmem:[#allocation8 + $0xf8] sm:$0xff]
    %v259 = vld [vmem:[#allocation8 + $0x100] sm:$0xff]
    %v260 = vld [vmem:[#allocation8 + $0x108] sm:$0xff]
    %v261 = vld [vmem:[#allocation8 + $0x110] sm:$0xff]
    %v262 = vld [vmem:[#allocation8 + $0x118] sm:$0xff]
    %v263 = vld [vmem:[#allocation8 + $0x120] sm:$0xff]
    %v264 = vld [vmem:[#allocation8 + $0x128] sm:$0xff]
    %v265 = vld [vmem:[#allocation8 + $0x130] sm:$0xff]
    %v266 = vld [vmem:[#allocation8 + $0x138] sm:$0xff]
    %v267 = vld [vmem:[#allocation8 + $0x140] sm:$0x11]
    %v268 = vld [vmem:[#allocation8 + $0x148] sm:$0x11]
    %v269 = vunpack.c.l.bf16 %v227
    %v270 = vunpack.c.h.bf16 %v227
    %v271 = vunpack.c.l.bf16 %v228
    %v272 = vunpack.c.h.bf16 %v228
    %v273 = vunpack.c.l.bf16 %v229
    %v274 = vunpack.c.h.bf16 %v229
    %v275 = vunpack.c.l.bf16 %v230
    %v276 = vunpack.c.h.bf16 %v230
    %v277 = vunpack.c.l.bf16 %v231
    %v278 = vunpack.c.h.bf16 %v231
    %v279 = vunpack.c.l.bf16 %v232
    %v280 = vunpack.c.h.bf16 %v232
    %v281 = vunpack.c.l.bf16 %v233
    %v282 = vunpack.c.h.bf16 %v233
    %v283 = vunpack.c.l.bf16 %v234
    %v284 = vunpack.c.h.bf16 %v234
    %v285 = vunpack.c.l.bf16 %v235
    %v286 = vunpack.c.h.bf16 %v235
    %v287 = vunpack.c.l.bf16 %v236
    %v288 = vunpack.c.h.bf16 %v236
    %v289 = vunpack.c.l.bf16 %v237
    %v290 = vunpack.c.h.bf16 %v237
    %v291 = vunpack.c.l.bf16 %v238
    %v292 = vunpack.c.h.bf16 %v238
    %v293 = vunpack.c.l.bf16 %v239
    %v294 = vunpack.c.h.bf16 %v239
    %v295 = vunpack.c.l.bf16 %v240
    %v296 = vunpack.c.h.bf16 %v240
    %v297 = vunpack.c.l.bf16 %v241
    %v298 = vunpack.c.h.bf16 %v241
    %v299 = vunpack.c.l.bf16 %v242
    %v300 = vunpack.c.h.bf16 %v242
    %v301 = vunpack.c.l.bf16 %v243
    %v302 = vunpack.c.h.bf16 %v243
    %v303 = vunpack.c.l.bf16 %v244
    %v304 = vunpack.c.h.bf16 %v244
    %v305 = vunpack.c.l.bf16 %v245
    %v306 = vunpack.c.h.bf16 %v245
    %v307 = vunpack.c.l.bf16 %v246
    %v308 = vunpack.c.h.bf16 %v246
    %v309 = vunpack.c.l.bf16 %v247
    %v310 = vunpack.c.h.bf16 %v247
    %v311 = vunpack.c.l.bf16 %v248
    %v312 = vunpack.c.h.bf16 %v248
    %v313 = vunpack.c.l.bf16 %v249
    %v314 = vunpack.c.h.bf16 %v249
    %v315 = vunpack.c.l.bf16 %v250
    %v316 = vunpack.c.h.bf16 %v250
    %v317 = vunpack.c.l.bf16 %v251
    %v318 = vunpack.c.h.bf16 %v251
    %v319 = vunpack.c.l.bf16 %v252
    %v320 = vunpack.c.h.bf16 %v252
    %v321 = vunpack.c.l.bf16 %v253
    %v322 = vunpack.c.h.bf16 %v253
    %v323 = vunpack.c.l.bf16 %v254
    %v324 = vunpack.c.h.bf16 %v254
    %v325 = vunpack.c.l.bf16 %v255
    %v326 = vunpack.c.h.bf16 %v255
    %v327 = vunpack.c.l.bf16 %v256
    %v328 = vunpack.c.h.bf16 %v256
    %v329 = vunpack.c.l.bf16 %v257
    %v330 = vunpack.c.h.bf16 %v257
    %v331 = vunpack.c.l.bf16 %v258
    %v332 = vunpack.c.h.bf16 %v258
    %v333 = vunpack.c.l.bf16 %v259
    %v334 = vunpack.c.h.bf16 %v259
    %v335 = vunpack.c.l.bf16 %v260
    %v336 = vunpack.c.h.bf16 %v260
    %v337 = vunpack.c.l.bf16 %v261
    %v338 = vunpack.c.h.bf16 %v261
    %v339 = vunpack.c.l.bf16 %v262
    %v340 = vunpack.c.h.bf16 %v262
    %v341 = vunpack.c.l.bf16 %v263
    %v342 = vunpack.c.h.bf16 %v263
    %v343 = vunpack.c.l.bf16 %v264
    %v344 = vunpack.c.h.bf16 %v264
    %v345 = vunpack.c.l.bf16 %v265
    %v346 = vunpack.c.h.bf16 %v265
    %v347 = vunpack.c.l.bf16 %v266
    %v348 = vunpack.c.h.bf16 %v266
    %v349 = vunpack.c.l.bf16 %v267
    %v350 = vunpack.c.h.bf16 %v267
    %v351 = vunpack.c.l.bf16 %v268
    %v352 = vunpack.c.h.bf16 %v268
    %v353 = vld [vmem:[%s4] sm:$0xf]
    %v355 = vlaneseq
    %v356 = vshrl.u32 %v355, 7
    %v357 = vsub.s32 0, %v356
    %v358 = vrot.slane %v353, %v357
    %v359 = vlaneseq
    %v360 = vshrl.u32 %v359, 7
    %v361 = vsub.s32 1, %v360
    %v362 = vrot.slane %v353, %v361
    %v363 = vlaneseq
    %v364 = vshrl.u32 %v363, 7
    %v365 = vsub.s32 2, %v364
    %v366 = vrot.slane %v353, %v365
    %v367 = vlaneseq
    %v368 = vshrl.u32 %v367, 7
    %v369 = vsub.s32 3, %v368
    %v370 = vrot.slane %v353, %v369
    %vm375 = vcmask 277504
    %v377 = vsel %vm375, %v212, 0
    %v380 = vsel %vm375, %v214, 0
    %v383 = vsel %vm375, %v216, 0
    %v386 = vsel %vm375, %v218, 0
    %v389 = vsel %vm375, %v220, 0
    %v392 = vsel %vm375, %v222, 0
    %v395 = vsel %vm375, %v224, 0
    %v398 = vsel %vm375, %v226, 0
    %vm400 = vcmask 1041408
    %v402 = vsel %vm400, %v349, 0
    %v405 = vsel %vm400, %v350, 0
    %v408 = vsel %vm400, %v351, 0
    %v411 = vsel %vm400, %v352, 0
    %413 = vmatprep.subr.mxu0 %v330
    %414 = vmatpush1.msra.mxu0 %v329
    %415 = vmatprep.subr.mxu0 %v326
    %416 = vmatpush1.msra.mxu0 %v325
    %417 = vmatprep.subr.mxu0 %v322
    %418 = vmatpush1.msra.mxu0 %v321
    %419 = vmatprep.subr.mxu0 %v318
    %420 = vmatpush1.msra.mxu0 %v317
    %421 = vmatprep.subr.mxu0 %v314
    %422 = vmatpush1.msra.mxu0 %v313
    %423 = vmatprep.subr.mxu0 %v310
    %424 = vmatpush1.msra.mxu0 %v309
    %425 = vmatprep.subr.mxu0 %v306
    %426 = vmatpush1.msra.mxu0 %v305
    %427 = vmatprep.subr.mxu0 %v302
    %428 = vmatpush1.msra.mxu0 %v301
    %429 = vmatprep.subr.mxu0 %v298
    %430 = vmatpush1.msra.mxu0 %v297
    %431 = vmatprep.subr.mxu0 %v294
    %432 = vmatpush1.msra.mxu0 %v293
    %433 = vmatprep.subr.mxu0 %v290
    %434 = vmatpush1.msra.mxu0 %v289
    %435 = vmatprep.subr.mxu0 %v286
    %436 = vmatpush1.msra.mxu0 %v285
    %437 = vmatprep.subr.mxu0 %v282
    %438 = vmatpush1.msra.mxu0 %v281
    %439 = vmatprep.subr.mxu0 %v278
    %440 = vmatpush1.msra.mxu0 %v277
    %441 = vmatprep.subr.mxu0 %v274
    %442 = vmatpush1.msra.mxu0 %v273
    %443 = vmatprep.subr.mxu0 %v270
    %444 = vmatpush1.msra.mxu0 %v269
    %445 = vmatprep.subr.mxu0 0.0
    %446 = vmatpush2.msra.mxu0 0.0
    %447 = vmatprep.subr.mxu0 0.0
    %448 = vmatpush2.msra.mxu0 0.0
    %449 = vmatprep.subr.mxu0 0.0
    %450 = vmatpush2.msra.mxu0 0.0
    %451 = vmatprep.subr.mxu0 0.0
    %452 = vmatpush2.msra.mxu0 0.0
    %453 = vmatprep.subr.mxu0 0.0
    %454 = vmatpush2.msra.mxu0 0.0
    %455 = vmatprep.subr.mxu0 0.0
    %456 = vmatpush2.msra.mxu0 0.0
    %457 = vmatprep.subr.mxu0 0.0
    %458 = vmatpush2.msra.mxu0 0.0
    %459 = vmatprep.subr.mxu0 0.0
    %460 = vmatpush2.msra.mxu0 0.0
    %461 = vmatprep.subr.mxu0 0.0
    %462 = vmatpush2.msra.mxu0 0.0
    %463 = vmatprep.subr.mxu0 0.0
    %464 = vmatpush2.msra.mxu0 0.0
    %465 = vmatprep.subr.mxu0 0.0
    %466 = vmatpush2.msra.mxu0 0.0
    %467 = vmatprep.subr.mxu0 %v405
    %468 = vmatpush2.msra.mxu0 %v402
    %469 = vmatprep.subr.mxu0 %v346
    %470 = vmatpush2.msra.mxu0 %v345
    %471 = vmatprep.subr.mxu0 %v342
    %472 = vmatpush2.msra.mxu0 %v341
    %473 = vmatprep.subr.mxu0 %v338
    %474 = vmatpush2.msra.mxu0 %v337
    %475 = vmatprep.subr.mxu0 %v334
    %476 = vmatpush2.msra.mxu0 %v333
    %477 = vmatprep.mubr.f32.mxu0 %v377
    %478 = vmatmul.mubr.f32.gmra.mxu0 %v211
    %v479 = vpop.f32.mrf.mxu0
    %v480 = vadd.f32 %v358, %v479
    %v481 = vpop.f32.mrf.mxu0
    %v482 = vadd.f32 %v362, %v481
    %483 = vmatprep.mubr.f32.mxu0 %v380
    %484 = vmatmul.mubr.f32.gmra.mxu0 %v213
    %v485 = vpop.f32.mrf.mxu0
    %v486 = vadd.f32 %v358, %v485
    %v487 = vpop.f32.mrf.mxu0
    %v488 = vadd.f32 %v362, %v487
    %489 = vmatprep.mubr.f32.mxu0 %v383
    %490 = vmatmul.mubr.f32.gmra.mxu0 %v215
    %v491 = vpop.f32.mrf.mxu0
    %v492 = vadd.f32 %v358, %v491
    %v493 = vpop.f32.mrf.mxu0
    %v494 = vadd.f32 %v362, %v493
    %495 = vmatprep.mubr.f32.mxu0 %v386
    %496 = vmatmul.mubr.f32.gmra.mxu0 %v217
    %v497 = vpop.f32.mrf.mxu0
    %v498 = vadd.f32 %v358, %v497
    %v499 = vpop.f32.mrf.mxu0
    %v500 = vadd.f32 %v362, %v499
    %501 = vmatprep.mubr.f32.mxu0 %v389
    %502 = vmatmul.mubr.f32.gmra.mxu0 %v219
    %v503 = vpop.f32.mrf.mxu0
    %v504 = vadd.f32 %v358, %v503
    %v505 = vpop.f32.mrf.mxu0
    %v506 = vadd.f32 %v362, %v505
    %507 = vmatprep.mubr.f32.mxu0 %v392
    %508 = vmatmul.mubr.f32.gmra.mxu0 %v221
    %v509 = vpop.f32.mrf.mxu0
    %v510 = vadd.f32 %v358, %v509
    %v511 = vpop.f32.mrf.mxu0
    %v512 = vadd.f32 %v362, %v511
    %513 = vmatprep.mubr.f32.mxu0 %v395
    %514 = vmatmul.mubr.f32.gmra.mxu0 %v223
    %v515 = vpop.f32.mrf.mxu0
    %v516 = vadd.f32 %v358, %v515
    %v517 = vpop.f32.mrf.mxu0
    %v518 = vadd.f32 %v362, %v517
    %519 = vmatprep.mubr.f32.mxu0 %v398
    %520 = vmatmul.mubr.f32.gmra.mxu0 %v225
    %v521 = vpop.f32.mrf.mxu0
    %v522 = vadd.f32 %v358, %v521
    %v523 = vpop.f32.mrf.mxu0
    %v524 = vadd.f32 %v362, %v523
    %525 = vdwg.mxu0
    %526 = vmatprep.subr.mxu0 %v332
    %527 = vmatpush1.msra.mxu0 %v331
    %528 = vmatprep.subr.mxu0 %v328
    %529 = vmatpush1.msra.mxu0 %v327
    %530 = vmatprep.subr.mxu0 %v324
    %531 = vmatpush1.msra.mxu0 %v323
    %532 = vmatprep.subr.mxu0 %v320
    %533 = vmatpush1.msra.mxu0 %v319
    %534 = vmatprep.subr.mxu0 %v316
    %535 = vmatpush1.msra.mxu0 %v315
    %536 = vmatprep.subr.mxu0 %v312
    %537 = vmatpush1.msra.mxu0 %v311
    %538 = vmatprep.subr.mxu0 %v308
    %539 = vmatpush1.msra.mxu0 %v307
    %540 = vmatprep.subr.mxu0 %v304
    %541 = vmatpush1.msra.mxu0 %v303
    %542 = vmatprep.subr.mxu0 %v300
    %543 = vmatpush1.msra.mxu0 %v299
    %544 = vmatprep.subr.mxu0 %v296
    %545 = vmatpush1.msra.mxu0 %v295
    %546 = vmatprep.subr.mxu0 %v292
    %547 = vmatpush1.msra.mxu0 %v291
    %548 = vmatprep.subr.mxu0 %v288
    %549 = vmatpush1.msra.mxu0 %v287
    %550 = vmatprep.subr.mxu0 %v284
    %551 = vmatpush1.msra.mxu0 %v283
    %552 = vmatprep.subr.mxu0 %v280
    %553 = vmatpush1.msra.mxu0 %v279
    %554 = vmatprep.subr.mxu0 %v276
    %555 = vmatpush1.msra.mxu0 %v275
    %556 = vmatprep.subr.mxu0 %v272
    %557 = vmatpush1.msra.mxu0 %v271
    %558 = vmatprep.subr.mxu0 0.0
    %559 = vmatpush2.msra.mxu0 0.0
    %560 = vmatprep.subr.mxu0 0.0
    %561 = vmatpush2.msra.mxu0 0.0
    %562 = vmatprep.subr.mxu0 0.0
    %563 = vmatpush2.msra.mxu0 0.0
    %564 = vmatprep.subr.mxu0 0.0
    %565 = vmatpush2.msra.mxu0 0.0
    %566 = vmatprep.subr.mxu0 0.0
    %567 = vmatpush2.msra.mxu0 0.0
    %568 = vmatprep.subr.mxu0 0.0
    %569 = vmatpush2.msra.mxu0 0.0
    %570 = vmatprep.subr.mxu0 0.0
    %571 = vmatpush2.msra.mxu0 0.0
    %572 = vmatprep.subr.mxu0 0.0
    %573 = vmatpush2.msra.mxu0 0.0
    %574 = vmatprep.subr.mxu0 0.0
    %575 = vmatpush2.msra.mxu0 0.0
    %576 = vmatprep.subr.mxu0 0.0
    %577 = vmatpush2.msra.mxu0 0.0
    %578 = vmatprep.subr.mxu0 0.0
    %579 = vmatpush2.msra.mxu0 0.0
    %580 = vmatprep.subr.mxu0 %v411
    %581 = vmatpush2.msra.mxu0 %v408
    %582 = vmatprep.subr.mxu0 %v348
    %583 = vmatpush2.msra.mxu0 %v347
    %584 = vmatprep.subr.mxu0 %v344
    %585 = vmatpush2.msra.mxu0 %v343
    %586 = vmatprep.subr.mxu0 %v340
    %587 = vmatpush2.msra.mxu0 %v339
    %588 = vmatprep.subr.mxu0 %v336
    %589 = vmatpush2.msra.mxu0 %v335
    %590 = vmatprep.mubr.f32.mxu0 %v377
    %591 = vmatmul.mubr.f32.gmra.mxu0 %v211
    %v592 = vpop.f32.mrf.mxu0
    %v593 = vadd.f32 %v366, %v592
    %v594 = vpop.f32.mrf.mxu0
    %v595 = vadd.f32 %v370, %v594
    %596 = vmatprep.mubr.f32.mxu0 %v380
    %597 = vmatmul.mubr.f32.gmra.mxu0 %v213
    %v598 = vpop.f32.mrf.mxu0
    %v599 = vadd.f32 %v366, %v598
    %v600 = vpop.f32.mrf.mxu0
    %v601 = vadd.f32 %v370, %v600
    %602 = vmatprep.mubr.f32.mxu0 %v383
    %603 = vmatmul.mubr.f32.gmra.mxu0 %v215
    %v604 = vpop.f32.mrf.mxu0
    %v605 = vadd.f32 %v366, %v604
    %v606 = vpop.f32.mrf.mxu0
    %v607 = vadd.f32 %v370, %v606
    %608 = vmatprep.mubr.f32.mxu0 %v386
    %609 = vmatmul.mubr.f32.gmra.mxu0 %v217
    %v610 = vpop.f32.mrf.mxu0
    %v611 = vadd.f32 %v366, %v610
    %v612 = vpop.f32.mrf.mxu0
    %v613 = vadd.f32 %v370, %v612
    %614 = vmatprep.mubr.f32.mxu0 %v389
    %615 = vmatmul.mubr.f32.gmra.mxu0 %v219
    %v616 = vpop.f32.mrf.mxu0
    %v617 = vadd.f32 %v366, %v616
    %v618 = vpop.f32.mrf.mxu0
    %v619 = vadd.f32 %v370, %v618
    %620 = vmatprep.mubr.f32.mxu0 %v392
    %621 = vmatmul.mubr.f32.gmra.mxu0 %v221
    %v622 = vpop.f32.mrf.mxu0
    %v623 = vadd.f32 %v366, %v622
    %v624 = vpop.f32.mrf.mxu0
    %v625 = vadd.f32 %v370, %v624
    %626 = vmatprep.mubr.f32.mxu0 %v395
    %627 = vmatmul.mubr.f32.gmra.mxu0 %v223
    %v628 = vpop.f32.mrf.mxu0
    %v629 = vadd.f32 %v366, %v628
    %v630 = vpop.f32.mrf.mxu0
    %v631 = vadd.f32 %v370, %v630
    %632 = vmatprep.mubr.f32.mxu0 %v398
    %633 = vmatmul.mubr.f32.gmra.mxu0 %v225
    %v634 = vpop.f32.mrf.mxu0
    %v635 = vadd.f32 %v366, %v634
    %v636 = vpop.f32.mrf.mxu0
    %v637 = vadd.f32 %v370, %v636
    %638 = vdwg.mxu0
    %v639 = vld [vmem:[%s3] sm:$0xff]
    %v640 = vld [vmem:[%s3 + $0x8] sm:$0xff]
    %v641 = vld [vmem:[%s3 + $0x10] sm:$0xff]
    %v642 = vld [vmem:[%s3 + $0x18] sm:$0xff]
    %v643 = vld [vmem:[%s3 + $0x20] sm:$0xff]
    %v644 = vld [vmem:[%s3 + $0x28] sm:$0xff]
    %v645 = vld [vmem:[%s3 + $0x30] sm:$0xff]
    %v646 = vld [vmem:[%s3 + $0x38] sm:$0xff]
    %v647 = vld [vmem:[%s3 + $0x40] sm:$0xff]
    %v648 = vld [vmem:[%s3 + $0x48] sm:$0xff]
    %v649 = vld [vmem:[%s3 + $0x50] sm:$0xff]
    %v650 = vld [vmem:[%s3 + $0x58] sm:$0xff]
    %v651 = vld [vmem:[%s3 + $0x60] sm:$0xff]
    %v652 = vld [vmem:[%s3 + $0x68] sm:$0xff]
    %v653 = vld [vmem:[%s3 + $0x70] sm:$0xff]
    %v654 = vld [vmem:[%s3 + $0x78] sm:$0xff]
    %v655 = vld [vmem:[%s3 + $0x80] sm:$0xff]
    %v656 = vld [vmem:[%s3 + $0x88] sm:$0xff]
    %v657 = vld [vmem:[%s3 + $0x90] sm:$0xff]
    %v658 = vld [vmem:[%s3 + $0x98] sm:$0xff]
    %v659 = vld [vmem:[%s3 + $0xa0] sm:$0xff]
    %v660 = vld [vmem:[%s3 + $0xa8] sm:$0xff]
    %v661 = vld [vmem:[%s3 + $0xb0] sm:$0xff]
    %v662 = vld [vmem:[%s3 + $0xb8] sm:$0xff]
    %v663 = vld [vmem:[%s3 + $0xc0] sm:$0xff]
    %v664 = vld [vmem:[%s3 + $0xc8] sm:$0xff]
    %v665 = vld [vmem:[%s3 + $0xd0] sm:$0xff]
    %v666 = vld [vmem:[%s3 + $0xd8] sm:$0xff]
    %v667 = vld [vmem:[%s3 + $0xe0] sm:$0xff]
    %v668 = vld [vmem:[%s3 + $0xe8] sm:$0xff]
    %v669 = vld [vmem:[%s3 + $0xf0] sm:$0xff]
    %v670 = vld [vmem:[%s3 + $0xf8] sm:$0xff]
    %v671 = vunpack.c.l.bf16 %v639
    %v672 = vunpack.c.h.bf16 %v639
    %v673 = vunpack.c.l.bf16 %v640
    %v674 = vunpack.c.h.bf16 %v640
    %v675 = vunpack.c.l.bf16 %v641
    %v676 = vunpack.c.h.bf16 %v641
    %v677 = vunpack.c.l.bf16 %v642
    %v678 = vunpack.c.h.bf16 %v642
    %v679 = vunpack.c.l.bf16 %v643
    %v680 = vunpack.c.h.bf16 %v643
    %v681 = vunpack.c.l.bf16 %v644
    %v682 = vunpack.c.h.bf16 %v644
    %v683 = vunpack.c.l.bf16 %v645
    %v684 = vunpack.c.h.bf16 %v645
    %v685 = vunpack.c.l.bf16 %v646
    %v686 = vunpack.c.h.bf16 %v646
    %v687 = vunpack.c.l.bf16 %v647
    %v688 = vunpack.c.h.bf16 %v647
    %v689 = vunpack.c.l.bf16 %v648
    %v690 = vunpack.c.h.bf16 %v648
    %v691 = vunpack.c.l.bf16 %v649
    %v692 = vunpack.c.h.bf16 %v649
    %v693 = vunpack.c.l.bf16 %v650
    %v694 = vunpack.c.h.bf16 %v650
    %v695 = vunpack.c.l.bf16 %v651
    %v696 = vunpack.c.h.bf16 %v651
    %v697 = vunpack.c.l.bf16 %v652
    %v698 = vunpack.c.h.bf16 %v652
    %v699 = vunpack.c.l.bf16 %v653
    %v700 = vunpack.c.h.bf16 %v653
    %v701 = vunpack.c.l.bf16 %v654
    %v702 = vunpack.c.h.bf16 %v654
    %v703 = vunpack.c.l.bf16 %v655
    %v704 = vunpack.c.h.bf16 %v655
    %v705 = vunpack.c.l.bf16 %v656
    %v706 = vunpack.c.h.bf16 %v656
    %v707 = vunpack.c.l.bf16 %v657
    %v708 = vunpack.c.h.bf16 %v657
    %v709 = vunpack.c.l.bf16 %v658
    %v710 = vunpack.c.h.bf16 %v658
    %v711 = vunpack.c.l.bf16 %v659
    %v712 = vunpack.c.h.bf16 %v659
    %v713 = vunpack.c.l.bf16 %v660
    %v714 = vunpack.c.h.bf16 %v660
    %v715 = vunpack.c.l.bf16 %v661
    %v716 = vunpack.c.h.bf16 %v661
    %v717 = vunpack.c.l.bf16 %v662
    %v718 = vunpack.c.h.bf16 %v662
    %v719 = vunpack.c.l.bf16 %v663
    %v720 = vunpack.c.h.bf16 %v663
    %v721 = vunpack.c.l.bf16 %v664
    %v722 = vunpack.c.h.bf16 %v664
    %v723 = vunpack.c.l.bf16 %v665
    %v724 = vunpack.c.h.bf16 %v665
    %v725 = vunpack.c.l.bf16 %v666
    %v726 = vunpack.c.h.bf16 %v666
    %v727 = vunpack.c.l.bf16 %v667
    %v728 = vunpack.c.h.bf16 %v667
    %v729 = vunpack.c.l.bf16 %v668
    %v730 = vunpack.c.h.bf16 %v668
    %v731 = vunpack.c.l.bf16 %v669
    %v732 = vunpack.c.h.bf16 %v669
    %v733 = vunpack.c.l.bf16 %v670
    %v734 = vunpack.c.h.bf16 %v670
    %735 = vmatprep.subr.mxu0 %v732
    %736 = vmatpush1.msra.mxu0 %v731
    %737 = vmatprep.subr.mxu0 %v728
    %738 = vmatpush1.msra.mxu0 %v727
    %739 = vmatprep.subr.mxu0 %v724
    %740 = vmatpush1.msra.mxu0 %v723
    %741 = vmatprep.subr.mxu0 %v720
    %742 = vmatpush1.msra.mxu0 %v719
    %743 = vmatprep.subr.mxu0 %v716
    %744 = vmatpush1.msra.mxu0 %v715
    %745 = vmatprep.subr.mxu0 %v712
    %746 = vmatpush1.msra.mxu0 %v711
    %747 = vmatprep.subr.mxu0 %v708
    %748 = vmatpush1.msra.mxu0 %v707
    %749 = vmatprep.subr.mxu0 %v704
    %750 = vmatpush1.msra.mxu0 %v703
    %751 = vmatprep.subr.mxu0 %v700
    %752 = vmatpush1.msra.mxu0 %v699
    %753 = vmatprep.subr.mxu0 %v696
    %754 = vmatpush1.msra.mxu0 %v695
    %755 = vmatprep.subr.mxu0 %v692
    %756 = vmatpush1.msra.mxu0 %v691
    %757 = vmatprep.subr.mxu0 %v688
    %758 = vmatpush1.msra.mxu0 %v687
    %759 = vmatprep.subr.mxu0 %v684
    %760 = vmatpush1.msra.mxu0 %v683
    %761 = vmatprep.subr.mxu0 %v680
    %762 = vmatpush1.msra.mxu0 %v679
    %763 = vmatprep.subr.mxu0 %v676
    %764 = vmatpush1.msra.mxu0 %v675
    %765 = vmatprep.subr.mxu0 %v672
    %766 = vmatpush1.msra.mxu0 %v671
    %767 = vmatprep.subr.mxu0 0.0
    %768 = vmatpush2.msra.mxu0 0.0
    %769 = vmatprep.subr.mxu0 0.0
    %770 = vmatpush2.msra.mxu0 0.0
    %771 = vmatprep.subr.mxu0 0.0
    %772 = vmatpush2.msra.mxu0 0.0
    %773 = vmatprep.subr.mxu0 0.0
    %774 = vmatpush2.msra.mxu0 0.0
    %775 = vmatprep.subr.mxu0 0.0
    %776 = vmatpush2.msra.mxu0 0.0
    %777 = vmatprep.subr.mxu0 0.0
    %778 = vmatpush2.msra.mxu0 0.0
    %779 = vmatprep.subr.mxu0 0.0
    %780 = vmatpush2.msra.mxu0 0.0
    %781 = vmatprep.subr.mxu0 0.0
    %782 = vmatpush2.msra.mxu0 0.0
    %783 = vmatprep.subr.mxu0 0.0
    %784 = vmatpush2.msra.mxu0 0.0
    %785 = vmatprep.subr.mxu0 0.0
    %786 = vmatpush2.msra.mxu0 0.0
    %787 = vmatprep.subr.mxu0 0.0
    %788 = vmatpush2.msra.mxu0 0.0
    %789 = vmatprep.subr.mxu0 0.0
    %790 = vmatpush2.msra.mxu0 0.0
    %791 = vmatprep.subr.mxu0 0.0
    %792 = vmatpush2.msra.mxu0 0.0
    %793 = vmatprep.subr.mxu0 0.0
    %794 = vmatpush2.msra.mxu0 0.0
    %795 = vmatprep.subr.mxu0 0.0
    %796 = vmatpush2.msra.mxu0 0.0
    %797 = vmatprep.subr.mxu0 0.0
    %798 = vmatpush2.msra.mxu0 0.0
    %799 = vmatprep.mubr.f32.mxu0 0.0
    %800 = vmatmul.mubr.f32.gmra.mxu0 0.0
    %v801 = vpop.f32.mrf.mxu0
    %v802 = vadd.f32 0.0, %v801
    %v803 = vpop.f32.mrf.mxu0
    %v804 = vadd.f32 0.0, %v803
    %805 = vdwg.mxu0
    %806 = vmatprep.subr.mxu0 %v734
    %807 = vmatpush1.msra.mxu0 %v733
    %808 = vmatprep.subr.mxu0 %v730
    %809 = vmatpush1.msra.mxu0 %v729
    %810 = vmatprep.subr.mxu0 %v726
    %811 = vmatpush1.msra.mxu0 %v725
    %812 = vmatprep.subr.mxu0 %v722
    %813 = vmatpush1.msra.mxu0 %v721
    %814 = vmatprep.subr.mxu0 %v718
    %815 = vmatpush1.msra.mxu0 %v717
    %816 = vmatprep.subr.mxu0 %v714
    %817 = vmatpush1.msra.mxu0 %v713
    %818 = vmatprep.subr.mxu0 %v710
    %819 = vmatpush1.msra.mxu0 %v709
    %820 = vmatprep.subr.mxu0 %v706
    %821 = vmatpush1.msra.mxu0 %v705
    %822 = vmatprep.subr.mxu0 %v702
    %823 = vmatpush1.msra.mxu0 %v701
    %824 = vmatprep.subr.mxu0 %v698
    %825 = vmatpush1.msra.mxu0 %v697
    %826 = vmatprep.subr.mxu0 %v694
    %827 = vmatpush1.msra.mxu0 %v693
    %828 = vmatprep.subr.mxu0 %v690
    %829 = vmatpush1.msra.mxu0 %v689
    %830 = vmatprep.subr.mxu0 %v686
    %831 = vmatpush1.msra.mxu0 %v685
    %832 = vmatprep.subr.mxu0 %v682
    %833 = vmatpush1.msra.mxu0 %v681
    %834 = vmatprep.subr.mxu0 %v678
    %835 = vmatpush1.msra.mxu0 %v677
    %836 = vmatprep.subr.mxu0 %v674
    %837 = vmatpush1.msra.mxu0 %v673
    %838 = vmatprep.subr.mxu0 0.0
    %839 = vmatpush2.msra.mxu0 0.0
    %840 = vmatprep.subr.mxu0 0.0
    %841 = vmatpush2.msra.mxu0 0.0
    %842 = vmatprep.subr.mxu0 0.0
    %843 = vmatpush2.msra.mxu0 0.0
    %844 = vmatprep.subr.mxu0 0.0
    %845 = vmatpush2.msra.mxu0 0.0
    %846 = vmatprep.subr.mxu0 0.0
    %847 = vmatpush2.msra.mxu0 0.0
    %848 = vmatprep.subr.mxu0 0.0
    %849 = vmatpush2.msra.mxu0 0.0
    %850 = vmatprep.subr.mxu0 0.0
    %851 = vmatpush2.msra.mxu0 0.0
    %852 = vmatprep.subr.mxu0 0.0
    %853 = vmatpush2.msra.mxu0 0.0
    %854 = vmatprep.subr.mxu0 0.0
    %855 = vmatpush2.msra.mxu0 0.0
    %856 = vmatprep.subr.mxu0 0.0
    %857 = vmatpush2.msra.mxu0 0.0
    %858 = vmatprep.subr.mxu0 0.0
    %859 = vmatpush2.msra.mxu0 0.0
    %860 = vmatprep.subr.mxu0 0.0
    %861 = vmatpush2.msra.mxu0 0.0
    %862 = vmatprep.subr.mxu0 0.0
    %863 = vmatpush2.msra.mxu0 0.0
    %864 = vmatprep.subr.mxu0 0.0
    %865 = vmatpush2.msra.mxu0 0.0
    %866 = vmatprep.subr.mxu0 0.0
    %867 = vmatpush2.msra.mxu0 0.0
    %868 = vmatprep.subr.mxu0 0.0
    %869 = vmatpush2.msra.mxu0 0.0
    %870 = vmatprep.mubr.f32.mxu0 0.0
    %871 = vmatmul.mubr.f32.gmra.mxu0 0.0
    %v872 = vpop.f32.mrf.mxu0
    %v873 = vadd.f32 0.0, %v872
    %v874 = vpop.f32.mrf.mxu0
    %v875 = vadd.f32 0.0, %v874
    %876 = vdwg.mxu0
    %v877 = vadd.f32 %v480, %v802
    %v878 = vadd.f32 %v482, %v804
    %v879 = vadd.f32 %v593, %v873
    %v880 = vadd.f32 %v595, %v875
    %v881 = vxor.u32 %v877, 2147483648
    %v882 = vmul.f32 %v881, 1.442695
    %v883 = vpow.pop %v882
    %v884 = vadd.f32 %v883, 1.0
    %v885 = vrcp.pop %v884
    %v886 = vmul.f32 1.0, %v885
    %v887 = vxor.u32 %v878, 2147483648
    %v888 = vmul.f32 %v887, 1.442695
    %v889 = vpow.pop %v888
    %v890 = vadd.f32 %v889, 1.0
    %v891 = vrcp.pop %v890
    %v892 = vmul.f32 1.0, %v891
    %v893 = vtanh.pop %v879
    %v894 = vxor.u32 %v880, 2147483648
    %v895 = vmul.f32 %v894, 1.442695
    %v896 = vpow.pop %v895
    %v897 = vadd.f32 %v896, 1.0
    %v898 = vrcp.pop %v897
    %v899 = vmul.f32 1.0, %v898
    %v900 = vmul.f32 %v892, 0.0
    %v901 = vmul.f32 %v886, %v893
    %v902 = vadd.f32 %v900, %v901
    %v903 = vtanh.pop %v902
    %v904 = vmul.f32 %v899, %v903
    %905 = vmatprep.subr.mxu0 %v732
    %906 = vmatpush1.msra.mxu0 %v731
    %907 = vmatprep.subr.mxu0 %v728
    %908 = vmatpush1.msra.mxu0 %v727
    %909 = vmatprep.subr.mxu0 %v724
    %910 = vmatpush1.msra.mxu0 %v723
    %911 = vmatprep.subr.mxu0 %v720
    %912 = vmatpush1.msra.mxu0 %v719
    %913 = vmatprep.subr.mxu0 %v716
    %914 = vmatpush1.msra.mxu0 %v715
    %915 = vmatprep.subr.mxu0 %v712
    %916 = vmatpush1.msra.mxu0 %v711
    %917 = vmatprep.subr.mxu0 %v708
    %918 = vmatpush1.msra.mxu0 %v707
    %919 = vmatprep.subr.mxu0 %v704
    %920 = vmatpush1.msra.mxu0 %v703
    %921 = vmatprep.subr.mxu0 %v700
    %922 = vmatpush1.msra.mxu0 %v699
    %923 = vmatprep.subr.mxu0 %v696
    %924 = vmatpush1.msra.mxu0 %v695
    %925 = vmatprep.subr.mxu0 %v692
    %926 = vmatpush1.msra.mxu0 %v691
    %927 = vmatprep.subr.mxu0 %v688
    %928 = vmatpush1.msra.mxu0 %v687
    %929 = vmatprep.subr.mxu0 %v684
    %930 = vmatpush1.msra.mxu0 %v683
    %931 = vmatprep.subr.mxu0 %v680
    %932 = vmatpush1.msra.mxu0 %v679
    %933 = vmatprep.subr.mxu0 %v676
    %934 = vmatpush1.msra.mxu0 %v675
    %935 = vmatprep.subr.mxu0 %v672
    %936 = vmatpush1.msra.mxu0 %v671
    %937 = vmatprep.subr.mxu0 0.0
    %938 = vmatpush2.msra.mxu0 0.0
    %939 = vmatprep.subr.mxu0 0.0
    %940 = vmatpush2.msra.mxu0 0.0
    %941 = vmatprep.subr.mxu0 0.0
    %942 = vmatpush2.msra.mxu0 0.0
    %943 = vmatprep.subr.mxu0 0.0
    %944 = vmatpush2.msra.mxu0 0.0
    %945 = vmatprep.subr.mxu0 0.0
    %946 = vmatpush2.msra.mxu0 0.0
    %947 = vmatprep.subr.mxu0 0.0
    %948 = vmatpush2.msra.mxu0 0.0
    %949 = vmatprep.subr.mxu0 0.0
    %950 = vmatpush2.msra.mxu0 0.0
    %951 = vmatprep.subr.mxu0 0.0
    %952 = vmatpush2.msra.mxu0 0.0
    %953 = vmatprep.subr.mxu0 0.0
    %954 = vmatpush2.msra.mxu0 0.0
    %955 = vmatprep.subr.mxu0 0.0
    %956 = vmatpush2.msra.mxu0 0.0
    %957 = vmatprep.subr.mxu0 0.0
    %958 = vmatpush2.msra.mxu0 0.0
    %959 = vmatprep.subr.mxu0 0.0
    %960 = vmatpush2.msra.mxu0 0.0
    %961 = vmatprep.subr.mxu0 0.0
    %962 = vmatpush2.msra.mxu0 0.0
    %963 = vmatprep.subr.mxu0 0.0
    %964 = vmatpush2.msra.mxu0 0.0
    %965 = vmatprep.subr.mxu0 0.0
    %966 = vmatpush2.msra.mxu0 0.0
    %967 = vmatprep.subr.mxu0 0.0
    %968 = vmatpush2.msra.mxu0 0.0
    %969 = vmatprep.mubr.f32.mxu0 0.0
    %970 = vmatmul.mubr.f32.gmra.mxu0 %v904
    %v971 = vpop.f32.mrf.mxu0
    %v972 = vadd.f32 0.0, %v971
    %v973 = vpop.f32.mrf.mxu0
    %v974 = vadd.f32 0.0, %v973
    %975 = vdwg.mxu0
    %976 = vmatprep.subr.mxu0 %v734
    %977 = vmatpush1.msra.mxu0 %v733
    %978 = vmatprep.subr.mxu0 %v730
    %979 = vmatpush1.msra.mxu0 %v729
    %980 = vmatprep.subr.mxu0 %v726
    %981 = vmatpush1.msra.mxu0 %v725
    %982 = vmatprep.subr.mxu0 %v722
    %983 = vmatpush1.msra.mxu0 %v721
    %984 = vmatprep.subr.mxu0 %v718
    %985 = vmatpush1.msra.mxu0 %v717
    %986 = vmatprep.subr.mxu0 %v714
    %987 = vmatpush1.msra.mxu0 %v713
    %988 = vmatprep.subr.mxu0 %v710
    %989 = vmatpush1.msra.mxu0 %v709
    %990 = vmatprep.subr.mxu0 %v706
    %991 = vmatpush1.msra.mxu0 %v705
    %992 = vmatprep.subr.mxu0 %v702
    %993 = vmatpush1.msra.mxu0 %v701
    %994 = vmatprep.subr.mxu0 %v698
    %995 = vmatpush1.msra.mxu0 %v697
    %996 = vmatprep.subr.mxu0 %v694
    %997 = vmatpush1.msra.mxu0 %v693
    %998 = vmatprep.subr.mxu0 %v690
    %999 = vmatpush1.msra.mxu0 %v689
    %1000 = vmatprep.subr.mxu0 %v686
    %1001 = vmatpush1.msra.mxu0 %v685
    %1002 = vmatprep.subr.mxu0 %v682
    %1003 = vmatpush1.msra.mxu0 %v681
    %1004 = vmatprep.subr.mxu0 %v678
    %1005 = vmatpush1.msra.mxu0 %v677
    %1006 = vmatprep.subr.mxu0 %v674
    %1007 = vmatpush1.msra.mxu0 %v673
    %1008 = vmatprep.subr.mxu0 0.0
    %1009 = vmatpush2.msra.mxu0 0.0
    %1010 = vmatprep.subr.mxu0 0.0
    %1011 = vmatpush2.msra.mxu0 0.0
    %1012 = vmatprep.subr.mxu0 0.0
    %1013 = vmatpush2.msra.mxu0 0.0
    %1014 = vmatprep.subr.mxu0 0.0
    %1015 = vmatpush2.msra.mxu0 0.0
    %1016 = vmatprep.subr.mxu0 0.0
    %1017 = vmatpush2.msra.mxu0 0.0
    %1018 = vmatprep.subr.mxu0 0.0
    %1019 = vmatpush2.msra.mxu0 0.0
    %1020 = vmatprep.subr.mxu0 0.0
    %1021 = vmatpush2.msra.mxu0 0.0
    %1022 = vmatprep.subr.mxu0 0.0
    %1023 = vmatpush2.msra.mxu0 0.0
    %1024 = vmatprep.subr.mxu0 0.0
    %1025 = vmatpush2.msra.mxu0 0.0
    %1026 = vmatprep.subr.mxu0 0.0
    %1027 = vmatpush2.msra.mxu0 0.0
    %1028 = vmatprep.subr.mxu0 0.0
    %1029 = vmatpush2.msra.mxu0 0.0
    %1030 = vmatprep.subr.mxu0 0.0
    %1031 = vmatpush2.msra.mxu0 0.0
    %1032 = vmatprep.subr.mxu0 0.0
    %1033 = vmatpush2.msra.mxu0 0.0
    %1034 = vmatprep.subr.mxu0 0.0
    %1035 = vmatpush2.msra.mxu0 0.0
    %1036 = vmatprep.subr.mxu0 0.0
    %1037 = vmatpush2.msra.mxu0 0.0
    %1038 = vmatprep.subr.mxu0 0.0
    %1039 = vmatpush2.msra.mxu0 0.0
    %1040 = vmatprep.mubr.f32.mxu0 0.0
    %1041 = vmatmul.mubr.f32.gmra.mxu0 %v904
    %v1042 = vpop.f32.mrf.mxu0
    %v1043 = vadd.f32 0.0, %v1042
    %v1044 = vpop.f32.mrf.mxu0
    %v1045 = vadd.f32 0.0, %v1044
    %1046 = vdwg.mxu0
    %v1047 = vadd.f32 %v486, %v972
    %v1048 = vadd.f32 %v488, %v974
    %v1049 = vadd.f32 %v599, %v1043
    %v1050 = vadd.f32 %v601, %v1045
    %v1051 = vxor.u32 %v1047, 2147483648
    %v1052 = vmul.f32 %v1051, 1.442695
    %v1053 = vpow.pop %v1052
    %v1054 = vadd.f32 %v1053, 1.0
    %v1055 = vrcp.pop %v1054
    %v1056 = vmul.f32 1.0, %v1055
    %v1057 = vxor.u32 %v1048, 2147483648
    %v1058 = vmul.f32 %v1057, 1.442695
    %v1059 = vpow.pop %v1058
    %v1060 = vadd.f32 %v1059, 1.0
    %v1061 = vrcp.pop %v1060
    %v1062 = vmul.f32 1.0, %v1061
    %v1063 = vtanh.pop %v1049
    %v1064 = vxor.u32 %v1050, 2147483648
    %v1065 = vmul.f32 %v1064, 1.442695
    %v1066 = vpow.pop %v1065
    %v1067 = vadd.f32 %v1066, 1.0
    %v1068 = vrcp.pop %v1067
    %v1069 = vmul.f32 1.0, %v1068
    %v1070 = vmul.f32 %v1062, %v902
    %v1071 = vmul.f32 %v1056, %v1063
    %v1072 = vadd.f32 %v1070, %v1071
    %v1073 = vtanh.pop %v1072
    %v1074 = vmul.f32 %v1069, %v1073
    %1075 = vmatprep.subr.mxu0 %v732
    %1076 = vmatpush1.msra.mxu0 %v731
    %1077 = vmatprep.subr.mxu0 %v728
    %1078 = vmatpush1.msra.mxu0 %v727
    %1079 = vmatprep.subr.mxu0 %v724
    %1080 = vmatpush1.msra.mxu0 %v723
    %1081 = vmatprep.subr.mxu0 %v720
    %1082 = vmatpush1.msra.mxu0 %v719
    %1083 = vmatprep.subr.mxu0 %v716
    %1084 = vmatpush1.msra.mxu0 %v715
    %1085 = vmatprep.subr.mxu0 %v712
    %1086 = vmatpush1.msra.mxu0 %v711
    %1087 = vmatprep.subr.mxu0 %v708
    %1088 = vmatpush1.msra.mxu0 %v707
    %1089 = vmatprep.subr.mxu0 %v704
    %1090 = vmatpush1.msra.mxu0 %v703
    %1091 = vmatprep.subr.mxu0 %v700
    %1092 = vmatpush1.msra.mxu0 %v699
    %1093 = vmatprep.subr.mxu0 %v696
    %1094 = vmatpush1.msra.mxu0 %v695
    %1095 = vmatprep.subr.mxu0 %v692
    %1096 = vmatpush1.msra.mxu0 %v691
    %1097 = vmatprep.subr.mxu0 %v688
    %1098 = vmatpush1.msra.mxu0 %v687
    %1099 = vmatprep.subr.mxu0 %v684
    %1100 = vmatpush1.msra.mxu0 %v683
    %1101 = vmatprep.subr.mxu0 %v680
    %1102 = vmatpush1.msra.mxu0 %v679
    %1103 = vmatprep.subr.mxu0 %v676
    %1104 = vmatpush1.msra.mxu0 %v675
    %1105 = vmatprep.subr.mxu0 %v672
    %1106 = vmatpush1.msra.mxu0 %v671
    %1107 = vmatprep.subr.mxu0 0.0
    %1108 = vmatpush2.msra.mxu0 0.0
    %1109 = vmatprep.subr.mxu0 0.0
    %1110 = vmatpush2.msra.mxu0 0.0
    %1111 = vmatprep.subr.mxu0 0.0
    %1112 = vmatpush2.msra.mxu0 0.0
    %1113 = vmatprep.subr.mxu0 0.0
    %1114 = vmatpush2.msra.mxu0 0.0
    %1115 = vmatprep.subr.mxu0 0.0
    %1116 = vmatpush2.msra.mxu0 0.0
    %1117 = vmatprep.subr.mxu0 0.0
    %1118 = vmatpush2.msra.mxu0 0.0
    %1119 = vmatprep.subr.mxu0 0.0
    %1120 = vmatpush2.msra.mxu0 0.0
    %1121 = vmatprep.subr.mxu0 0.0
    %1122 = vmatpush2.msra.mxu0 0.0
    %1123 = vmatprep.subr.mxu0 0.0
    %1124 = vmatpush2.msra.mxu0 0.0
    %1125 = vmatprep.subr.mxu0 0.0
    %1126 = vmatpush2.msra.mxu0 0.0
    %1127 = vmatprep.subr.mxu0 0.0
    %1128 = vmatpush2.msra.mxu0 0.0
    %1129 = vmatprep.subr.mxu0 0.0
    %1130 = vmatpush2.msra.mxu0 0.0
    %1131 = vmatprep.subr.mxu0 0.0
    %1132 = vmatpush2.msra.mxu0 0.0
    %1133 = vmatprep.subr.mxu0 0.0
    %1134 = vmatpush2.msra.mxu0 0.0
    %1135 = vmatprep.subr.mxu0 0.0
    %1136 = vmatpush2.msra.mxu0 0.0
    %1137 = vmatprep.subr.mxu0 0.0
    %1138 = vmatpush2.msra.mxu0 0.0
    %1139 = vmatprep.mubr.f32.mxu0 0.0
    %1140 = vmatmul.mubr.f32.gmra.mxu0 %v1074
    %v1141 = vpop.f32.mrf.mxu0
    %v1142 = vadd.f32 0.0, %v1141
    %v1143 = vpop.f32.mrf.mxu0
    %v1144 = vadd.f32 0.0, %v1143
    %1145 = vdwg.mxu0
    %1146 = vmatprep.subr.mxu0 %v734
    %1147 = vmatpush1.msra.mxu0 %v733
    %1148 = vmatprep.subr.mxu0 %v730
    %1149 = vmatpush1.msra.mxu0 %v729
    %1150 = vmatprep.subr.mxu0 %v726
    %1151 = vmatpush1.msra.mxu0 %v725
    %1152 = vmatprep.subr.mxu0 %v722
    %1153 = vmatpush1.msra.mxu0 %v721
    %1154 = vmatprep.subr.mxu0 %v718
    %1155 = vmatpush1.msra.mxu0 %v717
    %1156 = vmatprep.subr.mxu0 %v714
    %1157 = vmatpush1.msra.mxu0 %v713
    %1158 = vmatprep.subr.mxu0 %v710
    %1159 = vmatpush1.msra.mxu0 %v709
    %1160 = vmatprep.subr.mxu0 %v706
    %1161 = vmatpush1.msra.mxu0 %v705
    %1162 = vmatprep.subr.mxu0 %v702
    %1163 = vmatpush1.msra.mxu0 %v701
    %1164 = vmatprep.subr.mxu0 %v698
    %1165 = vmatpush1.msra.mxu0 %v697
    %1166 = vmatprep.subr.mxu0 %v694
    %1167 = vmatpush1.msra.mxu0 %v693
    %1168 = vmatprep.subr.mxu0 %v690
    %1169 = vmatpush1.msra.mxu0 %v689
    %1170 = vmatprep.subr.mxu0 %v686
    %1171 = vmatpush1.msra.mxu0 %v685
    %1172 = vmatprep.subr.mxu0 %v682
    %1173 = vmatpush1.msra.mxu0 %v681
    %1174 = vmatprep.subr.mxu0 %v678
    %1175 = vmatpush1.msra.mxu0 %v677
    %1176 = vmatprep.subr.mxu0 %v674
    %1177 = vmatpush1.msra.mxu0 %v673
    %1178 = vmatprep.subr.mxu0 0.0
    %1179 = vmatpush2.msra.mxu0 0.0
    %1180 = vmatprep.subr.mxu0 0.0
    %1181 = vmatpush2.msra.mxu0 0.0
    %1182 = vmatprep.subr.mxu0 0.0
    %1183 = vmatpush2.msra.mxu0 0.0
    %1184 = vmatprep.subr.mxu0 0.0
    %1185 = vmatpush2.msra.mxu0 0.0
    %1186 = vmatprep.subr.mxu0 0.0
    %1187 = vmatpush2.msra.mxu0 0.0
    %1188 = vmatprep.subr.mxu0 0.0
    %1189 = vmatpush2.msra.mxu0 0.0
    %1190 = vmatprep.subr.mxu0 0.0
    %1191 = vmatpush2.msra.mxu0 0.0
    %1192 = vmatprep.subr.mxu0 0.0
    %1193 = vmatpush2.msra.mxu0 0.0
    %1194 = vmatprep.subr.mxu0 0.0
    %1195 = vmatpush2.msra.mxu0 0.0
    %1196 = vmatprep.subr.mxu0 0.0
    %1197 = vmatpush2.msra.mxu0 0.0
    %1198 = vmatprep.subr.mxu0 0.0
    %1199 = vmatpush2.msra.mxu0 0.0
    %1200 = vmatprep.subr.mxu0 0.0
    %1201 = vmatpush2.msra.mxu0 0.0
    %1202 = vmatprep.subr.mxu0 0.0
    %1203 = vmatpush2.msra.mxu0 0.0
    %1204 = vmatprep.subr.mxu0 0.0
    %1205 = vmatpush2.msra.mxu0 0.0
    %1206 = vmatprep.subr.mxu0 0.0
    %1207 = vmatpush2.msra.mxu0 0.0
    %1208 = vmatprep.subr.mxu0 0.0
    %1209 = vmatpush2.msra.mxu0 0.0
    %1210 = vmatprep.mubr.f32.mxu0 0.0
    %1211 = vmatmul.mubr.f32.gmra.mxu0 %v1074
    %v1212 = vpop.f32.mrf.mxu0
    %v1213 = vadd.f32 0.0, %v1212
    %v1214 = vpop.f32.mrf.mxu0
    %v1215 = vadd.f32 0.0, %v1214
    %1216 = vdwg.mxu0
    %v1217 = vadd.f32 %v492, %v1142
    %v1218 = vadd.f32 %v494, %v1144
    %v1219 = vadd.f32 %v605, %v1213
    %v1220 = vadd.f32 %v607, %v1215
    %v1221 = vxor.u32 %v1217, 2147483648
    %v1222 = vmul.f32 %v1221, 1.442695
    %v1223 = vpow.pop %v1222
    %v1224 = vadd.f32 %v1223, 1.0
    %v1225 = vrcp.pop %v1224
    %v1226 = vmul.f32 1.0, %v1225
    %v1227 = vxor.u32 %v1218, 2147483648
    %v1228 = vmul.f32 %v1227, 1.442695
    %v1229 = vpow.pop %v1228
    %v1230 = vadd.f32 %v1229, 1.0
    %v1231 = vrcp.pop %v1230
    %v1232 = vmul.f32 1.0, %v1231
    %v1233 = vtanh.pop %v1219
    %v1234 = vxor.u32 %v1220, 2147483648
    %v1235 = vmul.f32 %v1234, 1.442695
    %v1236 = vpow.pop %v1235
    %v1237 = vadd.f32 %v1236, 1.0
    %v1238 = vrcp.pop %v1237
    %v1239 = vmul.f32 1.0, %v1238
    %v1240 = vmul.f32 %v1232, %v1072
    %v1241 = vmul.f32 %v1226, %v1233
    %v1242 = vadd.f32 %v1240, %v1241
    %v1243 = vtanh.pop %v1242
    %v1244 = vmul.f32 %v1239, %v1243
    %1245 = vmatprep.subr.mxu0 %v732
    %1246 = vmatpush1.msra.mxu0 %v731
    %1247 = vmatprep.subr.mxu0 %v728
    %1248 = vmatpush1.msra.mxu0 %v727
    %1249 = vmatprep.subr.mxu0 %v724
    %1250 = vmatpush1.msra.mxu0 %v723
    %1251 = vmatprep.subr.mxu0 %v720
    %1252 = vmatpush1.msra.mxu0 %v719
    %1253 = vmatprep.subr.mxu0 %v716
    %1254 = vmatpush1.msra.mxu0 %v715
    %1255 = vmatprep.subr.mxu0 %v712
    %1256 = vmatpush1.msra.mxu0 %v711
    %1257 = vmatprep.subr.mxu0 %v708
    %1258 = vmatpush1.msra.mxu0 %v707
    %1259 = vmatprep.subr.mxu0 %v704
    %1260 = vmatpush1.msra.mxu0 %v703
    %1261 = vmatprep.subr.mxu0 %v700
    %1262 = vmatpush1.msra.mxu0 %v699
    %1263 = vmatprep.subr.mxu0 %v696
    %1264 = vmatpush1.msra.mxu0 %v695
    %1265 = vmatprep.subr.mxu0 %v692
    %1266 = vmatpush1.msra.mxu0 %v691
    %1267 = vmatprep.subr.mxu0 %v688
    %1268 = vmatpush1.msra.mxu0 %v687
    %1269 = vmatprep.subr.mxu0 %v684
    %1270 = vmatpush1.msra.mxu0 %v683
    %1271 = vmatprep.subr.mxu0 %v680
    %1272 = vmatpush1.msra.mxu0 %v679
    %1273 = vmatprep.subr.mxu0 %v676
    %1274 = vmatpush1.msra.mxu0 %v675
    %1275 = vmatprep.subr.mxu0 %v672
    %1276 = vmatpush1.msra.mxu0 %v671
    %1277 = vmatprep.subr.mxu0 0.0
    %1278 = vmatpush2.msra.mxu0 0.0
    %1279 = vmatprep.subr.mxu0 0.0
    %1280 = vmatpush2.msra.mxu0 0.0
    %1281 = vmatprep.subr.mxu0 0.0
    %1282 = vmatpush2.msra.mxu0 0.0
    %1283 = vmatprep.subr.mxu0 0.0
    %1284 = vmatpush2.msra.mxu0 0.0
    %1285 = vmatprep.subr.mxu0 0.0
    %1286 = vmatpush2.msra.mxu0 0.0
    %1287 = vmatprep.subr.mxu0 0.0
    %1288 = vmatpush2.msra.mxu0 0.0
    %1289 = vmatprep.subr.mxu0 0.0
    %1290 = vmatpush2.msra.mxu0 0.0
    %1291 = vmatprep.subr.mxu0 0.0
    %1292 = vmatpush2.msra.mxu0 0.0
    %1293 = vmatprep.subr.mxu0 0.0
    %1294 = vmatpush2.msra.mxu0 0.0
    %1295 = vmatprep.subr.mxu0 0.0
    %1296 = vmatpush2.msra.mxu0 0.0
    %1297 = vmatprep.subr.mxu0 0.0
    %1298 = vmatpush2.msra.mxu0 0.0
    %1299 = vmatprep.subr.mxu0 0.0
    %1300 = vmatpush2.msra.mxu0 0.0
    %1301 = vmatprep.subr.mxu0 0.0
    %1302 = vmatpush2.msra.mxu0 0.0
    %1303 = vmatprep.subr.mxu0 0.0
    %1304 = vmatpush2.msra.mxu0 0.0
    %1305 = vmatprep.subr.mxu0 0.0
    %1306 = vmatpush2.msra.mxu0 0.0
    %1307 = vmatprep.subr.mxu0 0.0
    %1308 = vmatpush2.msra.mxu0 0.0
    %1309 = vmatprep.mubr.f32.mxu0 0.0
    %1310 = vmatmul.mubr.f32.gmra.mxu0 %v1244
    %v1311 = vpop.f32.mrf.mxu0
    %v1312 = vadd.f32 0.0, %v1311
    %v1313 = vpop.f32.mrf.mxu0
    %v1314 = vadd.f32 0.0, %v1313
    %1315 = vdwg.mxu0
    %1316 = vmatprep.subr.mxu0 %v734
    %1317 = vmatpush1.msra.mxu0 %v733
    %1318 = vmatprep.subr.mxu0 %v730
    %1319 = vmatpush1.msra.mxu0 %v729
    %1320 = vmatprep.subr.mxu0 %v726
    %1321 = vmatpush1.msra.mxu0 %v725
    %1322 = vmatprep.subr.mxu0 %v722
    %1323 = vmatpush1.msra.mxu0 %v721
    %1324 = vmatprep.subr.mxu0 %v718
    %1325 = vmatpush1.msra.mxu0 %v717
    %1326 = vmatprep.subr.mxu0 %v714
    %1327 = vmatpush1.msra.mxu0 %v713
    %1328 = vmatprep.subr.mxu0 %v710
    %1329 = vmatpush1.msra.mxu0 %v709
    %1330 = vmatprep.subr.mxu0 %v706
    %1331 = vmatpush1.msra.mxu0 %v705
    %1332 = vmatprep.subr.mxu0 %v702
    %1333 = vmatpush1.msra.mxu0 %v701
    %1334 = vmatprep.subr.mxu0 %v698
    %1335 = vmatpush1.msra.mxu0 %v697
    %1336 = vmatprep.subr.mxu0 %v694
    %1337 = vmatpush1.msra.mxu0 %v693
    %1338 = vmatprep.subr.mxu0 %v690
    %1339 = vmatpush1.msra.mxu0 %v689
    %1340 = vmatprep.subr.mxu0 %v686
    %1341 = vmatpush1.msra.mxu0 %v685
    %1342 = vmatprep.subr.mxu0 %v682
    %1343 = vmatpush1.msra.mxu0 %v681
    %1344 = vmatprep.subr.mxu0 %v678
    %1345 = vmatpush1.msra.mxu0 %v677
    %1346 = vmatprep.subr.mxu0 %v674
    %1347 = vmatpush1.msra.mxu0 %v673
    %1348 = vmatprep.subr.mxu0 0.0
    %1349 = vmatpush2.msra.mxu0 0.0
    %1350 = vmatprep.subr.mxu0 0.0
    %1351 = vmatpush2.msra.mxu0 0.0
    %1352 = vmatprep.subr.mxu0 0.0
    %1353 = vmatpush2.msra.mxu0 0.0
    %1354 = vmatprep.subr.mxu0 0.0
    %1355 = vmatpush2.msra.mxu0 0.0
    %1356 = vmatprep.subr.mxu0 0.0
    %1357 = vmatpush2.msra.mxu0 0.0
    %1358 = vmatprep.subr.mxu0 0.0
    %1359 = vmatpush2.msra.mxu0 0.0
    %1360 = vmatprep.subr.mxu0 0.0
    %1361 = vmatpush2.msra.mxu0 0.0
    %1362 = vmatprep.subr.mxu0 0.0
    %1363 = vmatpush2.msra.mxu0 0.0
    %1364 = vmatprep.subr.mxu0 0.0
    %1365 = vmatpush2.msra.mxu0 0.0
    %1366 = vmatprep.subr.mxu0 0.0
    %1367 = vmatpush2.msra.mxu0 0.0
    %1368 = vmatprep.subr.mxu0 0.0
    %1369 = vmatpush2.msra.mxu0 0.0
    %1370 = vmatprep.subr.mxu0 0.0
    %1371 = vmatpush2.msra.mxu0 0.0
    %1372 = vmatprep.subr.mxu0 0.0
    %1373 = vmatpush2.msra.mxu0 0.0
    %1374 = vmatprep.subr.mxu0 0.0
    %1375 = vmatpush2.msra.mxu0 0.0
    %1376 = vmatprep.subr.mxu0 0.0
    %1377 = vmatpush2.msra.mxu0 0.0
    %1378 = vmatprep.subr.mxu0 0.0
    %1379 = vmatpush2.msra.mxu0 0.0
    %1380 = vmatprep.mubr.f32.mxu0 0.0
    %1381 = vmatmul.mubr.f32.gmra.mxu0 %v1244
    %v1382 = vpop.f32.mrf.mxu0
    %v1383 = vadd.f32 0.0, %v1382
    %v1384 = vpop.f32.mrf.mxu0
    %v1385 = vadd.f32 0.0, %v1384
    %1386 = vdwg.mxu0
    %v1387 = vadd.f32 %v498, %v1312
    %v1388 = vadd.f32 %v500, %v1314
    %v1389 = vadd.f32 %v611, %v1383
    %v1390 = vadd.f32 %v613, %v1385
    %v1391 = vxor.u32 %v1387, 2147483648
    %v1392 = vmul.f32 %v1391, 1.442695
    %v1393 = vpow.pop %v1392
    %v1394 = vadd.f32 %v1393, 1.0
    %v1395 = vrcp.pop %v1394
    %v1396 = vmul.f32 1.0, %v1395
    %v1397 = vxor.u32 %v1388, 2147483648
    %v1398 = vmul.f32 %v1397, 1.442695
    %v1399 = vpow.pop %v1398
    %v1400 = vadd.f32 %v1399, 1.0
    %v1401 = vrcp.pop %v1400
    %v1402 = vmul.f32 1.0, %v1401
    %v1403 = vtanh.pop %v1389
    %v1404 = vxor.u32 %v1390, 2147483648
    %v1405 = vmul.f32 %v1404, 1.442695
    %v1406 = vpow.pop %v1405
    %v1407 = vadd.f32 %v1406, 1.0
    %v1408 = vrcp.pop %v1407
    %v1409 = vmul.f32 1.0, %v1408
    %v1410 = vmul.f32 %v1402, %v1242
    %v1411 = vmul.f32 %v1396, %v1403
    %v1412 = vadd.f32 %v1410, %v1411
    %v1413 = vtanh.pop %v1412
    %v1414 = vmul.f32 %v1409, %v1413
    %1415 = vmatprep.subr.mxu0 %v732
    %1416 = vmatpush1.msra.mxu0 %v731
    %1417 = vmatprep.subr.mxu0 %v728
    %1418 = vmatpush1.msra.mxu0 %v727
    %1419 = vmatprep.subr.mxu0 %v724
    %1420 = vmatpush1.msra.mxu0 %v723
    %1421 = vmatprep.subr.mxu0 %v720
    %1422 = vmatpush1.msra.mxu0 %v719
    %1423 = vmatprep.subr.mxu0 %v716
    %1424 = vmatpush1.msra.mxu0 %v715
    %1425 = vmatprep.subr.mxu0 %v712
    %1426 = vmatpush1.msra.mxu0 %v711
    %1427 = vmatprep.subr.mxu0 %v708
    %1428 = vmatpush1.msra.mxu0 %v707
    %1429 = vmatprep.subr.mxu0 %v704
    %1430 = vmatpush1.msra.mxu0 %v703
    %1431 = vmatprep.subr.mxu0 %v700
    %1432 = vmatpush1.msra.mxu0 %v699
    %1433 = vmatprep.subr.mxu0 %v696
    %1434 = vmatpush1.msra.mxu0 %v695
    %1435 = vmatprep.subr.mxu0 %v692
    %1436 = vmatpush1.msra.mxu0 %v691
    %1437 = vmatprep.subr.mxu0 %v688
    %1438 = vmatpush1.msra.mxu0 %v687
    %1439 = vmatprep.subr.mxu0 %v684
    %1440 = vmatpush1.msra.mxu0 %v683
    %1441 = vmatprep.subr.mxu0 %v680
    %1442 = vmatpush1.msra.mxu0 %v679
    %1443 = vmatprep.subr.mxu0 %v676
    %1444 = vmatpush1.msra.mxu0 %v675
    %1445 = vmatprep.subr.mxu0 %v672
    %1446 = vmatpush1.msra.mxu0 %v671
    %1447 = vmatprep.subr.mxu0 0.0
    %1448 = vmatpush2.msra.mxu0 0.0
    %1449 = vmatprep.subr.mxu0 0.0
    %1450 = vmatpush2.msra.mxu0 0.0
    %1451 = vmatprep.subr.mxu0 0.0
    %1452 = vmatpush2.msra.mxu0 0.0
    %1453 = vmatprep.subr.mxu0 0.0
    %1454 = vmatpush2.msra.mxu0 0.0
    %1455 = vmatprep.subr.mxu0 0.0
    %1456 = vmatpush2.msra.mxu0 0.0
    %1457 = vmatprep.subr.mxu0 0.0
    %1458 = vmatpush2.msra.mxu0 0.0
    %1459 = vmatprep.subr.mxu0 0.0
    %1460 = vmatpush2.msra.mxu0 0.0
    %1461 = vmatprep.subr.mxu0 0.0
    %1462 = vmatpush2.msra.mxu0 0.0
    %1463 = vmatprep.subr.mxu0 0.0
    %1464 = vmatpush2.msra.mxu0 0.0
    %1465 = vmatprep.subr.mxu0 0.0
    %1466 = vmatpush2.msra.mxu0 0.0
    %1467 = vmatprep.subr.mxu0 0.0
    %1468 = vmatpush2.msra.mxu0 0.0
    %1469 = vmatprep.subr.mxu0 0.0
    %1470 = vmatpush2.msra.mxu0 0.0
    %1471 = vmatprep.subr.mxu0 0.0
    %1472 = vmatpush2.msra.mxu0 0.0
    %1473 = vmatprep.subr.mxu0 0.0
    %1474 = vmatpush2.msra.mxu0 0.0
    %1475 = vmatprep.subr.mxu0 0.0
    %1476 = vmatpush2.msra.mxu0 0.0
    %1477 = vmatprep.subr.mxu0 0.0
    %1478 = vmatpush2.msra.mxu0 0.0
    %1479 = vmatprep.mubr.f32.mxu0 0.0
    %1480 = vmatmul.mubr.f32.gmra.mxu0 %v1414
    %v1481 = vpop.f32.mrf.mxu0
    %v1482 = vadd.f32 0.0, %v1481
    %v1483 = vpop.f32.mrf.mxu0
    %v1484 = vadd.f32 0.0, %v1483
    %1485 = vdwg.mxu0
    %1486 = vmatprep.subr.mxu0 %v734
    %1487 = vmatpush1.msra.mxu0 %v733
    %1488 = vmatprep.subr.mxu0 %v730
    %1489 = vmatpush1.msra.mxu0 %v729
    %1490 = vmatprep.subr.mxu0 %v726
    %1491 = vmatpush1.msra.mxu0 %v725
    %1492 = vmatprep.subr.mxu0 %v722
    %1493 = vmatpush1.msra.mxu0 %v721
    %1494 = vmatprep.subr.mxu0 %v718
    %1495 = vmatpush1.msra.mxu0 %v717
    %1496 = vmatprep.subr.mxu0 %v714
    %1497 = vmatpush1.msra.mxu0 %v713
    %1498 = vmatprep.subr.mxu0 %v710
    %1499 = vmatpush1.msra.mxu0 %v709
    %1500 = vmatprep.subr.mxu0 %v706
    %1501 = vmatpush1.msra.mxu0 %v705
    %1502 = vmatprep.subr.mxu0 %v702
    %1503 = vmatpush1.msra.mxu0 %v701
    %1504 = vmatprep.subr.mxu0 %v698
    %1505 = vmatpush1.msra.mxu0 %v697
    %1506 = vmatprep.subr.mxu0 %v694
    %1507 = vmatpush1.msra.mxu0 %v693
    %1508 = vmatprep.subr.mxu0 %v690
    %1509 = vmatpush1.msra.mxu0 %v689
    %1510 = vmatprep.subr.mxu0 %v686
    %1511 = vmatpush1.msra.mxu0 %v685
    %1512 = vmatprep.subr.mxu0 %v682
    %1513 = vmatpush1.msra.mxu0 %v681
    %1514 = vmatprep.subr.mxu0 %v678
    %1515 = vmatpush1.msra.mxu0 %v677
    %1516 = vmatprep.subr.mxu0 %v674
    %1517 = vmatpush1.msra.mxu0 %v673
    %1518 = vmatprep.subr.mxu0 0.0
    %1519 = vmatpush2.msra.mxu0 0.0
    %1520 = vmatprep.subr.mxu0 0.0
    %1521 = vmatpush2.msra.mxu0 0.0
    %1522 = vmatprep.subr.mxu0 0.0
    %1523 = vmatpush2.msra.mxu0 0.0
    %1524 = vmatprep.subr.mxu0 0.0
    %1525 = vmatpush2.msra.mxu0 0.0
    %1526 = vmatprep.subr.mxu0 0.0
    %1527 = vmatpush2.msra.mxu0 0.0
    %1528 = vmatprep.subr.mxu0 0.0
    %1529 = vmatpush2.msra.mxu0 0.0
    %1530 = vmatprep.subr.mxu0 0.0
    %1531 = vmatpush2.msra.mxu0 0.0
    %1532 = vmatprep.subr.mxu0 0.0
    %1533 = vmatpush2.msra.mxu0 0.0
    %1534 = vmatprep.subr.mxu0 0.0
    %1535 = vmatpush2.msra.mxu0 0.0
    %1536 = vmatprep.subr.mxu0 0.0
    %1537 = vmatpush2.msra.mxu0 0.0
    %1538 = vmatprep.subr.mxu0 0.0
    %1539 = vmatpush2.msra.mxu0 0.0
    %1540 = vmatprep.subr.mxu0 0.0
    %1541 = vmatpush2.msra.mxu0 0.0
    %1542 = vmatprep.subr.mxu0 0.0
    %1543 = vmatpush2.msra.mxu0 0.0
    %1544 = vmatprep.subr.mxu0 0.0
    %1545 = vmatpush2.msra.mxu0 0.0
    %1546 = vmatprep.subr.mxu0 0.0
    %1547 = vmatpush2.msra.mxu0 0.0
    %1548 = vmatprep.subr.mxu0 0.0
    %1549 = vmatpush2.msra.mxu0 0.0
    %1550 = vmatprep.mubr.f32.mxu0 0.0
    %1551 = vmatmul.mubr.f32.gmra.mxu0 %v1414
    %v1552 = vpop.f32.mrf.mxu0
    %v1553 = vadd.f32 0.0, %v1552
    %v1554 = vpop.f32.mrf.mxu0
    %v1555 = vadd.f32 0.0, %v1554
    %1556 = vdwg.mxu0
    %v1557 = vadd.f32 %v504, %v1482
    %v1558 = vadd.f32 %v506, %v1484
    %v1559 = vadd.f32 %v617, %v1553
    %v1560 = vadd.f32 %v619, %v1555
    %v1561 = vxor.u32 %v1557, 2147483648
    %v1562 = vmul.f32 %v1561, 1.442695
    %v1563 = vpow.pop %v1562
    %v1564 = vadd.f32 %v1563, 1.0
    %v1565 = vrcp.pop %v1564
    %v1566 = vmul.f32 1.0, %v1565
    %v1567 = vxor.u32 %v1558, 2147483648
    %v1568 = vmul.f32 %v1567, 1.442695
    %v1569 = vpow.pop %v1568
    %v1570 = vadd.f32 %v1569, 1.0
    %v1571 = vrcp.pop %v1570
    %v1572 = vmul.f32 1.0, %v1571
    %v1573 = vtanh.pop %v1559
    %v1574 = vxor.u32 %v1560, 2147483648
    %v1575 = vmul.f32 %v1574, 1.442695
    %v1576 = vpow.pop %v1575
    %v1577 = vadd.f32 %v1576, 1.0
    %v1578 = vrcp.pop %v1577
    %v1579 = vmul.f32 1.0, %v1578
    %v1580 = vmul.f32 %v1572, %v1412
    %v1581 = vmul.f32 %v1566, %v1573
    %v1582 = vadd.f32 %v1580, %v1581
    %v1583 = vtanh.pop %v1582
    %v1584 = vmul.f32 %v1579, %v1583
    %1585 = vmatprep.subr.mxu0 %v732
    %1586 = vmatpush1.msra.mxu0 %v731
    %1587 = vmatprep.subr.mxu0 %v728
    %1588 = vmatpush1.msra.mxu0 %v727
    %1589 = vmatprep.subr.mxu0 %v724
    %1590 = vmatpush1.msra.mxu0 %v723
    %1591 = vmatprep.subr.mxu0 %v720
    %1592 = vmatpush1.msra.mxu0 %v719
    %1593 = vmatprep.subr.mxu0 %v716
    %1594 = vmatpush1.msra.mxu0 %v715
    %1595 = vmatprep.subr.mxu0 %v712
    %1596 = vmatpush1.msra.mxu0 %v711
    %1597 = vmatprep.subr.mxu0 %v708
    %1598 = vmatpush1.msra.mxu0 %v707
    %1599 = vmatprep.subr.mxu0 %v704
    %1600 = vmatpush1.msra.mxu0 %v703
    %1601 = vmatprep.subr.mxu0 %v700
    %1602 = vmatpush1.msra.mxu0 %v699
    %1603 = vmatprep.subr.mxu0 %v696
    %1604 = vmatpush1.msra.mxu0 %v695
    %1605 = vmatprep.subr.mxu0 %v692
    %1606 = vmatpush1.msra.mxu0 %v691
    %1607 = vmatprep.subr.mxu0 %v688
    %1608 = vmatpush1.msra.mxu0 %v687
    %1609 = vmatprep.subr.mxu0 %v684
    %1610 = vmatpush1.msra.mxu0 %v683
    %1611 = vmatprep.subr.mxu0 %v680
    %1612 = vmatpush1.msra.mxu0 %v679
    %1613 = vmatprep.subr.mxu0 %v676
    %1614 = vmatpush1.msra.mxu0 %v675
    %1615 = vmatprep.subr.mxu0 %v672
    %1616 = vmatpush1.msra.mxu0 %v671
    %1617 = vmatprep.subr.mxu0 0.0
    %1618 = vmatpush2.msra.mxu0 0.0
    %1619 = vmatprep.subr.mxu0 0.0
    %1620 = vmatpush2.msra.mxu0 0.0
    %1621 = vmatprep.subr.mxu0 0.0
    %1622 = vmatpush2.msra.mxu0 0.0
    %1623 = vmatprep.subr.mxu0 0.0
    %1624 = vmatpush2.msra.mxu0 0.0
    %1625 = vmatprep.subr.mxu0 0.0
    %1626 = vmatpush2.msra.mxu0 0.0
    %1627 = vmatprep.subr.mxu0 0.0
    %1628 = vmatpush2.msra.mxu0 0.0
    %1629 = vmatprep.subr.mxu0 0.0
    %1630 = vmatpush2.msra.mxu0 0.0
    %1631 = vmatprep.subr.mxu0 0.0
    %1632 = vmatpush2.msra.mxu0 0.0
    %1633 = vmatprep.subr.mxu0 0.0
    %1634 = vmatpush2.msra.mxu0 0.0
    %1635 = vmatprep.subr.mxu0 0.0
    %1636 = vmatpush2.msra.mxu0 0.0
    %1637 = vmatprep.subr.mxu0 0.0
    %1638 = vmatpush2.msra.mxu0 0.0
    %1639 = vmatprep.subr.mxu0 0.0
    %1640 = vmatpush2.msra.mxu0 0.0
    %1641 = vmatprep.subr.mxu0 0.0
    %1642 = vmatpush2.msra.mxu0 0.0
    %1643 = vmatprep.subr.mxu0 0.0
    %1644 = vmatpush2.msra.mxu0 0.0
    %1645 = vmatprep.subr.mxu0 0.0
    %1646 = vmatpush2.msra.mxu0 0.0
    %1647 = vmatprep.subr.mxu0 0.0
    %1648 = vmatpush2.msra.mxu0 0.0
    %1649 = vmatprep.mubr.f32.mxu0 0.0
    %1650 = vmatmul.mubr.f32.gmra.mxu0 %v1584
    %v1651 = vpop.f32.mrf.mxu0
    %v1652 = vadd.f32 0.0, %v1651
    %v1653 = vpop.f32.mrf.mxu0
    %v1654 = vadd.f32 0.0, %v1653
    %1655 = vdwg.mxu0
    %1656 = vmatprep.subr.mxu0 %v734
    %1657 = vmatpush1.msra.mxu0 %v733
    %1658 = vmatprep.subr.mxu0 %v730
    %1659 = vmatpush1.msra.mxu0 %v729
    %1660 = vmatprep.subr.mxu0 %v726
    %1661 = vmatpush1.msra.mxu0 %v725
    %1662 = vmatprep.subr.mxu0 %v722
    %1663 = vmatpush1.msra.mxu0 %v721
    %1664 = vmatprep.subr.mxu0 %v718
    %1665 = vmatpush1.msra.mxu0 %v717
    %1666 = vmatprep.subr.mxu0 %v714
    %1667 = vmatpush1.msra.mxu0 %v713
    %1668 = vmatprep.subr.mxu0 %v710
    %1669 = vmatpush1.msra.mxu0 %v709
    %1670 = vmatprep.subr.mxu0 %v706
    %1671 = vmatpush1.msra.mxu0 %v705
    %1672 = vmatprep.subr.mxu0 %v702
    %1673 = vmatpush1.msra.mxu0 %v701
    %1674 = vmatprep.subr.mxu0 %v698
    %1675 = vmatpush1.msra.mxu0 %v697
    %1676 = vmatprep.subr.mxu0 %v694
    %1677 = vmatpush1.msra.mxu0 %v693
    %1678 = vmatprep.subr.mxu0 %v690
    %1679 = vmatpush1.msra.mxu0 %v689
    %1680 = vmatprep.subr.mxu0 %v686
    %1681 = vmatpush1.msra.mxu0 %v685
    %1682 = vmatprep.subr.mxu0 %v682
    %1683 = vmatpush1.msra.mxu0 %v681
    %1684 = vmatprep.subr.mxu0 %v678
    %1685 = vmatpush1.msra.mxu0 %v677
    %1686 = vmatprep.subr.mxu0 %v674
    %1687 = vmatpush1.msra.mxu0 %v673
    %1688 = vmatprep.subr.mxu0 0.0
    %1689 = vmatpush2.msra.mxu0 0.0
    %1690 = vmatprep.subr.mxu0 0.0
    %1691 = vmatpush2.msra.mxu0 0.0
    %1692 = vmatprep.subr.mxu0 0.0
    %1693 = vmatpush2.msra.mxu0 0.0
    %1694 = vmatprep.subr.mxu0 0.0
    %1695 = vmatpush2.msra.mxu0 0.0
    %1696 = vmatprep.subr.mxu0 0.0
    %1697 = vmatpush2.msra.mxu0 0.0
    %1698 = vmatprep.subr.mxu0 0.0
    %1699 = vmatpush2.msra.mxu0 0.0
    %1700 = vmatprep.subr.mxu0 0.0
    %1701 = vmatpush2.msra.mxu0 0.0
    %1702 = vmatprep.subr.mxu0 0.0
    %1703 = vmatpush2.msra.mxu0 0.0
    %1704 = vmatprep.subr.mxu0 0.0
    %1705 = vmatpush2.msra.mxu0 0.0
    %1706 = vmatprep.subr.mxu0 0.0
    %1707 = vmatpush2.msra.mxu0 0.0
    %1708 = vmatprep.subr.mxu0 0.0
    %1709 = vmatpush2.msra.mxu0 0.0
    %1710 = vmatprep.subr.mxu0 0.0
    %1711 = vmatpush2.msra.mxu0 0.0
    %1712 = vmatprep.subr.mxu0 0.0
    %1713 = vmatpush2.msra.mxu0 0.0
    %1714 = vmatprep.subr.mxu0 0.0
    %1715 = vmatpush2.msra.mxu0 0.0
    %1716 = vmatprep.subr.mxu0 0.0
    %1717 = vmatpush2.msra.mxu0 0.0
    %1718 = vmatprep.subr.mxu0 0.0
    %1719 = vmatpush2.msra.mxu0 0.0
    %1720 = vmatprep.mubr.f32.mxu0 0.0
    %1721 = vmatmul.mubr.f32.gmra.mxu0 %v1584
    %v1722 = vpop.f32.mrf.mxu0
    %v1723 = vadd.f32 0.0, %v1722
    %v1724 = vpop.f32.mrf.mxu0
    %v1725 = vadd.f32 0.0, %v1724
    %1726 = vdwg.mxu0
    %v1727 = vadd.f32 %v510, %v1652
    %v1728 = vadd.f32 %v512, %v1654
    %v1729 = vadd.f32 %v623, %v1723
    %v1730 = vadd.f32 %v625, %v1725
    %v1731 = vxor.u32 %v1727, 2147483648
    %v1732 = vmul.f32 %v1731, 1.442695
    %v1733 = vpow.pop %v1732
    %v1734 = vadd.f32 %v1733, 1.0
    %v1735 = vrcp.pop %v1734
    %v1736 = vmul.f32 1.0, %v1735
    %v1737 = vxor.u32 %v1728, 2147483648
    %v1738 = vmul.f32 %v1737, 1.442695
    %v1739 = vpow.pop %v1738
    %v1740 = vadd.f32 %v1739, 1.0
    %v1741 = vrcp.pop %v1740
    %v1742 = vmul.f32 1.0, %v1741
    %v1743 = vtanh.pop %v1729
    %v1744 = vxor.u32 %v1730, 2147483648
    %v1745 = vmul.f32 %v1744, 1.442695
    %v1746 = vpow.pop %v1745
    %v1747 = vadd.f32 %v1746, 1.0
    %v1748 = vrcp.pop %v1747
    %v1749 = vmul.f32 1.0, %v1748
    %v1750 = vmul.f32 %v1742, %v1582
    %v1751 = vmul.f32 %v1736, %v1743
    %v1752 = vadd.f32 %v1750, %v1751
    %v1753 = vtanh.pop %v1752
    %v1754 = vmul.f32 %v1749, %v1753
    %1755 = vmatprep.subr.mxu0 %v732
    %1756 = vmatpush1.msra.mxu0 %v731
    %1757 = vmatprep.subr.mxu0 %v728
    %1758 = vmatpush1.msra.mxu0 %v727
    %1759 = vmatprep.subr.mxu0 %v724
    %1760 = vmatpush1.msra.mxu0 %v723
    %1761 = vmatprep.subr.mxu0 %v720
    %1762 = vmatpush1.msra.mxu0 %v719
    %1763 = vmatprep.subr.mxu0 %v716
    %1764 = vmatpush1.msra.mxu0 %v715
    %1765 = vmatprep.subr.mxu0 %v712
    %1766 = vmatpush1.msra.mxu0 %v711
    %1767 = vmatprep.subr.mxu0 %v708
    %1768 = vmatpush1.msra.mxu0 %v707
    %1769 = vmatprep.subr.mxu0 %v704
    %1770 = vmatpush1.msra.mxu0 %v703
    %1771 = vmatprep.subr.mxu0 %v700
    %1772 = vmatpush1.msra.mxu0 %v699
    %1773 = vmatprep.subr.mxu0 %v696
    %1774 = vmatpush1.msra.mxu0 %v695
    %1775 = vmatprep.subr.mxu0 %v692
    %1776 = vmatpush1.msra.mxu0 %v691
    %1777 = vmatprep.subr.mxu0 %v688
    %1778 = vmatpush1.msra.mxu0 %v687
    %1779 = vmatprep.subr.mxu0 %v684
    %1780 = vmatpush1.msra.mxu0 %v683
    %1781 = vmatprep.subr.mxu0 %v680
    %1782 = vmatpush1.msra.mxu0 %v679
    %1783 = vmatprep.subr.mxu0 %v676
    %1784 = vmatpush1.msra.mxu0 %v675
    %1785 = vmatprep.subr.mxu0 %v672
    %1786 = vmatpush1.msra.mxu0 %v671
    %1787 = vmatprep.subr.mxu0 0.0
    %1788 = vmatpush2.msra.mxu0 0.0
    %1789 = vmatprep.subr.mxu0 0.0
    %1790 = vmatpush2.msra.mxu0 0.0
    %1791 = vmatprep.subr.mxu0 0.0
    %1792 = vmatpush2.msra.mxu0 0.0
    %1793 = vmatprep.subr.mxu0 0.0
    %1794 = vmatpush2.msra.mxu0 0.0
    %1795 = vmatprep.subr.mxu0 0.0
    %1796 = vmatpush2.msra.mxu0 0.0
    %1797 = vmatprep.subr.mxu0 0.0
    %1798 = vmatpush2.msra.mxu0 0.0
    %1799 = vmatprep.subr.mxu0 0.0
    %1800 = vmatpush2.msra.mxu0 0.0
    %1801 = vmatprep.subr.mxu0 0.0
    %1802 = vmatpush2.msra.mxu0 0.0
    %1803 = vmatprep.subr.mxu0 0.0
    %1804 = vmatpush2.msra.mxu0 0.0
    %1805 = vmatprep.subr.mxu0 0.0
    %1806 = vmatpush2.msra.mxu0 0.0
    %1807 = vmatprep.subr.mxu0 0.0
    %1808 = vmatpush2.msra.mxu0 0.0
    %1809 = vmatprep.subr.mxu0 0.0
    %1810 = vmatpush2.msra.mxu0 0.0
    %1811 = vmatprep.subr.mxu0 0.0
    %1812 = vmatpush2.msra.mxu0 0.0
    %1813 = vmatprep.subr.mxu0 0.0
    %1814 = vmatpush2.msra.mxu0 0.0
    %1815 = vmatprep.subr.mxu0 0.0
    %1816 = vmatpush2.msra.mxu0 0.0
    %1817 = vmatprep.subr.mxu0 0.0
    %1818 = vmatpush2.msra.mxu0 0.0
    %1819 = vmatprep.mubr.f32.mxu0 0.0
    %1820 = vmatmul.mubr.f32.gmra.mxu0 %v1754
    %v1821 = vpop.f32.mrf.mxu0
    %v1822 = vadd.f32 0.0, %v1821
    %v1823 = vpop.f32.mrf.mxu0
    %v1824 = vadd.f32 0.0, %v1823
    %1825 = vdwg.mxu0
    %1826 = vmatprep.subr.mxu0 %v734
    %1827 = vmatpush1.msra.mxu0 %v733
    %1828 = vmatprep.subr.mxu0 %v730
    %1829 = vmatpush1.msra.mxu0 %v729
    %1830 = vmatprep.subr.mxu0 %v726
    %1831 = vmatpush1.msra.mxu0 %v725
    %1832 = vmatprep.subr.mxu0 %v722
    %1833 = vmatpush1.msra.mxu0 %v721
    %1834 = vmatprep.subr.mxu0 %v718
    %1835 = vmatpush1.msra.mxu0 %v717
    %1836 = vmatprep.subr.mxu0 %v714
    %1837 = vmatpush1.msra.mxu0 %v713
    %1838 = vmatprep.subr.mxu0 %v710
    %1839 = vmatpush1.msra.mxu0 %v709
    %1840 = vmatprep.subr.mxu0 %v706
    %1841 = vmatpush1.msra.mxu0 %v705
    %1842 = vmatprep.subr.mxu0 %v702
    %1843 = vmatpush1.msra.mxu0 %v701
    %1844 = vmatprep.subr.mxu0 %v698
    %1845 = vmatpush1.msra.mxu0 %v697
    %1846 = vmatprep.subr.mxu0 %v694
    %1847 = vmatpush1.msra.mxu0 %v693
    %1848 = vmatprep.subr.mxu0 %v690
    %1849 = vmatpush1.msra.mxu0 %v689
    %1850 = vmatprep.subr.mxu0 %v686
    %1851 = vmatpush1.msra.mxu0 %v685
    %1852 = vmatprep.subr.mxu0 %v682
    %1853 = vmatpush1.msra.mxu0 %v681
    %1854 = vmatprep.subr.mxu0 %v678
    %1855 = vmatpush1.msra.mxu0 %v677
    %1856 = vmatprep.subr.mxu0 %v674
    %1857 = vmatpush1.msra.mxu0 %v673
    %1858 = vmatprep.subr.mxu0 0.0
    %1859 = vmatpush2.msra.mxu0 0.0
    %1860 = vmatprep.subr.mxu0 0.0
    %1861 = vmatpush2.msra.mxu0 0.0
    %1862 = vmatprep.subr.mxu0 0.0
    %1863 = vmatpush2.msra.mxu0 0.0
    %1864 = vmatprep.subr.mxu0 0.0
    %1865 = vmatpush2.msra.mxu0 0.0
    %1866 = vmatprep.subr.mxu0 0.0
    %1867 = vmatpush2.msra.mxu0 0.0
    %1868 = vmatprep.subr.mxu0 0.0
    %1869 = vmatpush2.msra.mxu0 0.0
    %1870 = vmatprep.subr.mxu0 0.0
    %1871 = vmatpush2.msra.mxu0 0.0
    %1872 = vmatprep.subr.mxu0 0.0
    %1873 = vmatpush2.msra.mxu0 0.0
    %1874 = vmatprep.subr.mxu0 0.0
    %1875 = vmatpush2.msra.mxu0 0.0
    %1876 = vmatprep.subr.mxu0 0.0
    %1877 = vmatpush2.msra.mxu0 0.0
    %1878 = vmatprep.subr.mxu0 0.0
    %1879 = vmatpush2.msra.mxu0 0.0
    %1880 = vmatprep.subr.mxu0 0.0
    %1881 = vmatpush2.msra.mxu0 0.0
    %1882 = vmatprep.subr.mxu0 0.0
    %1883 = vmatpush2.msra.mxu0 0.0
    %1884 = vmatprep.subr.mxu0 0.0
    %1885 = vmatpush2.msra.mxu0 0.0
    %1886 = vmatprep.subr.mxu0 0.0
    %1887 = vmatpush2.msra.mxu0 0.0
    %1888 = vmatprep.subr.mxu0 0.0
    %1889 = vmatpush2.msra.mxu0 0.0
    %1890 = vmatprep.mubr.f32.mxu0 0.0
    %1891 = vmatmul.mubr.f32.gmra.mxu0 %v1754
    %v1892 = vpop.f32.mrf.mxu0
    %v1893 = vadd.f32 0.0, %v1892
    %v1894 = vpop.f32.mrf.mxu0
    %v1895 = vadd.f32 0.0, %v1894
    %1896 = vdwg.mxu0
    %v1897 = vadd.f32 %v516, %v1822
    %v1898 = vadd.f32 %v518, %v1824
    %v1899 = vadd.f32 %v629, %v1893
    %v1900 = vadd.f32 %v631, %v1895
    %v1901 = vxor.u32 %v1897, 2147483648
    %v1902 = vmul.f32 %v1901, 1.442695
    %v1903 = vpow.pop %v1902
    %v1904 = vadd.f32 %v1903, 1.0
    %v1905 = vrcp.pop %v1904
    %v1906 = vmul.f32 1.0, %v1905
    %v1907 = vxor.u32 %v1898, 2147483648
    %v1908 = vmul.f32 %v1907, 1.442695
    %v1909 = vpow.pop %v1908
    %v1910 = vadd.f32 %v1909, 1.0
    %v1911 = vrcp.pop %v1910
    %v1912 = vmul.f32 1.0, %v1911
    %v1913 = vtanh.pop %v1899
    %v1914 = vxor.u32 %v1900, 2147483648
    %v1915 = vmul.f32 %v1914, 1.442695
    %v1916 = vpow.pop %v1915
    %v1917 = vadd.f32 %v1916, 1.0
    %v1918 = vrcp.pop %v1917
    %v1919 = vmul.f32 1.0, %v1918
    %v1920 = vmul.f32 %v1912, %v1752
    %v1921 = vmul.f32 %v1906, %v1913
    %v1922 = vadd.f32 %v1920, %v1921
    %v1923 = vtanh.pop %v1922
    %v1924 = vmul.f32 %v1919, %v1923
    %1925 = vmatprep.subr.mxu0 %v732
    %1926 = vmatpush1.msra.mxu0 %v731
    %1927 = vmatprep.subr.mxu0 %v728
    %1928 = vmatpush1.msra.mxu0 %v727
    %1929 = vmatprep.subr.mxu0 %v724
    %1930 = vmatpush1.msra.mxu0 %v723
    %1931 = vmatprep.subr.mxu0 %v720
    %1932 = vmatpush1.msra.mxu0 %v719
    %1933 = vmatprep.subr.mxu0 %v716
    %1934 = vmatpush1.msra.mxu0 %v715
    %1935 = vmatprep.subr.mxu0 %v712
    %1936 = vmatpush1.msra.mxu0 %v711
    %1937 = vmatprep.subr.mxu0 %v708
    %1938 = vmatpush1.msra.mxu0 %v707
    %1939 = vmatprep.subr.mxu0 %v704
    %1940 = vmatpush1.msra.mxu0 %v703
    %1941 = vmatprep.subr.mxu0 %v700
    %1942 = vmatpush1.msra.mxu0 %v699
    %1943 = vmatprep.subr.mxu0 %v696
    %1944 = vmatpush1.msra.mxu0 %v695
    %1945 = vmatprep.subr.mxu0 %v692
    %1946 = vmatpush1.msra.mxu0 %v691
    %1947 = vmatprep.subr.mxu0 %v688
    %1948 = vmatpush1.msra.mxu0 %v687
    %1949 = vmatprep.subr.mxu0 %v684
    %1950 = vmatpush1.msra.mxu0 %v683
    %1951 = vmatprep.subr.mxu0 %v680
    %1952 = vmatpush1.msra.mxu0 %v679
    %1953 = vmatprep.subr.mxu0 %v676
    %1954 = vmatpush1.msra.mxu0 %v675
    %1955 = vmatprep.subr.mxu0 %v672
    %1956 = vmatpush1.msra.mxu0 %v671
    %1957 = vmatprep.subr.mxu0 0.0
    %1958 = vmatpush2.msra.mxu0 0.0
    %1959 = vmatprep.subr.mxu0 0.0
    %1960 = vmatpush2.msra.mxu0 0.0
    %1961 = vmatprep.subr.mxu0 0.0
    %1962 = vmatpush2.msra.mxu0 0.0
    %1963 = vmatprep.subr.mxu0 0.0
    %1964 = vmatpush2.msra.mxu0 0.0
    %1965 = vmatprep.subr.mxu0 0.0
    %1966 = vmatpush2.msra.mxu0 0.0
    %1967 = vmatprep.subr.mxu0 0.0
    %1968 = vmatpush2.msra.mxu0 0.0
    %1969 = vmatprep.subr.mxu0 0.0
    %1970 = vmatpush2.msra.mxu0 0.0
    %1971 = vmatprep.subr.mxu0 0.0
    %1972 = vmatpush2.msra.mxu0 0.0
    %1973 = vmatprep.subr.mxu0 0.0
    %1974 = vmatpush2.msra.mxu0 0.0
    %1975 = vmatprep.subr.mxu0 0.0
    %1976 = vmatpush2.msra.mxu0 0.0
    %1977 = vmatprep.subr.mxu0 0.0
    %1978 = vmatpush2.msra.mxu0 0.0
    %1979 = vmatprep.subr.mxu0 0.0
    %1980 = vmatpush2.msra.mxu0 0.0
    %1981 = vmatprep.subr.mxu0 0.0
    %1982 = vmatpush2.msra.mxu0 0.0
    %1983 = vmatprep.subr.mxu0 0.0
    %1984 = vmatpush2.msra.mxu0 0.0
    %1985 = vmatprep.subr.mxu0 0.0
    %1986 = vmatpush2.msra.mxu0 0.0
    %1987 = vmatprep.subr.mxu0 0.0
    %1988 = vmatpush2.msra.mxu0 0.0
    %1989 = vmatprep.mubr.f32.mxu0 0.0
    %1990 = vmatmul.mubr.f32.gmra.mxu0 %v1924
    %v1991 = vpop.f32.mrf.mxu0
    %v1992 = vadd.f32 0.0, %v1991
    %v1993 = vpop.f32.mrf.mxu0
    %v1994 = vadd.f32 0.0, %v1993
    %1995 = vdwg.mxu0
    %1996 = vmatprep.subr.mxu0 %v734
    %1997 = vmatpush1.msra.mxu0 %v733
    %1998 = vmatprep.subr.mxu0 %v730
    %1999 = vmatpush1.msra.mxu0 %v729
    %2000 = vmatprep.subr.mxu0 %v726
    %2001 = vmatpush1.msra.mxu0 %v725
    %2002 = vmatprep.subr.mxu0 %v722
    %2003 = vmatpush1.msra.mxu0 %v721
    %2004 = vmatprep.subr.mxu0 %v718
    %2005 = vmatpush1.msra.mxu0 %v717
    %2006 = vmatprep.subr.mxu0 %v714
    %2007 = vmatpush1.msra.mxu0 %v713
    %2008 = vmatprep.subr.mxu0 %v710
    %2009 = vmatpush1.msra.mxu0 %v709
    %2010 = vmatprep.subr.mxu0 %v706
    %2011 = vmatpush1.msra.mxu0 %v705
    %2012 = vmatprep.subr.mxu0 %v702
    %2013 = vmatpush1.msra.mxu0 %v701
    %2014 = vmatprep.subr.mxu0 %v698
    %2015 = vmatpush1.msra.mxu0 %v697
    %2016 = vmatprep.subr.mxu0 %v694
    %2017 = vmatpush1.msra.mxu0 %v693
    %2018 = vmatprep.subr.mxu0 %v690
    %2019 = vmatpush1.msra.mxu0 %v689
    %2020 = vmatprep.subr.mxu0 %v686
    %2021 = vmatpush1.msra.mxu0 %v685
    %2022 = vmatprep.subr.mxu0 %v682
    %2023 = vmatpush1.msra.mxu0 %v681
    %2024 = vmatprep.subr.mxu0 %v678
    %2025 = vmatpush1.msra.mxu0 %v677
    %2026 = vmatprep.subr.mxu0 %v674
    %2027 = vmatpush1.msra.mxu0 %v673
    %2028 = vmatprep.subr.mxu0 0.0
    %2029 = vmatpush2.msra.mxu0 0.0
    %2030 = vmatprep.subr.mxu0 0.0
    %2031 = vmatpush2.msra.mxu0 0.0
    %2032 = vmatprep.subr.mxu0 0.0
    %2033 = vmatpush2.msra.mxu0 0.0
    %2034 = vmatprep.subr.mxu0 0.0
    %2035 = vmatpush2.msra.mxu0 0.0
    %2036 = vmatprep.subr.mxu0 0.0
    %2037 = vmatpush2.msra.mxu0 0.0
    %2038 = vmatprep.subr.mxu0 0.0
    %2039 = vmatpush2.msra.mxu0 0.0
    %2040 = vmatprep.subr.mxu0 0.0
    %2041 = vmatpush2.msra.mxu0 0.0
    %2042 = vmatprep.subr.mxu0 0.0
    %2043 = vmatpush2.msra.mxu0 0.0
    %2044 = vmatprep.subr.mxu0 0.0
    %2045 = vmatpush2.msra.mxu0 0.0
    %2046 = vmatprep.subr.mxu0 0.0
    %2047 = vmatpush2.msra.mxu0 0.0
    %2048 = vmatprep.subr.mxu0 0.0
    %2049 = vmatpush2.msra.mxu0 0.0
    %2050 = vmatprep.subr.mxu0 0.0
    %2051 = vmatpush2.msra.mxu0 0.0
    %2052 = vmatprep.subr.mxu0 0.0
    %2053 = vmatpush2.msra.mxu0 0.0
    %2054 = vmatprep.subr.mxu0 0.0
    %2055 = vmatpush2.msra.mxu0 0.0
    %2056 = vmatprep.subr.mxu0 0.0
    %2057 = vmatpush2.msra.mxu0 0.0
    %2058 = vmatprep.subr.mxu0 0.0
    %2059 = vmatpush2.msra.mxu0 0.0
    %2060 = vmatprep.mubr.f32.mxu0 0.0
    %2061 = vmatmul.mubr.f32.gmra.mxu0 %v1924
    %v2062 = vpop.f32.mrf.mxu0
    %v2063 = vadd.f32 0.0, %v2062
    %v2064 = vpop.f32.mrf.mxu0
    %v2065 = vadd.f32 0.0, %v2064
    %2066 = vdwg.mxu0
    %v2067 = vadd.f32 %v522, %v1992
    %v2068 = vadd.f32 %v524, %v1994
    %v2069 = vadd.f32 %v635, %v2063
    %v2070 = vadd.f32 %v637, %v2065
    %v2071 = vxor.u32 %v2067, 2147483648
    %v2072 = vmul.f32 %v2071, 1.442695
    %v2073 = vpow.pop %v2072
    %v2074 = vadd.f32 %v2073, 1.0
    %v2075 = vrcp.pop %v2074
    %v2076 = vmul.f32 1.0, %v2075
    %v2077 = vxor.u32 %v2068, 2147483648
    %v2078 = vmul.f32 %v2077, 1.442695
    %v2079 = vpow.pop %v2078
    %v2080 = vadd.f32 %v2079, 1.0
    %v2081 = vrcp.pop %v2080
    %v2082 = vmul.f32 1.0, %v2081
    %v2083 = vtanh.pop %v2069
    %v2084 = vxor.u32 %v2070, 2147483648
    %v2085 = vmul.f32 %v2084, 1.442695
    %v2086 = vpow.pop %v2085
    %v2087 = vadd.f32 %v2086, 1.0
    %v2088 = vrcp.pop %v2087
    %v2089 = vmul.f32 1.0, %v2088
    %v2090 = vmul.f32 %v2082, %v1922
    %v2091 = vmul.f32 %v2076, %v2083
    %v2092 = vadd.f32 %v2090, %v2091
    %v2093 = vtanh.pop %v2092
    %v2094 = vmul.f32 %v2089, %v2093
    %v2095 = vld [vmem:[%s1] sm:$0xff]
    %v2096 = vld [vmem:[%s1 + $0x8] sm:$0xff]
    %v2097 = vld [vmem:[%s1 + $0x10] sm:$0xff]
    %v2098 = vld [vmem:[#allocation11] sm:$0xff]
    %v2099 = vld [vmem:[#allocation11 + $0x8] sm:$0xff]
    %v2100 = vld [vmem:[#allocation11 + $0x10] sm:$0xff]
    %v2101 = vld [vmem:[#allocation11 + $0x18] sm:$0xff]
    %v2102 = vld [vmem:[#allocation11 + $0x20] sm:$0xff]
    %v2103 = vld [vmem:[#allocation11 + $0x28] sm:$0xff]
    %v2104 = vld [vmem:[#allocation11 + $0x30] sm:$0xff]
    %v2105 = vld [vmem:[#allocation11 + $0x38] sm:$0xff]
    %v2106 = vld [vmem:[#allocation11 + $0x40] sm:$0xff]
    %v2107 = vld [vmem:[#allocation11 + $0x48] sm:$0xff]
    %v2108 = vld [vmem:[#allocation11 + $0x50] sm:$0xff]
    %v2109 = vld [vmem:[#allocation11 + $0x58] sm:$0xff]
    %v2110 = vld [vmem:[#allocation11 + $0x60] sm:$0xff]
    %v2111 = vld [vmem:[#allocation11 + $0x68] sm:$0xff]
    %v2112 = vld [vmem:[#allocation11 + $0x70] sm:$0xff]
    %v2113 = vld [vmem:[#allocation11 + $0x78] sm:$0xff]
    %v2114 = vld [vmem:[#allocation11 + $0x80] sm:$0xff]
    %v2115 = vld [vmem:[#allocation11 + $0x88] sm:$0xff]
    %v2116 = vld [vmem:[#allocation11 + $0x90] sm:$0xff]
    %v2117 = vld [vmem:[#allocation11 + $0x98] sm:$0xff]
    %v2118 = vld [vmem:[#allocation11 + $0xa0] sm:$0xff]
    %v2119 = vld [vmem:[#allocation11 + $0xa8] sm:$0xff]
    %v2120 = vld [vmem:[#allocation11 + $0xb0] sm:$0xff]
    %v2121 = vld [vmem:[#allocation11 + $0xb8] sm:$0xff]
    %v2122 = vld [vmem:[#allocation11 + $0xc0] sm:$0xff]
    %v2123 = vld [vmem:[#allocation11 + $0xc8] sm:$0xff]
    %v2124 = vld [vmem:[#allocation11 + $0xd0] sm:$0xff]
    %v2125 = vld [vmem:[#allocation11 + $0xd8] sm:$0xff]
    %v2126 = vld [vmem:[#allocation11 + $0xe0] sm:$0xff]
    %v2127 = vld [vmem:[#allocation11 + $0xe8] sm:$0xff]
    %v2128 = vld [vmem:[#allocation11 + $0xf0] sm:$0xff]
    %v2129 = vld [vmem:[#allocation11 + $0xf8] sm:$0xff]
    %v2130 = vld [vmem:[#allocation13] sm:$0xff]
    %v2131 = vld [vmem:[#allocation13 + $0x8] sm:$0xff]
    %v2132 = vld [vmem:[#allocation13 + $0x10] sm:$0xff]
    %v2133 = vld [vmem:[#allocation13 + $0x18] sm:$0xff]
    %v2134 = vld [vmem:[#allocation13 + $0x20] sm:$0xff]
    %v2135 = vld [vmem:[#allocation13 + $0x28] sm:$0xff]
    %v2136 = vld [vmem:[#allocation13 + $0x30] sm:$0xff]
    %v2137 = vld [vmem:[#allocation13 + $0x38] sm:$0xff]
    %v2138 = vld [vmem:[#allocation13 + $0x40] sm:$0xff]
    %v2139 = vld [vmem:[#allocation13 + $0x48] sm:$0xff]
    %v2140 = vld [vmem:[#allocation13 + $0x50] sm:$0xff]
    %v2141 = vld [vmem:[#allocation13 + $0x58] sm:$0xff]
    %v2142 = vld [vmem:[#allocation13 + $0x60] sm:$0xff]
    %v2143 = vld [vmem:[#allocation13 + $0x68] sm:$0xff]
    %v2144 = vld [vmem:[#allocation13 + $0x70] sm:$0xff]
    %v2145 = vld [vmem:[#allocation13 + $0x78] sm:$0xff]
    %v2146 = vld [vmem:[#allocation13 + $0x80] sm:$0xff]
    %v2147 = vld [vmem:[#allocation13 + $0x88] sm:$0xff]
    %v2148 = vld [vmem:[#allocation13 + $0x90] sm:$0xff]
    %v2149 = vld [vmem:[#allocation13 + $0x98] sm:$0xff]
    %v2150 = vld [vmem:[#allocation13 + $0xa0] sm:$0xff]
    %v2151 = vld [vmem:[#allocation13 + $0xa8] sm:$0xff]
    %v2152 = vld [vmem:[#allocation13 + $0xb0] sm:$0xff]
    %v2153 = vld [vmem:[#allocation13 + $0xb8] sm:$0xff]
    %v2154 = vld [vmem:[#allocation13 + $0xc0] sm:$0xff]
    %v2155 = vld [vmem:[#allocation13 + $0xc8] sm:$0xff]
    %v2156 = vld [vmem:[#allocation13 + $0xd0] sm:$0xff]
    %v2157 = vld [vmem:[#allocation13 + $0xd8] sm:$0xff]
    %v2158 = vld [vmem:[#allocation13 + $0xe0] sm:$0xff]
    %v2159 = vld [vmem:[#allocation13 + $0xe8] sm:$0xff]
    %v2160 = vld [vmem:[#allocation13 + $0xf0] sm:$0xff]
    %v2161 = vld [vmem:[#allocation13 + $0xf8] sm:$0xff]
    %v2162 = vld [vmem:[#allocation13 + $0x100] sm:$0xff]
    %v2163 = vld [vmem:[#allocation13 + $0x108] sm:$0xff]
    %v2164 = vld [vmem:[#allocation13 + $0x110] sm:$0xff]
    %v2165 = vld [vmem:[#allocation13 + $0x118] sm:$0xff]
    %v2166 = vld [vmem:[#allocation13 + $0x120] sm:$0xff]
    %v2167 = vld [vmem:[#allocation13 + $0x128] sm:$0xff]
    %v2168 = vld [vmem:[#allocation13 + $0x130] sm:$0xff]
    %v2169 = vld [vmem:[#allocation13 + $0x138] sm:$0xff]
    %v2170 = vld [vmem:[#allocation13 + $0x140] sm:$0xff]
    %v2171 = vld [vmem:[#allocation13 + $0x148] sm:$0xff]
    %v2172 = vld [vmem:[#allocation13 + $0x150] sm:$0xff]
    %v2173 = vld [vmem:[#allocation13 + $0x158] sm:$0xff]
    %v2174 = vld [vmem:[#allocation13 + $0x160] sm:$0xff]
    %v2175 = vld [vmem:[#allocation13 + $0x168] sm:$0xff]
    %v2176 = vld [vmem:[#allocation13 + $0x170] sm:$0xff]
    %v2177 = vld [vmem:[#allocation13 + $0x178] sm:$0xff]
    %v2178 = vld [vmem:[#allocation13 + $0x180] sm:$0xff]
    %v2179 = vld [vmem:[#allocation13 + $0x188] sm:$0xff]
    %v2180 = vld [vmem:[#allocation13 + $0x190] sm:$0xff]
    %v2181 = vld [vmem:[#allocation13 + $0x198] sm:$0xff]
    %v2182 = vld [vmem:[#allocation13 + $0x1a0] sm:$0xff]
    %v2183 = vld [vmem:[#allocation13 + $0x1a8] sm:$0xff]
    %v2184 = vld [vmem:[#allocation13 + $0x1b0] sm:$0xff]
    %v2185 = vld [vmem:[#allocation13 + $0x1b8] sm:$0xff]
    %v2186 = vld [vmem:[#allocation13 + $0x1c0] sm:$0xff]
    %v2187 = vld [vmem:[#allocation13 + $0x1c8] sm:$0xff]
    %v2188 = vld [vmem:[#allocation13 + $0x1d0] sm:$0xff]
    %v2189 = vld [vmem:[#allocation13 + $0x1d8] sm:$0xff]
    %v2190 = vld [vmem:[#allocation13 + $0x1e0] sm:$0xff]
    %v2191 = vld [vmem:[#allocation13 + $0x1e8] sm:$0xff]
    %v2192 = vld [vmem:[#allocation13 + $0x1f0] sm:$0xff]
    %v2193 = vld [vmem:[#allocation13 + $0x1f8] sm:$0xff]
    %v2194 = vld [vmem:[#allocation13 + $0x200] sm:$0xff]
    %v2195 = vld [vmem:[#allocation13 + $0x208] sm:$0xff]
    %v2196 = vld [vmem:[#allocation13 + $0x210] sm:$0xff]
    %v2197 = vld [vmem:[#allocation13 + $0x218] sm:$0xff]
    %v2198 = vld [vmem:[#allocation13 + $0x220] sm:$0xff]
    %v2199 = vld [vmem:[#allocation13 + $0x228] sm:$0xff]
    %v2200 = vld [vmem:[#allocation13 + $0x230] sm:$0xff]
    %v2201 = vld [vmem:[#allocation13 + $0x238] sm:$0xff]
    %v2202 = vld [vmem:[#allocation13 + $0x240] sm:$0xff]
    %v2203 = vld [vmem:[#allocation13 + $0x248] sm:$0xff]
    %v2204 = vld [vmem:[#allocation13 + $0x250] sm:$0xff]
    %v2205 = vld [vmem:[#allocation13 + $0x258] sm:$0xff]
    %v2206 = vld [vmem:[#allocation13 + $0x260] sm:$0xff]
    %v2207 = vld [vmem:[#allocation13 + $0x268] sm:$0xff]
    %v2208 = vld [vmem:[#allocation13 + $0x270] sm:$0xff]
    %v2209 = vld [vmem:[#allocation13 + $0x278] sm:$0xff]
    %v2210 = vld [vmem:[#allocation13 + $0x280] sm:$0xff]
    %v2211 = vld [vmem:[#allocation13 + $0x288] sm:$0xff]
    %v2212 = vld [vmem:[#allocation13 + $0x290] sm:$0xff]
    %v2213 = vld [vmem:[#allocation13 + $0x298] sm:$0xff]
    %v2214 = vld [vmem:[#allocation13 + $0x2a0] sm:$0xff]
    %v2215 = vld [vmem:[#allocation13 + $0x2a8] sm:$0xff]
    %v2216 = vld [vmem:[#allocation13 + $0x2b0] sm:$0xff]
    %v2217 = vld [vmem:[#allocation13 + $0x2b8] sm:$0xff]
    %v2218 = vld [vmem:[#allocation13 + $0x2c0] sm:$0xff]
    %v2219 = vld [vmem:[#allocation13 + $0x2c8] sm:$0xff]
    %v2220 = vld [vmem:[#allocation13 + $0x2d0] sm:$0xff]
    %v2221 = vld [vmem:[#allocation13 + $0x2d8] sm:$0xff]
    %v2222 = vld [vmem:[#allocation13 + $0x2e0] sm:$0x77]
    %v2223 = vld [vmem:[#allocation13 + $0x2e8] sm:$0x77]
    %v2318 = vunpack.c.l.b16 %v2130
    %v2319 = vunpack.c.h.b16 %v2130
    %v2320 = vunpack.c.l.b16 %v2131
    %v2321 = vunpack.c.h.b16 %v2131
    %v2322 = vunpack.c.l.b16 %v2132
    %v2323 = vunpack.c.h.b16 %v2132
    %v2324 = vunpack.c.l.b16 %v2133
    %v2325 = vunpack.c.h.b16 %v2133
    %v2326 = vunpack.c.l.b16 %v2134
    %v2327 = vunpack.c.h.b16 %v2134
    %v2328 = vunpack.c.l.b16 %v2135
    %v2329 = vunpack.c.h.b16 %v2135
    %v2330 = vunpack.c.l.b16 %v2136
    %v2331 = vunpack.c.h.b16 %v2136
    %v2332 = vunpack.c.l.b16 %v2137
    %v2333 = vunpack.c.h.b16 %v2137
    %v2334 = vunpack.c.l.b16 %v2138
    %v2335 = vunpack.c.h.b16 %v2138
    %v2336 = vunpack.c.l.b16 %v2139
    %v2337 = vunpack.c.h.b16 %v2139
    %v2338 = vunpack.c.l.b16 %v2140
    %v2339 = vunpack.c.h.b16 %v2140
    %v2340 = vunpack.c.l.b16 %v2141
    %v2341 = vunpack.c.h.b16 %v2141
    %v2342 = vunpack.c.l.b16 %v2142
    %v2343 = vunpack.c.h.b16 %v2142
    %v2344 = vunpack.c.l.b16 %v2143
    %v2345 = vunpack.c.h.b16 %v2143
    %v2346 = vunpack.c.l.b16 %v2144
    %v2347 = vunpack.c.h.b16 %v2144
    %v2348 = vunpack.c.l.b16 %v2145
    %v2349 = vunpack.c.h.b16 %v2145
    %v2350 = vunpack.c.l.b16 %v2146
    %v2351 = vunpack.c.h.b16 %v2146
    %v2352 = vunpack.c.l.b16 %v2147
    %v2353 = vunpack.c.h.b16 %v2147
    %v2354 = vunpack.c.l.b16 %v2148
    %v2355 = vunpack.c.h.b16 %v2148
    %v2356 = vunpack.c.l.b16 %v2149
    %v2357 = vunpack.c.h.b16 %v2149
    %v2358 = vunpack.c.l.b16 %v2150
    %v2359 = vunpack.c.h.b16 %v2150
    %v2360 = vunpack.c.l.b16 %v2151
    %v2361 = vunpack.c.h.b16 %v2151
    %v2362 = vunpack.c.l.b16 %v2152
    %v2363 = vunpack.c.h.b16 %v2152
    %v2364 = vunpack.c.l.b16 %v2153
    %v2365 = vunpack.c.h.b16 %v2153
    %v2366 = vunpack.c.l.b16 %v2154
    %v2367 = vunpack.c.h.b16 %v2154
    %v2368 = vunpack.c.l.b16 %v2155
    %v2369 = vunpack.c.h.b16 %v2155
    %v2370 = vunpack.c.l.b16 %v2156
    %v2371 = vunpack.c.h.b16 %v2156
    %v2372 = vunpack.c.l.b16 %v2157
    %v2373 = vunpack.c.h.b16 %v2157
    %v2374 = vunpack.c.l.b16 %v2158
    %v2375 = vunpack.c.h.b16 %v2158
    %v2376 = vunpack.c.l.b16 %v2159
    %v2377 = vunpack.c.h.b16 %v2159
    %v2378 = vunpack.c.l.b16 %v2160
    %v2379 = vunpack.c.h.b16 %v2160
    %v2380 = vunpack.c.l.b16 %v2161
    %v2381 = vunpack.c.h.b16 %v2161
    %v2382 = vunpack.c.l.b16 %v2162
    %v2383 = vunpack.c.h.b16 %v2162
    %v2384 = vunpack.c.l.b16 %v2163
    %v2385 = vunpack.c.h.b16 %v2163
    %v2386 = vunpack.c.l.b16 %v2164
    %v2387 = vunpack.c.h.b16 %v2164
    %v2388 = vunpack.c.l.b16 %v2165
    %v2389 = vunpack.c.h.b16 %v2165
    %v2390 = vunpack.c.l.b16 %v2166
    %v2391 = vunpack.c.h.b16 %v2166
    %v2392 = vunpack.c.l.b16 %v2167
    %v2393 = vunpack.c.h.b16 %v2167
    %v2394 = vunpack.c.l.b16 %v2168
    %v2395 = vunpack.c.h.b16 %v2168
    %v2396 = vunpack.c.l.b16 %v2169
    %v2397 = vunpack.c.h.b16 %v2169
    %v2398 = vunpack.c.l.b16 %v2170
    %v2399 = vunpack.c.h.b16 %v2170
    %v2400 = vunpack.c.l.b16 %v2171
    %v2401 = vunpack.c.h.b16 %v2171
    %v2402 = vunpack.c.l.b16 %v2172
    %v2403 = vunpack.c.h.b16 %v2172
    %v2404 = vunpack.c.l.b16 %v2173
    %v2405 = vunpack.c.h.b16 %v2173
    %v2406 = vunpack.c.l.b16 %v2174
    %v2407 = vunpack.c.h.b16 %v2174
    %v2408 = vunpack.c.l.b16 %v2175
    %v2409 = vunpack.c.h.b16 %v2175
    %v2410 = vunpack.c.l.b16 %v2176
    %v2411 = vunpack.c.h.b16 %v2176
    %v2412 = vunpack.c.l.b16 %v2177
    %v2413 = vunpack.c.h.b16 %v2177
    %v2414 = vunpack.c.l.b16 %v2178
    %v2415 = vunpack.c.h.b16 %v2178
    %v2416 = vunpack.c.l.b16 %v2179
    %v2417 = vunpack.c.h.b16 %v2179
    %v2418 = vunpack.c.l.b16 %v2180
    %v2419 = vunpack.c.h.b16 %v2180
    %v2420 = vunpack.c.l.b16 %v2181
    %v2421 = vunpack.c.h.b16 %v2181
    %v2422 = vunpack.c.l.b16 %v2182
    %v2423 = vunpack.c.h.b16 %v2182
    %v2424 = vunpack.c.l.b16 %v2183
    %v2425 = vunpack.c.h.b16 %v2183
    %v2426 = vunpack.c.l.b16 %v2184
    %v2427 = vunpack.c.h.b16 %v2184
    %v2428 = vunpack.c.l.b16 %v2185
    %v2429 = vunpack.c.h.b16 %v2185
    %v2430 = vunpack.c.l.b16 %v2186
    %v2431 = vunpack.c.h.b16 %v2186
    %v2432 = vunpack.c.l.b16 %v2187
    %v2433 = vunpack.c.h.b16 %v2187
    %v2434 = vunpack.c.l.b16 %v2188
    %v2435 = vunpack.c.h.b16 %v2188
    %v2436 = vunpack.c.l.b16 %v2189
    %v2437 = vunpack.c.h.b16 %v2189
    %v2438 = vunpack.c.l.b16 %v2190
    %v2439 = vunpack.c.h.b16 %v2190
    %v2440 = vunpack.c.l.b16 %v2191
    %v2441 = vunpack.c.h.b16 %v2191
    %v2442 = vunpack.c.l.b16 %v2192
    %v2443 = vunpack.c.h.b16 %v2192
    %v2444 = vunpack.c.l.b16 %v2193
    %v2445 = vunpack.c.h.b16 %v2193
    %v2446 = vunpack.c.l.b16 %v2194
    %v2447 = vunpack.c.h.b16 %v2194
    %v2448 = vunpack.c.l.b16 %v2195
    %v2449 = vunpack.c.h.b16 %v2195
    %v2450 = vunpack.c.l.b16 %v2196
    %v2451 = vunpack.c.h.b16 %v2196
    %v2452 = vunpack.c.l.b16 %v2197
    %v2453 = vunpack.c.h.b16 %v2197
    %v2454 = vunpack.c.l.b16 %v2198
    %v2455 = vunpack.c.h.b16 %v2198
    %v2456 = vunpack.c.l.b16 %v2199
    %v2457 = vunpack.c.h.b16 %v2199
    %v2458 = vunpack.c.l.b16 %v2200
    %v2459 = vunpack.c.h.b16 %v2200
    %v2460 = vunpack.c.l.b16 %v2201
    %v2461 = vunpack.c.h.b16 %v2201
    %v2462 = vunpack.c.l.b16 %v2202
    %v2463 = vunpack.c.h.b16 %v2202
    %v2464 = vunpack.c.l.b16 %v2203
    %v2465 = vunpack.c.h.b16 %v2203
    %v2466 = vunpack.c.l.b16 %v2204
    %v2467 = vunpack.c.h.b16 %v2204
    %v2468 = vunpack.c.l.b16 %v2205
    %v2469 = vunpack.c.h.b16 %v2205
    %v2470 = vunpack.c.l.b16 %v2206
    %v2471 = vunpack.c.h.b16 %v2206
    %v2472 = vunpack.c.l.b16 %v2207
    %v2473 = vunpack.c.h.b16 %v2207
    %v2474 = vunpack.c.l.b16 %v2208
    %v2475 = vunpack.c.h.b16 %v2208
    %v2476 = vunpack.c.l.b16 %v2209
    %v2477 = vunpack.c.h.b16 %v2209
    %v2478 = vunpack.c.l.b16 %v2210
    %v2479 = vunpack.c.h.b16 %v2210
    %v2480 = vunpack.c.l.b16 %v2211
    %v2481 = vunpack.c.h.b16 %v2211
    %v2482 = vunpack.c.l.b16 %v2212
    %v2483 = vunpack.c.h.b16 %v2212
    %v2484 = vunpack.c.l.b16 %v2213
    %v2485 = vunpack.c.h.b16 %v2213
    %v2486 = vunpack.c.l.b16 %v2214
    %v2487 = vunpack.c.h.b16 %v2214
    %v2488 = vunpack.c.l.b16 %v2215
    %v2489 = vunpack.c.h.b16 %v2215
    %v2490 = vunpack.c.l.b16 %v2216
    %v2491 = vunpack.c.h.b16 %v2216
    %v2492 = vunpack.c.l.b16 %v2217
    %v2493 = vunpack.c.h.b16 %v2217
    %v2494 = vunpack.c.l.b16 %v2218
    %v2495 = vunpack.c.h.b16 %v2218
    %v2496 = vunpack.c.l.b16 %v2219
    %v2497 = vunpack.c.h.b16 %v2219
    %v2498 = vunpack.c.l.b16 %v2220
    %v2499 = vunpack.c.h.b16 %v2220
    %v2500 = vunpack.c.l.b16 %v2221
    %v2501 = vunpack.c.h.b16 %v2221
    %v2502 = vunpack.c.l.b16 %v2222
    %v2503 = vunpack.c.h.b16 %v2222
    %v2504 = vunpack.c.l.b16 %v2223
    %v2505 = vunpack.c.h.b16 %v2223
    %v2506 = vpack.c.b16 %v2322, %v2318
    %v2507 = vpack.c.b16 %v2323, %v2319
    %v2508 = vpack.c.b16 %v2324, %v2320
    %v2509 = vpack.c.b16 %v2325, %v2321
    %v2510 = vpack.c.b16 %v2330, %v2326
    %v2511 = vpack.c.b16 %v2331, %v2327
    %v2512 = vpack.c.b16 %v2332, %v2328
    %v2513 = vpack.c.b16 %v2333, %v2329
    %v2514 = vpack.c.b16 %v2338, %v2334
    %v2515 = vpack.c.b16 %v2339, %v2335
    %v2516 = vpack.c.b16 %v2340, %v2336
    %v2517 = vpack.c.b16 %v2341, %v2337
    %v2518 = vpack.c.b16 %v2346, %v2342
    %v2519 = vpack.c.b16 %v2347, %v2343
    %v2520 = vpack.c.b16 %v2348, %v2344
    %v2521 = vpack.c.b16 %v2349, %v2345
    %v2522 = vpack.c.b16 %v2354, %v2350
    %v2523 = vpack.c.b16 %v2355, %v2351
    %v2524 = vpack.c.b16 %v2356, %v2352
    %v2525 = vpack.c.b16 %v2357, %v2353
    %v2526 = vpack.c.b16 %v2362, %v2358
    %v2527 = vpack.c.b16 %v2363, %v2359
    %v2528 = vpack.c.b16 %v2364, %v2360
    %v2529 = vpack.c.b16 %v2365, %v2361
    %v2530 = vpack.c.b16 %v2370, %v2366
    %v2531 = vpack.c.b16 %v2371, %v2367
    %v2532 = vpack.c.b16 %v2372, %v2368
    %v2533 = vpack.c.b16 %v2373, %v2369
    %v2534 = vpack.c.b16 %v2378, %v2374
    %v2535 = vpack.c.b16 %v2379, %v2375
    %v2536 = vpack.c.b16 %v2380, %v2376
    %v2537 = vpack.c.b16 %v2381, %v2377
    %v2538 = vpack.c.b16 %v2386, %v2382
    %v2539 = vpack.c.b16 %v2387, %v2383
    %v2540 = vpack.c.b16 %v2388, %v2384
    %v2541 = vpack.c.b16 %v2389, %v2385
    %v2542 = vpack.c.b16 %v2394, %v2390
    %v2543 = vpack.c.b16 %v2395, %v2391
    %v2544 = vpack.c.b16 %v2396, %v2392
    %v2545 = vpack.c.b16 %v2397, %v2393
    %v2546 = vpack.c.b16 %v2402, %v2398
    %v2547 = vpack.c.b16 %v2403, %v2399
    %v2548 = vpack.c.b16 %v2404, %v2400
    %v2549 = vpack.c.b16 %v2405, %v2401
    %v2550 = vpack.c.b16 %v2410, %v2406
    %v2551 = vpack.c.b16 %v2411, %v2407
    %v2552 = vpack.c.b16 %v2412, %v2408
    %v2553 = vpack.c.b16 %v2413, %v2409
    %v2554 = vpack.c.b16 %v2418, %v2414
    %v2555 = vpack.c.b16 %v2419, %v2415
    %v2556 = vpack.c.b16 %v2420, %v2416
    %v2557 = vpack.c.b16 %v2421, %v2417
    %v2558 = vpack.c.b16 %v2426, %v2422
    %v2559 = vpack.c.b16 %v2427, %v2423
    %v2560 = vpack.c.b16 %v2428, %v2424
    %v2561 = vpack.c.b16 %v2429, %v2425
    %v2562 = vpack.c.b16 %v2434, %v2430
    %v2563 = vpack.c.b16 %v2435, %v2431
    %v2564 = vpack.c.b16 %v2436, %v2432
    %v2565 = vpack.c.b16 %v2437, %v2433
    %v2566 = vpack.c.b16 %v2442, %v2438
    %v2567 = vpack.c.b16 %v2443, %v2439
    %v2568 = vpack.c.b16 %v2444, %v2440
    %v2569 = vpack.c.b16 %v2445, %v2441
    %v2570 = vpack.c.b16 %v2450, %v2446
    %v2571 = vpack.c.b16 %v2451, %v2447
    %v2572 = vpack.c.b16 %v2452, %v2448
    %v2573 = vpack.c.b16 %v2453, %v2449
    %v2574 = vpack.c.b16 %v2458, %v2454
    %v2575 = vpack.c.b16 %v2459, %v2455
    %v2576 = vpack.c.b16 %v2460, %v2456
    %v2577 = vpack.c.b16 %v2461, %v2457
    %v2578 = vpack.c.b16 %v2466, %v2462
    %v2579 = vpack.c.b16 %v2467, %v2463
    %v2580 = vpack.c.b16 %v2468, %v2464
    %v2581 = vpack.c.b16 %v2469, %v2465
    %v2582 = vpack.c.b16 %v2474, %v2470
    %v2583 = vpack.c.b16 %v2475, %v2471
    %v2584 = vpack.c.b16 %v2476, %v2472
    %v2585 = vpack.c.b16 %v2477, %v2473
    %v2586 = vpack.c.b16 %v2482, %v2478
    %v2587 = vpack.c.b16 %v2483, %v2479
    %v2588 = vpack.c.b16 %v2484, %v2480
    %v2589 = vpack.c.b16 %v2485, %v2481
    %v2590 = vpack.c.b16 %v2490, %v2486
    %v2591 = vpack.c.b16 %v2491, %v2487
    %v2592 = vpack.c.b16 %v2492, %v2488
    %v2593 = vpack.c.b16 %v2493, %v2489
    %v2594 = vpack.c.b16 %v2498, %v2494
    %v2595 = vpack.c.b16 %v2499, %v2495
    %v2596 = vpack.c.b16 %v2500, %v2496
    %v2597 = vpack.c.b16 %v2501, %v2497
    %v2598 = vpack.c.b16 %v2502, %v2502
    %v2599 = vpack.c.b16 %v2503, %v2503
    %v2600 = vpack.c.b16 %v2504, %v2504
    %v2601 = vpack.c.b16 %v2505, %v2505
    %vm2694 = vcmask 957440
    %v2696 = vsel %vm2694, %v2097, 0
    %vm2698 = vcmask 1042432
    %v2699 = vsel %vm400, 4294967295, 65535
    %v2700 = vsel %vm2698, %v2699, 0
    %v2702 = vand.u32 %v2598, %v2700
    %v2705 = vand.u32 %v2599, %v2700
    %v2708 = vand.u32 %v2600, %v2700
    %v2711 = vand.u32 %v2601, %v2700
    %2713 = vmatprep.subr.bf16.mxu0 %v2535
    %2714 = vmatpush1.bf16.msra.mxu0 %v2534
    %2715 = vmatprep.subr.bf16.mxu0 %v2531
    %2716 = vmatpush1.bf16.msra.mxu0 %v2530
    %2717 = vmatprep.subr.bf16.mxu0 %v2527
    %2718 = vmatpush1.bf16.msra.mxu0 %v2526
    %2719 = vmatprep.subr.bf16.mxu0 %v2523
    %2720 = vmatpush1.bf16.msra.mxu0 %v2522
    %2721 = vmatprep.subr.bf16.mxu0 %v2519
    %2722 = vmatpush1.bf16.msra.mxu0 %v2518
    %2723 = vmatprep.subr.bf16.mxu0 %v2515
    %2724 = vmatpush1.bf16.msra.mxu0 %v2514
    %2725 = vmatprep.subr.bf16.mxu0 %v2511
    %2726 = vmatpush1.bf16.msra.mxu0 %v2510
    %2727 = vmatprep.subr.bf16.mxu0 %v2507
    %2728 = vmatpush1.bf16.msra.mxu0 %v2506
    %2729 = vmatprep.subr.bf16.mxu0 %v2567
    %2730 = vmatpush2.bf16.msra.mxu0 %v2566
    %2731 = vmatprep.subr.bf16.mxu0 %v2563
    %2732 = vmatpush2.bf16.msra.mxu0 %v2562
    %2733 = vmatprep.subr.bf16.mxu0 %v2559
    %2734 = vmatpush2.bf16.msra.mxu0 %v2558
    %2735 = vmatprep.subr.bf16.mxu0 %v2555
    %2736 = vmatpush2.bf16.msra.mxu0 %v2554
    %2737 = vmatprep.subr.bf16.mxu0 %v2551
    %2738 = vmatpush2.bf16.msra.mxu0 %v2550
    %2739 = vmatprep.subr.bf16.mxu0 %v2547
    %2740 = vmatpush2.bf16.msra.mxu0 %v2546
    %2741 = vmatprep.subr.bf16.mxu0 %v2543
    %2742 = vmatpush2.bf16.msra.mxu0 %v2542
    %2743 = vmatprep.subr.bf16.mxu0 %v2539
    %2744 = vmatpush2.bf16.msra.mxu0 %v2538
    %2745 = vmatprep.mubr.f32.mxu0 %v2096
    %2746 = vmatmul.mubr.f32.gmra.mxu0 %v2095
    %v2747 = vpop.f32.mrf.mxu0
    %v2748 = vadd.f32 0.0, %v2747
    %v2749 = vpop.f32.mrf.mxu0
    %v2750 = vadd.f32 0.0, %v2749
    %2751 = vdwg.mxu0
    %2752 = vmatprep.subr.bf16.mxu0 %v2705
    %2753 = vmatpush1.bf16.msra.mxu0 %v2702
    %2754 = vmatprep.subr.bf16.mxu0 %v2595
    %2755 = vmatpush1.bf16.msra.mxu0 %v2594
    %2756 = vmatprep.subr.bf16.mxu0 %v2591
    %2757 = vmatpush1.bf16.msra.mxu0 %v2590
    %2758 = vmatprep.subr.bf16.mxu0 %v2587
    %2759 = vmatpush1.bf16.msra.mxu0 %v2586
    %2760 = vmatprep.subr.bf16.mxu0 %v2583
    %2761 = vmatpush1.bf16.msra.mxu0 %v2582
    %2762 = vmatprep.subr.bf16.mxu0 %v2579
    %2763 = vmatpush1.bf16.msra.mxu0 %v2578
    %2764 = vmatprep.subr.bf16.mxu0 %v2575
    %2765 = vmatpush1.bf16.msra.mxu0 %v2574
    %2766 = vmatprep.subr.bf16.mxu0 %v2571
    %2767 = vmatpush1.bf16.msra.mxu0 %v2570
    %2768 = vmatprep.subr.bf16.mxu0 0
    %2769 = vmatpush2.bf16.msra.mxu0 0
    %2770 = vmatprep.subr.bf16.mxu0 0
    %2771 = vmatpush2.bf16.msra.mxu0 0
    %2772 = vmatprep.subr.bf16.mxu0 0
    %2773 = vmatpush2.bf16.msra.mxu0 0
    %2774 = vmatprep.subr.bf16.mxu0 0
    %2775 = vmatpush2.bf16.msra.mxu0 0
    %2776 = vmatprep.subr.bf16.mxu0 0
    %2777 = vmatpush2.bf16.msra.mxu0 0
    %2778 = vmatprep.subr.bf16.mxu0 0
    %2779 = vmatpush2.bf16.msra.mxu0 0
    %2780 = vmatprep.subr.bf16.mxu0 0
    %2781 = vmatpush2.bf16.msra.mxu0 0
    %2782 = vmatprep.subr.bf16.mxu0 0
    %2783 = vmatpush2.bf16.msra.mxu0 0
    %2784 = vmatprep.mubr.f32.mxu0 0.0
    %2785 = vmatmul.mubr.f32.gmra.mxu0 %v2696
    %v2786 = vpop.f32.mrf.mxu0
    %v2787 = vadd.f32 %v2748, %v2786
    %v2788 = vpop.f32.mrf.mxu0
    %v2789 = vadd.f32 %v2750, %v2788
    %2790 = vdwg.mxu0
    %2791 = vmatprep.subr.bf16.mxu0 %v2537
    %2792 = vmatpush1.bf16.msra.mxu0 %v2536
    %2793 = vmatprep.subr.bf16.mxu0 %v2533
    %2794 = vmatpush1.bf16.msra.mxu0 %v2532
    %2795 = vmatprep.subr.bf16.mxu0 %v2529
    %2796 = vmatpush1.bf16.msra.mxu0 %v2528
    %2797 = vmatprep.subr.bf16.mxu0 %v2525
    %2798 = vmatpush1.bf16.msra.mxu0 %v2524
    %2799 = vmatprep.subr.bf16.mxu0 %v2521
    %2800 = vmatpush1.bf16.msra.mxu0 %v2520
    %2801 = vmatprep.subr.bf16.mxu0 %v2517
    %2802 = vmatpush1.bf16.msra.mxu0 %v2516
    %2803 = vmatprep.subr.bf16.mxu0 %v2513
    %2804 = vmatpush1.bf16.msra.mxu0 %v2512
    %2805 = vmatprep.subr.bf16.mxu0 %v2509
    %2806 = vmatpush1.bf16.msra.mxu0 %v2508
    %2807 = vmatprep.subr.bf16.mxu0 %v2569
    %2808 = vmatpush2.bf16.msra.mxu0 %v2568
    %2809 = vmatprep.subr.bf16.mxu0 %v2565
    %2810 = vmatpush2.bf16.msra.mxu0 %v2564
    %2811 = vmatprep.subr.bf16.mxu0 %v2561
    %2812 = vmatpush2.bf16.msra.mxu0 %v2560
    %2813 = vmatprep.subr.bf16.mxu0 %v2557
    %2814 = vmatpush2.bf16.msra.mxu0 %v2556
    %2815 = vmatprep.subr.bf16.mxu0 %v2553
    %2816 = vmatpush2.bf16.msra.mxu0 %v2552
    %2817 = vmatprep.subr.bf16.mxu0 %v2549
    %2818 = vmatpush2.bf16.msra.mxu0 %v2548
    %2819 = vmatprep.subr.bf16.mxu0 %v2545
    %2820 = vmatpush2.bf16.msra.mxu0 %v2544
    %2821 = vmatprep.subr.bf16.mxu0 %v2541
    %2822 = vmatpush2.bf16.msra.mxu0 %v2540
    %2823 = vmatprep.mubr.f32.mxu0 %v2096
    %2824 = vmatmul.mubr.f32.gmra.mxu0 %v2095
    %v2825 = vpop.f32.mrf.mxu0
    %v2826 = vadd.f32 0.0, %v2825
    %v2827 = vpop.f32.mrf.mxu0
    %v2828 = vadd.f32 0.0, %v2827
    %2829 = vdwg.mxu0
    %2830 = vmatprep.subr.bf16.mxu0 %v2711
    %2831 = vmatpush1.bf16.msra.mxu0 %v2708
    %2832 = vmatprep.subr.bf16.mxu0 %v2597
    %2833 = vmatpush1.bf16.msra.mxu0 %v2596
    %2834 = vmatprep.subr.bf16.mxu0 %v2593
    %2835 = vmatpush1.bf16.msra.mxu0 %v2592
    %2836 = vmatprep.subr.bf16.mxu0 %v2589
    %2837 = vmatpush1.bf16.msra.mxu0 %v2588
    %2838 = vmatprep.subr.bf16.mxu0 %v2585
    %2839 = vmatpush1.bf16.msra.mxu0 %v2584
    %2840 = vmatprep.subr.bf16.mxu0 %v2581
    %2841 = vmatpush1.bf16.msra.mxu0 %v2580
    %2842 = vmatprep.subr.bf16.mxu0 %v2577
    %2843 = vmatpush1.bf16.msra.mxu0 %v2576
    %2844 = vmatprep.subr.bf16.mxu0 %v2573
    %2845 = vmatpush1.bf16.msra.mxu0 %v2572
    %2846 = vmatprep.subr.bf16.mxu0 0
    %2847 = vmatpush2.bf16.msra.mxu0 0
    %2848 = vmatprep.subr.bf16.mxu0 0
    %2849 = vmatpush2.bf16.msra.mxu0 0
    %2850 = vmatprep.subr.bf16.mxu0 0
    %2851 = vmatpush2.bf16.msra.mxu0 0
    %2852 = vmatprep.subr.bf16.mxu0 0
    %2853 = vmatpush2.bf16.msra.mxu0 0
    %2854 = vmatprep.subr.bf16.mxu0 0
    %2855 = vmatpush2.bf16.msra.mxu0 0
    %2856 = vmatprep.subr.bf16.mxu0 0
    %2857 = vmatpush2.bf16.msra.mxu0 0
    %2858 = vmatprep.subr.bf16.mxu0 0
    %2859 = vmatpush2.bf16.msra.mxu0 0
    %2860 = vmatprep.subr.bf16.mxu0 0
    %2861 = vmatpush2.bf16.msra.mxu0 0
    %2862 = vmatprep.mubr.f32.mxu0 0.0
    %2863 = vmatmul.mubr.f32.gmra.mxu0 %v2696
    %v2864 = vpop.f32.mrf.mxu0
    %v2865 = vadd.f32 %v2826, %v2864
    %v2866 = vpop.f32.mrf.mxu0
    %v2867 = vadd.f32 %v2828, %v2866
    %2868 = vdwg.mxu0
    %v2901 = vunpack.c.l.b16 %v2098
    %v2902 = vunpack.c.h.b16 %v2098
    %v2903 = vunpack.c.l.b16 %v2099
    %v2904 = vunpack.c.h.b16 %v2099
    %v2905 = vunpack.c.l.b16 %v2100
    %v2906 = vunpack.c.h.b16 %v2100
    %v2907 = vunpack.c.l.b16 %v2101
    %v2908 = vunpack.c.h.b16 %v2101
    %v2909 = vunpack.c.l.b16 %v2102
    %v2910 = vunpack.c.h.b16 %v2102
    %v2911 = vunpack.c.l.b16 %v2103
    %v2912 = vunpack.c.h.b16 %v2103
    %v2913 = vunpack.c.l.b16 %v2104
    %v2914 = vunpack.c.h.b16 %v2104
    %v2915 = vunpack.c.l.b16 %v2105
    %v2916 = vunpack.c.h.b16 %v2105
    %v2917 = vunpack.c.l.b16 %v2106
    %v2918 = vunpack.c.h.b16 %v2106
    %v2919 = vunpack.c.l.b16 %v2107
    %v2920 = vunpack.c.h.b16 %v2107
    %v2921 = vunpack.c.l.b16 %v2108
    %v2922 = vunpack.c.h.b16 %v2108
    %v2923 = vunpack.c.l.b16 %v2109
    %v2924 = vunpack.c.h.b16 %v2109
    %v2925 = vunpack.c.l.b16 %v2110
    %v2926 = vunpack.c.h.b16 %v2110
    %v2927 = vunpack.c.l.b16 %v2111
    %v2928 = vunpack.c.h.b16 %v2111
    %v2929 = vunpack.c.l.b16 %v2112
    %v2930 = vunpack.c.h.b16 %v2112
    %v2931 = vunpack.c.l.b16 %v2113
    %v2932 = vunpack.c.h.b16 %v2113
    %v2933 = vunpack.c.l.b16 %v2114
    %v2934 = vunpack.c.h.b16 %v2114
    %v2935 = vunpack.c.l.b16 %v2115
    %v2936 = vunpack.c.h.b16 %v2115
    %v2937 = vunpack.c.l.b16 %v2116
    %v2938 = vunpack.c.h.b16 %v2116
    %v2939 = vunpack.c.l.b16 %v2117
    %v2940 = vunpack.c.h.b16 %v2117
    %v2941 = vunpack.c.l.b16 %v2118
    %v2942 = vunpack.c.h.b16 %v2118
    %v2943 = vunpack.c.l.b16 %v2119
    %v2944 = vunpack.c.h.b16 %v2119
    %v2945 = vunpack.c.l.b16 %v2120
    %v2946 = vunpack.c.h.b16 %v2120
    %v2947 = vunpack.c.l.b16 %v2121
    %v2948 = vunpack.c.h.b16 %v2121
    %v2949 = vunpack.c.l.b16 %v2122
    %v2950 = vunpack.c.h.b16 %v2122
    %v2951 = vunpack.c.l.b16 %v2123
    %v2952 = vunpack.c.h.b16 %v2123
    %v2953 = vunpack.c.l.b16 %v2124
    %v2954 = vunpack.c.h.b16 %v2124
    %v2955 = vunpack.c.l.b16 %v2125
    %v2956 = vunpack.c.h.b16 %v2125
    %v2957 = vunpack.c.l.b16 %v2126
    %v2958 = vunpack.c.h.b16 %v2126
    %v2959 = vunpack.c.l.b16 %v2127
    %v2960 = vunpack.c.h.b16 %v2127
    %v2961 = vunpack.c.l.b16 %v2128
    %v2962 = vunpack.c.h.b16 %v2128
    %v2963 = vunpack.c.l.b16 %v2129
    %v2964 = vunpack.c.h.b16 %v2129
    %v2965 = vpack.c.b16 %v2905, %v2901
    %v2966 = vpack.c.b16 %v2906, %v2902
    %v2967 = vpack.c.b16 %v2907, %v2903
    %v2968 = vpack.c.b16 %v2908, %v2904
    %v2969 = vpack.c.b16 %v2913, %v2909
    %v2970 = vpack.c.b16 %v2914, %v2910
    %v2971 = vpack.c.b16 %v2915, %v2911
    %v2972 = vpack.c.b16 %v2916, %v2912
    %v2973 = vpack.c.b16 %v2921, %v2917
    %v2974 = vpack.c.b16 %v2922, %v2918
    %v2975 = vpack.c.b16 %v2923, %v2919
    %v2976 = vpack.c.b16 %v2924, %v2920
    %v2977 = vpack.c.b16 %v2929, %v2925
    %v2978 = vpack.c.b16 %v2930, %v2926
    %v2979 = vpack.c.b16 %v2931, %v2927
    %v2980 = vpack.c.b16 %v2932, %v2928
    %v2981 = vpack.c.b16 %v2937, %v2933
    %v2982 = vpack.c.b16 %v2938, %v2934
    %v2983 = vpack.c.b16 %v2939, %v2935
    %v2984 = vpack.c.b16 %v2940, %v2936
    %v2985 = vpack.c.b16 %v2945, %v2941
    %v2986 = vpack.c.b16 %v2946, %v2942
    %v2987 = vpack.c.b16 %v2947, %v2943
    %v2988 = vpack.c.b16 %v2948, %v2944
    %v2989 = vpack.c.b16 %v2953, %v2949
    %v2990 = vpack.c.b16 %v2954, %v2950
    %v2991 = vpack.c.b16 %v2955, %v2951
    %v2992 = vpack.c.b16 %v2956, %v2952
    %v2993 = vpack.c.b16 %v2961, %v2957
    %v2994 = vpack.c.b16 %v2962, %v2958
    %v2995 = vpack.c.b16 %v2963, %v2959
    %v2996 = vpack.c.b16 %v2964, %v2960
    %3029 = vmatprep.subr.bf16.mxu0 %v2994
    %3030 = vmatpush1.bf16.msra.mxu0 %v2993
    %3031 = vmatprep.subr.bf16.mxu0 %v2990
    %3032 = vmatpush1.bf16.msra.mxu0 %v2989
    %3033 = vmatprep.subr.bf16.mxu0 %v2986
    %3034 = vmatpush1.bf16.msra.mxu0 %v2985
    %3035 = vmatprep.subr.bf16.mxu0 %v2982
    %3036 = vmatpush1.bf16.msra.mxu0 %v2981
    %3037 = vmatprep.subr.bf16.mxu0 %v2978
    %3038 = vmatpush1.bf16.msra.mxu0 %v2977
    %3039 = vmatprep.subr.bf16.mxu0 %v2974
    %3040 = vmatpush1.bf16.msra.mxu0 %v2973
    %3041 = vmatprep.subr.bf16.mxu0 %v2970
    %3042 = vmatpush1.bf16.msra.mxu0 %v2969
    %3043 = vmatprep.subr.bf16.mxu0 %v2966
    %3044 = vmatpush1.bf16.msra.mxu0 %v2965
    %3045 = vmatprep.subr.bf16.mxu0 0
    %3046 = vmatpush2.bf16.msra.mxu0 0
    %3047 = vmatprep.subr.bf16.mxu0 0
    %3048 = vmatpush2.bf16.msra.mxu0 0
    %3049 = vmatprep.subr.bf16.mxu0 0
    %3050 = vmatpush2.bf16.msra.mxu0 0
    %3051 = vmatprep.subr.bf16.mxu0 0
    %3052 = vmatpush2.bf16.msra.mxu0 0
    %3053 = vmatprep.subr.bf16.mxu0 0
    %3054 = vmatpush2.bf16.msra.mxu0 0
    %3055 = vmatprep.subr.bf16.mxu0 0
    %3056 = vmatpush2.bf16.msra.mxu0 0
    %3057 = vmatprep.subr.bf16.mxu0 0
    %3058 = vmatpush2.bf16.msra.mxu0 0
    %3059 = vmatprep.subr.bf16.mxu0 0
    %3060 = vmatpush2.bf16.msra.mxu0 0
    %3061 = vmatprep.mubr.f32.mxu0 0.0
    %3062 = vmatmul.mubr.f32.gmra.mxu0 %v2094
    %v3063 = vpop.f32.mrf.mxu0
    %v3064 = vadd.f32 %v2787, %v3063
    %v3065 = vpop.f32.mrf.mxu0
    %v3066 = vadd.f32 %v2789, %v3065
    %3067 = vdwg.mxu0
    %3068 = vmatprep.subr.bf16.mxu0 %v2996
    %3069 = vmatpush1.bf16.msra.mxu0 %v2995
    %3070 = vmatprep.subr.bf16.mxu0 %v2992
    %3071 = vmatpush1.bf16.msra.mxu0 %v2991
    %3072 = vmatprep.subr.bf16.mxu0 %v2988
    %3073 = vmatpush1.bf16.msra.mxu0 %v2987
    %3074 = vmatprep.subr.bf16.mxu0 %v2984
    %3075 = vmatpush1.bf16.msra.mxu0 %v2983
    %3076 = vmatprep.subr.bf16.mxu0 %v2980
    %3077 = vmatpush1.bf16.msra.mxu0 %v2979
    %3078 = vmatprep.subr.bf16.mxu0 %v2976
    %3079 = vmatpush1.bf16.msra.mxu0 %v2975
    %3080 = vmatprep.subr.bf16.mxu0 %v2972
    %3081 = vmatpush1.bf16.msra.mxu0 %v2971
    %3082 = vmatprep.subr.bf16.mxu0 %v2968
    %3083 = vmatpush1.bf16.msra.mxu0 %v2967
    %3084 = vmatprep.subr.bf16.mxu0 0
    %3085 = vmatpush2.bf16.msra.mxu0 0
    %3086 = vmatprep.subr.bf16.mxu0 0
    %3087 = vmatpush2.bf16.msra.mxu0 0
    %3088 = vmatprep.subr.bf16.mxu0 0
    %3089 = vmatpush2.bf16.msra.mxu0 0
    %3090 = vmatprep.subr.bf16.mxu0 0
    %3091 = vmatpush2.bf16.msra.mxu0 0
    %3092 = vmatprep.subr.bf16.mxu0 0
    %3093 = vmatpush2.bf16.msra.mxu0 0
    %3094 = vmatprep.subr.bf16.mxu0 0
    %3095 = vmatpush2.bf16.msra.mxu0 0
    %3096 = vmatprep.subr.bf16.mxu0 0
    %3097 = vmatpush2.bf16.msra.mxu0 0
    %3098 = vmatprep.subr.bf16.mxu0 0
    %3099 = vmatpush2.bf16.msra.mxu0 0
    %3100 = vmatprep.mubr.f32.mxu0 0.0
    %3101 = vmatmul.mubr.f32.gmra.mxu0 %v2094
    %v3102 = vpop.f32.mrf.mxu0
    %v3103 = vadd.f32 %v2865, %v3102
    %v3104 = vpop.f32.mrf.mxu0
    %v3105 = vadd.f32 %v2867, %v3104
    %3106 = vdwg.mxu0
    %v3107 = vld [vmem:[#allocation14] sm:$0xf]
    %v3109 = vlaneseq
    %v3110 = vshrl.u32 %v3109, 7
    %v3111 = vsub.s32 0, %v3110
    %v3112 = vrot.slane %v3107, %v3111
    %v3113 = vlaneseq
    %v3114 = vshrl.u32 %v3113, 7
    %v3115 = vsub.s32 1, %v3114
    %v3116 = vrot.slane %v3107, %v3115
    %v3117 = vlaneseq
    %v3118 = vshrl.u32 %v3117, 7
    %v3119 = vsub.s32 2, %v3118
    %v3120 = vrot.slane %v3107, %v3119
    %v3121 = vlaneseq
    %v3122 = vshrl.u32 %v3121, 7
    %v3123 = vsub.s32 3, %v3122
    %v3124 = vrot.slane %v3107, %v3123
    %v3129 = vadd.f32 %v3064, %v3112
    %v3130 = vadd.f32 %v3066, %v3116
    %v3131 = vadd.f32 %v3103, %v3120
    %v3132 = vadd.f32 %v3105, %v3124
    %v3133 = vmax.f32 %v3129, 0.0
    %v3134 = vmax.f32 %v3130, 0.0
    %v3135 = vmax.f32 %v3131, 0.0
    %v3136 = vmax.f32 %v3132, 0.0
    %s3137 = smul.u32 4, 64
    %s3138 = smul.u32 %s3137, 4
    %s3139 = sshll.u32 %s3138, 4
    %3140 = dma.done [#allocation7], %s3139
    %v3141 = vld [vmem:[#allocation2] sm:$0xff]
    %v3142 = vld [vmem:[#allocation2 + $0x8] sm:$0xff]
    %v3143 = vld [vmem:[#allocation2 + $0x10] sm:$0xff]
    %v3144 = vld [vmem:[#allocation2 + $0x18] sm:$0xff]
    %v3145 = vld [vmem:[#allocation2 + $0x20] sm:$0xff]
    %v3146 = vld [vmem:[#allocation2 + $0x28] sm:$0xff]
    %v3147 = vld [vmem:[#allocation2 + $0x30] sm:$0xff]
    %v3148 = vld [vmem:[#allocation2 + $0x38] sm:$0xff]
    %v3149 = vld [vmem:[#allocation2 + $0x40] sm:$0xff]
    %v3150 = vld [vmem:[#allocation2 + $0x48] sm:$0xff]
    %v3151 = vld [vmem:[#allocation2 + $0x50] sm:$0xff]
    %v3152 = vld [vmem:[#allocation2 + $0x58] sm:$0xff]
    %v3153 = vld [vmem:[#allocation2 + $0x60] sm:$0xff]
    %v3154 = vld [vmem:[#allocation2 + $0x68] sm:$0xff]
    %v3155 = vld [vmem:[#allocation2 + $0x70] sm:$0xff]
    %v3156 = vld [vmem:[#allocation2 + $0x78] sm:$0xff]
    %v3157 = vld [vmem:[#allocation2 + $0x80] sm:$0xff]
    %v3158 = vld [vmem:[#allocation2 + $0x88] sm:$0xff]
    %v3159 = vld [vmem:[#allocation2 + $0x90] sm:$0xff]
    %v3160 = vld [vmem:[#allocation2 + $0x98] sm:$0xff]
    %v3161 = vld [vmem:[#allocation2 + $0xa0] sm:$0xff]
    %v3162 = vld [vmem:[#allocation2 + $0xa8] sm:$0xff]
    %v3163 = vld [vmem:[#allocation2 + $0xb0] sm:$0xff]
    %v3164 = vld [vmem:[#allocation2 + $0xb8] sm:$0xff]
    %v3165 = vld [vmem:[#allocation2 + $0xc0] sm:$0xff]
    %v3166 = vld [vmem:[#allocation2 + $0xc8] sm:$0xff]
    %v3167 = vld [vmem:[#allocation2 + $0xd0] sm:$0xff]
    %v3168 = vld [vmem:[#allocation2 + $0xd8] sm:$0xff]
    %v3169 = vld [vmem:[#allocation2 + $0xe0] sm:$0xff]
    %v3170 = vld [vmem:[#allocation2 + $0xe8] sm:$0xff]
    %v3171 = vld [vmem:[#allocation2 + $0xf0] sm:$0xff]
    %v3172 = vld [vmem:[#allocation2 + $0xf8] sm:$0xff]
    %v3173 = vld [vmem:[#allocation2 + $0x100] sm:$0xff]
    %v3174 = vld [vmem:[#allocation2 + $0x108] sm:$0xff]
    %v3175 = vld [vmem:[#allocation2 + $0x110] sm:$0xff]
    %v3176 = vld [vmem:[#allocation2 + $0x118] sm:$0xff]
    %v3177 = vld [vmem:[#allocation2 + $0x120] sm:$0xff]
    %v3178 = vld [vmem:[#allocation2 + $0x128] sm:$0xff]
    %v3179 = vld [vmem:[#allocation2 + $0x130] sm:$0xff]
    %v3180 = vld [vmem:[#allocation2 + $0x138] sm:$0xff]
    %v3181 = vld [vmem:[#allocation2 + $0x140] sm:$0xff]
    %v3182 = vld [vmem:[#allocation2 + $0x148] sm:$0xff]
    %v3183 = vld [vmem:[#allocation2 + $0x150] sm:$0xff]
    %v3184 = vld [vmem:[#allocation2 + $0x158] sm:$0xff]
    %v3185 = vld [vmem:[#allocation2 + $0x160] sm:$0xff]
    %v3186 = vld [vmem:[#allocation2 + $0x168] sm:$0xff]
    %v3187 = vld [vmem:[#allocation2 + $0x170] sm:$0xff]
    %v3188 = vld [vmem:[#allocation2 + $0x178] sm:$0xff]
    %v3189 = vld [vmem:[#allocation2 + $0x180] sm:$0xff]
    %v3190 = vld [vmem:[#allocation2 + $0x188] sm:$0xff]
    %v3191 = vld [vmem:[#allocation2 + $0x190] sm:$0xff]
    %v3192 = vld [vmem:[#allocation2 + $0x198] sm:$0xff]
    %v3193 = vld [vmem:[#allocation2 + $0x1a0] sm:$0xff]
    %v3194 = vld [vmem:[#allocation2 + $0x1a8] sm:$0xff]
    %v3195 = vld [vmem:[#allocation2 + $0x1b0] sm:$0xff]
    %v3196 = vld [vmem:[#allocation2 + $0x1b8] sm:$0xff]
    %v3197 = vld [vmem:[#allocation2 + $0x1c0] sm:$0xff]
    %v3198 = vld [vmem:[#allocation2 + $0x1c8] sm:$0xff]
    %v3199 = vld [vmem:[#allocation2 + $0x1d0] sm:$0xff]
    %v3200 = vld [vmem:[#allocation2 + $0x1d8] sm:$0xff]
    %v3201 = vld [vmem:[#allocation2 + $0x1e0] sm:$0xff]
    %v3202 = vld [vmem:[#allocation2 + $0x1e8] sm:$0xff]
    %v3203 = vld [vmem:[#allocation2 + $0x1f0] sm:$0xff]
    %v3204 = vld [vmem:[#allocation2 + $0x1f8] sm:$0xff]
    %v3205 = vld [vmem:[#allocation2 + $0x200] sm:$0xff]
    %v3206 = vld [vmem:[#allocation2 + $0x208] sm:$0xff]
    %v3207 = vld [vmem:[#allocation2 + $0x210] sm:$0xff]
    %v3208 = vld [vmem:[#allocation2 + $0x218] sm:$0xff]
    %v3209 = vld [vmem:[#allocation2 + $0x220] sm:$0xff]
    %v3210 = vld [vmem:[#allocation2 + $0x228] sm:$0xff]
    %v3211 = vld [vmem:[#allocation2 + $0x230] sm:$0xff]
    %v3212 = vld [vmem:[#allocation2 + $0x238] sm:$0xff]
    %v3213 = vld [vmem:[#allocation2 + $0x240] sm:$0xff]
    %v3214 = vld [vmem:[#allocation2 + $0x248] sm:$0xff]
    %v3215 = vld [vmem:[#allocation2 + $0x250] sm:$0xff]
    %v3216 = vld [vmem:[#allocation2 + $0x258] sm:$0xff]
    %v3217 = vld [vmem:[#allocation2 + $0x260] sm:$0xff]
    %v3218 = vld [vmem:[#allocation2 + $0x268] sm:$0xff]
    %v3219 = vld [vmem:[#allocation2 + $0x270] sm:$0xff]
    %v3220 = vld [vmem:[#allocation2 + $0x278] sm:$0xff]
    %v3221 = vld [vmem:[#allocation2 + $0x280] sm:$0xff]
    %v3222 = vld [vmem:[#allocation2 + $0x288] sm:$0xff]
    %v3223 = vld [vmem:[#allocation2 + $0x290] sm:$0xff]
    %v3224 = vld [vmem:[#allocation2 + $0x298] sm:$0xff]
    %v3225 = vld [vmem:[#allocation2 + $0x2a0] sm:$0xff]
    %v3226 = vld [vmem:[#allocation2 + $0x2a8] sm:$0xff]
    %v3227 = vld [vmem:[#allocation2 + $0x2b0] sm:$0xff]
    %v3228 = vld [vmem:[#allocation2 + $0x2b8] sm:$0xff]
    %v3229 = vld [vmem:[#allocation2 + $0x2c0] sm:$0xff]
    %v3230 = vld [vmem:[#allocation2 + $0x2c8] sm:$0xff]
    %v3231 = vld [vmem:[#allocation2 + $0x2d0] sm:$0xff]
    %v3232 = vld [vmem:[#allocation2 + $0x2d8] sm:$0xff]
    %v3233 = vld [vmem:[#allocation2 + $0x2e0] sm:$0xff]
    %v3234 = vld [vmem:[#allocation2 + $0x2e8] sm:$0xff]
    %v3235 = vld [vmem:[#allocation2 + $0x2f0] sm:$0xff]
    %v3236 = vld [vmem:[#allocation2 + $0x2f8] sm:$0xff]
    %v3237 = vld [vmem:[#allocation2 + $0x300] sm:$0xff]
    %v3238 = vld [vmem:[#allocation2 + $0x308] sm:$0xff]
    %v3239 = vld [vmem:[#allocation2 + $0x310] sm:$0xff]
    %v3240 = vld [vmem:[#allocation2 + $0x318] sm:$0xff]
    %v3241 = vld [vmem:[#allocation2 + $0x320] sm:$0xff]
    %v3242 = vld [vmem:[#allocation2 + $0x328] sm:$0xff]
    %v3243 = vld [vmem:[#allocation2 + $0x330] sm:$0xff]
    %v3244 = vld [vmem:[#allocation2 + $0x338] sm:$0xff]
    %v3245 = vld [vmem:[#allocation2 + $0x340] sm:$0xff]
    %v3246 = vld [vmem:[#allocation2 + $0x348] sm:$0xff]
    %v3247 = vld [vmem:[#allocation2 + $0x350] sm:$0xff]
    %v3248 = vld [vmem:[#allocation2 + $0x358] sm:$0xff]
    %v3249 = vld [vmem:[#allocation2 + $0x360] sm:$0xff]
    %v3250 = vld [vmem:[#allocation2 + $0x368] sm:$0xff]
    %v3251 = vld [vmem:[#allocation2 + $0x370] sm:$0xff]
    %v3252 = vld [vmem:[#allocation2 + $0x378] sm:$0xff]
    %v3253 = vld [vmem:[#allocation2 + $0x380] sm:$0xff]
    %v3254 = vld [vmem:[#allocation2 + $0x388] sm:$0xff]
    %v3255 = vld [vmem:[#allocation2 + $0x390] sm:$0xff]
    %v3256 = vld [vmem:[#allocation2 + $0x398] sm:$0xff]
    %v3257 = vld [vmem:[#allocation2 + $0x3a0] sm:$0xff]
    %v3258 = vld [vmem:[#allocation2 + $0x3a8] sm:$0xff]
    %v3259 = vld [vmem:[#allocation2 + $0x3b0] sm:$0xff]
    %v3260 = vld [vmem:[#allocation2 + $0x3b8] sm:$0xff]
    %v3261 = vld [vmem:[#allocation2 + $0x3c0] sm:$0xff]
    %v3262 = vld [vmem:[#allocation2 + $0x3c8] sm:$0xff]
    %v3263 = vld [vmem:[#allocation2 + $0x3d0] sm:$0xff]
    %v3264 = vld [vmem:[#allocation2 + $0x3d8] sm:$0xff]
    %v3265 = vld [vmem:[#allocation2 + $0x3e0] sm:$0xff]
    %v3266 = vld [vmem:[#allocation2 + $0x3e8] sm:$0xff]
    %v3267 = vld [vmem:[#allocation2 + $0x3f0] sm:$0xff]
    %v3268 = vld [vmem:[#allocation2 + $0x3f8] sm:$0xff]
    %v3269 = vld [vmem:[#allocation16] sm:$0xf]
    %v3271 = vlaneseq
    %v3272 = vshrl.u32 %v3271, 7
    %v3273 = vsub.s32 0, %v3272
    %v3274 = vrot.slane %v3269, %v3273
    %v3275 = vlaneseq
    %v3276 = vshrl.u32 %v3275, 7
    %v3277 = vsub.s32 1, %v3276
    %v3278 = vrot.slane %v3269, %v3277
    %v3279 = vlaneseq
    %v3280 = vshrl.u32 %v3279, 7
    %v3281 = vsub.s32 2, %v3280
    %v3282 = vrot.slane %v3269, %v3281
    %v3283 = vlaneseq
    %v3284 = vshrl.u32 %v3283, 7
    %v3285 = vsub.s32 3, %v3284
    %v3286 = vrot.slane %v3269, %v3285
    %v3419 = vunpack.c.l.b16 %v3141
    %v3420 = vunpack.c.h.b16 %v3141
    %v3421 = vunpack.c.l.b16 %v3142
    %v3422 = vunpack.c.h.b16 %v3142
    %v3423 = vunpack.c.l.b16 %v3143
    %v3424 = vunpack.c.h.b16 %v3143
    %v3425 = vunpack.c.l.b16 %v3144
    %v3426 = vunpack.c.h.b16 %v3144
    %v3427 = vunpack.c.l.b16 %v3145
    %v3428 = vunpack.c.h.b16 %v3145
    %v3429 = vunpack.c.l.b16 %v3146
    %v3430 = vunpack.c.h.b16 %v3146
    %v3431 = vunpack.c.l.b16 %v3147
    %v3432 = vunpack.c.h.b16 %v3147
    %v3433 = vunpack.c.l.b16 %v3148
    %v3434 = vunpack.c.h.b16 %v3148
    %v3435 = vunpack.c.l.b16 %v3149
    %v3436 = vunpack.c.h.b16 %v3149
    %v3437 = vunpack.c.l.b16 %v3150
    %v3438 = vunpack.c.h.b16 %v3150
    %v3439 = vunpack.c.l.b16 %v3151
    %v3440 = vunpack.c.h.b16 %v3151
    %v3441 = vunpack.c.l.b16 %v3152
    %v3442 = vunpack.c.h.b16 %v3152
    %v3443 = vunpack.c.l.b16 %v3153
    %v3444 = vunpack.c.h.b16 %v3153
    %v3445 = vunpack.c.l.b16 %v3154
    %v3446 = vunpack.c.h.b16 %v3154
    %v3447 = vunpack.c.l.b16 %v3155
    %v3448 = vunpack.c.h.b16 %v3155
    %v3449 = vunpack.c.l.b16 %v3156
    %v3450 = vunpack.c.h.b16 %v3156
    %v3451 = vunpack.c.l.b16 %v3157
    %v3452 = vunpack.c.h.b16 %v3157
    %v3453 = vunpack.c.l.b16 %v3158
    %v3454 = vunpack.c.h.b16 %v3158
    %v3455 = vunpack.c.l.b16 %v3159
    %v3456 = vunpack.c.h.b16 %v3159
    %v3457 = vunpack.c.l.b16 %v3160
    %v3458 = vunpack.c.h.b16 %v3160
    %v3459 = vunpack.c.l.b16 %v3161
    %v3460 = vunpack.c.h.b16 %v3161
    %v3461 = vunpack.c.l.b16 %v3162
    %v3462 = vunpack.c.h.b16 %v3162
    %v3463 = vunpack.c.l.b16 %v3163
    %v3464 = vunpack.c.h.b16 %v3163
    %v3465 = vunpack.c.l.b16 %v3164
    %v3466 = vunpack.c.h.b16 %v3164
    %v3467 = vunpack.c.l.b16 %v3165
    %v3468 = vunpack.c.h.b16 %v3165
    %v3469 = vunpack.c.l.b16 %v3166
    %v3470 = vunpack.c.h.b16 %v3166
    %v3471 = vunpack.c.l.b16 %v3167
    %v3472 = vunpack.c.h.b16 %v3167
    %v3473 = vunpack.c.l.b16 %v3168
    %v3474 = vunpack.c.h.b16 %v3168
    %v3475 = vunpack.c.l.b16 %v3169
    %v3476 = vunpack.c.h.b16 %v3169
    %v3477 = vunpack.c.l.b16 %v3170
    %v3478 = vunpack.c.h.b16 %v3170
    %v3479 = vunpack.c.l.b16 %v3171
    %v3480 = vunpack.c.h.b16 %v3171
    %v3481 = vunpack.c.l.b16 %v3172
    %v3482 = vunpack.c.h.b16 %v3172
    %v3483 = vunpack.c.l.b16 %v3173
    %v3484 = vunpack.c.h.b16 %v3173
    %v3485 = vunpack.c.l.b16 %v3174
    %v3486 = vunpack.c.h.b16 %v3174
    %v3487 = vunpack.c.l.b16 %v3175
    %v3488 = vunpack.c.h.b16 %v3175
    %v3489 = vunpack.c.l.b16 %v3176
    %v3490 = vunpack.c.h.b16 %v3176
    %v3491 = vunpack.c.l.b16 %v3177
    %v3492 = vunpack.c.h.b16 %v3177
    %v3493 = vunpack.c.l.b16 %v3178
    %v3494 = vunpack.c.h.b16 %v3178
    %v3495 = vunpack.c.l.b16 %v3179
    %v3496 = vunpack.c.h.b16 %v3179
    %v3497 = vunpack.c.l.b16 %v3180
    %v3498 = vunpack.c.h.b16 %v3180
    %v3499 = vunpack.c.l.b16 %v3181
    %v3500 = vunpack.c.h.b16 %v3181
    %v3501 = vunpack.c.l.b16 %v3182
    %v3502 = vunpack.c.h.b16 %v3182
    %v3503 = vunpack.c.l.b16 %v3183
    %v3504 = vunpack.c.h.b16 %v3183
    %v3505 = vunpack.c.l.b16 %v3184
    %v3506 = vunpack.c.h.b16 %v3184
    %v3507 = vunpack.c.l.b16 %v3185
    %v3508 = vunpack.c.h.b16 %v3185
    %v3509 = vunpack.c.l.b16 %v3186
    %v3510 = vunpack.c.h.b16 %v3186
    %v3511 = vunpack.c.l.b16 %v3187
    %v3512 = vunpack.c.h.b16 %v3187
    %v3513 = vunpack.c.l.b16 %v3188
    %v3514 = vunpack.c.h.b16 %v3188
    %v3515 = vunpack.c.l.b16 %v3189
    %v3516 = vunpack.c.h.b16 %v3189
    %v3517 = vunpack.c.l.b16 %v3190
    %v3518 = vunpack.c.h.b16 %v3190
    %v3519 = vunpack.c.l.b16 %v3191
    %v3520 = vunpack.c.h.b16 %v3191
    %v3521 = vunpack.c.l.b16 %v3192
    %v3522 = vunpack.c.h.b16 %v3192
    %v3523 = vunpack.c.l.b16 %v3193
    %v3524 = vunpack.c.h.b16 %v3193
    %v3525 = vunpack.c.l.b16 %v3194
    %v3526 = vunpack.c.h.b16 %v3194
    %v3527 = vunpack.c.l.b16 %v3195
    %v3528 = vunpack.c.h.b16 %v3195
    %v3529 = vunpack.c.l.b16 %v3196
    %v3530 = vunpack.c.h.b16 %v3196
    %v3531 = vunpack.c.l.b16 %v3197
    %v3532 = vunpack.c.h.b16 %v3197
    %v3533 = vunpack.c.l.b16 %v3198
    %v3534 = vunpack.c.h.b16 %v3198
    %v3535 = vunpack.c.l.b16 %v3199
    %v3536 = vunpack.c.h.b16 %v3199
    %v3537 = vunpack.c.l.b16 %v3200
    %v3538 = vunpack.c.h.b16 %v3200
    %v3539 = vunpack.c.l.b16 %v3201
    %v3540 = vunpack.c.h.b16 %v3201
    %v3541 = vunpack.c.l.b16 %v3202
    %v3542 = vunpack.c.h.b16 %v3202
    %v3543 = vunpack.c.l.b16 %v3203
    %v3544 = vunpack.c.h.b16 %v3203
    %v3545 = vunpack.c.l.b16 %v3204
    %v3546 = vunpack.c.h.b16 %v3204
    %v3547 = vunpack.c.l.b16 %v3205
    %v3548 = vunpack.c.h.b16 %v3205
    %v3549 = vunpack.c.l.b16 %v3206
    %v3550 = vunpack.c.h.b16 %v3206
    %v3551 = vunpack.c.l.b16 %v3207
    %v3552 = vunpack.c.h.b16 %v3207
    %v3553 = vunpack.c.l.b16 %v3208
    %v3554 = vunpack.c.h.b16 %v3208
    %v3555 = vunpack.c.l.b16 %v3209
    %v3556 = vunpack.c.h.b16 %v3209
    %v3557 = vunpack.c.l.b16 %v3210
    %v3558 = vunpack.c.h.b16 %v3210
    %v3559 = vunpack.c.l.b16 %v3211
    %v3560 = vunpack.c.h.b16 %v3211
    %v3561 = vunpack.c.l.b16 %v3212
    %v3562 = vunpack.c.h.b16 %v3212
    %v3563 = vunpack.c.l.b16 %v3213
    %v3564 = vunpack.c.h.b16 %v3213
    %v3565 = vunpack.c.l.b16 %v3214
    %v3566 = vunpack.c.h.b16 %v3214
    %v3567 = vunpack.c.l.b16 %v3215
    %v3568 = vunpack.c.h.b16 %v3215
    %v3569 = vunpack.c.l.b16 %v3216
    %v3570 = vunpack.c.h.b16 %v3216
    %v3571 = vunpack.c.l.b16 %v3217
    %v3572 = vunpack.c.h.b16 %v3217
    %v3573 = vunpack.c.l.b16 %v3218
    %v3574 = vunpack.c.h.b16 %v3218
    %v3575 = vunpack.c.l.b16 %v3219
    %v3576 = vunpack.c.h.b16 %v3219
    %v3577 = vunpack.c.l.b16 %v3220
    %v3578 = vunpack.c.h.b16 %v3220
    %v3579 = vunpack.c.l.b16 %v3221
    %v3580 = vunpack.c.h.b16 %v3221
    %v3581 = vunpack.c.l.b16 %v3222
    %v3582 = vunpack.c.h.b16 %v3222
    %v3583 = vunpack.c.l.b16 %v3223
    %v3584 = vunpack.c.h.b16 %v3223
    %v3585 = vunpack.c.l.b16 %v3224
    %v3586 = vunpack.c.h.b16 %v3224
    %v3587 = vunpack.c.l.b16 %v3225
    %v3588 = vunpack.c.h.b16 %v3225
    %v3589 = vunpack.c.l.b16 %v3226
    %v3590 = vunpack.c.h.b16 %v3226
    %v3591 = vunpack.c.l.b16 %v3227
    %v3592 = vunpack.c.h.b16 %v3227
    %v3593 = vunpack.c.l.b16 %v3228
    %v3594 = vunpack.c.h.b16 %v3228
    %v3595 = vunpack.c.l.b16 %v3229
    %v3596 = vunpack.c.h.b16 %v3229
    %v3597 = vunpack.c.l.b16 %v3230
    %v3598 = vunpack.c.h.b16 %v3230
    %v3599 = vunpack.c.l.b16 %v3231
    %v3600 = vunpack.c.h.b16 %v3231
    %v3601 = vunpack.c.l.b16 %v3232
    %v3602 = vunpack.c.h.b16 %v3232
    %v3603 = vunpack.c.l.b16 %v3233
    %v3604 = vunpack.c.h.b16 %v3233
    %v3605 = vunpack.c.l.b16 %v3234
    %v3606 = vunpack.c.h.b16 %v3234
    %v3607 = vunpack.c.l.b16 %v3235
    %v3608 = vunpack.c.h.b16 %v3235
    %v3609 = vunpack.c.l.b16 %v3236
    %v3610 = vunpack.c.h.b16 %v3236
    %v3611 = vunpack.c.l.b16 %v3237
    %v3612 = vunpack.c.h.b16 %v3237
    %v3613 = vunpack.c.l.b16 %v3238
    %v3614 = vunpack.c.h.b16 %v3238
    %v3615 = vunpack.c.l.b16 %v3239
    %v3616 = vunpack.c.h.b16 %v3239
    %v3617 = vunpack.c.l.b16 %v3240
    %v3618 = vunpack.c.h.b16 %v3240
    %v3619 = vunpack.c.l.b16 %v3241
    %v3620 = vunpack.c.h.b16 %v3241
    %v3621 = vunpack.c.l.b16 %v3242
    %v3622 = vunpack.c.h.b16 %v3242
    %v3623 = vunpack.c.l.b16 %v3243
    %v3624 = vunpack.c.h.b16 %v3243
    %v3625 = vunpack.c.l.b16 %v3244
    %v3626 = vunpack.c.h.b16 %v3244
    %v3627 = vunpack.c.l.b16 %v3245
    %v3628 = vunpack.c.h.b16 %v3245
    %v3629 = vunpack.c.l.b16 %v3246
    %v3630 = vunpack.c.h.b16 %v3246
    %v3631 = vunpack.c.l.b16 %v3247
    %v3632 = vunpack.c.h.b16 %v3247
    %v3633 = vunpack.c.l.b16 %v3248
    %v3634 = vunpack.c.h.b16 %v3248
    %v3635 = vunpack.c.l.b16 %v3249
    %v3636 = vunpack.c.h.b16 %v3249
    %v3637 = vunpack.c.l.b16 %v3250
    %v3638 = vunpack.c.h.b16 %v3250
    %v3639 = vunpack.c.l.b16 %v3251
    %v3640 = vunpack.c.h.b16 %v3251
    %v3641 = vunpack.c.l.b16 %v3252
    %v3642 = vunpack.c.h.b16 %v3252
    %v3643 = vunpack.c.l.b16 %v3253
    %v3644 = vunpack.c.h.b16 %v3253
    %v3645 = vunpack.c.l.b16 %v3254
    %v3646 = vunpack.c.h.b16 %v3254
    %v3647 = vunpack.c.l.b16 %v3255
    %v3648 = vunpack.c.h.b16 %v3255
    %v3649 = vunpack.c.l.b16 %v3256
    %v3650 = vunpack.c.h.b16 %v3256
    %v3651 = vunpack.c.l.b16 %v3257
    %v3652 = vunpack.c.h.b16 %v3257
    %v3653 = vunpack.c.l.b16 %v3258
    %v3654 = vunpack.c.h.b16 %v3258
    %v3655 = vunpack.c.l.b16 %v3259
    %v3656 = vunpack.c.h.b16 %v3259
    %v3657 = vunpack.c.l.b16 %v3260
    %v3658 = vunpack.c.h.b16 %v3260
    %v3659 = vunpack.c.l.b16 %v3261
    %v3660 = vunpack.c.h.b16 %v3261
    %v3661 = vunpack.c.l.b16 %v3262
    %v3662 = vunpack.c.h.b16 %v3262
    %v3663 = vunpack.c.l.b16 %v3263
    %v3664 = vunpack.c.h.b16 %v3263
    %v3665 = vunpack.c.l.b16 %v3264
    %v3666 = vunpack.c.h.b16 %v3264
    %v3667 = vunpack.c.l.b16 %v3265
    %v3668 = vunpack.c.h.b16 %v3265
    %v3669 = vunpack.c.l.b16 %v3266
    %v3670 = vunpack.c.h.b16 %v3266
    %v3671 = vunpack.c.l.b16 %v3267
    %v3672 = vunpack.c.h.b16 %v3267
    %v3673 = vunpack.c.l.b16 %v3268
    %v3674 = vunpack.c.h.b16 %v3268
    %v3675 = vpack.c.b16 %v3423, %v3419
    %v3676 = vpack.c.b16 %v3424, %v3420
    %v3677 = vpack.c.b16 %v3425, %v3421
    %v3678 = vpack.c.b16 %v3426, %v3422
    %v3679 = vpack.c.b16 %v3431, %v3427
    %v3680 = vpack.c.b16 %v3432, %v3428
    %v3681 = vpack.c.b16 %v3433, %v3429
    %v3682 = vpack.c.b16 %v3434, %v3430
    %v3683 = vpack.c.b16 %v3439, %v3435
    %v3684 = vpack.c.b16 %v3440, %v3436
    %v3685 = vpack.c.b16 %v3441, %v3437
    %v3686 = vpack.c.b16 %v3442, %v3438
    %v3687 = vpack.c.b16 %v3447, %v3443
    %v3688 = vpack.c.b16 %v3448, %v3444
    %v3689 = vpack.c.b16 %v3449, %v3445
    %v3690 = vpack.c.b16 %v3450, %v3446
    %v3691 = vpack.c.b16 %v3455, %v3451
    %v3692 = vpack.c.b16 %v3456, %v3452
    %v3693 = vpack.c.b16 %v3457, %v3453
    %v3694 = vpack.c.b16 %v3458, %v3454
    %v3695 = vpack.c.b16 %v3463, %v3459
    %v3696 = vpack.c.b16 %v3464, %v3460
    %v3697 = vpack.c.b16 %v3465, %v3461
    %v3698 = vpack.c.b16 %v3466, %v3462
    %v3699 = vpack.c.b16 %v3471, %v3467
    %v3700 = vpack.c.b16 %v3472, %v3468
    %v3701 = vpack.c.b16 %v3473, %v3469
    %v3702 = vpack.c.b16 %v3474, %v3470
    %v3703 = vpack.c.b16 %v3479, %v3475
    %v3704 = vpack.c.b16 %v3480, %v3476
    %v3705 = vpack.c.b16 %v3481, %v3477
    %v3706 = vpack.c.b16 %v3482, %v3478
    %v3707 = vpack.c.b16 %v3487, %v3483
    %v3708 = vpack.c.b16 %v3488, %v3484
    %v3709 = vpack.c.b16 %v3489, %v3485
    %v3710 = vpack.c.b16 %v3490, %v3486
    %v3711 = vpack.c.b16 %v3495, %v3491
    %v3712 = vpack.c.b16 %v3496, %v3492
    %v3713 = vpack.c.b16 %v3497, %v3493
    %v3714 = vpack.c.b16 %v3498, %v3494
    %v3715 = vpack.c.b16 %v3503, %v3499
    %v3716 = vpack.c.b16 %v3504, %v3500
    %v3717 = vpack.c.b16 %v3505, %v3501
    %v3718 = vpack.c.b16 %v3506, %v3502
    %v3719 = vpack.c.b16 %v3511, %v3507
    %v3720 = vpack.c.b16 %v3512, %v3508
    %v3721 = vpack.c.b16 %v3513, %v3509
    %v3722 = vpack.c.b16 %v3514, %v3510
    %v3723 = vpack.c.b16 %v3519, %v3515
    %v3724 = vpack.c.b16 %v3520, %v3516
    %v3725 = vpack.c.b16 %v3521, %v3517
    %v3726 = vpack.c.b16 %v3522, %v3518
    %v3727 = vpack.c.b16 %v3527, %v3523
    %v3728 = vpack.c.b16 %v3528, %v3524
    %v3729 = vpack.c.b16 %v3529, %v3525
    %v3730 = vpack.c.b16 %v3530, %v3526
    %v3731 = vpack.c.b16 %v3535, %v3531
    %v3732 = vpack.c.b16 %v3536, %v3532
    %v3733 = vpack.c.b16 %v3537, %v3533
    %v3734 = vpack.c.b16 %v3538, %v3534
    %v3735 = vpack.c.b16 %v3543, %v3539
    %v3736 = vpack.c.b16 %v3544, %v3540
    %v3737 = vpack.c.b16 %v3545, %v3541
    %v3738 = vpack.c.b16 %v3546, %v3542
    %v3739 = vpack.c.b16 %v3551, %v3547
    %v3740 = vpack.c.b16 %v3552, %v3548
    %v3741 = vpack.c.b16 %v3553, %v3549
    %v3742 = vpack.c.b16 %v3554, %v3550
    %v3743 = vpack.c.b16 %v3559, %v3555
    %v3744 = vpack.c.b16 %v3560, %v3556
    %v3745 = vpack.c.b16 %v3561, %v3557
    %v3746 = vpack.c.b16 %v3562, %v3558
    %v3747 = vpack.c.b16 %v3567, %v3563
    %v3748 = vpack.c.b16 %v3568, %v3564
    %v3749 = vpack.c.b16 %v3569, %v3565
    %v3750 = vpack.c.b16 %v3570, %v3566
    %v3751 = vpack.c.b16 %v3575, %v3571
    %v3752 = vpack.c.b16 %v3576, %v3572
    %v3753 = vpack.c.b16 %v3577, %v3573
    %v3754 = vpack.c.b16 %v3578, %v3574
    %v3755 = vpack.c.b16 %v3583, %v3579
    %v3756 = vpack.c.b16 %v3584, %v3580
    %v3757 = vpack.c.b16 %v3585, %v3581
    %v3758 = vpack.c.b16 %v3586, %v3582
    %v3759 = vpack.c.b16 %v3591, %v3587
    %v3760 = vpack.c.b16 %v3592, %v3588
    %v3761 = vpack.c.b16 %v3593, %v3589
    %v3762 = vpack.c.b16 %v3594, %v3590
    %v3763 = vpack.c.b16 %v3599, %v3595
    %v3764 = vpack.c.b16 %v3600, %v3596
    %v3765 = vpack.c.b16 %v3601, %v3597
    %v3766 = vpack.c.b16 %v3602, %v3598
    %v3767 = vpack.c.b16 %v3607, %v3603
    %v3768 = vpack.c.b16 %v3608, %v3604
    %v3769 = vpack.c.b16 %v3609, %v3605
    %v3770 = vpack.c.b16 %v3610, %v3606
    %v3771 = vpack.c.b16 %v3615, %v3611
    %v3772 = vpack.c.b16 %v3616, %v3612
    %v3773 = vpack.c.b16 %v3617, %v3613
    %v3774 = vpack.c.b16 %v3618, %v3614
    %v3775 = vpack.c.b16 %v3623, %v3619
    %v3776 = vpack.c.b16 %v3624, %v3620
    %v3777 = vpack.c.b16 %v3625, %v3621
    %v3778 = vpack.c.b16 %v3626, %v3622
    %v3779 = vpack.c.b16 %v3631, %v3627
    %v3780 = vpack.c.b16 %v3632, %v3628
    %v3781 = vpack.c.b16 %v3633, %v3629
    %v3782 = vpack.c.b16 %v3634, %v3630
    %v3783 = vpack.c.b16 %v3639, %v3635
    %v3784 = vpack.c.b16 %v3640, %v3636
    %v3785 = vpack.c.b16 %v3641, %v3637
    %v3786 = vpack.c.b16 %v3642, %v3638
    %v3787 = vpack.c.b16 %v3647, %v3643
    %v3788 = vpack.c.b16 %v3648, %v3644
    %v3789 = vpack.c.b16 %v3649, %v3645
    %v3790 = vpack.c.b16 %v3650, %v3646
    %v3791 = vpack.c.b16 %v3655, %v3651
    %v3792 = vpack.c.b16 %v3656, %v3652
    %v3793 = vpack.c.b16 %v3657, %v3653
    %v3794 = vpack.c.b16 %v3658, %v3654
    %v3795 = vpack.c.b16 %v3663, %v3659
    %v3796 = vpack.c.b16 %v3664, %v3660
    %v3797 = vpack.c.b16 %v3665, %v3661
    %v3798 = vpack.c.b16 %v3666, %v3662
    %v3799 = vpack.c.b16 %v3671, %v3667
    %v3800 = vpack.c.b16 %v3672, %v3668
    %v3801 = vpack.c.b16 %v3673, %v3669
    %v3802 = vpack.c.b16 %v3674, %v3670
    %3931 = vmatprep.subr.bf16.mxu0 %v3704
    %3932 = vmatpush1.bf16.msra.mxu0 %v3703
    %3933 = vmatprep.subr.bf16.mxu0 %v3700
    %3934 = vmatpush1.bf16.msra.mxu0 %v3699
    %3935 = vmatprep.subr.bf16.mxu0 %v3696
    %3936 = vmatpush1.bf16.msra.mxu0 %v3695
    %3937 = vmatprep.subr.bf16.mxu0 %v3692
    %3938 = vmatpush1.bf16.msra.mxu0 %v3691
    %3939 = vmatprep.subr.bf16.mxu0 %v3688
    %3940 = vmatpush1.bf16.msra.mxu0 %v3687
    %3941 = vmatprep.subr.bf16.mxu0 %v3684
    %3942 = vmatpush1.bf16.msra.mxu0 %v3683
    %3943 = vmatprep.subr.bf16.mxu0 %v3680
    %3944 = vmatpush1.bf16.msra.mxu0 %v3679
    %3945 = vmatprep.subr.bf16.mxu0 %v3676
    %3946 = vmatpush1.bf16.msra.mxu0 %v3675
    %3947 = vmatprep.subr.bf16.mxu0 %v3736
    %3948 = vmatpush2.bf16.msra.mxu0 %v3735
    %3949 = vmatprep.subr.bf16.mxu0 %v3732
    %3950 = vmatpush2.bf16.msra.mxu0 %v3731
    %3951 = vmatprep.subr.bf16.mxu0 %v3728
    %3952 = vmatpush2.bf16.msra.mxu0 %v3727
    %3953 = vmatprep.subr.bf16.mxu0 %v3724
    %3954 = vmatpush2.bf16.msra.mxu0 %v3723
    %3955 = vmatprep.subr.bf16.mxu0 %v3720
    %3956 = vmatpush2.bf16.msra.mxu0 %v3719
    %3957 = vmatprep.subr.bf16.mxu0 %v3716
    %3958 = vmatpush2.bf16.msra.mxu0 %v3715
    %3959 = vmatprep.subr.bf16.mxu0 %v3712
    %3960 = vmatpush2.bf16.msra.mxu0 %v3711
    %3961 = vmatprep.subr.bf16.mxu0 %v3708
    %3962 = vmatpush2.bf16.msra.mxu0 %v3707
    %3963 = vmatprep.mubr.f32.mxu0 %v3134
    %3964 = vmatmul.mubr.f32.gmra.mxu0 %v3133
    %v3965 = vpop.f32.mrf.mxu0
    %v3966 = vadd.f32 %v3274, %v3965
    %v3967 = vpop.f32.mrf.mxu0
    %v3968 = vadd.f32 %v3278, %v3967
    %3969 = vdwg.mxu0
    %3970 = vmatprep.subr.bf16.mxu0 %v3768
    %3971 = vmatpush1.bf16.msra.mxu0 %v3767
    %3972 = vmatprep.subr.bf16.mxu0 %v3764
    %3973 = vmatpush1.bf16.msra.mxu0 %v3763
    %3974 = vmatprep.subr.bf16.mxu0 %v3760
    %3975 = vmatpush1.bf16.msra.mxu0 %v3759
    %3976 = vmatprep.subr.bf16.mxu0 %v3756
    %3977 = vmatpush1.bf16.msra.mxu0 %v3755
    %3978 = vmatprep.subr.bf16.mxu0 %v3752
    %3979 = vmatpush1.bf16.msra.mxu0 %v3751
    %3980 = vmatprep.subr.bf16.mxu0 %v3748
    %3981 = vmatpush1.bf16.msra.mxu0 %v3747
    %3982 = vmatprep.subr.bf16.mxu0 %v3744
    %3983 = vmatpush1.bf16.msra.mxu0 %v3743
    %3984 = vmatprep.subr.bf16.mxu0 %v3740
    %3985 = vmatpush1.bf16.msra.mxu0 %v3739
    %3986 = vmatprep.subr.bf16.mxu0 %v3800
    %3987 = vmatpush2.bf16.msra.mxu0 %v3799
    %3988 = vmatprep.subr.bf16.mxu0 %v3796
    %3989 = vmatpush2.bf16.msra.mxu0 %v3795
    %3990 = vmatprep.subr.bf16.mxu0 %v3792
    %3991 = vmatpush2.bf16.msra.mxu0 %v3791
    %3992 = vmatprep.subr.bf16.mxu0 %v3788
    %3993 = vmatpush2.bf16.msra.mxu0 %v3787
    %3994 = vmatprep.subr.bf16.mxu0 %v3784
    %3995 = vmatpush2.bf16.msra.mxu0 %v3783
    %3996 = vmatprep.subr.bf16.mxu0 %v3780
    %3997 = vmatpush2.bf16.msra.mxu0 %v3779
    %3998 = vmatprep.subr.bf16.mxu0 %v3776
    %3999 = vmatpush2.bf16.msra.mxu0 %v3775
    %4000 = vmatprep.subr.bf16.mxu0 %v3772
    %4001 = vmatpush2.bf16.msra.mxu0 %v3771
    %4002 = vmatprep.mubr.f32.mxu0 %v3136
    %4003 = vmatmul.mubr.f32.gmra.mxu0 %v3135
    %v4004 = vpop.f32.mrf.mxu0
    %v4005 = vadd.f32 %v3966, %v4004
    %v4006 = vpop.f32.mrf.mxu0
    %v4007 = vadd.f32 %v3968, %v4006
    %4008 = vdwg.mxu0
    %4009 = vmatprep.subr.bf16.mxu0 %v3706
    %4010 = vmatpush1.bf16.msra.mxu0 %v3705
    %4011 = vmatprep.subr.bf16.mxu0 %v3702
    %4012 = vmatpush1.bf16.msra.mxu0 %v3701
    %4013 = vmatprep.subr.bf16.mxu0 %v3698
    %4014 = vmatpush1.bf16.msra.mxu0 %v3697
    %4015 = vmatprep.subr.bf16.mxu0 %v3694
    %4016 = vmatpush1.bf16.msra.mxu0 %v3693
    %4017 = vmatprep.subr.bf16.mxu0 %v3690
    %4018 = vmatpush1.bf16.msra.mxu0 %v3689
    %4019 = vmatprep.subr.bf16.mxu0 %v3686
    %4020 = vmatpush1.bf16.msra.mxu0 %v3685
    %4021 = vmatprep.subr.bf16.mxu0 %v3682
    %4022 = vmatpush1.bf16.msra.mxu0 %v3681
    %4023 = vmatprep.subr.bf16.mxu0 %v3678
    %4024 = vmatpush1.bf16.msra.mxu0 %v3677
    %4025 = vmatprep.subr.bf16.mxu0 %v3738
    %4026 = vmatpush2.bf16.msra.mxu0 %v3737
    %4027 = vmatprep.subr.bf16.mxu0 %v3734
    %4028 = vmatpush2.bf16.msra.mxu0 %v3733
    %4029 = vmatprep.subr.bf16.mxu0 %v3730
    %4030 = vmatpush2.bf16.msra.mxu0 %v3729
    %4031 = vmatprep.subr.bf16.mxu0 %v3726
    %4032 = vmatpush2.bf16.msra.mxu0 %v3725
    %4033 = vmatprep.subr.bf16.mxu0 %v3722
    %4034 = vmatpush2.bf16.msra.mxu0 %v3721
    %4035 = vmatprep.subr.bf16.mxu0 %v3718
    %4036 = vmatpush2.bf16.msra.mxu0 %v3717
    %4037 = vmatprep.subr.bf16.mxu0 %v3714
    %4038 = vmatpush2.bf16.msra.mxu0 %v3713
    %4039 = vmatprep.subr.bf16.mxu0 %v3710
    %4040 = vmatpush2.bf16.msra.mxu0 %v3709
    %4041 = vmatprep.mubr.f32.mxu0 %v3134
    %4042 = vmatmul.mubr.f32.gmra.mxu0 %v3133
    %v4043 = vpop.f32.mrf.mxu0
    %v4044 = vadd.f32 %v3282, %v4043
    %v4045 = vpop.f32.mrf.mxu0
    %v4046 = vadd.f32 %v3286, %v4045
    %4047 = vdwg.mxu0
    %4048 = vmatprep.subr.bf16.mxu0 %v3770
    %4049 = vmatpush1.bf16.msra.mxu0 %v3769
    %4050 = vmatprep.subr.bf16.mxu0 %v3766
    %4051 = vmatpush1.bf16.msra.mxu0 %v3765
    %4052 = vmatprep.subr.bf16.mxu0 %v3762
    %4053 = vmatpush1.bf16.msra.mxu0 %v3761
    %4054 = vmatprep.subr.bf16.mxu0 %v3758
    %4055 = vmatpush1.bf16.msra.mxu0 %v3757
    %4056 = vmatprep.subr.bf16.mxu0 %v3754
    %4057 = vmatpush1.bf16.msra.mxu0 %v3753
    %4058 = vmatprep.subr.bf16.mxu0 %v3750
    %4059 = vmatpush1.bf16.msra.mxu0 %v3749
    %4060 = vmatprep.subr.bf16.mxu0 %v3746
    %4061 = vmatpush1.bf16.msra.mxu0 %v3745
    %4062 = vmatprep.subr.bf16.mxu0 %v3742
    %4063 = vmatpush1.bf16.msra.mxu0 %v3741
    %4064 = vmatprep.subr.bf16.mxu0 %v3802
    %4065 = vmatpush2.bf16.msra.mxu0 %v3801
    %4066 = vmatprep.subr.bf16.mxu0 %v3798
    %4067 = vmatpush2.bf16.msra.mxu0 %v3797
    %4068 = vmatprep.subr.bf16.mxu0 %v3794
    %4069 = vmatpush2.bf16.msra.mxu0 %v3793
    %4070 = vmatprep.subr.bf16.mxu0 %v3790
    %4071 = vmatpush2.bf16.msra.mxu0 %v3789
    %4072 = vmatprep.subr.bf16.mxu0 %v3786
    %4073 = vmatpush2.bf16.msra.mxu0 %v3785
    %4074 = vmatprep.subr.bf16.mxu0 %v3782
    %4075 = vmatpush2.bf16.msra.mxu0 %v3781
    %4076 = vmatprep.subr.bf16.mxu0 %v3778
    %4077 = vmatpush2.bf16.msra.mxu0 %v3777
    %4078 = vmatprep.subr.bf16.mxu0 %v3774
    %4079 = vmatpush2.bf16.msra.mxu0 %v3773
    %4080 = vmatprep.mubr.f32.mxu0 %v3136
    %4081 = vmatmul.mubr.f32.gmra.mxu0 %v3135
    %v4082 = vpop.f32.mrf.mxu0
    %v4083 = vadd.f32 %v4044, %v4082
    %v4084 = vpop.f32.mrf.mxu0
    %v4085 = vadd.f32 %v4046, %v4084
    %4086 = vdwg.mxu0
    %v4087 = vmax.f32 %v4005, 0.0
    %v4088 = vmax.f32 %v4007, 0.0
    %v4089 = vmax.f32 %v4083, 0.0
    %v4090 = vmax.f32 %v4085, 0.0
    %s4091 = sshll.u32 %s3138, 4
    %4092 = dma.done %s163, %s4091
    %v4093 = vld [vmem:[#allocation3] sm:$0xff]
    %v4094 = vld [vmem:[#allocation3 + $0x8] sm:$0xff]
    %v4095 = vld [vmem:[#allocation3 + $0x10] sm:$0xff]
    %v4096 = vld [vmem:[#allocation3 + $0x18] sm:$0xff]
    %v4097 = vld [vmem:[#allocation3 + $0x20] sm:$0xff]
    %v4098 = vld [vmem:[#allocation3 + $0x28] sm:$0xff]
    %v4099 = vld [vmem:[#allocation3 + $0x30] sm:$0xff]
    %v4100 = vld [vmem:[#allocation3 + $0x38] sm:$0xff]
    %v4101 = vld [vmem:[#allocation3 + $0x40] sm:$0xff]
    %v4102 = vld [vmem:[#allocation3 + $0x48] sm:$0xff]
    %v4103 = vld [vmem:[#allocation3 + $0x50] sm:$0xff]
    %v4104 = vld [vmem:[#allocation3 + $0x58] sm:$0xff]
    %v4105 = vld [vmem:[#allocation3 + $0x60] sm:$0xff]
    %v4106 = vld [vmem:[#allocation3 + $0x68] sm:$0xff]
    %v4107 = vld [vmem:[#allocation3 + $0x70] sm:$0xff]
    %v4108 = vld [vmem:[#allocation3 + $0x78] sm:$0xff]
    %v4109 = vld [vmem:[#allocation3 + $0x80] sm:$0xff]
    %v4110 = vld [vmem:[#allocation3 + $0x88] sm:$0xff]
    %v4111 = vld [vmem:[#allocation3 + $0x90] sm:$0xff]
    %v4112 = vld [vmem:[#allocation3 + $0x98] sm:$0xff]
    %v4113 = vld [vmem:[#allocation3 + $0xa0] sm:$0xff]
    %v4114 = vld [vmem:[#allocation3 + $0xa8] sm:$0xff]
    %v4115 = vld [vmem:[#allocation3 + $0xb0] sm:$0xff]
    %v4116 = vld [vmem:[#allocation3 + $0xb8] sm:$0xff]
    %v4117 = vld [vmem:[#allocation3 + $0xc0] sm:$0xff]
    %v4118 = vld [vmem:[#allocation3 + $0xc8] sm:$0xff]
    %v4119 = vld [vmem:[#allocation3 + $0xd0] sm:$0xff]
    %v4120 = vld [vmem:[#allocation3 + $0xd8] sm:$0xff]
    %v4121 = vld [vmem:[#allocation3 + $0xe0] sm:$0xff]
    %v4122 = vld [vmem:[#allocation3 + $0xe8] sm:$0xff]
    %v4123 = vld [vmem:[#allocation3 + $0xf0] sm:$0xff]
    %v4124 = vld [vmem:[#allocation3 + $0xf8] sm:$0xff]
    %v4125 = vld [vmem:[#allocation3 + $0x100] sm:$0xff]
    %v4126 = vld [vmem:[#allocation3 + $0x108] sm:$0xff]
    %v4127 = vld [vmem:[#allocation3 + $0x110] sm:$0xff]
    %v4128 = vld [vmem:[#allocation3 + $0x118] sm:$0xff]
    %v4129 = vld [vmem:[#allocation3 + $0x120] sm:$0xff]
    %v4130 = vld [vmem:[#allocation3 + $0x128] sm:$0xff]
    %v4131 = vld [vmem:[#allocation3 + $0x130] sm:$0xff]
    %v4132 = vld [vmem:[#allocation3 + $0x138] sm:$0xff]
    %v4133 = vld [vmem:[#allocation3 + $0x140] sm:$0xff]
    %v4134 = vld [vmem:[#allocation3 + $0x148] sm:$0xff]
    %v4135 = vld [vmem:[#allocation3 + $0x150] sm:$0xff]
    %v4136 = vld [vmem:[#allocation3 + $0x158] sm:$0xff]
    %v4137 = vld [vmem:[#allocation3 + $0x160] sm:$0xff]
    %v4138 = vld [vmem:[#allocation3 + $0x168] sm:$0xff]
    %v4139 = vld [vmem:[#allocation3 + $0x170] sm:$0xff]
    %v4140 = vld [vmem:[#allocation3 + $0x178] sm:$0xff]
    %v4141 = vld [vmem:[#allocation3 + $0x180] sm:$0xff]
    %v4142 = vld [vmem:[#allocation3 + $0x188] sm:$0xff]
    %v4143 = vld [vmem:[#allocation3 + $0x190] sm:$0xff]
    %v4144 = vld [vmem:[#allocation3 + $0x198] sm:$0xff]
    %v4145 = vld [vmem:[#allocation3 + $0x1a0] sm:$0xff]
    %v4146 = vld [vmem:[#allocation3 + $0x1a8] sm:$0xff]
    %v4147 = vld [vmem:[#allocation3 + $0x1b0] sm:$0xff]
    %v4148 = vld [vmem:[#allocation3 + $0x1b8] sm:$0xff]
    %v4149 = vld [vmem:[#allocation3 + $0x1c0] sm:$0xff]
    %v4150 = vld [vmem:[#allocation3 + $0x1c8] sm:$0xff]
    %v4151 = vld [vmem:[#allocation3 + $0x1d0] sm:$0xff]
    %v4152 = vld [vmem:[#allocation3 + $0x1d8] sm:$0xff]
    %v4153 = vld [vmem:[#allocation3 + $0x1e0] sm:$0xff]
    %v4154 = vld [vmem:[#allocation3 + $0x1e8] sm:$0xff]
    %v4155 = vld [vmem:[#allocation3 + $0x1f0] sm:$0xff]
    %v4156 = vld [vmem:[#allocation3 + $0x1f8] sm:$0xff]
    %v4157 = vld [vmem:[#allocation3 + $0x200] sm:$0xff]
    %v4158 = vld [vmem:[#allocation3 + $0x208] sm:$0xff]
    %v4159 = vld [vmem:[#allocation3 + $0x210] sm:$0xff]
    %v4160 = vld [vmem:[#allocation3 + $0x218] sm:$0xff]
    %v4161 = vld [vmem:[#allocation3 + $0x220] sm:$0xff]
    %v4162 = vld [vmem:[#allocation3 + $0x228] sm:$0xff]
    %v4163 = vld [vmem:[#allocation3 + $0x230] sm:$0xff]
    %v4164 = vld [vmem:[#allocation3 + $0x238] sm:$0xff]
    %v4165 = vld [vmem:[#allocation3 + $0x240] sm:$0xff]
    %v4166 = vld [vmem:[#allocation3 + $0x248] sm:$0xff]
    %v4167 = vld [vmem:[#allocation3 + $0x250] sm:$0xff]
    %v4168 = vld [vmem:[#allocation3 + $0x258] sm:$0xff]
    %v4169 = vld [vmem:[#allocation3 + $0x260] sm:$0xff]
    %v4170 = vld [vmem:[#allocation3 + $0x268] sm:$0xff]
    %v4171 = vld [vmem:[#allocation3 + $0x270] sm:$0xff]
    %v4172 = vld [vmem:[#allocation3 + $0x278] sm:$0xff]
    %v4173 = vld [vmem:[#allocation3 + $0x280] sm:$0xff]
    %v4174 = vld [vmem:[#allocation3 + $0x288] sm:$0xff]
    %v4175 = vld [vmem:[#allocation3 + $0x290] sm:$0xff]
    %v4176 = vld [vmem:[#allocation3 + $0x298] sm:$0xff]
    %v4177 = vld [vmem:[#allocation3 + $0x2a0] sm:$0xff]
    %v4178 = vld [vmem:[#allocation3 + $0x2a8] sm:$0xff]
    %v4179 = vld [vmem:[#allocation3 + $0x2b0] sm:$0xff]
    %v4180 = vld [vmem:[#allocation3 + $0x2b8] sm:$0xff]
    %v4181 = vld [vmem:[#allocation3 + $0x2c0] sm:$0xff]
    %v4182 = vld [vmem:[#allocation3 + $0x2c8] sm:$0xff]
    %v4183 = vld [vmem:[#allocation3 + $0x2d0] sm:$0xff]
    %v4184 = vld [vmem:[#allocation3 + $0x2d8] sm:$0xff]
    %v4185 = vld [vmem:[#allocation3 + $0x2e0] sm:$0xff]
    %v4186 = vld [vmem:[#allocation3 + $0x2e8] sm:$0xff]
    %v4187 = vld [vmem:[#allocation3 + $0x2f0] sm:$0xff]
    %v4188 = vld [vmem:[#allocation3 + $0x2f8] sm:$0xff]
    %v4189 = vld [vmem:[#allocation3 + $0x300] sm:$0xff]
    %v4190 = vld [vmem:[#allocation3 + $0x308] sm:$0xff]
    %v4191 = vld [vmem:[#allocation3 + $0x310] sm:$0xff]
    %v4192 = vld [vmem:[#allocation3 + $0x318] sm:$0xff]
    %v4193 = vld [vmem:[#allocation3 + $0x320] sm:$0xff]
    %v4194 = vld [vmem:[#allocation3 + $0x328] sm:$0xff]
    %v4195 = vld [vmem:[#allocation3 + $0x330] sm:$0xff]
    %v4196 = vld [vmem:[#allocation3 + $0x338] sm:$0xff]
    %v4197 = vld [vmem:[#allocation3 + $0x340] sm:$0xff]
    %v4198 = vld [vmem:[#allocation3 + $0x348] sm:$0xff]
    %v4199 = vld [vmem:[#allocation3 + $0x350] sm:$0xff]
    %v4200 = vld [vmem:[#allocation3 + $0x358] sm:$0xff]
    %v4201 = vld [vmem:[#allocation3 + $0x360] sm:$0xff]
    %v4202 = vld [vmem:[#allocation3 + $0x368] sm:$0xff]
    %v4203 = vld [vmem:[#allocation3 + $0x370] sm:$0xff]
    %v4204 = vld [vmem:[#allocation3 + $0x378] sm:$0xff]
    %v4205 = vld [vmem:[#allocation3 + $0x380] sm:$0xff]
    %v4206 = vld [vmem:[#allocation3 + $0x388] sm:$0xff]
    %v4207 = vld [vmem:[#allocation3 + $0x390] sm:$0xff]
    %v4208 = vld [vmem:[#allocation3 + $0x398] sm:$0xff]
    %v4209 = vld [vmem:[#allocation3 + $0x3a0] sm:$0xff]
    %v4210 = vld [vmem:[#allocation3 + $0x3a8] sm:$0xff]
    %v4211 = vld [vmem:[#allocation3 + $0x3b0] sm:$0xff]
    %v4212 = vld [vmem:[#allocation3 + $0x3b8] sm:$0xff]
    %v4213 = vld [vmem:[#allocation3 + $0x3c0] sm:$0xff]
    %v4214 = vld [vmem:[#allocation3 + $0x3c8] sm:$0xff]
    %v4215 = vld [vmem:[#allocation3 + $0x3d0] sm:$0xff]
    %v4216 = vld [vmem:[#allocation3 + $0x3d8] sm:$0xff]
    %v4217 = vld [vmem:[#allocation3 + $0x3e0] sm:$0xff]
    %v4218 = vld [vmem:[#allocation3 + $0x3e8] sm:$0xff]
    %v4219 = vld [vmem:[#allocation3 + $0x3f0] sm:$0xff]
    %v4220 = vld [vmem:[#allocation3 + $0x3f8] sm:$0xff]
    %v4221 = vld [vmem:[#allocation17] sm:$0xf]
    %v4223 = vlaneseq
    %v4224 = vshrl.u32 %v4223, 7
    %v4225 = vsub.s32 0, %v4224
    %v4226 = vrot.slane %v4221, %v4225
    %v4227 = vlaneseq
    %v4228 = vshrl.u32 %v4227, 7
    %v4229 = vsub.s32 1, %v4228
    %v4230 = vrot.slane %v4221, %v4229
    %v4231 = vlaneseq
    %v4232 = vshrl.u32 %v4231, 7
    %v4233 = vsub.s32 2, %v4232
    %v4234 = vrot.slane %v4221, %v4233
    %v4235 = vlaneseq
    %v4236 = vshrl.u32 %v4235, 7
    %v4237 = vsub.s32 3, %v4236
    %v4238 = vrot.slane %v4221, %v4237
    %v4371 = vunpack.c.l.b16 %v4093
    %v4372 = vunpack.c.h.b16 %v4093
    %v4373 = vunpack.c.l.b16 %v4094
    %v4374 = vunpack.c.h.b16 %v4094
    %v4375 = vunpack.c.l.b16 %v4095
    %v4376 = vunpack.c.h.b16 %v4095
    %v4377 = vunpack.c.l.b16 %v4096
    %v4378 = vunpack.c.h.b16 %v4096
    %v4379 = vunpack.c.l.b16 %v4097
    %v4380 = vunpack.c.h.b16 %v4097
    %v4381 = vunpack.c.l.b16 %v4098
    %v4382 = vunpack.c.h.b16 %v4098
    %v4383 = vunpack.c.l.b16 %v4099
    %v4384 = vunpack.c.h.b16 %v4099
    %v4385 = vunpack.c.l.b16 %v4100
    %v4386 = vunpack.c.h.b16 %v4100
    %v4387 = vunpack.c.l.b16 %v4101
    %v4388 = vunpack.c.h.b16 %v4101
    %v4389 = vunpack.c.l.b16 %v4102
    %v4390 = vunpack.c.h.b16 %v4102
    %v4391 = vunpack.c.l.b16 %v4103
    %v4392 = vunpack.c.h.b16 %v4103
    %v4393 = vunpack.c.l.b16 %v4104
    %v4394 = vunpack.c.h.b16 %v4104
    %v4395 = vunpack.c.l.b16 %v4105
    %v4396 = vunpack.c.h.b16 %v4105
    %v4397 = vunpack.c.l.b16 %v4106
    %v4398 = vunpack.c.h.b16 %v4106
    %v4399 = vunpack.c.l.b16 %v4107
    %v4400 = vunpack.c.h.b16 %v4107
    %v4401 = vunpack.c.l.b16 %v4108
    %v4402 = vunpack.c.h.b16 %v4108
    %v4403 = vunpack.c.l.b16 %v4109
    %v4404 = vunpack.c.h.b16 %v4109
    %v4405 = vunpack.c.l.b16 %v4110
    %v4406 = vunpack.c.h.b16 %v4110
    %v4407 = vunpack.c.l.b16 %v4111
    %v4408 = vunpack.c.h.b16 %v4111
    %v4409 = vunpack.c.l.b16 %v4112
    %v4410 = vunpack.c.h.b16 %v4112
    %v4411 = vunpack.c.l.b16 %v4113
    %v4412 = vunpack.c.h.b16 %v4113
    %v4413 = vunpack.c.l.b16 %v4114
    %v4414 = vunpack.c.h.b16 %v4114
    %v4415 = vunpack.c.l.b16 %v4115
    %v4416 = vunpack.c.h.b16 %v4115
    %v4417 = vunpack.c.l.b16 %v4116
    %v4418 = vunpack.c.h.b16 %v4116
    %v4419 = vunpack.c.l.b16 %v4117
    %v4420 = vunpack.c.h.b16 %v4117
    %v4421 = vunpack.c.l.b16 %v4118
    %v4422 = vunpack.c.h.b16 %v4118
    %v4423 = vunpack.c.l.b16 %v4119
    %v4424 = vunpack.c.h.b16 %v4119
    %v4425 = vunpack.c.l.b16 %v4120
    %v4426 = vunpack.c.h.b16 %v4120
    %v4427 = vunpack.c.l.b16 %v4121
    %v4428 = vunpack.c.h.b16 %v4121
    %v4429 = vunpack.c.l.b16 %v4122
    %v4430 = vunpack.c.h.b16 %v4122
    %v4431 = vunpack.c.l.b16 %v4123
    %v4432 = vunpack.c.h.b16 %v4123
    %v4433 = vunpack.c.l.b16 %v4124
    %v4434 = vunpack.c.h.b16 %v4124
    %v4435 = vunpack.c.l.b16 %v4125
    %v4436 = vunpack.c.h.b16 %v4125
    %v4437 = vunpack.c.l.b16 %v4126
    %v4438 = vunpack.c.h.b16 %v4126
    %v4439 = vunpack.c.l.b16 %v4127
    %v4440 = vunpack.c.h.b16 %v4127
    %v4441 = vunpack.c.l.b16 %v4128
    %v4442 = vunpack.c.h.b16 %v4128
    %v4443 = vunpack.c.l.b16 %v4129
    %v4444 = vunpack.c.h.b16 %v4129
    %v4445 = vunpack.c.l.b16 %v4130
    %v4446 = vunpack.c.h.b16 %v4130
    %v4447 = vunpack.c.l.b16 %v4131
    %v4448 = vunpack.c.h.b16 %v4131
    %v4449 = vunpack.c.l.b16 %v4132
    %v4450 = vunpack.c.h.b16 %v4132
    %v4451 = vunpack.c.l.b16 %v4133
    %v4452 = vunpack.c.h.b16 %v4133
    %v4453 = vunpack.c.l.b16 %v4134
    %v4454 = vunpack.c.h.b16 %v4134
    %v4455 = vunpack.c.l.b16 %v4135
    %v4456 = vunpack.c.h.b16 %v4135
    %v4457 = vunpack.c.l.b16 %v4136
    %v4458 = vunpack.c.h.b16 %v4136
    %v4459 = vunpack.c.l.b16 %v4137
    %v4460 = vunpack.c.h.b16 %v4137
    %v4461 = vunpack.c.l.b16 %v4138
    %v4462 = vunpack.c.h.b16 %v4138
    %v4463 = vunpack.c.l.b16 %v4139
    %v4464 = vunpack.c.h.b16 %v4139
    %v4465 = vunpack.c.l.b16 %v4140
    %v4466 = vunpack.c.h.b16 %v4140
    %v4467 = vunpack.c.l.b16 %v4141
    %v4468 = vunpack.c.h.b16 %v4141
    %v4469 = vunpack.c.l.b16 %v4142
    %v4470 = vunpack.c.h.b16 %v4142
    %v4471 = vunpack.c.l.b16 %v4143
    %v4472 = vunpack.c.h.b16 %v4143
    %v4473 = vunpack.c.l.b16 %v4144
    %v4474 = vunpack.c.h.b16 %v4144
    %v4475 = vunpack.c.l.b16 %v4145
    %v4476 = vunpack.c.h.b16 %v4145
    %v4477 = vunpack.c.l.b16 %v4146
    %v4478 = vunpack.c.h.b16 %v4146
    %v4479 = vunpack.c.l.b16 %v4147
    %v4480 = vunpack.c.h.b16 %v4147
    %v4481 = vunpack.c.l.b16 %v4148
    %v4482 = vunpack.c.h.b16 %v4148
    %v4483 = vunpack.c.l.b16 %v4149
    %v4484 = vunpack.c.h.b16 %v4149
    %v4485 = vunpack.c.l.b16 %v4150
    %v4486 = vunpack.c.h.b16 %v4150
    %v4487 = vunpack.c.l.b16 %v4151
    %v4488 = vunpack.c.h.b16 %v4151
    %v4489 = vunpack.c.l.b16 %v4152
    %v4490 = vunpack.c.h.b16 %v4152
    %v4491 = vunpack.c.l.b16 %v4153
    %v4492 = vunpack.c.h.b16 %v4153
    %v4493 = vunpack.c.l.b16 %v4154
    %v4494 = vunpack.c.h.b16 %v4154
    %v4495 = vunpack.c.l.b16 %v4155
    %v4496 = vunpack.c.h.b16 %v4155
    %v4497 = vunpack.c.l.b16 %v4156
    %v4498 = vunpack.c.h.b16 %v4156
    %v4499 = vunpack.c.l.b16 %v4157
    %v4500 = vunpack.c.h.b16 %v4157
    %v4501 = vunpack.c.l.b16 %v4158
    %v4502 = vunpack.c.h.b16 %v4158
    %v4503 = vunpack.c.l.b16 %v4159
    %v4504 = vunpack.c.h.b16 %v4159
    %v4505 = vunpack.c.l.b16 %v4160
    %v4506 = vunpack.c.h.b16 %v4160
    %v4507 = vunpack.c.l.b16 %v4161
    %v4508 = vunpack.c.h.b16 %v4161
    %v4509 = vunpack.c.l.b16 %v4162
    %v4510 = vunpack.c.h.b16 %v4162
    %v4511 = vunpack.c.l.b16 %v4163
    %v4512 = vunpack.c.h.b16 %v4163
    %v4513 = vunpack.c.l.b16 %v4164
    %v4514 = vunpack.c.h.b16 %v4164
    %v4515 = vunpack.c.l.b16 %v4165
    %v4516 = vunpack.c.h.b16 %v4165
    %v4517 = vunpack.c.l.b16 %v4166
    %v4518 = vunpack.c.h.b16 %v4166
    %v4519 = vunpack.c.l.b16 %v4167
    %v4520 = vunpack.c.h.b16 %v4167
    %v4521 = vunpack.c.l.b16 %v4168
    %v4522 = vunpack.c.h.b16 %v4168
    %v4523 = vunpack.c.l.b16 %v4169
    %v4524 = vunpack.c.h.b16 %v4169
    %v4525 = vunpack.c.l.b16 %v4170
    %v4526 = vunpack.c.h.b16 %v4170
    %v4527 = vunpack.c.l.b16 %v4171
    %v4528 = vunpack.c.h.b16 %v4171
    %v4529 = vunpack.c.l.b16 %v4172
    %v4530 = vunpack.c.h.b16 %v4172
    %v4531 = vunpack.c.l.b16 %v4173
    %v4532 = vunpack.c.h.b16 %v4173
    %v4533 = vunpack.c.l.b16 %v4174
    %v4534 = vunpack.c.h.b16 %v4174
    %v4535 = vunpack.c.l.b16 %v4175
    %v4536 = vunpack.c.h.b16 %v4175
    %v4537 = vunpack.c.l.b16 %v4176
    %v4538 = vunpack.c.h.b16 %v4176
    %v4539 = vunpack.c.l.b16 %v4177
    %v4540 = vunpack.c.h.b16 %v4177
    %v4541 = vunpack.c.l.b16 %v4178
    %v4542 = vunpack.c.h.b16 %v4178
    %v4543 = vunpack.c.l.b16 %v4179
    %v4544 = vunpack.c.h.b16 %v4179
    %v4545 = vunpack.c.l.b16 %v4180
    %v4546 = vunpack.c.h.b16 %v4180
    %v4547 = vunpack.c.l.b16 %v4181
    %v4548 = vunpack.c.h.b16 %v4181
    %v4549 = vunpack.c.l.b16 %v4182
    %v4550 = vunpack.c.h.b16 %v4182
    %v4551 = vunpack.c.l.b16 %v4183
    %v4552 = vunpack.c.h.b16 %v4183
    %v4553 = vunpack.c.l.b16 %v4184
    %v4554 = vunpack.c.h.b16 %v4184
    %v4555 = vunpack.c.l.b16 %v4185
    %v4556 = vunpack.c.h.b16 %v4185
    %v4557 = vunpack.c.l.b16 %v4186
    %v4558 = vunpack.c.h.b16 %v4186
    %v4559 = vunpack.c.l.b16 %v4187
    %v4560 = vunpack.c.h.b16 %v4187
    %v4561 = vunpack.c.l.b16 %v4188
    %v4562 = vunpack.c.h.b16 %v4188
    %v4563 = vunpack.c.l.b16 %v4189
    %v4564 = vunpack.c.h.b16 %v4189
    %v4565 = vunpack.c.l.b16 %v4190
    %v4566 = vunpack.c.h.b16 %v4190
    %v4567 = vunpack.c.l.b16 %v4191
    %v4568 = vunpack.c.h.b16 %v4191
    %v4569 = vunpack.c.l.b16 %v4192
    %v4570 = vunpack.c.h.b16 %v4192
    %v4571 = vunpack.c.l.b16 %v4193
    %v4572 = vunpack.c.h.b16 %v4193
    %v4573 = vunpack.c.l.b16 %v4194
    %v4574 = vunpack.c.h.b16 %v4194
    %v4575 = vunpack.c.l.b16 %v4195
    %v4576 = vunpack.c.h.b16 %v4195
    %v4577 = vunpack.c.l.b16 %v4196
    %v4578 = vunpack.c.h.b16 %v4196
    %v4579 = vunpack.c.l.b16 %v4197
    %v4580 = vunpack.c.h.b16 %v4197
    %v4581 = vunpack.c.l.b16 %v4198
    %v4582 = vunpack.c.h.b16 %v4198
    %v4583 = vunpack.c.l.b16 %v4199
    %v4584 = vunpack.c.h.b16 %v4199
    %v4585 = vunpack.c.l.b16 %v4200
    %v4586 = vunpack.c.h.b16 %v4200
    %v4587 = vunpack.c.l.b16 %v4201
    %v4588 = vunpack.c.h.b16 %v4201
    %v4589 = vunpack.c.l.b16 %v4202
    %v4590 = vunpack.c.h.b16 %v4202
    %v4591 = vunpack.c.l.b16 %v4203
    %v4592 = vunpack.c.h.b16 %v4203
    %v4593 = vunpack.c.l.b16 %v4204
    %v4594 = vunpack.c.h.b16 %v4204
    %v4595 = vunpack.c.l.b16 %v4205
    %v4596 = vunpack.c.h.b16 %v4205
    %v4597 = vunpack.c.l.b16 %v4206
    %v4598 = vunpack.c.h.b16 %v4206
    %v4599 = vunpack.c.l.b16 %v4207
    %v4600 = vunpack.c.h.b16 %v4207
    %v4601 = vunpack.c.l.b16 %v4208
    %v4602 = vunpack.c.h.b16 %v4208
    %v4603 = vunpack.c.l.b16 %v4209
    %v4604 = vunpack.c.h.b16 %v4209
    %v4605 = vunpack.c.l.b16 %v4210
    %v4606 = vunpack.c.h.b16 %v4210
    %v4607 = vunpack.c.l.b16 %v4211
    %v4608 = vunpack.c.h.b16 %v4211
    %v4609 = vunpack.c.l.b16 %v4212
    %v4610 = vunpack.c.h.b16 %v4212
    %v4611 = vunpack.c.l.b16 %v4213
    %v4612 = vunpack.c.h.b16 %v4213
    %v4613 = vunpack.c.l.b16 %v4214
    %v4614 = vunpack.c.h.b16 %v4214
    %v4615 = vunpack.c.l.b16 %v4215
    %v4616 = vunpack.c.h.b16 %v4215
    %v4617 = vunpack.c.l.b16 %v4216
    %v4618 = vunpack.c.h.b16 %v4216
    %v4619 = vunpack.c.l.b16 %v4217
    %v4620 = vunpack.c.h.b16 %v4217
    %v4621 = vunpack.c.l.b16 %v4218
    %v4622 = vunpack.c.h.b16 %v4218
    %v4623 = vunpack.c.l.b16 %v4219
    %v4624 = vunpack.c.h.b16 %v4219
    %v4625 = vunpack.c.l.b16 %v4220
    %v4626 = vunpack.c.h.b16 %v4220
    %v4627 = vpack.c.b16 %v4375, %v4371
    %v4628 = vpack.c.b16 %v4376, %v4372
    %v4629 = vpack.c.b16 %v4377, %v4373
    %v4630 = vpack.c.b16 %v4378, %v4374
    %v4631 = vpack.c.b16 %v4383, %v4379
    %v4632 = vpack.c.b16 %v4384, %v4380
    %v4633 = vpack.c.b16 %v4385, %v4381
    %v4634 = vpack.c.b16 %v4386, %v4382
    %v4635 = vpack.c.b16 %v4391, %v4387
    %v4636 = vpack.c.b16 %v4392, %v4388
    %v4637 = vpack.c.b16 %v4393, %v4389
    %v4638 = vpack.c.b16 %v4394, %v4390
    %v4639 = vpack.c.b16 %v4399, %v4395
    %v4640 = vpack.c.b16 %v4400, %v4396
    %v4641 = vpack.c.b16 %v4401, %v4397
    %v4642 = vpack.c.b16 %v4402, %v4398
    %v4643 = vpack.c.b16 %v4407, %v4403
    %v4644 = vpack.c.b16 %v4408, %v4404
    %v4645 = vpack.c.b16 %v4409, %v4405
    %v4646 = vpack.c.b16 %v4410, %v4406
    %v4647 = vpack.c.b16 %v4415, %v4411
    %v4648 = vpack.c.b16 %v4416, %v4412
    %v4649 = vpack.c.b16 %v4417, %v4413
    %v4650 = vpack.c.b16 %v4418, %v4414
    %v4651 = vpack.c.b16 %v4423, %v4419
    %v4652 = vpack.c.b16 %v4424, %v4420
    %v4653 = vpack.c.b16 %v4425, %v4421
    %v4654 = vpack.c.b16 %v4426, %v4422
    %v4655 = vpack.c.b16 %v4431, %v4427
    %v4656 = vpack.c.b16 %v4432, %v4428
    %v4657 = vpack.c.b16 %v4433, %v4429
    %v4658 = vpack.c.b16 %v4434, %v4430
    %v4659 = vpack.c.b16 %v4439, %v4435
    %v4660 = vpack.c.b16 %v4440, %v4436
    %v4661 = vpack.c.b16 %v4441, %v4437
    %v4662 = vpack.c.b16 %v4442, %v4438
    %v4663 = vpack.c.b16 %v4447, %v4443
    %v4664 = vpack.c.b16 %v4448, %v4444
    %v4665 = vpack.c.b16 %v4449, %v4445
    %v4666 = vpack.c.b16 %v4450, %v4446
    %v4667 = vpack.c.b16 %v4455, %v4451
    %v4668 = vpack.c.b16 %v4456, %v4452
    %v4669 = vpack.c.b16 %v4457, %v4453
    %v4670 = vpack.c.b16 %v4458, %v4454
    %v4671 = vpack.c.b16 %v4463, %v4459
    %v4672 = vpack.c.b16 %v4464, %v4460
    %v4673 = vpack.c.b16 %v4465, %v4461
    %v4674 = vpack.c.b16 %v4466, %v4462
    %v4675 = vpack.c.b16 %v4471, %v4467
    %v4676 = vpack.c.b16 %v4472, %v4468
    %v4677 = vpack.c.b16 %v4473, %v4469
    %v4678 = vpack.c.b16 %v4474, %v4470
    %v4679 = vpack.c.b16 %v4479, %v4475
    %v4680 = vpack.c.b16 %v4480, %v4476
    %v4681 = vpack.c.b16 %v4481, %v4477
    %v4682 = vpack.c.b16 %v4482, %v4478
    %v4683 = vpack.c.b16 %v4487, %v4483
    %v4684 = vpack.c.b16 %v4488, %v4484
    %v4685 = vpack.c.b16 %v4489, %v4485
    %v4686 = vpack.c.b16 %v4490, %v4486
    %v4687 = vpack.c.b16 %v4495, %v4491
    %v4688 = vpack.c.b16 %v4496, %v4492
    %v4689 = vpack.c.b16 %v4497, %v4493
    %v4690 = vpack.c.b16 %v4498, %v4494
    %v4691 = vpack.c.b16 %v4503, %v4499
    %v4692 = vpack.c.b16 %v4504, %v4500
    %v4693 = vpack.c.b16 %v4505, %v4501
    %v4694 = vpack.c.b16 %v4506, %v4502
    %v4695 = vpack.c.b16 %v4511, %v4507
    %v4696 = vpack.c.b16 %v4512, %v4508
    %v4697 = vpack.c.b16 %v4513, %v4509
    %v4698 = vpack.c.b16 %v4514, %v4510
    %v4699 = vpack.c.b16 %v4519, %v4515
    %v4700 = vpack.c.b16 %v4520, %v4516
    %v4701 = vpack.c.b16 %v4521, %v4517
    %v4702 = vpack.c.b16 %v4522, %v4518
    %v4703 = vpack.c.b16 %v4527, %v4523
    %v4704 = vpack.c.b16 %v4528, %v4524
    %v4705 = vpack.c.b16 %v4529, %v4525
    %v4706 = vpack.c.b16 %v4530, %v4526
    %v4707 = vpack.c.b16 %v4535, %v4531
    %v4708 = vpack.c.b16 %v4536, %v4532
    %v4709 = vpack.c.b16 %v4537, %v4533
    %v4710 = vpack.c.b16 %v4538, %v4534
    %v4711 = vpack.c.b16 %v4543, %v4539
    %v4712 = vpack.c.b16 %v4544, %v4540
    %v4713 = vpack.c.b16 %v4545, %v4541
    %v4714 = vpack.c.b16 %v4546, %v4542
    %v4715 = vpack.c.b16 %v4551, %v4547
    %v4716 = vpack.c.b16 %v4552, %v4548
    %v4717 = vpack.c.b16 %v4553, %v4549
    %v4718 = vpack.c.b16 %v4554, %v4550
    %v4719 = vpack.c.b16 %v4559, %v4555
    %v4720 = vpack.c.b16 %v4560, %v4556
    %v4721 = vpack.c.b16 %v4561, %v4557
    %v4722 = vpack.c.b16 %v4562, %v4558
    %v4723 = vpack.c.b16 %v4567, %v4563
    %v4724 = vpack.c.b16 %v4568, %v4564
    %v4725 = vpack.c.b16 %v4569, %v4565
    %v4726 = vpack.c.b16 %v4570, %v4566
    %v4727 = vpack.c.b16 %v4575, %v4571
    %v4728 = vpack.c.b16 %v4576, %v4572
    %v4729 = vpack.c.b16 %v4577, %v4573
    %v4730 = vpack.c.b16 %v4578, %v4574
    %v4731 = vpack.c.b16 %v4583, %v4579
    %v4732 = vpack.c.b16 %v4584, %v4580
    %v4733 = vpack.c.b16 %v4585, %v4581
    %v4734 = vpack.c.b16 %v4586, %v4582
    %v4735 = vpack.c.b16 %v4591, %v4587
    %v4736 = vpack.c.b16 %v4592, %v4588
    %v4737 = vpack.c.b16 %v4593, %v4589
    %v4738 = vpack.c.b16 %v4594, %v4590
    %v4739 = vpack.c.b16 %v4599, %v4595
    %v4740 = vpack.c.b16 %v4600, %v4596
    %v4741 = vpack.c.b16 %v4601, %v4597
    %v4742 = vpack.c.b16 %v4602, %v4598
    %v4743 = vpack.c.b16 %v4607, %v4603
    %v4744 = vpack.c.b16 %v4608, %v4604
    %v4745 = vpack.c.b16 %v4609, %v4605
    %v4746 = vpack.c.b16 %v4610, %v4606
    %v4747 = vpack.c.b16 %v4615, %v4611
    %v4748 = vpack.c.b16 %v4616, %v4612
    %v4749 = vpack.c.b16 %v4617, %v4613
    %v4750 = vpack.c.b16 %v4618, %v4614
    %v4751 = vpack.c.b16 %v4623, %v4619
    %v4752 = vpack.c.b16 %v4624, %v4620
    %v4753 = vpack.c.b16 %v4625, %v4621
    %v4754 = vpack.c.b16 %v4626, %v4622
    %4883 = vmatprep.subr.bf16.mxu0 %v4656
    %4884 = vmatpush1.bf16.msra.mxu0 %v4655
    %4885 = vmatprep.subr.bf16.mxu0 %v4652
    %4886 = vmatpush1.bf16.msra.mxu0 %v4651
    %4887 = vmatprep.subr.bf16.mxu0 %v4648
    %4888 = vmatpush1.bf16.msra.mxu0 %v4647
    %4889 = vmatprep.subr.bf16.mxu0 %v4644
    %4890 = vmatpush1.bf16.msra.mxu0 %v4643
    %4891 = vmatprep.subr.bf16.mxu0 %v4640
    %4892 = vmatpush1.bf16.msra.mxu0 %v4639
    %4893 = vmatprep.subr.bf16.mxu0 %v4636
    %4894 = vmatpush1.bf16.msra.mxu0 %v4635
    %4895 = vmatprep.subr.bf16.mxu0 %v4632
    %4896 = vmatpush1.bf16.msra.mxu0 %v4631
    %4897 = vmatprep.subr.bf16.mxu0 %v4628
    %4898 = vmatpush1.bf16.msra.mxu0 %v4627
    %4899 = vmatprep.subr.bf16.mxu0 %v4688
    %4900 = vmatpush2.bf16.msra.mxu0 %v4687
    %4901 = vmatprep.subr.bf16.mxu0 %v4684
    %4902 = vmatpush2.bf16.msra.mxu0 %v4683
    %4903 = vmatprep.subr.bf16.mxu0 %v4680
    %4904 = vmatpush2.bf16.msra.mxu0 %v4679
    %4905 = vmatprep.subr.bf16.mxu0 %v4676
    %4906 = vmatpush2.bf16.msra.mxu0 %v4675
    %4907 = vmatprep.subr.bf16.mxu0 %v4672
    %4908 = vmatpush2.bf16.msra.mxu0 %v4671
    %4909 = vmatprep.subr.bf16.mxu0 %v4668
    %4910 = vmatpush2.bf16.msra.mxu0 %v4667
    %4911 = vmatprep.subr.bf16.mxu0 %v4664
    %4912 = vmatpush2.bf16.msra.mxu0 %v4663
    %4913 = vmatprep.subr.bf16.mxu0 %v4660
    %4914 = vmatpush2.bf16.msra.mxu0 %v4659
    %4915 = vmatprep.mubr.f32.mxu0 %v4088
    %4916 = vmatmul.mubr.f32.gmra.mxu0 %v4087
    %v4917 = vpop.f32.mrf.mxu0
    %v4918 = vadd.f32 %v4226, %v4917
    %v4919 = vpop.f32.mrf.mxu0
    %v4920 = vadd.f32 %v4230, %v4919
    %4921 = vdwg.mxu0
    %4922 = vmatprep.subr.bf16.mxu0 %v4720
    %4923 = vmatpush1.bf16.msra.mxu0 %v4719
    %4924 = vmatprep.subr.bf16.mxu0 %v4716
    %4925 = vmatpush1.bf16.msra.mxu0 %v4715
    %4926 = vmatprep.subr.bf16.mxu0 %v4712
    %4927 = vmatpush1.bf16.msra.mxu0 %v4711
    %4928 = vmatprep.subr.bf16.mxu0 %v4708
    %4929 = vmatpush1.bf16.msra.mxu0 %v4707
    %4930 = vmatprep.subr.bf16.mxu0 %v4704
    %4931 = vmatpush1.bf16.msra.mxu0 %v4703
    %4932 = vmatprep.subr.bf16.mxu0 %v4700
    %4933 = vmatpush1.bf16.msra.mxu0 %v4699
    %4934 = vmatprep.subr.bf16.mxu0 %v4696
    %4935 = vmatpush1.bf16.msra.mxu0 %v4695
    %4936 = vmatprep.subr.bf16.mxu0 %v4692
    %4937 = vmatpush1.bf16.msra.mxu0 %v4691
    %4938 = vmatprep.subr.bf16.mxu0 %v4752
    %4939 = vmatpush2.bf16.msra.mxu0 %v4751
    %4940 = vmatprep.subr.bf16.mxu0 %v4748
    %4941 = vmatpush2.bf16.msra.mxu0 %v4747
    %4942 = vmatprep.subr.bf16.mxu0 %v4744
    %4943 = vmatpush2.bf16.msra.mxu0 %v4743
    %4944 = vmatprep.subr.bf16.mxu0 %v4740
    %4945 = vmatpush2.bf16.msra.mxu0 %v4739
    %4946 = vmatprep.subr.bf16.mxu0 %v4736
    %4947 = vmatpush2.bf16.msra.mxu0 %v4735
    %4948 = vmatprep.subr.bf16.mxu0 %v4732
    %4949 = vmatpush2.bf16.msra.mxu0 %v4731
    %4950 = vmatprep.subr.bf16.mxu0 %v4728
    %4951 = vmatpush2.bf16.msra.mxu0 %v4727
    %4952 = vmatprep.subr.bf16.mxu0 %v4724
    %4953 = vmatpush2.bf16.msra.mxu0 %v4723
    %4954 = vmatprep.mubr.f32.mxu0 %v4090
    %4955 = vmatmul.mubr.f32.gmra.mxu0 %v4089
    %v4956 = vpop.f32.mrf.mxu0
    %v4957 = vadd.f32 %v4918, %v4956
    %v4958 = vpop.f32.mrf.mxu0
    %v4959 = vadd.f32 %v4920, %v4958
    %4960 = vdwg.mxu0
    %4961 = vmatprep.subr.bf16.mxu0 %v4658
    %4962 = vmatpush1.bf16.msra.mxu0 %v4657
    %4963 = vmatprep.subr.bf16.mxu0 %v4654
    %4964 = vmatpush1.bf16.msra.mxu0 %v4653
    %4965 = vmatprep.subr.bf16.mxu0 %v4650
    %4966 = vmatpush1.bf16.msra.mxu0 %v4649
    %4967 = vmatprep.subr.bf16.mxu0 %v4646
    %4968 = vmatpush1.bf16.msra.mxu0 %v4645
    %4969 = vmatprep.subr.bf16.mxu0 %v4642
    %4970 = vmatpush1.bf16.msra.mxu0 %v4641
    %4971 = vmatprep.subr.bf16.mxu0 %v4638
    %4972 = vmatpush1.bf16.msra.mxu0 %v4637
    %4973 = vmatprep.subr.bf16.mxu0 %v4634
    %4974 = vmatpush1.bf16.msra.mxu0 %v4633
    %4975 = vmatprep.subr.bf16.mxu0 %v4630
    %4976 = vmatpush1.bf16.msra.mxu0 %v4629
    %4977 = vmatprep.subr.bf16.mxu0 %v4690
    %4978 = vmatpush2.bf16.msra.mxu0 %v4689
    %4979 = vmatprep.subr.bf16.mxu0 %v4686
    %4980 = vmatpush2.bf16.msra.mxu0 %v4685
    %4981 = vmatprep.subr.bf16.mxu0 %v4682
    %4982 = vmatpush2.bf16.msra.mxu0 %v4681
    %4983 = vmatprep.subr.bf16.mxu0 %v4678
    %4984 = vmatpush2.bf16.msra.mxu0 %v4677
    %4985 = vmatprep.subr.bf16.mxu0 %v4674
    %4986 = vmatpush2.bf16.msra.mxu0 %v4673
    %4987 = vmatprep.subr.bf16.mxu0 %v4670
    %4988 = vmatpush2.bf16.msra.mxu0 %v4669
    %4989 = vmatprep.subr.bf16.mxu0 %v4666
    %4990 = vmatpush2.bf16.msra.mxu0 %v4665
    %4991 = vmatprep.subr.bf16.mxu0 %v4662
    %4992 = vmatpush2.bf16.msra.mxu0 %v4661
    %4993 = vmatprep.mubr.f32.mxu0 %v4088
    %4994 = vmatmul.mubr.f32.gmra.mxu0 %v4087
    %v4995 = vpop.f32.mrf.mxu0
    %v4996 = vadd.f32 %v4234, %v4995
    %v4997 = vpop.f32.mrf.mxu0
    %v4998 = vadd.f32 %v4238, %v4997
    %4999 = vdwg.mxu0
    %5000 = vmatprep.subr.bf16.mxu0 %v4722
    %5001 = vmatpush1.bf16.msra.mxu0 %v4721
    %5002 = vmatprep.subr.bf16.mxu0 %v4718
    %5003 = vmatpush1.bf16.msra.mxu0 %v4717
    %5004 = vmatprep.subr.bf16.mxu0 %v4714
    %5005 = vmatpush1.bf16.msra.mxu0 %v4713
    %5006 = vmatprep.subr.bf16.mxu0 %v4710
    %5007 = vmatpush1.bf16.msra.mxu0 %v4709
    %5008 = vmatprep.subr.bf16.mxu0 %v4706
    %5009 = vmatpush1.bf16.msra.mxu0 %v4705
    %5010 = vmatprep.subr.bf16.mxu0 %v4702
    %5011 = vmatpush1.bf16.msra.mxu0 %v4701
    %5012 = vmatprep.subr.bf16.mxu0 %v4698
    %5013 = vmatpush1.bf16.msra.mxu0 %v4697
    %5014 = vmatprep.subr.bf16.mxu0 %v4694
    %5015 = vmatpush1.bf16.msra.mxu0 %v4693
    %5016 = vmatprep.subr.bf16.mxu0 %v4754
    %5017 = vmatpush2.bf16.msra.mxu0 %v4753
    %5018 = vmatprep.subr.bf16.mxu0 %v4750
    %5019 = vmatpush2.bf16.msra.mxu0 %v4749
    %5020 = vmatprep.subr.bf16.mxu0 %v4746
    %5021 = vmatpush2.bf16.msra.mxu0 %v4745
    %5022 = vmatprep.subr.bf16.mxu0 %v4742
    %5023 = vmatpush2.bf16.msra.mxu0 %v4741
    %5024 = vmatprep.subr.bf16.mxu0 %v4738
    %5025 = vmatpush2.bf16.msra.mxu0 %v4737
    %5026 = vmatprep.subr.bf16.mxu0 %v4734
    %5027 = vmatpush2.bf16.msra.mxu0 %v4733
    %5028 = vmatprep.subr.bf16.mxu0 %v4730
    %5029 = vmatpush2.bf16.msra.mxu0 %v4729
    %5030 = vmatprep.subr.bf16.mxu0 %v4726
    %5031 = vmatpush2.bf16.msra.mxu0 %v4725
    %5032 = vmatprep.mubr.f32.mxu0 %v4090
    %5033 = vmatmul.mubr.f32.gmra.mxu0 %v4089
    %v5034 = vpop.f32.mrf.mxu0
    %v5035 = vadd.f32 %v4996, %v5034
    %v5036 = vpop.f32.mrf.mxu0
    %v5037 = vadd.f32 %v4998, %v5036
    %5038 = vdwg.mxu0
    %v5039 = vmax.f32 %v4957, 0.0
    %v5040 = vmax.f32 %v4959, 0.0
    %v5041 = vmax.f32 %v5035, 0.0
    %v5042 = vmax.f32 %v5037, 0.0
    %s5043 = sshll.u32 %s3138, 4
    %5044 = dma.done %s175, %s5043
    %v5045 = vld [vmem:[#allocation4] sm:$0xff]
    %v5046 = vld [vmem:[#allocation4 + $0x8] sm:$0xff]
    %v5047 = vld [vmem:[#allocation4 + $0x10] sm:$0xff]
    %v5048 = vld [vmem:[#allocation4 + $0x18] sm:$0xff]
    %v5049 = vld [vmem:[#allocation4 + $0x20] sm:$0xff]
    %v5050 = vld [vmem:[#allocation4 + $0x28] sm:$0xff]
    %v5051 = vld [vmem:[#allocation4 + $0x30] sm:$0xff]
    %v5052 = vld [vmem:[#allocation4 + $0x38] sm:$0xff]
    %v5053 = vld [vmem:[#allocation4 + $0x40] sm:$0xff]
    %v5054 = vld [vmem:[#allocation4 + $0x48] sm:$0xff]
    %v5055 = vld [vmem:[#allocation4 + $0x50] sm:$0xff]
    %v5056 = vld [vmem:[#allocation4 + $0x58] sm:$0xff]
    %v5057 = vld [vmem:[#allocation4 + $0x60] sm:$0xff]
    %v5058 = vld [vmem:[#allocation4 + $0x68] sm:$0xff]
    %v5059 = vld [vmem:[#allocation4 + $0x70] sm:$0xff]
    %v5060 = vld [vmem:[#allocation4 + $0x78] sm:$0xff]
    %v5061 = vld [vmem:[#allocation4 + $0x80] sm:$0xff]
    %v5062 = vld [vmem:[#allocation4 + $0x88] sm:$0xff]
    %v5063 = vld [vmem:[#allocation4 + $0x90] sm:$0xff]
    %v5064 = vld [vmem:[#allocation4 + $0x98] sm:$0xff]
    %v5065 = vld [vmem:[#allocation4 + $0xa0] sm:$0xff]
    %v5066 = vld [vmem:[#allocation4 + $0xa8] sm:$0xff]
    %v5067 = vld [vmem:[#allocation4 + $0xb0] sm:$0xff]
    %v5068 = vld [vmem:[#allocation4 + $0xb8] sm:$0xff]
    %v5069 = vld [vmem:[#allocation4 + $0xc0] sm:$0xff]
    %v5070 = vld [vmem:[#allocation4 + $0xc8] sm:$0xff]
    %v5071 = vld [vmem:[#allocation4 + $0xd0] sm:$0xff]
    %v5072 = vld [vmem:[#allocation4 + $0xd8] sm:$0xff]
    %v5073 = vld [vmem:[#allocation4 + $0xe0] sm:$0xff]
    %v5074 = vld [vmem:[#allocation4 + $0xe8] sm:$0xff]
    %v5075 = vld [vmem:[#allocation4 + $0xf0] sm:$0xff]
    %v5076 = vld [vmem:[#allocation4 + $0xf8] sm:$0xff]
    %v5077 = vld [vmem:[#allocation4 + $0x100] sm:$0xff]
    %v5078 = vld [vmem:[#allocation4 + $0x108] sm:$0xff]
    %v5079 = vld [vmem:[#allocation4 + $0x110] sm:$0xff]
    %v5080 = vld [vmem:[#allocation4 + $0x118] sm:$0xff]
    %v5081 = vld [vmem:[#allocation4 + $0x120] sm:$0xff]
    %v5082 = vld [vmem:[#allocation4 + $0x128] sm:$0xff]
    %v5083 = vld [vmem:[#allocation4 + $0x130] sm:$0xff]
    %v5084 = vld [vmem:[#allocation4 + $0x138] sm:$0xff]
    %v5085 = vld [vmem:[#allocation4 + $0x140] sm:$0xff]
    %v5086 = vld [vmem:[#allocation4 + $0x148] sm:$0xff]
    %v5087 = vld [vmem:[#allocation4 + $0x150] sm:$0xff]
    %v5088 = vld [vmem:[#allocation4 + $0x158] sm:$0xff]
    %v5089 = vld [vmem:[#allocation4 + $0x160] sm:$0xff]
    %v5090 = vld [vmem:[#allocation4 + $0x168] sm:$0xff]
    %v5091 = vld [vmem:[#allocation4 + $0x170] sm:$0xff]
    %v5092 = vld [vmem:[#allocation4 + $0x178] sm:$0xff]
    %v5093 = vld [vmem:[#allocation4 + $0x180] sm:$0xff]
    %v5094 = vld [vmem:[#allocation4 + $0x188] sm:$0xff]
    %v5095 = vld [vmem:[#allocation4 + $0x190] sm:$0xff]
    %v5096 = vld [vmem:[#allocation4 + $0x198] sm:$0xff]
    %v5097 = vld [vmem:[#allocation4 + $0x1a0] sm:$0xff]
    %v5098 = vld [vmem:[#allocation4 + $0x1a8] sm:$0xff]
    %v5099 = vld [vmem:[#allocation4 + $0x1b0] sm:$0xff]
    %v5100 = vld [vmem:[#allocation4 + $0x1b8] sm:$0xff]
    %v5101 = vld [vmem:[#allocation4 + $0x1c0] sm:$0xff]
    %v5102 = vld [vmem:[#allocation4 + $0x1c8] sm:$0xff]
    %v5103 = vld [vmem:[#allocation4 + $0x1d0] sm:$0xff]
    %v5104 = vld [vmem:[#allocation4 + $0x1d8] sm:$0xff]
    %v5105 = vld [vmem:[#allocation4 + $0x1e0] sm:$0xff]
    %v5106 = vld [vmem:[#allocation4 + $0x1e8] sm:$0xff]
    %v5107 = vld [vmem:[#allocation4 + $0x1f0] sm:$0xff]
    %v5108 = vld [vmem:[#allocation4 + $0x1f8] sm:$0xff]
    %v5109 = vld [vmem:[#allocation4 + $0x200] sm:$0xff]
    %v5110 = vld [vmem:[#allocation4 + $0x208] sm:$0xff]
    %v5111 = vld [vmem:[#allocation4 + $0x210] sm:$0xff]
    %v5112 = vld [vmem:[#allocation4 + $0x218] sm:$0xff]
    %v5113 = vld [vmem:[#allocation4 + $0x220] sm:$0xff]
    %v5114 = vld [vmem:[#allocation4 + $0x228] sm:$0xff]
    %v5115 = vld [vmem:[#allocation4 + $0x230] sm:$0xff]
    %v5116 = vld [vmem:[#allocation4 + $0x238] sm:$0xff]
    %v5117 = vld [vmem:[#allocation4 + $0x240] sm:$0xff]
    %v5118 = vld [vmem:[#allocation4 + $0x248] sm:$0xff]
    %v5119 = vld [vmem:[#allocation4 + $0x250] sm:$0xff]
    %v5120 = vld [vmem:[#allocation4 + $0x258] sm:$0xff]
    %v5121 = vld [vmem:[#allocation4 + $0x260] sm:$0xff]
    %v5122 = vld [vmem:[#allocation4 + $0x268] sm:$0xff]
    %v5123 = vld [vmem:[#allocation4 + $0x270] sm:$0xff]
    %v5124 = vld [vmem:[#allocation4 + $0x278] sm:$0xff]
    %v5125 = vld [vmem:[#allocation4 + $0x280] sm:$0xff]
    %v5126 = vld [vmem:[#allocation4 + $0x288] sm:$0xff]
    %v5127 = vld [vmem:[#allocation4 + $0x290] sm:$0xff]
    %v5128 = vld [vmem:[#allocation4 + $0x298] sm:$0xff]
    %v5129 = vld [vmem:[#allocation4 + $0x2a0] sm:$0xff]
    %v5130 = vld [vmem:[#allocation4 + $0x2a8] sm:$0xff]
    %v5131 = vld [vmem:[#allocation4 + $0x2b0] sm:$0xff]
    %v5132 = vld [vmem:[#allocation4 + $0x2b8] sm:$0xff]
    %v5133 = vld [vmem:[#allocation4 + $0x2c0] sm:$0xff]
    %v5134 = vld [vmem:[#allocation4 + $0x2c8] sm:$0xff]
    %v5135 = vld [vmem:[#allocation4 + $0x2d0] sm:$0xff]
    %v5136 = vld [vmem:[#allocation4 + $0x2d8] sm:$0xff]
    %v5137 = vld [vmem:[#allocation4 + $0x2e0] sm:$0xff]
    %v5138 = vld [vmem:[#allocation4 + $0x2e8] sm:$0xff]
    %v5139 = vld [vmem:[#allocation4 + $0x2f0] sm:$0xff]
    %v5140 = vld [vmem:[#allocation4 + $0x2f8] sm:$0xff]
    %v5141 = vld [vmem:[#allocation4 + $0x300] sm:$0xff]
    %v5142 = vld [vmem:[#allocation4 + $0x308] sm:$0xff]
    %v5143 = vld [vmem:[#allocation4 + $0x310] sm:$0xff]
    %v5144 = vld [vmem:[#allocation4 + $0x318] sm:$0xff]
    %v5145 = vld [vmem:[#allocation4 + $0x320] sm:$0xff]
    %v5146 = vld [vmem:[#allocation4 + $0x328] sm:$0xff]
    %v5147 = vld [vmem:[#allocation4 + $0x330] sm:$0xff]
    %v5148 = vld [vmem:[#allocation4 + $0x338] sm:$0xff]
    %v5149 = vld [vmem:[#allocation4 + $0x340] sm:$0xff]
    %v5150 = vld [vmem:[#allocation4 + $0x348] sm:$0xff]
    %v5151 = vld [vmem:[#allocation4 + $0x350] sm:$0xff]
    %v5152 = vld [vmem:[#allocation4 + $0x358] sm:$0xff]
    %v5153 = vld [vmem:[#allocation4 + $0x360] sm:$0xff]
    %v5154 = vld [vmem:[#allocation4 + $0x368] sm:$0xff]
    %v5155 = vld [vmem:[#allocation4 + $0x370] sm:$0xff]
    %v5156 = vld [vmem:[#allocation4 + $0x378] sm:$0xff]
    %v5157 = vld [vmem:[#allocation4 + $0x380] sm:$0xff]
    %v5158 = vld [vmem:[#allocation4 + $0x388] sm:$0xff]
    %v5159 = vld [vmem:[#allocation4 + $0x390] sm:$0xff]
    %v5160 = vld [vmem:[#allocation4 + $0x398] sm:$0xff]
    %v5161 = vld [vmem:[#allocation4 + $0x3a0] sm:$0xff]
    %v5162 = vld [vmem:[#allocation4 + $0x3a8] sm:$0xff]
    %v5163 = vld [vmem:[#allocation4 + $0x3b0] sm:$0xff]
    %v5164 = vld [vmem:[#allocation4 + $0x3b8] sm:$0xff]
    %v5165 = vld [vmem:[#allocation4 + $0x3c0] sm:$0xff]
    %v5166 = vld [vmem:[#allocation4 + $0x3c8] sm:$0xff]
    %v5167 = vld [vmem:[#allocation4 + $0x3d0] sm:$0xff]
    %v5168 = vld [vmem:[#allocation4 + $0x3d8] sm:$0xff]
    %v5169 = vld [vmem:[#allocation4 + $0x3e0] sm:$0xff]
    %v5170 = vld [vmem:[#allocation4 + $0x3e8] sm:$0xff]
    %v5171 = vld [vmem:[#allocation4 + $0x3f0] sm:$0xff]
    %v5172 = vld [vmem:[#allocation4 + $0x3f8] sm:$0xff]
    %v5173 = vld [vmem:[#allocation19] sm:$0xf]
    %v5175 = vlaneseq
    %v5176 = vshrl.u32 %v5175, 7
    %v5177 = vsub.s32 0, %v5176
    %v5178 = vrot.slane %v5173, %v5177
    %v5179 = vlaneseq
    %v5180 = vshrl.u32 %v5179, 7
    %v5181 = vsub.s32 1, %v5180
    %v5182 = vrot.slane %v5173, %v5181
    %v5183 = vlaneseq
    %v5184 = vshrl.u32 %v5183, 7
    %v5185 = vsub.s32 2, %v5184
    %v5186 = vrot.slane %v5173, %v5185
    %v5187 = vlaneseq
    %v5188 = vshrl.u32 %v5187, 7
    %v5189 = vsub.s32 3, %v5188
    %v5190 = vrot.slane %v5173, %v5189
    %v5323 = vunpack.c.l.b16 %v5045
    %v5324 = vunpack.c.h.b16 %v5045
    %v5325 = vunpack.c.l.b16 %v5046
    %v5326 = vunpack.c.h.b16 %v5046
    %v5327 = vunpack.c.l.b16 %v5047
    %v5328 = vunpack.c.h.b16 %v5047
    %v5329 = vunpack.c.l.b16 %v5048
    %v5330 = vunpack.c.h.b16 %v5048
    %v5331 = vunpack.c.l.b16 %v5049
    %v5332 = vunpack.c.h.b16 %v5049
    %v5333 = vunpack.c.l.b16 %v5050
    %v5334 = vunpack.c.h.b16 %v5050
    %v5335 = vunpack.c.l.b16 %v5051
    %v5336 = vunpack.c.h.b16 %v5051
    %v5337 = vunpack.c.l.b16 %v5052
    %v5338 = vunpack.c.h.b16 %v5052
    %v5339 = vunpack.c.l.b16 %v5053
    %v5340 = vunpack.c.h.b16 %v5053
    %v5341 = vunpack.c.l.b16 %v5054
    %v5342 = vunpack.c.h.b16 %v5054
    %v5343 = vunpack.c.l.b16 %v5055
    %v5344 = vunpack.c.h.b16 %v5055
    %v5345 = vunpack.c.l.b16 %v5056
    %v5346 = vunpack.c.h.b16 %v5056
    %v5347 = vunpack.c.l.b16 %v5057
    %v5348 = vunpack.c.h.b16 %v5057
    %v5349 = vunpack.c.l.b16 %v5058
    %v5350 = vunpack.c.h.b16 %v5058
    %v5351 = vunpack.c.l.b16 %v5059
    %v5352 = vunpack.c.h.b16 %v5059
    %v5353 = vunpack.c.l.b16 %v5060
    %v5354 = vunpack.c.h.b16 %v5060
    %v5355 = vunpack.c.l.b16 %v5061
    %v5356 = vunpack.c.h.b16 %v5061
    %v5357 = vunpack.c.l.b16 %v5062
    %v5358 = vunpack.c.h.b16 %v5062
    %v5359 = vunpack.c.l.b16 %v5063
    %v5360 = vunpack.c.h.b16 %v5063
    %v5361 = vunpack.c.l.b16 %v5064
    %v5362 = vunpack.c.h.b16 %v5064
    %v5363 = vunpack.c.l.b16 %v5065
    %v5364 = vunpack.c.h.b16 %v5065
    %v5365 = vunpack.c.l.b16 %v5066
    %v5366 = vunpack.c.h.b16 %v5066
    %v5367 = vunpack.c.l.b16 %v5067
    %v5368 = vunpack.c.h.b16 %v5067
    %v5369 = vunpack.c.l.b16 %v5068
    %v5370 = vunpack.c.h.b16 %v5068
    %v5371 = vunpack.c.l.b16 %v5069
    %v5372 = vunpack.c.h.b16 %v5069
    %v5373 = vunpack.c.l.b16 %v5070
    %v5374 = vunpack.c.h.b16 %v5070
    %v5375 = vunpack.c.l.b16 %v5071
    %v5376 = vunpack.c.h.b16 %v5071
    %v5377 = vunpack.c.l.b16 %v5072
    %v5378 = vunpack.c.h.b16 %v5072
    %v5379 = vunpack.c.l.b16 %v5073
    %v5380 = vunpack.c.h.b16 %v5073
    %v5381 = vunpack.c.l.b16 %v5074
    %v5382 = vunpack.c.h.b16 %v5074
    %v5383 = vunpack.c.l.b16 %v5075
    %v5384 = vunpack.c.h.b16 %v5075
    %v5385 = vunpack.c.l.b16 %v5076
    %v5386 = vunpack.c.h.b16 %v5076
    %v5387 = vunpack.c.l.b16 %v5077
    %v5388 = vunpack.c.h.b16 %v5077
    %v5389 = vunpack.c.l.b16 %v5078
    %v5390 = vunpack.c.h.b16 %v5078
    %v5391 = vunpack.c.l.b16 %v5079
    %v5392 = vunpack.c.h.b16 %v5079
    %v5393 = vunpack.c.l.b16 %v5080
    %v5394 = vunpack.c.h.b16 %v5080
    %v5395 = vunpack.c.l.b16 %v5081
    %v5396 = vunpack.c.h.b16 %v5081
    %v5397 = vunpack.c.l.b16 %v5082
    %v5398 = vunpack.c.h.b16 %v5082
    %v5399 = vunpack.c.l.b16 %v5083
    %v5400 = vunpack.c.h.b16 %v5083
    %v5401 = vunpack.c.l.b16 %v5084
    %v5402 = vunpack.c.h.b16 %v5084
    %v5403 = vunpack.c.l.b16 %v5085
    %v5404 = vunpack.c.h.b16 %v5085
    %v5405 = vunpack.c.l.b16 %v5086
    %v5406 = vunpack.c.h.b16 %v5086
    %v5407 = vunpack.c.l.b16 %v5087
    %v5408 = vunpack.c.h.b16 %v5087
    %v5409 = vunpack.c.l.b16 %v5088
    %v5410 = vunpack.c.h.b16 %v5088
    %v5411 = vunpack.c.l.b16 %v5089
    %v5412 = vunpack.c.h.b16 %v5089
    %v5413 = vunpack.c.l.b16 %v5090
    %v5414 = vunpack.c.h.b16 %v5090
    %v5415 = vunpack.c.l.b16 %v5091
    %v5416 = vunpack.c.h.b16 %v5091
    %v5417 = vunpack.c.l.b16 %v5092
    %v5418 = vunpack.c.h.b16 %v5092
    %v5419 = vunpack.c.l.b16 %v5093
    %v5420 = vunpack.c.h.b16 %v5093
    %v5421 = vunpack.c.l.b16 %v5094
    %v5422 = vunpack.c.h.b16 %v5094
    %v5423 = vunpack.c.l.b16 %v5095
    %v5424 = vunpack.c.h.b16 %v5095
    %v5425 = vunpack.c.l.b16 %v5096
    %v5426 = vunpack.c.h.b16 %v5096
    %v5427 = vunpack.c.l.b16 %v5097
    %v5428 = vunpack.c.h.b16 %v5097
    %v5429 = vunpack.c.l.b16 %v5098
    %v5430 = vunpack.c.h.b16 %v5098
    %v5431 = vunpack.c.l.b16 %v5099
    %v5432 = vunpack.c.h.b16 %v5099
    %v5433 = vunpack.c.l.b16 %v5100
    %v5434 = vunpack.c.h.b16 %v5100
    %v5435 = vunpack.c.l.b16 %v5101
    %v5436 = vunpack.c.h.b16 %v5101
    %v5437 = vunpack.c.l.b16 %v5102
    %v5438 = vunpack.c.h.b16 %v5102
    %v5439 = vunpack.c.l.b16 %v5103
    %v5440 = vunpack.c.h.b16 %v5103
    %v5441 = vunpack.c.l.b16 %v5104
    %v5442 = vunpack.c.h.b16 %v5104
    %v5443 = vunpack.c.l.b16 %v5105
    %v5444 = vunpack.c.h.b16 %v5105
    %v5445 = vunpack.c.l.b16 %v5106
    %v5446 = vunpack.c.h.b16 %v5106
    %v5447 = vunpack.c.l.b16 %v5107
    %v5448 = vunpack.c.h.b16 %v5107
    %v5449 = vunpack.c.l.b16 %v5108
    %v5450 = vunpack.c.h.b16 %v5108
    %v5451 = vunpack.c.l.b16 %v5109
    %v5452 = vunpack.c.h.b16 %v5109
    %v5453 = vunpack.c.l.b16 %v5110
    %v5454 = vunpack.c.h.b16 %v5110
    %v5455 = vunpack.c.l.b16 %v5111
    %v5456 = vunpack.c.h.b16 %v5111
    %v5457 = vunpack.c.l.b16 %v5112
    %v5458 = vunpack.c.h.b16 %v5112
    %v5459 = vunpack.c.l.b16 %v5113
    %v5460 = vunpack.c.h.b16 %v5113
    %v5461 = vunpack.c.l.b16 %v5114
    %v5462 = vunpack.c.h.b16 %v5114
    %v5463 = vunpack.c.l.b16 %v5115
    %v5464 = vunpack.c.h.b16 %v5115
    %v5465 = vunpack.c.l.b16 %v5116
    %v5466 = vunpack.c.h.b16 %v5116
    %v5467 = vunpack.c.l.b16 %v5117
    %v5468 = vunpack.c.h.b16 %v5117
    %v5469 = vunpack.c.l.b16 %v5118
    %v5470 = vunpack.c.h.b16 %v5118
    %v5471 = vunpack.c.l.b16 %v5119
    %v5472 = vunpack.c.h.b16 %v5119
    %v5473 = vunpack.c.l.b16 %v5120
    %v5474 = vunpack.c.h.b16 %v5120
    %v5475 = vunpack.c.l.b16 %v5121
    %v5476 = vunpack.c.h.b16 %v5121
    %v5477 = vunpack.c.l.b16 %v5122
    %v5478 = vunpack.c.h.b16 %v5122
    %v5479 = vunpack.c.l.b16 %v5123
    %v5480 = vunpack.c.h.b16 %v5123
    %v5481 = vunpack.c.l.b16 %v5124
    %v5482 = vunpack.c.h.b16 %v5124
    %v5483 = vunpack.c.l.b16 %v5125
    %v5484 = vunpack.c.h.b16 %v5125
    %v5485 = vunpack.c.l.b16 %v5126
    %v5486 = vunpack.c.h.b16 %v5126
    %v5487 = vunpack.c.l.b16 %v5127
    %v5488 = vunpack.c.h.b16 %v5127
    %v5489 = vunpack.c.l.b16 %v5128
    %v5490 = vunpack.c.h.b16 %v5128
    %v5491 = vunpack.c.l.b16 %v5129
    %v5492 = vunpack.c.h.b16 %v5129
    %v5493 = vunpack.c.l.b16 %v5130
    %v5494 = vunpack.c.h.b16 %v5130
    %v5495 = vunpack.c.l.b16 %v5131
    %v5496 = vunpack.c.h.b16 %v5131
    %v5497 = vunpack.c.l.b16 %v5132
    %v5498 = vunpack.c.h.b16 %v5132
    %v5499 = vunpack.c.l.b16 %v5133
    %v5500 = vunpack.c.h.b16 %v5133
    %v5501 = vunpack.c.l.b16 %v5134
    %v5502 = vunpack.c.h.b16 %v5134
    %v5503 = vunpack.c.l.b16 %v5135
    %v5504 = vunpack.c.h.b16 %v5135
    %v5505 = vunpack.c.l.b16 %v5136
    %v5506 = vunpack.c.h.b16 %v5136
    %v5507 = vunpack.c.l.b16 %v5137
    %v5508 = vunpack.c.h.b16 %v5137
    %v5509 = vunpack.c.l.b16 %v5138
    %v5510 = vunpack.c.h.b16 %v5138
    %v5511 = vunpack.c.l.b16 %v5139
    %v5512 = vunpack.c.h.b16 %v5139
    %v5513 = vunpack.c.l.b16 %v5140
    %v5514 = vunpack.c.h.b16 %v5140
    %v5515 = vunpack.c.l.b16 %v5141
    %v5516 = vunpack.c.h.b16 %v5141
    %v5517 = vunpack.c.l.b16 %v5142
    %v5518 = vunpack.c.h.b16 %v5142
    %v5519 = vunpack.c.l.b16 %v5143
    %v5520 = vunpack.c.h.b16 %v5143
    %v5521 = vunpack.c.l.b16 %v5144
    %v5522 = vunpack.c.h.b16 %v5144
    %v5523 = vunpack.c.l.b16 %v5145
    %v5524 = vunpack.c.h.b16 %v5145
    %v5525 = vunpack.c.l.b16 %v5146
    %v5526 = vunpack.c.h.b16 %v5146
    %v5527 = vunpack.c.l.b16 %v5147
    %v5528 = vunpack.c.h.b16 %v5147
    %v5529 = vunpack.c.l.b16 %v5148
    %v5530 = vunpack.c.h.b16 %v5148
    %v5531 = vunpack.c.l.b16 %v5149
    %v5532 = vunpack.c.h.b16 %v5149
    %v5533 = vunpack.c.l.b16 %v5150
    %v5534 = vunpack.c.h.b16 %v5150
    %v5535 = vunpack.c.l.b16 %v5151
    %v5536 = vunpack.c.h.b16 %v5151
    %v5537 = vunpack.c.l.b16 %v5152
    %v5538 = vunpack.c.h.b16 %v5152
    %v5539 = vunpack.c.l.b16 %v5153
    %v5540 = vunpack.c.h.b16 %v5153
    %v5541 = vunpack.c.l.b16 %v5154
    %v5542 = vunpack.c.h.b16 %v5154
    %v5543 = vunpack.c.l.b16 %v5155
    %v5544 = vunpack.c.h.b16 %v5155
    %v5545 = vunpack.c.l.b16 %v5156
    %v5546 = vunpack.c.h.b16 %v5156
    %v5547 = vunpack.c.l.b16 %v5157
    %v5548 = vunpack.c.h.b16 %v5157
    %v5549 = vunpack.c.l.b16 %v5158
    %v5550 = vunpack.c.h.b16 %v5158
    %v5551 = vunpack.c.l.b16 %v5159
    %v5552 = vunpack.c.h.b16 %v5159
    %v5553 = vunpack.c.l.b16 %v5160
    %v5554 = vunpack.c.h.b16 %v5160
    %v5555 = vunpack.c.l.b16 %v5161
    %v5556 = vunpack.c.h.b16 %v5161
    %v5557 = vunpack.c.l.b16 %v5162
    %v5558 = vunpack.c.h.b16 %v5162
    %v5559 = vunpack.c.l.b16 %v5163
    %v5560 = vunpack.c.h.b16 %v5163
    %v5561 = vunpack.c.l.b16 %v5164
    %v5562 = vunpack.c.h.b16 %v5164
    %v5563 = vunpack.c.l.b16 %v5165
    %v5564 = vunpack.c.h.b16 %v5165
    %v5565 = vunpack.c.l.b16 %v5166
    %v5566 = vunpack.c.h.b16 %v5166
    %v5567 = vunpack.c.l.b16 %v5167
    %v5568 = vunpack.c.h.b16 %v5167
    %v5569 = vunpack.c.l.b16 %v5168
    %v5570 = vunpack.c.h.b16 %v5168
    %v5571 = vunpack.c.l.b16 %v5169
    %v5572 = vunpack.c.h.b16 %v5169
    %v5573 = vunpack.c.l.b16 %v5170
    %v5574 = vunpack.c.h.b16 %v5170
    %v5575 = vunpack.c.l.b16 %v5171
    %v5576 = vunpack.c.h.b16 %v5171
    %v5577 = vunpack.c.l.b16 %v5172
    %v5578 = vunpack.c.h.b16 %v5172
    %v5579 = vpack.c.b16 %v5327, %v5323
    %v5580 = vpack.c.b16 %v5328, %v5324
    %v5581 = vpack.c.b16 %v5329, %v5325
    %v5582 = vpack.c.b16 %v5330, %v5326
    %v5583 = vpack.c.b16 %v5335, %v5331
    %v5584 = vpack.c.b16 %v5336, %v5332
    %v5585 = vpack.c.b16 %v5337, %v5333
    %v5586 = vpack.c.b16 %v5338, %v5334
    %v5587 = vpack.c.b16 %v5343, %v5339
    %v5588 = vpack.c.b16 %v5344, %v5340
    %v5589 = vpack.c.b16 %v5345, %v5341
    %v5590 = vpack.c.b16 %v5346, %v5342
    %v5591 = vpack.c.b16 %v5351, %v5347
    %v5592 = vpack.c.b16 %v5352, %v5348
    %v5593 = vpack.c.b16 %v5353, %v5349
    %v5594 = vpack.c.b16 %v5354, %v5350
    %v5595 = vpack.c.b16 %v5359, %v5355
    %v5596 = vpack.c.b16 %v5360, %v5356
    %v5597 = vpack.c.b16 %v5361, %v5357
    %v5598 = vpack.c.b16 %v5362, %v5358
    %v5599 = vpack.c.b16 %v5367, %v5363
    %v5600 = vpack.c.b16 %v5368, %v5364
    %v5601 = vpack.c.b16 %v5369, %v5365
    %v5602 = vpack.c.b16 %v5370, %v5366
    %v5603 = vpack.c.b16 %v5375, %v5371
    %v5604 = vpack.c.b16 %v5376, %v5372
    %v5605 = vpack.c.b16 %v5377, %v5373
    %v5606 = vpack.c.b16 %v5378, %v5374
    %v5607 = vpack.c.b16 %v5383, %v5379
    %v5608 = vpack.c.b16 %v5384, %v5380
    %v5609 = vpack.c.b16 %v5385, %v5381
    %v5610 = vpack.c.b16 %v5386, %v5382
    %v5611 = vpack.c.b16 %v5391, %v5387
    %v5612 = vpack.c.b16 %v5392, %v5388
    %v5613 = vpack.c.b16 %v5393, %v5389
    %v5614 = vpack.c.b16 %v5394, %v5390
    %v5615 = vpack.c.b16 %v5399, %v5395
    %v5616 = vpack.c.b16 %v5400, %v5396
    %v5617 = vpack.c.b16 %v5401, %v5397
    %v5618 = vpack.c.b16 %v5402, %v5398
    %v5619 = vpack.c.b16 %v5407, %v5403
    %v5620 = vpack.c.b16 %v5408, %v5404
    %v5621 = vpack.c.b16 %v5409, %v5405
    %v5622 = vpack.c.b16 %v5410, %v5406
    %v5623 = vpack.c.b16 %v5415, %v5411
    %v5624 = vpack.c.b16 %v5416, %v5412
    %v5625 = vpack.c.b16 %v5417, %v5413
    %v5626 = vpack.c.b16 %v5418, %v5414
    %v5627 = vpack.c.b16 %v5423, %v5419
    %v5628 = vpack.c.b16 %v5424, %v5420
    %v5629 = vpack.c.b16 %v5425, %v5421
    %v5630 = vpack.c.b16 %v5426, %v5422
    %v5631 = vpack.c.b16 %v5431, %v5427
    %v5632 = vpack.c.b16 %v5432, %v5428
    %v5633 = vpack.c.b16 %v5433, %v5429
    %v5634 = vpack.c.b16 %v5434, %v5430
    %v5635 = vpack.c.b16 %v5439, %v5435
    %v5636 = vpack.c.b16 %v5440, %v5436
    %v5637 = vpack.c.b16 %v5441, %v5437
    %v5638 = vpack.c.b16 %v5442, %v5438
    %v5639 = vpack.c.b16 %v5447, %v5443
    %v5640 = vpack.c.b16 %v5448, %v5444
    %v5641 = vpack.c.b16 %v5449, %v5445
    %v5642 = vpack.c.b16 %v5450, %v5446
    %v5643 = vpack.c.b16 %v5455, %v5451
    %v5644 = vpack.c.b16 %v5456, %v5452
    %v5645 = vpack.c.b16 %v5457, %v5453
    %v5646 = vpack.c.b16 %v5458, %v5454
    %v5647 = vpack.c.b16 %v5463, %v5459
    %v5648 = vpack.c.b16 %v5464, %v5460
    %v5649 = vpack.c.b16 %v5465, %v5461
    %v5650 = vpack.c.b16 %v5466, %v5462
    %v5651 = vpack.c.b16 %v5471, %v5467
    %v5652 = vpack.c.b16 %v5472, %v5468
    %v5653 = vpack.c.b16 %v5473, %v5469
    %v5654 = vpack.c.b16 %v5474, %v5470
    %v5655 = vpack.c.b16 %v5479, %v5475
    %v5656 = vpack.c.b16 %v5480, %v5476
    %v5657 = vpack.c.b16 %v5481, %v5477
    %v5658 = vpack.c.b16 %v5482, %v5478
    %v5659 = vpack.c.b16 %v5487, %v5483
    %v5660 = vpack.c.b16 %v5488, %v5484
    %v5661 = vpack.c.b16 %v5489, %v5485
    %v5662 = vpack.c.b16 %v5490, %v5486
    %v5663 = vpack.c.b16 %v5495, %v5491
    %v5664 = vpack.c.b16 %v5496, %v5492
    %v5665 = vpack.c.b16 %v5497, %v5493
    %v5666 = vpack.c.b16 %v5498, %v5494
    %v5667 = vpack.c.b16 %v5503, %v5499
    %v5668 = vpack.c.b16 %v5504, %v5500
    %v5669 = vpack.c.b16 %v5505, %v5501
    %v5670 = vpack.c.b16 %v5506, %v5502
    %v5671 = vpack.c.b16 %v5511, %v5507
    %v5672 = vpack.c.b16 %v5512, %v5508
    %v5673 = vpack.c.b16 %v5513, %v5509
    %v5674 = vpack.c.b16 %v5514, %v5510
    %v5675 = vpack.c.b16 %v5519, %v5515
    %v5676 = vpack.c.b16 %v5520, %v5516
    %v5677 = vpack.c.b16 %v5521, %v5517
    %v5678 = vpack.c.b16 %v5522, %v5518
    %v5679 = vpack.c.b16 %v5527, %v5523
    %v5680 = vpack.c.b16 %v5528, %v5524
    %v5681 = vpack.c.b16 %v5529, %v5525
    %v5682 = vpack.c.b16 %v5530, %v5526
    %v5683 = vpack.c.b16 %v5535, %v5531
    %v5684 = vpack.c.b16 %v5536, %v5532
    %v5685 = vpack.c.b16 %v5537, %v5533
    %v5686 = vpack.c.b16 %v5538, %v5534
    %v5687 = vpack.c.b16 %v5543, %v5539
    %v5688 = vpack.c.b16 %v5544, %v5540
    %v5689 = vpack.c.b16 %v5545, %v5541
    %v5690 = vpack.c.b16 %v5546, %v5542
    %v5691 = vpack.c.b16 %v5551, %v5547
    %v5692 = vpack.c.b16 %v5552, %v5548
    %v5693 = vpack.c.b16 %v5553, %v5549
    %v5694 = vpack.c.b16 %v5554, %v5550
    %v5695 = vpack.c.b16 %v5559, %v5555
    %v5696 = vpack.c.b16 %v5560, %v5556
    %v5697 = vpack.c.b16 %v5561, %v5557
    %v5698 = vpack.c.b16 %v5562, %v5558
    %v5699 = vpack.c.b16 %v5567, %v5563
    %v5700 = vpack.c.b16 %v5568, %v5564
    %v5701 = vpack.c.b16 %v5569, %v5565
    %v5702 = vpack.c.b16 %v5570, %v5566
    %v5703 = vpack.c.b16 %v5575, %v5571
    %v5704 = vpack.c.b16 %v5576, %v5572
    %v5705 = vpack.c.b16 %v5577, %v5573
    %v5706 = vpack.c.b16 %v5578, %v5574
    %5835 = vmatprep.subr.bf16.mxu0 %v5608
    %5836 = vmatpush1.bf16.msra.mxu0 %v5607
    %5837 = vmatprep.subr.bf16.mxu0 %v5604
    %5838 = vmatpush1.bf16.msra.mxu0 %v5603
    %5839 = vmatprep.subr.bf16.mxu0 %v5600
    %5840 = vmatpush1.bf16.msra.mxu0 %v5599
    %5841 = vmatprep.subr.bf16.mxu0 %v5596
    %5842 = vmatpush1.bf16.msra.mxu0 %v5595
    %5843 = vmatprep.subr.bf16.mxu0 %v5592
    %5844 = vmatpush1.bf16.msra.mxu0 %v5591
    %5845 = vmatprep.subr.bf16.mxu0 %v5588
    %5846 = vmatpush1.bf16.msra.mxu0 %v5587
    %5847 = vmatprep.subr.bf16.mxu0 %v5584
    %5848 = vmatpush1.bf16.msra.mxu0 %v5583
    %5849 = vmatprep.subr.bf16.mxu0 %v5580
    %5850 = vmatpush1.bf16.msra.mxu0 %v5579
    %5851 = vmatprep.subr.bf16.mxu0 %v5640
    %5852 = vmatpush2.bf16.msra.mxu0 %v5639
    %5853 = vmatprep.subr.bf16.mxu0 %v5636
    %5854 = vmatpush2.bf16.msra.mxu0 %v5635
    %5855 = vmatprep.subr.bf16.mxu0 %v5632
    %5856 = vmatpush2.bf16.msra.mxu0 %v5631
    %5857 = vmatprep.subr.bf16.mxu0 %v5628
    %5858 = vmatpush2.bf16.msra.mxu0 %v5627
    %5859 = vmatprep.subr.bf16.mxu0 %v5624
    %5860 = vmatpush2.bf16.msra.mxu0 %v5623
    %5861 = vmatprep.subr.bf16.mxu0 %v5620
    %5862 = vmatpush2.bf16.msra.mxu0 %v5619
    %5863 = vmatprep.subr.bf16.mxu0 %v5616
    %5864 = vmatpush2.bf16.msra.mxu0 %v5615
    %5865 = vmatprep.subr.bf16.mxu0 %v5612
    %5866 = vmatpush2.bf16.msra.mxu0 %v5611
    %5867 = vmatprep.mubr.f32.mxu0 %v5040
    %5868 = vmatmul.mubr.f32.gmra.mxu0 %v5039
    %v5869 = vpop.f32.mrf.mxu0
    %v5870 = vadd.f32 %v5178, %v5869
    %v5871 = vpop.f32.mrf.mxu0
    %v5872 = vadd.f32 %v5182, %v5871
    %5873 = vdwg.mxu0
    %5874 = vmatprep.subr.bf16.mxu0 %v5672
    %5875 = vmatpush1.bf16.msra.mxu0 %v5671
    %5876 = vmatprep.subr.bf16.mxu0 %v5668
    %5877 = vmatpush1.bf16.msra.mxu0 %v5667
    %5878 = vmatprep.subr.bf16.mxu0 %v5664
    %5879 = vmatpush1.bf16.msra.mxu0 %v5663
    %5880 = vmatprep.subr.bf16.mxu0 %v5660
    %5881 = vmatpush1.bf16.msra.mxu0 %v5659
    %5882 = vmatprep.subr.bf16.mxu0 %v5656
    %5883 = vmatpush1.bf16.msra.mxu0 %v5655
    %5884 = vmatprep.subr.bf16.mxu0 %v5652
    %5885 = vmatpush1.bf16.msra.mxu0 %v5651
    %5886 = vmatprep.subr.bf16.mxu0 %v5648
    %5887 = vmatpush1.bf16.msra.mxu0 %v5647
    %5888 = vmatprep.subr.bf16.mxu0 %v5644
    %5889 = vmatpush1.bf16.msra.mxu0 %v5643
    %5890 = vmatprep.subr.bf16.mxu0 %v5704
    %5891 = vmatpush2.bf16.msra.mxu0 %v5703
    %5892 = vmatprep.subr.bf16.mxu0 %v5700
    %5893 = vmatpush2.bf16.msra.mxu0 %v5699
    %5894 = vmatprep.subr.bf16.mxu0 %v5696
    %5895 = vmatpush2.bf16.msra.mxu0 %v5695
    %5896 = vmatprep.subr.bf16.mxu0 %v5692
    %5897 = vmatpush2.bf16.msra.mxu0 %v5691
    %5898 = vmatprep.subr.bf16.mxu0 %v5688
    %5899 = vmatpush2.bf16.msra.mxu0 %v5687
    %5900 = vmatprep.subr.bf16.mxu0 %v5684
    %5901 = vmatpush2.bf16.msra.mxu0 %v5683
    %5902 = vmatprep.subr.bf16.mxu0 %v5680
    %5903 = vmatpush2.bf16.msra.mxu0 %v5679
    %5904 = vmatprep.subr.bf16.mxu0 %v5676
    %5905 = vmatpush2.bf16.msra.mxu0 %v5675
    %5906 = vmatprep.mubr.f32.mxu0 %v5042
    %5907 = vmatmul.mubr.f32.gmra.mxu0 %v5041
    %v5908 = vpop.f32.mrf.mxu0
    %v5909 = vadd.f32 %v5870, %v5908
    %v5910 = vpop.f32.mrf.mxu0
    %v5911 = vadd.f32 %v5872, %v5910
    %5912 = vdwg.mxu0
    %5913 = vmatprep.subr.bf16.mxu0 %v5610
    %5914 = vmatpush1.bf16.msra.mxu0 %v5609
    %5915 = vmatprep.subr.bf16.mxu0 %v5606
    %5916 = vmatpush1.bf16.msra.mxu0 %v5605
    %5917 = vmatprep.subr.bf16.mxu0 %v5602
    %5918 = vmatpush1.bf16.msra.mxu0 %v5601
    %5919 = vmatprep.subr.bf16.mxu0 %v5598
    %5920 = vmatpush1.bf16.msra.mxu0 %v5597
    %5921 = vmatprep.subr.bf16.mxu0 %v5594
    %5922 = vmatpush1.bf16.msra.mxu0 %v5593
    %5923 = vmatprep.subr.bf16.mxu0 %v5590
    %5924 = vmatpush1.bf16.msra.mxu0 %v5589
    %5925 = vmatprep.subr.bf16.mxu0 %v5586
    %5926 = vmatpush1.bf16.msra.mxu0 %v5585
    %5927 = vmatprep.subr.bf16.mxu0 %v5582
    %5928 = vmatpush1.bf16.msra.mxu0 %v5581
    %5929 = vmatprep.subr.bf16.mxu0 %v5642
    %5930 = vmatpush2.bf16.msra.mxu0 %v5641
    %5931 = vmatprep.subr.bf16.mxu0 %v5638
    %5932 = vmatpush2.bf16.msra.mxu0 %v5637
    %5933 = vmatprep.subr.bf16.mxu0 %v5634
    %5934 = vmatpush2.bf16.msra.mxu0 %v5633
    %5935 = vmatprep.subr.bf16.mxu0 %v5630
    %5936 = vmatpush2.bf16.msra.mxu0 %v5629
    %5937 = vmatprep.subr.bf16.mxu0 %v5626
    %5938 = vmatpush2.bf16.msra.mxu0 %v5625
    %5939 = vmatprep.subr.bf16.mxu0 %v5622
    %5940 = vmatpush2.bf16.msra.mxu0 %v5621
    %5941 = vmatprep.subr.bf16.mxu0 %v5618
    %5942 = vmatpush2.bf16.msra.mxu0 %v5617
    %5943 = vmatprep.subr.bf16.mxu0 %v5614
    %5944 = vmatpush2.bf16.msra.mxu0 %v5613
    %5945 = vmatprep.mubr.f32.mxu0 %v5040
    %5946 = vmatmul.mubr.f32.gmra.mxu0 %v5039
    %v5947 = vpop.f32.mrf.mxu0
    %v5948 = vadd.f32 %v5186, %v5947
    %v5949 = vpop.f32.mrf.mxu0
    %v5950 = vadd.f32 %v5190, %v5949
    %5951 = vdwg.mxu0
    %5952 = vmatprep.subr.bf16.mxu0 %v5674
    %5953 = vmatpush1.bf16.msra.mxu0 %v5673
    %5954 = vmatprep.subr.bf16.mxu0 %v5670
    %5955 = vmatpush1.bf16.msra.mxu0 %v5669
    %5956 = vmatprep.subr.bf16.mxu0 %v5666
    %5957 = vmatpush1.bf16.msra.mxu0 %v5665
    %5958 = vmatprep.subr.bf16.mxu0 %v5662
    %5959 = vmatpush1.bf16.msra.mxu0 %v5661
    %5960 = vmatprep.subr.bf16.mxu0 %v5658
    %5961 = vmatpush1.bf16.msra.mxu0 %v5657
    %5962 = vmatprep.subr.bf16.mxu0 %v5654
    %5963 = vmatpush1.bf16.msra.mxu0 %v5653
    %5964 = vmatprep.subr.bf16.mxu0 %v5650
    %5965 = vmatpush1.bf16.msra.mxu0 %v5649
    %5966 = vmatprep.subr.bf16.mxu0 %v5646
    %5967 = vmatpush1.bf16.msra.mxu0 %v5645
    %5968 = vmatprep.subr.bf16.mxu0 %v5706
    %5969 = vmatpush2.bf16.msra.mxu0 %v5705
    %5970 = vmatprep.subr.bf16.mxu0 %v5702
    %5971 = vmatpush2.bf16.msra.mxu0 %v5701
    %5972 = vmatprep.subr.bf16.mxu0 %v5698
    %5973 = vmatpush2.bf16.msra.mxu0 %v5697
    %5974 = vmatprep.subr.bf16.mxu0 %v5694
    %5975 = vmatpush2.bf16.msra.mxu0 %v5693
    %5976 = vmatprep.subr.bf16.mxu0 %v5690
    %5977 = vmatpush2.bf16.msra.mxu0 %v5689
    %5978 = vmatprep.subr.bf16.mxu0 %v5686
    %5979 = vmatpush2.bf16.msra.mxu0 %v5685
    %5980 = vmatprep.subr.bf16.mxu0 %v5682
    %5981 = vmatpush2.bf16.msra.mxu0 %v5681
    %5982 = vmatprep.subr.bf16.mxu0 %v5678
    %5983 = vmatpush2.bf16.msra.mxu0 %v5677
    %5984 = vmatprep.mubr.f32.mxu0 %v5042
    %5985 = vmatmul.mubr.f32.gmra.mxu0 %v5041
    %v5986 = vpop.f32.mrf.mxu0
    %v5987 = vadd.f32 %v5948, %v5986
    %v5988 = vpop.f32.mrf.mxu0
    %v5989 = vadd.f32 %v5950, %v5988
    %5990 = vdwg.mxu0
    %v5991 = vmax.f32 %v5909, 0.0
    %v5992 = vmax.f32 %v5911, 0.0
    %v5993 = vmax.f32 %v5987, 0.0
    %v5994 = vmax.f32 %v5989, 0.0
    %s5995 = sshll.u32 %s3138, 4
    %5996 = dma.done %s187, %s5995
    %v5997 = vld [vmem:[#allocation5] sm:$0xff]
    %v5998 = vld [vmem:[#allocation5 + $0x8] sm:$0xff]
    %v5999 = vld [vmem:[#allocation5 + $0x10] sm:$0xff]
    %v6000 = vld [vmem:[#allocation5 + $0x18] sm:$0xff]
    %v6001 = vld [vmem:[#allocation5 + $0x20] sm:$0xff]
    %v6002 = vld [vmem:[#allocation5 + $0x28] sm:$0xff]
    %v6003 = vld [vmem:[#allocation5 + $0x30] sm:$0xff]
    %v6004 = vld [vmem:[#allocation5 + $0x38] sm:$0xff]
    %v6005 = vld [vmem:[#allocation5 + $0x40] sm:$0xff]
    %v6006 = vld [vmem:[#allocation5 + $0x48] sm:$0xff]
    %v6007 = vld [vmem:[#allocation5 + $0x50] sm:$0xff]
    %v6008 = vld [vmem:[#allocation5 + $0x58] sm:$0xff]
    %v6009 = vld [vmem:[#allocation5 + $0x60] sm:$0xff]
    %v6010 = vld [vmem:[#allocation5 + $0x68] sm:$0xff]
    %v6011 = vld [vmem:[#allocation5 + $0x70] sm:$0xff]
    %v6012 = vld [vmem:[#allocation5 + $0x78] sm:$0xff]
    %v6013 = vld [vmem:[#allocation5 + $0x80] sm:$0xff]
    %v6014 = vld [vmem:[#allocation5 + $0x88] sm:$0xff]
    %v6015 = vld [vmem:[#allocation5 + $0x90] sm:$0xff]
    %v6016 = vld [vmem:[#allocation5 + $0x98] sm:$0xff]
    %v6017 = vld [vmem:[#allocation5 + $0xa0] sm:$0xff]
    %v6018 = vld [vmem:[#allocation5 + $0xa8] sm:$0xff]
    %v6019 = vld [vmem:[#allocation5 + $0xb0] sm:$0xff]
    %v6020 = vld [vmem:[#allocation5 + $0xb8] sm:$0xff]
    %v6021 = vld [vmem:[#allocation5 + $0xc0] sm:$0xff]
    %v6022 = vld [vmem:[#allocation5 + $0xc8] sm:$0xff]
    %v6023 = vld [vmem:[#allocation5 + $0xd0] sm:$0xff]
    %v6024 = vld [vmem:[#allocation5 + $0xd8] sm:$0xff]
    %v6025 = vld [vmem:[#allocation5 + $0xe0] sm:$0xff]
    %v6026 = vld [vmem:[#allocation5 + $0xe8] sm:$0xff]
    %v6027 = vld [vmem:[#allocation5 + $0xf0] sm:$0xff]
    %v6028 = vld [vmem:[#allocation5 + $0xf8] sm:$0xff]
    %v6029 = vld [vmem:[#allocation5 + $0x100] sm:$0xff]
    %v6030 = vld [vmem:[#allocation5 + $0x108] sm:$0xff]
    %v6031 = vld [vmem:[#allocation5 + $0x110] sm:$0xff]
    %v6032 = vld [vmem:[#allocation5 + $0x118] sm:$0xff]
    %v6033 = vld [vmem:[#allocation5 + $0x120] sm:$0xff]
    %v6034 = vld [vmem:[#allocation5 + $0x128] sm:$0xff]
    %v6035 = vld [vmem:[#allocation5 + $0x130] sm:$0xff]
    %v6036 = vld [vmem:[#allocation5 + $0x138] sm:$0xff]
    %v6037 = vld [vmem:[#allocation5 + $0x140] sm:$0xff]
    %v6038 = vld [vmem:[#allocation5 + $0x148] sm:$0xff]
    %v6039 = vld [vmem:[#allocation5 + $0x150] sm:$0xff]
    %v6040 = vld [vmem:[#allocation5 + $0x158] sm:$0xff]
    %v6041 = vld [vmem:[#allocation5 + $0x160] sm:$0xff]
    %v6042 = vld [vmem:[#allocation5 + $0x168] sm:$0xff]
    %v6043 = vld [vmem:[#allocation5 + $0x170] sm:$0xff]
    %v6044 = vld [vmem:[#allocation5 + $0x178] sm:$0xff]
    %v6045 = vld [vmem:[#allocation5 + $0x180] sm:$0xff]
    %v6046 = vld [vmem:[#allocation5 + $0x188] sm:$0xff]
    %v6047 = vld [vmem:[#allocation5 + $0x190] sm:$0xff]
    %v6048 = vld [vmem:[#allocation5 + $0x198] sm:$0xff]
    %v6049 = vld [vmem:[#allocation5 + $0x1a0] sm:$0xff]
    %v6050 = vld [vmem:[#allocation5 + $0x1a8] sm:$0xff]
    %v6051 = vld [vmem:[#allocation5 + $0x1b0] sm:$0xff]
    %v6052 = vld [vmem:[#allocation5 + $0x1b8] sm:$0xff]
    %v6053 = vld [vmem:[#allocation5 + $0x1c0] sm:$0xff]
    %v6054 = vld [vmem:[#allocation5 + $0x1c8] sm:$0xff]
    %v6055 = vld [vmem:[#allocation5 + $0x1d0] sm:$0xff]
    %v6056 = vld [vmem:[#allocation5 + $0x1d8] sm:$0xff]
    %v6057 = vld [vmem:[#allocation5 + $0x1e0] sm:$0xff]
    %v6058 = vld [vmem:[#allocation5 + $0x1e8] sm:$0xff]
    %v6059 = vld [vmem:[#allocation5 + $0x1f0] sm:$0xff]
    %v6060 = vld [vmem:[#allocation5 + $0x1f8] sm:$0xff]
    %v6061 = vld [vmem:[#allocation5 + $0x200] sm:$0xff]
    %v6062 = vld [vmem:[#allocation5 + $0x208] sm:$0xff]
    %v6063 = vld [vmem:[#allocation5 + $0x210] sm:$0xff]
    %v6064 = vld [vmem:[#allocation5 + $0x218] sm:$0xff]
    %v6065 = vld [vmem:[#allocation5 + $0x220] sm:$0xff]
    %v6066 = vld [vmem:[#allocation5 + $0x228] sm:$0xff]
    %v6067 = vld [vmem:[#allocation5 + $0x230] sm:$0xff]
    %v6068 = vld [vmem:[#allocation5 + $0x238] sm:$0xff]
    %v6069 = vld [vmem:[#allocation5 + $0x240] sm:$0xff]
    %v6070 = vld [vmem:[#allocation5 + $0x248] sm:$0xff]
    %v6071 = vld [vmem:[#allocation5 + $0x250] sm:$0xff]
    %v6072 = vld [vmem:[#allocation5 + $0x258] sm:$0xff]
    %v6073 = vld [vmem:[#allocation5 + $0x260] sm:$0xff]
    %v6074 = vld [vmem:[#allocation5 + $0x268] sm:$0xff]
    %v6075 = vld [vmem:[#allocation5 + $0x270] sm:$0xff]
    %v6076 = vld [vmem:[#allocation5 + $0x278] sm:$0xff]
    %v6077 = vld [vmem:[#allocation5 + $0x280] sm:$0xff]
    %v6078 = vld [vmem:[#allocation5 + $0x288] sm:$0xff]
    %v6079 = vld [vmem:[#allocation5 + $0x290] sm:$0xff]
    %v6080 = vld [vmem:[#allocation5 + $0x298] sm:$0xff]
    %v6081 = vld [vmem:[#allocation5 + $0x2a0] sm:$0xff]
    %v6082 = vld [vmem:[#allocation5 + $0x2a8] sm:$0xff]
    %v6083 = vld [vmem:[#allocation5 + $0x2b0] sm:$0xff]
    %v6084 = vld [vmem:[#allocation5 + $0x2b8] sm:$0xff]
    %v6085 = vld [vmem:[#allocation5 + $0x2c0] sm:$0xff]
    %v6086 = vld [vmem:[#allocation5 + $0x2c8] sm:$0xff]
    %v6087 = vld [vmem:[#allocation5 + $0x2d0] sm:$0xff]
    %v6088 = vld [vmem:[#allocation5 + $0x2d8] sm:$0xff]
    %v6089 = vld [vmem:[#allocation5 + $0x2e0] sm:$0xff]
    %v6090 = vld [vmem:[#allocation5 + $0x2e8] sm:$0xff]
    %v6091 = vld [vmem:[#allocation5 + $0x2f0] sm:$0xff]
    %v6092 = vld [vmem:[#allocation5 + $0x2f8] sm:$0xff]
    %v6093 = vld [vmem:[#allocation5 + $0x300] sm:$0xff]
    %v6094 = vld [vmem:[#allocation5 + $0x308] sm:$0xff]
    %v6095 = vld [vmem:[#allocation5 + $0x310] sm:$0xff]
    %v6096 = vld [vmem:[#allocation5 + $0x318] sm:$0xff]
    %v6097 = vld [vmem:[#allocation5 + $0x320] sm:$0xff]
    %v6098 = vld [vmem:[#allocation5 + $0x328] sm:$0xff]
    %v6099 = vld [vmem:[#allocation5 + $0x330] sm:$0xff]
    %v6100 = vld [vmem:[#allocation5 + $0x338] sm:$0xff]
    %v6101 = vld [vmem:[#allocation5 + $0x340] sm:$0xff]
    %v6102 = vld [vmem:[#allocation5 + $0x348] sm:$0xff]
    %v6103 = vld [vmem:[#allocation5 + $0x350] sm:$0xff]
    %v6104 = vld [vmem:[#allocation5 + $0x358] sm:$0xff]
    %v6105 = vld [vmem:[#allocation5 + $0x360] sm:$0xff]
    %v6106 = vld [vmem:[#allocation5 + $0x368] sm:$0xff]
    %v6107 = vld [vmem:[#allocation5 + $0x370] sm:$0xff]
    %v6108 = vld [vmem:[#allocation5 + $0x378] sm:$0xff]
    %v6109 = vld [vmem:[#allocation5 + $0x380] sm:$0xff]
    %v6110 = vld [vmem:[#allocation5 + $0x388] sm:$0xff]
    %v6111 = vld [vmem:[#allocation5 + $0x390] sm:$0xff]
    %v6112 = vld [vmem:[#allocation5 + $0x398] sm:$0xff]
    %v6113 = vld [vmem:[#allocation5 + $0x3a0] sm:$0xff]
    %v6114 = vld [vmem:[#allocation5 + $0x3a8] sm:$0xff]
    %v6115 = vld [vmem:[#allocation5 + $0x3b0] sm:$0xff]
    %v6116 = vld [vmem:[#allocation5 + $0x3b8] sm:$0xff]
    %v6117 = vld [vmem:[#allocation5 + $0x3c0] sm:$0xff]
    %v6118 = vld [vmem:[#allocation5 + $0x3c8] sm:$0xff]
    %v6119 = vld [vmem:[#allocation5 + $0x3d0] sm:$0xff]
    %v6120 = vld [vmem:[#allocation5 + $0x3d8] sm:$0xff]
    %v6121 = vld [vmem:[#allocation5 + $0x3e0] sm:$0xff]
    %v6122 = vld [vmem:[#allocation5 + $0x3e8] sm:$0xff]
    %v6123 = vld [vmem:[#allocation5 + $0x3f0] sm:$0xff]
    %v6124 = vld [vmem:[#allocation5 + $0x3f8] sm:$0xff]
    %v6125 = vld [vmem:[#allocation20] sm:$0xf]
    %v6127 = vlaneseq
    %v6128 = vshrl.u32 %v6127, 7
    %v6129 = vsub.s32 0, %v6128
    %v6130 = vrot.slane %v6125, %v6129
    %v6131 = vlaneseq
    %v6132 = vshrl.u32 %v6131, 7
    %v6133 = vsub.s32 1, %v6132
    %v6134 = vrot.slane %v6125, %v6133
    %v6135 = vlaneseq
    %v6136 = vshrl.u32 %v6135, 7
    %v6137 = vsub.s32 2, %v6136
    %v6138 = vrot.slane %v6125, %v6137
    %v6139 = vlaneseq
    %v6140 = vshrl.u32 %v6139, 7
    %v6141 = vsub.s32 3, %v6140
    %v6142 = vrot.slane %v6125, %v6141
    %v6275 = vunpack.c.l.b16 %v5997
    %v6276 = vunpack.c.h.b16 %v5997
    %v6277 = vunpack.c.l.b16 %v5998
    %v6278 = vunpack.c.h.b16 %v5998
    %v6279 = vunpack.c.l.b16 %v5999
    %v6280 = vunpack.c.h.b16 %v5999
    %v6281 = vunpack.c.l.b16 %v6000
    %v6282 = vunpack.c.h.b16 %v6000
    %v6283 = vunpack.c.l.b16 %v6001
    %v6284 = vunpack.c.h.b16 %v6001
    %v6285 = vunpack.c.l.b16 %v6002
    %v6286 = vunpack.c.h.b16 %v6002
    %v6287 = vunpack.c.l.b16 %v6003
    %v6288 = vunpack.c.h.b16 %v6003
    %v6289 = vunpack.c.l.b16 %v6004
    %v6290 = vunpack.c.h.b16 %v6004
    %v6291 = vunpack.c.l.b16 %v6005
    %v6292 = vunpack.c.h.b16 %v6005
    %v6293 = vunpack.c.l.b16 %v6006
    %v6294 = vunpack.c.h.b16 %v6006
    %v6295 = vunpack.c.l.b16 %v6007
    %v6296 = vunpack.c.h.b16 %v6007
    %v6297 = vunpack.c.l.b16 %v6008
    %v6298 = vunpack.c.h.b16 %v6008
    %v6299 = vunpack.c.l.b16 %v6009
    %v6300 = vunpack.c.h.b16 %v6009
    %v6301 = vunpack.c.l.b16 %v6010
    %v6302 = vunpack.c.h.b16 %v6010
    %v6303 = vunpack.c.l.b16 %v6011
    %v6304 = vunpack.c.h.b16 %v6011
    %v6305 = vunpack.c.l.b16 %v6012
    %v6306 = vunpack.c.h.b16 %v6012
    %v6307 = vunpack.c.l.b16 %v6013
    %v6308 = vunpack.c.h.b16 %v6013
    %v6309 = vunpack.c.l.b16 %v6014
    %v6310 = vunpack.c.h.b16 %v6014
    %v6311 = vunpack.c.l.b16 %v6015
    %v6312 = vunpack.c.h.b16 %v6015
    %v6313 = vunpack.c.l.b16 %v6016
    %v6314 = vunpack.c.h.b16 %v6016
    %v6315 = vunpack.c.l.b16 %v6017
    %v6316 = vunpack.c.h.b16 %v6017
    %v6317 = vunpack.c.l.b16 %v6018
    %v6318 = vunpack.c.h.b16 %v6018
    %v6319 = vunpack.c.l.b16 %v6019
    %v6320 = vunpack.c.h.b16 %v6019
    %v6321 = vunpack.c.l.b16 %v6020
    %v6322 = vunpack.c.h.b16 %v6020
    %v6323 = vunpack.c.l.b16 %v6021
    %v6324 = vunpack.c.h.b16 %v6021
    %v6325 = vunpack.c.l.b16 %v6022
    %v6326 = vunpack.c.h.b16 %v6022
    %v6327 = vunpack.c.l.b16 %v6023
    %v6328 = vunpack.c.h.b16 %v6023
    %v6329 = vunpack.c.l.b16 %v6024
    %v6330 = vunpack.c.h.b16 %v6024
    %v6331 = vunpack.c.l.b16 %v6025
    %v6332 = vunpack.c.h.b16 %v6025
    %v6333 = vunpack.c.l.b16 %v6026
    %v6334 = vunpack.c.h.b16 %v6026
    %v6335 = vunpack.c.l.b16 %v6027
    %v6336 = vunpack.c.h.b16 %v6027
    %v6337 = vunpack.c.l.b16 %v6028
    %v6338 = vunpack.c.h.b16 %v6028
    %v6339 = vunpack.c.l.b16 %v6029
    %v6340 = vunpack.c.h.b16 %v6029
    %v6341 = vunpack.c.l.b16 %v6030
    %v6342 = vunpack.c.h.b16 %v6030
    %v6343 = vunpack.c.l.b16 %v6031
    %v6344 = vunpack.c.h.b16 %v6031
    %v6345 = vunpack.c.l.b16 %v6032
    %v6346 = vunpack.c.h.b16 %v6032
    %v6347 = vunpack.c.l.b16 %v6033
    %v6348 = vunpack.c.h.b16 %v6033
    %v6349 = vunpack.c.l.b16 %v6034
    %v6350 = vunpack.c.h.b16 %v6034
    %v6351 = vunpack.c.l.b16 %v6035
    %v6352 = vunpack.c.h.b16 %v6035
    %v6353 = vunpack.c.l.b16 %v6036
    %v6354 = vunpack.c.h.b16 %v6036
    %v6355 = vunpack.c.l.b16 %v6037
    %v6356 = vunpack.c.h.b16 %v6037
    %v6357 = vunpack.c.l.b16 %v6038
    %v6358 = vunpack.c.h.b16 %v6038
    %v6359 = vunpack.c.l.b16 %v6039
    %v6360 = vunpack.c.h.b16 %v6039
    %v6361 = vunpack.c.l.b16 %v6040
    %v6362 = vunpack.c.h.b16 %v6040
    %v6363 = vunpack.c.l.b16 %v6041
    %v6364 = vunpack.c.h.b16 %v6041
    %v6365 = vunpack.c.l.b16 %v6042
    %v6366 = vunpack.c.h.b16 %v6042
    %v6367 = vunpack.c.l.b16 %v6043
    %v6368 = vunpack.c.h.b16 %v6043
    %v6369 = vunpack.c.l.b16 %v6044
    %v6370 = vunpack.c.h.b16 %v6044
    %v6371 = vunpack.c.l.b16 %v6045
    %v6372 = vunpack.c.h.b16 %v6045
    %v6373 = vunpack.c.l.b16 %v6046
    %v6374 = vunpack.c.h.b16 %v6046
    %v6375 = vunpack.c.l.b16 %v6047
    %v6376 = vunpack.c.h.b16 %v6047
    %v6377 = vunpack.c.l.b16 %v6048
    %v6378 = vunpack.c.h.b16 %v6048
    %v6379 = vunpack.c.l.b16 %v6049
    %v6380 = vunpack.c.h.b16 %v6049
    %v6381 = vunpack.c.l.b16 %v6050
    %v6382 = vunpack.c.h.b16 %v6050
    %v6383 = vunpack.c.l.b16 %v6051
    %v6384 = vunpack.c.h.b16 %v6051
    %v6385 = vunpack.c.l.b16 %v6052
    %v6386 = vunpack.c.h.b16 %v6052
    %v6387 = vunpack.c.l.b16 %v6053
    %v6388 = vunpack.c.h.b16 %v6053
    %v6389 = vunpack.c.l.b16 %v6054
    %v6390 = vunpack.c.h.b16 %v6054
    %v6391 = vunpack.c.l.b16 %v6055
    %v6392 = vunpack.c.h.b16 %v6055
    %v6393 = vunpack.c.l.b16 %v6056
    %v6394 = vunpack.c.h.b16 %v6056
    %v6395 = vunpack.c.l.b16 %v6057
    %v6396 = vunpack.c.h.b16 %v6057
    %v6397 = vunpack.c.l.b16 %v6058
    %v6398 = vunpack.c.h.b16 %v6058
    %v6399 = vunpack.c.l.b16 %v6059
    %v6400 = vunpack.c.h.b16 %v6059
    %v6401 = vunpack.c.l.b16 %v6060
    %v6402 = vunpack.c.h.b16 %v6060
    %v6403 = vunpack.c.l.b16 %v6061
    %v6404 = vunpack.c.h.b16 %v6061
    %v6405 = vunpack.c.l.b16 %v6062
    %v6406 = vunpack.c.h.b16 %v6062
    %v6407 = vunpack.c.l.b16 %v6063
    %v6408 = vunpack.c.h.b16 %v6063
    %v6409 = vunpack.c.l.b16 %v6064
    %v6410 = vunpack.c.h.b16 %v6064
    %v6411 = vunpack.c.l.b16 %v6065
    %v6412 = vunpack.c.h.b16 %v6065
    %v6413 = vunpack.c.l.b16 %v6066
    %v6414 = vunpack.c.h.b16 %v6066
    %v6415 = vunpack.c.l.b16 %v6067
    %v6416 = vunpack.c.h.b16 %v6067
    %v6417 = vunpack.c.l.b16 %v6068
    %v6418 = vunpack.c.h.b16 %v6068
    %v6419 = vunpack.c.l.b16 %v6069
    %v6420 = vunpack.c.h.b16 %v6069
    %v6421 = vunpack.c.l.b16 %v6070
    %v6422 = vunpack.c.h.b16 %v6070
    %v6423 = vunpack.c.l.b16 %v6071
    %v6424 = vunpack.c.h.b16 %v6071
    %v6425 = vunpack.c.l.b16 %v6072
    %v6426 = vunpack.c.h.b16 %v6072
    %v6427 = vunpack.c.l.b16 %v6073
    %v6428 = vunpack.c.h.b16 %v6073
    %v6429 = vunpack.c.l.b16 %v6074
    %v6430 = vunpack.c.h.b16 %v6074
    %v6431 = vunpack.c.l.b16 %v6075
    %v6432 = vunpack.c.h.b16 %v6075
    %v6433 = vunpack.c.l.b16 %v6076
    %v6434 = vunpack.c.h.b16 %v6076
    %v6435 = vunpack.c.l.b16 %v6077
    %v6436 = vunpack.c.h.b16 %v6077
    %v6437 = vunpack.c.l.b16 %v6078
    %v6438 = vunpack.c.h.b16 %v6078
    %v6439 = vunpack.c.l.b16 %v6079
    %v6440 = vunpack.c.h.b16 %v6079
    %v6441 = vunpack.c.l.b16 %v6080
    %v6442 = vunpack.c.h.b16 %v6080
    %v6443 = vunpack.c.l.b16 %v6081
    %v6444 = vunpack.c.h.b16 %v6081
    %v6445 = vunpack.c.l.b16 %v6082
    %v6446 = vunpack.c.h.b16 %v6082
    %v6447 = vunpack.c.l.b16 %v6083
    %v6448 = vunpack.c.h.b16 %v6083
    %v6449 = vunpack.c.l.b16 %v6084
    %v6450 = vunpack.c.h.b16 %v6084
    %v6451 = vunpack.c.l.b16 %v6085
    %v6452 = vunpack.c.h.b16 %v6085
    %v6453 = vunpack.c.l.b16 %v6086
    %v6454 = vunpack.c.h.b16 %v6086
    %v6455 = vunpack.c.l.b16 %v6087
    %v6456 = vunpack.c.h.b16 %v6087
    %v6457 = vunpack.c.l.b16 %v6088
    %v6458 = vunpack.c.h.b16 %v6088
    %v6459 = vunpack.c.l.b16 %v6089
    %v6460 = vunpack.c.h.b16 %v6089
    %v6461 = vunpack.c.l.b16 %v6090
    %v6462 = vunpack.c.h.b16 %v6090
    %v6463 = vunpack.c.l.b16 %v6091
    %v6464 = vunpack.c.h.b16 %v6091
    %v6465 = vunpack.c.l.b16 %v6092
    %v6466 = vunpack.c.h.b16 %v6092
    %v6467 = vunpack.c.l.b16 %v6093
    %v6468 = vunpack.c.h.b16 %v6093
    %v6469 = vunpack.c.l.b16 %v6094
    %v6470 = vunpack.c.h.b16 %v6094
    %v6471 = vunpack.c.l.b16 %v6095
    %v6472 = vunpack.c.h.b16 %v6095
    %v6473 = vunpack.c.l.b16 %v6096
    %v6474 = vunpack.c.h.b16 %v6096
    %v6475 = vunpack.c.l.b16 %v6097
    %v6476 = vunpack.c.h.b16 %v6097
    %v6477 = vunpack.c.l.b16 %v6098
    %v6478 = vunpack.c.h.b16 %v6098
    %v6479 = vunpack.c.l.b16 %v6099
    %v6480 = vunpack.c.h.b16 %v6099
    %v6481 = vunpack.c.l.b16 %v6100
    %v6482 = vunpack.c.h.b16 %v6100
    %v6483 = vunpack.c.l.b16 %v6101
    %v6484 = vunpack.c.h.b16 %v6101
    %v6485 = vunpack.c.l.b16 %v6102
    %v6486 = vunpack.c.h.b16 %v6102
    %v6487 = vunpack.c.l.b16 %v6103
    %v6488 = vunpack.c.h.b16 %v6103
    %v6489 = vunpack.c.l.b16 %v6104
    %v6490 = vunpack.c.h.b16 %v6104
    %v6491 = vunpack.c.l.b16 %v6105
    %v6492 = vunpack.c.h.b16 %v6105
    %v6493 = vunpack.c.l.b16 %v6106
    %v6494 = vunpack.c.h.b16 %v6106
    %v6495 = vunpack.c.l.b16 %v6107
    %v6496 = vunpack.c.h.b16 %v6107
    %v6497 = vunpack.c.l.b16 %v6108
    %v6498 = vunpack.c.h.b16 %v6108
    %v6499 = vunpack.c.l.b16 %v6109
    %v6500 = vunpack.c.h.b16 %v6109
    %v6501 = vunpack.c.l.b16 %v6110
    %v6502 = vunpack.c.h.b16 %v6110
    %v6503 = vunpack.c.l.b16 %v6111
    %v6504 = vunpack.c.h.b16 %v6111
    %v6505 = vunpack.c.l.b16 %v6112
    %v6506 = vunpack.c.h.b16 %v6112
    %v6507 = vunpack.c.l.b16 %v6113
    %v6508 = vunpack.c.h.b16 %v6113
    %v6509 = vunpack.c.l.b16 %v6114
    %v6510 = vunpack.c.h.b16 %v6114
    %v6511 = vunpack.c.l.b16 %v6115
    %v6512 = vunpack.c.h.b16 %v6115
    %v6513 = vunpack.c.l.b16 %v6116
    %v6514 = vunpack.c.h.b16 %v6116
    %v6515 = vunpack.c.l.b16 %v6117
    %v6516 = vunpack.c.h.b16 %v6117
    %v6517 = vunpack.c.l.b16 %v6118
    %v6518 = vunpack.c.h.b16 %v6118
    %v6519 = vunpack.c.l.b16 %v6119
    %v6520 = vunpack.c.h.b16 %v6119
    %v6521 = vunpack.c.l.b16 %v6120
    %v6522 = vunpack.c.h.b16 %v6120
    %v6523 = vunpack.c.l.b16 %v6121
    %v6524 = vunpack.c.h.b16 %v6121
    %v6525 = vunpack.c.l.b16 %v6122
    %v6526 = vunpack.c.h.b16 %v6122
    %v6527 = vunpack.c.l.b16 %v6123
    %v6528 = vunpack.c.h.b16 %v6123
    %v6529 = vunpack.c.l.b16 %v6124
    %v6530 = vunpack.c.h.b16 %v6124
    %v6531 = vpack.c.b16 %v6279, %v6275
    %v6532 = vpack.c.b16 %v6280, %v6276
    %v6533 = vpack.c.b16 %v6281, %v6277
    %v6534 = vpack.c.b16 %v6282, %v6278
    %v6535 = vpack.c.b16 %v6287, %v6283
    %v6536 = vpack.c.b16 %v6288, %v6284
    %v6537 = vpack.c.b16 %v6289, %v6285
    %v6538 = vpack.c.b16 %v6290, %v6286
    %v6539 = vpack.c.b16 %v6295, %v6291
    %v6540 = vpack.c.b16 %v6296, %v6292
    %v6541 = vpack.c.b16 %v6297, %v6293
    %v6542 = vpack.c.b16 %v6298, %v6294
    %v6543 = vpack.c.b16 %v6303, %v6299
    %v6544 = vpack.c.b16 %v6304, %v6300
    %v6545 = vpack.c.b16 %v6305, %v6301
    %v6546 = vpack.c.b16 %v6306, %v6302
    %v6547 = vpack.c.b16 %v6311, %v6307
    %v6548 = vpack.c.b16 %v6312, %v6308
    %v6549 = vpack.c.b16 %v6313, %v6309
    %v6550 = vpack.c.b16 %v6314, %v6310
    %v6551 = vpack.c.b16 %v6319, %v6315
    %v6552 = vpack.c.b16 %v6320, %v6316
    %v6553 = vpack.c.b16 %v6321, %v6317
    %v6554 = vpack.c.b16 %v6322, %v6318
    %v6555 = vpack.c.b16 %v6327, %v6323
    %v6556 = vpack.c.b16 %v6328, %v6324
    %v6557 = vpack.c.b16 %v6329, %v6325
    %v6558 = vpack.c.b16 %v6330, %v6326
    %v6559 = vpack.c.b16 %v6335, %v6331
    %v6560 = vpack.c.b16 %v6336, %v6332
    %v6561 = vpack.c.b16 %v6337, %v6333
    %v6562 = vpack.c.b16 %v6338, %v6334
    %v6563 = vpack.c.b16 %v6343, %v6339
    %v6564 = vpack.c.b16 %v6344, %v6340
    %v6565 = vpack.c.b16 %v6345, %v6341
    %v6566 = vpack.c.b16 %v6346, %v6342
    %v6567 = vpack.c.b16 %v6351, %v6347
    %v6568 = vpack.c.b16 %v6352, %v6348
    %v6569 = vpack.c.b16 %v6353, %v6349
    %v6570 = vpack.c.b16 %v6354, %v6350
    %v6571 = vpack.c.b16 %v6359, %v6355
    %v6572 = vpack.c.b16 %v6360, %v6356
    %v6573 = vpack.c.b16 %v6361, %v6357
    %v6574 = vpack.c.b16 %v6362, %v6358
    %v6575 = vpack.c.b16 %v6367, %v6363
    %v6576 = vpack.c.b16 %v6368, %v6364
    %v6577 = vpack.c.b16 %v6369, %v6365
    %v6578 = vpack.c.b16 %v6370, %v6366
    %v6579 = vpack.c.b16 %v6375, %v6371
    %v6580 = vpack.c.b16 %v6376, %v6372
    %v6581 = vpack.c.b16 %v6377, %v6373
    %v6582 = vpack.c.b16 %v6378, %v6374
    %v6583 = vpack.c.b16 %v6383, %v6379
    %v6584 = vpack.c.b16 %v6384, %v6380
    %v6585 = vpack.c.b16 %v6385, %v6381
    %v6586 = vpack.c.b16 %v6386, %v6382
    %v6587 = vpack.c.b16 %v6391, %v6387
    %v6588 = vpack.c.b16 %v6392, %v6388
    %v6589 = vpack.c.b16 %v6393, %v6389
    %v6590 = vpack.c.b16 %v6394, %v6390
    %v6591 = vpack.c.b16 %v6399, %v6395
    %v6592 = vpack.c.b16 %v6400, %v6396
    %v6593 = vpack.c.b16 %v6401, %v6397
    %v6594 = vpack.c.b16 %v6402, %v6398
    %v6595 = vpack.c.b16 %v6407, %v6403
    %v6596 = vpack.c.b16 %v6408, %v6404
    %v6597 = vpack.c.b16 %v6409, %v6405
    %v6598 = vpack.c.b16 %v6410, %v6406
    %v6599 = vpack.c.b16 %v6415, %v6411
    %v6600 = vpack.c.b16 %v6416, %v6412
    %v6601 = vpack.c.b16 %v6417, %v6413
    %v6602 = vpack.c.b16 %v6418, %v6414
    %v6603 = vpack.c.b16 %v6423, %v6419
    %v6604 = vpack.c.b16 %v6424, %v6420
    %v6605 = vpack.c.b16 %v6425, %v6421
    %v6606 = vpack.c.b16 %v6426, %v6422
    %v6607 = vpack.c.b16 %v6431, %v6427
    %v6608 = vpack.c.b16 %v6432, %v6428
    %v6609 = vpack.c.b16 %v6433, %v6429
    %v6610 = vpack.c.b16 %v6434, %v6430
    %v6611 = vpack.c.b16 %v6439, %v6435
    %v6612 = vpack.c.b16 %v6440, %v6436
    %v6613 = vpack.c.b16 %v6441, %v6437
    %v6614 = vpack.c.b16 %v6442, %v6438
    %v6615 = vpack.c.b16 %v6447, %v6443
    %v6616 = vpack.c.b16 %v6448, %v6444
    %v6617 = vpack.c.b16 %v6449, %v6445
    %v6618 = vpack.c.b16 %v6450, %v6446
    %v6619 = vpack.c.b16 %v6455, %v6451
    %v6620 = vpack.c.b16 %v6456, %v6452
    %v6621 = vpack.c.b16 %v6457, %v6453
    %v6622 = vpack.c.b16 %v6458, %v6454
    %v6623 = vpack.c.b16 %v6463, %v6459
    %v6624 = vpack.c.b16 %v6464, %v6460
    %v6625 = vpack.c.b16 %v6465, %v6461
    %v6626 = vpack.c.b16 %v6466, %v6462
    %v6627 = vpack.c.b16 %v6471, %v6467
    %v6628 = vpack.c.b16 %v6472, %v6468
    %v6629 = vpack.c.b16 %v6473, %v6469
    %v6630 = vpack.c.b16 %v6474, %v6470
    %v6631 = vpack.c.b16 %v6479, %v6475
    %v6632 = vpack.c.b16 %v6480, %v6476
    %v6633 = vpack.c.b16 %v6481, %v6477
    %v6634 = vpack.c.b16 %v6482, %v6478
    %v6635 = vpack.c.b16 %v6487, %v6483
    %v6636 = vpack.c.b16 %v6488, %v6484
    %v6637 = vpack.c.b16 %v6489, %v6485
    %v6638 = vpack.c.b16 %v6490, %v6486
    %v6639 = vpack.c.b16 %v6495, %v6491
    %v6640 = vpack.c.b16 %v6496, %v6492
    %v6641 = vpack.c.b16 %v6497, %v6493
    %v6642 = vpack.c.b16 %v6498, %v6494
    %v6643 = vpack.c.b16 %v6503, %v6499
    %v6644 = vpack.c.b16 %v6504, %v6500
    %v6645 = vpack.c.b16 %v6505, %v6501
    %v6646 = vpack.c.b16 %v6506, %v6502
    %v6647 = vpack.c.b16 %v6511, %v6507
    %v6648 = vpack.c.b16 %v6512, %v6508
    %v6649 = vpack.c.b16 %v6513, %v6509
    %v6650 = vpack.c.b16 %v6514, %v6510
    %v6651 = vpack.c.b16 %v6519, %v6515
    %v6652 = vpack.c.b16 %v6520, %v6516
    %v6653 = vpack.c.b16 %v6521, %v6517
    %v6654 = vpack.c.b16 %v6522, %v6518
    %v6655 = vpack.c.b16 %v6527, %v6523
    %v6656 = vpack.c.b16 %v6528, %v6524
    %v6657 = vpack.c.b16 %v6529, %v6525
    %v6658 = vpack.c.b16 %v6530, %v6526
    %6787 = vmatprep.subr.bf16.mxu0 %v6560
    %6788 = vmatpush1.bf16.msra.mxu0 %v6559
    %6789 = vmatprep.subr.bf16.mxu0 %v6556
    %6790 = vmatpush1.bf16.msra.mxu0 %v6555
    %6791 = vmatprep.subr.bf16.mxu0 %v6552
    %6792 = vmatpush1.bf16.msra.mxu0 %v6551
    %6793 = vmatprep.subr.bf16.mxu0 %v6548
    %6794 = vmatpush1.bf16.msra.mxu0 %v6547
    %6795 = vmatprep.subr.bf16.mxu0 %v6544
    %6796 = vmatpush1.bf16.msra.mxu0 %v6543
    %6797 = vmatprep.subr.bf16.mxu0 %v6540
    %6798 = vmatpush1.bf16.msra.mxu0 %v6539
    %6799 = vmatprep.subr.bf16.mxu0 %v6536
    %6800 = vmatpush1.bf16.msra.mxu0 %v6535
    %6801 = vmatprep.subr.bf16.mxu0 %v6532
    %6802 = vmatpush1.bf16.msra.mxu0 %v6531
    %6803 = vmatprep.subr.bf16.mxu0 %v6592
    %6804 = vmatpush2.bf16.msra.mxu0 %v6591
    %6805 = vmatprep.subr.bf16.mxu0 %v6588
    %6806 = vmatpush2.bf16.msra.mxu0 %v6587
    %6807 = vmatprep.subr.bf16.mxu0 %v6584
    %6808 = vmatpush2.bf16.msra.mxu0 %v6583
    %6809 = vmatprep.subr.bf16.mxu0 %v6580
    %6810 = vmatpush2.bf16.msra.mxu0 %v6579
    %6811 = vmatprep.subr.bf16.mxu0 %v6576
    %6812 = vmatpush2.bf16.msra.mxu0 %v6575
    %6813 = vmatprep.subr.bf16.mxu0 %v6572
    %6814 = vmatpush2.bf16.msra.mxu0 %v6571
    %6815 = vmatprep.subr.bf16.mxu0 %v6568
    %6816 = vmatpush2.bf16.msra.mxu0 %v6567
    %6817 = vmatprep.subr.bf16.mxu0 %v6564
    %6818 = vmatpush2.bf16.msra.mxu0 %v6563
    %6819 = vmatprep.mubr.f32.mxu0 %v5992
    %6820 = vmatmul.mubr.f32.gmra.mxu0 %v5991
    %v6821 = vpop.f32.mrf.mxu0
    %v6822 = vadd.f32 %v6130, %v6821
    %v6823 = vpop.f32.mrf.mxu0
    %v6824 = vadd.f32 %v6134, %v6823
    %6825 = vdwg.mxu0
    %6826 = vmatprep.subr.bf16.mxu0 %v6624
    %6827 = vmatpush1.bf16.msra.mxu0 %v6623
    %6828 = vmatprep.subr.bf16.mxu0 %v6620
    %6829 = vmatpush1.bf16.msra.mxu0 %v6619
    %6830 = vmatprep.subr.bf16.mxu0 %v6616
    %6831 = vmatpush1.bf16.msra.mxu0 %v6615
    %6832 = vmatprep.subr.bf16.mxu0 %v6612
    %6833 = vmatpush1.bf16.msra.mxu0 %v6611
    %6834 = vmatprep.subr.bf16.mxu0 %v6608
    %6835 = vmatpush1.bf16.msra.mxu0 %v6607
    %6836 = vmatprep.subr.bf16.mxu0 %v6604
    %6837 = vmatpush1.bf16.msra.mxu0 %v6603
    %6838 = vmatprep.subr.bf16.mxu0 %v6600
    %6839 = vmatpush1.bf16.msra.mxu0 %v6599
    %6840 = vmatprep.subr.bf16.mxu0 %v6596
    %6841 = vmatpush1.bf16.msra.mxu0 %v6595
    %6842 = vmatprep.subr.bf16.mxu0 %v6656
    %6843 = vmatpush2.bf16.msra.mxu0 %v6655
    %6844 = vmatprep.subr.bf16.mxu0 %v6652
    %6845 = vmatpush2.bf16.msra.mxu0 %v6651
    %6846 = vmatprep.subr.bf16.mxu0 %v6648
    %6847 = vmatpush2.bf16.msra.mxu0 %v6647
    %6848 = vmatprep.subr.bf16.mxu0 %v6644
    %6849 = vmatpush2.bf16.msra.mxu0 %v6643
    %6850 = vmatprep.subr.bf16.mxu0 %v6640
    %6851 = vmatpush2.bf16.msra.mxu0 %v6639
    %6852 = vmatprep.subr.bf16.mxu0 %v6636
    %6853 = vmatpush2.bf16.msra.mxu0 %v6635
    %6854 = vmatprep.subr.bf16.mxu0 %v6632
    %6855 = vmatpush2.bf16.msra.mxu0 %v6631
    %6856 = vmatprep.subr.bf16.mxu0 %v6628
    %6857 = vmatpush2.bf16.msra.mxu0 %v6627
    %6858 = vmatprep.mubr.f32.mxu0 %v5994
    %6859 = vmatmul.mubr.f32.gmra.mxu0 %v5993
    %v6860 = vpop.f32.mrf.mxu0
    %v6861 = vadd.f32 %v6822, %v6860
    %v6862 = vpop.f32.mrf.mxu0
    %v6863 = vadd.f32 %v6824, %v6862
    %6864 = vdwg.mxu0
    %6865 = vmatprep.subr.bf16.mxu0 %v6562
    %6866 = vmatpush1.bf16.msra.mxu0 %v6561
    %6867 = vmatprep.subr.bf16.mxu0 %v6558
    %6868 = vmatpush1.bf16.msra.mxu0 %v6557
    %6869 = vmatprep.subr.bf16.mxu0 %v6554
    %6870 = vmatpush1.bf16.msra.mxu0 %v6553
    %6871 = vmatprep.subr.bf16.mxu0 %v6550
    %6872 = vmatpush1.bf16.msra.mxu0 %v6549
    %6873 = vmatprep.subr.bf16.mxu0 %v6546
    %6874 = vmatpush1.bf16.msra.mxu0 %v6545
    %6875 = vmatprep.subr.bf16.mxu0 %v6542
    %6876 = vmatpush1.bf16.msra.mxu0 %v6541
    %6877 = vmatprep.subr.bf16.mxu0 %v6538
    %6878 = vmatpush1.bf16.msra.mxu0 %v6537
    %6879 = vmatprep.subr.bf16.mxu0 %v6534
    %6880 = vmatpush1.bf16.msra.mxu0 %v6533
    %6881 = vmatprep.subr.bf16.mxu0 %v6594
    %6882 = vmatpush2.bf16.msra.mxu0 %v6593
    %6883 = vmatprep.subr.bf16.mxu0 %v6590
    %6884 = vmatpush2.bf16.msra.mxu0 %v6589
    %6885 = vmatprep.subr.bf16.mxu0 %v6586
    %6886 = vmatpush2.bf16.msra.mxu0 %v6585
    %6887 = vmatprep.subr.bf16.mxu0 %v6582
    %6888 = vmatpush2.bf16.msra.mxu0 %v6581
    %6889 = vmatprep.subr.bf16.mxu0 %v6578
    %6890 = vmatpush2.bf16.msra.mxu0 %v6577
    %6891 = vmatprep.subr.bf16.mxu0 %v6574
    %6892 = vmatpush2.bf16.msra.mxu0 %v6573
    %6893 = vmatprep.subr.bf16.mxu0 %v6570
    %6894 = vmatpush2.bf16.msra.mxu0 %v6569
    %6895 = vmatprep.subr.bf16.mxu0 %v6566
    %6896 = vmatpush2.bf16.msra.mxu0 %v6565
    %6897 = vmatprep.mubr.f32.mxu0 %v5992
    %6898 = vmatmul.mubr.f32.gmra.mxu0 %v5991
    %v6899 = vpop.f32.mrf.mxu0
    %v6900 = vadd.f32 %v6138, %v6899
    %v6901 = vpop.f32.mrf.mxu0
    %v6902 = vadd.f32 %v6142, %v6901
    %6903 = vdwg.mxu0
    %6904 = vmatprep.subr.bf16.mxu0 %v6626
    %6905 = vmatpush1.bf16.msra.mxu0 %v6625
    %6906 = vmatprep.subr.bf16.mxu0 %v6622
    %6907 = vmatpush1.bf16.msra.mxu0 %v6621
    %6908 = vmatprep.subr.bf16.mxu0 %v6618
    %6909 = vmatpush1.bf16.msra.mxu0 %v6617
    %6910 = vmatprep.subr.bf16.mxu0 %v6614
    %6911 = vmatpush1.bf16.msra.mxu0 %v6613
    %6912 = vmatprep.subr.bf16.mxu0 %v6610
    %6913 = vmatpush1.bf16.msra.mxu0 %v6609
    %6914 = vmatprep.subr.bf16.mxu0 %v6606
    %6915 = vmatpush1.bf16.msra.mxu0 %v6605
    %6916 = vmatprep.subr.bf16.mxu0 %v6602
    %6917 = vmatpush1.bf16.msra.mxu0 %v6601
    %6918 = vmatprep.subr.bf16.mxu0 %v6598
    %6919 = vmatpush1.bf16.msra.mxu0 %v6597
    %6920 = vmatprep.subr.bf16.mxu0 %v6658
    %6921 = vmatpush2.bf16.msra.mxu0 %v6657
    %6922 = vmatprep.subr.bf16.mxu0 %v6654
    %6923 = vmatpush2.bf16.msra.mxu0 %v6653
    %6924 = vmatprep.subr.bf16.mxu0 %v6650
    %6925 = vmatpush2.bf16.msra.mxu0 %v6649
    %6926 = vmatprep.subr.bf16.mxu0 %v6646
    %6927 = vmatpush2.bf16.msra.mxu0 %v6645
    %6928 = vmatprep.subr.bf16.mxu0 %v6642
    %6929 = vmatpush2.bf16.msra.mxu0 %v6641
    %6930 = vmatprep.subr.bf16.mxu0 %v6638
    %6931 = vmatpush2.bf16.msra.mxu0 %v6637
    %6932 = vmatprep.subr.bf16.mxu0 %v6634
    %6933 = vmatpush2.bf16.msra.mxu0 %v6633
    %6934 = vmatprep.subr.bf16.mxu0 %v6630
    %6935 = vmatpush2.bf16.msra.mxu0 %v6629
    %6936 = vmatprep.mubr.f32.mxu0 %v5994
    %6937 = vmatmul.mubr.f32.gmra.mxu0 %v5993
    %v6938 = vpop.f32.mrf.mxu0
    %v6939 = vadd.f32 %v6900, %v6938
    %v6940 = vpop.f32.mrf.mxu0
    %v6941 = vadd.f32 %v6902, %v6940
    %6942 = vdwg.mxu0
    %v6943 = vmax.f32 %v6861, 0.0
    %v6944 = vmax.f32 %v6863, 0.0
    %v6945 = vmax.f32 %v6939, 0.0
    %v6946 = vmax.f32 %v6941, 0.0
    %s6947 = smul.u32 %s3137, 1
    %s6948 = sshll.u32 %s6947, 4
    %6949 = dma.done %s199, %s6948
    %v6950 = vld [vmem:[#allocation6] sm:$0xf]
    %v6951 = vld [vmem:[#allocation6 + $0x4] sm:$0xf]
    %v6952 = vld [vmem:[#allocation6 + $0x8] sm:$0xf]
    %v6953 = vld [vmem:[#allocation6 + $0xc] sm:$0xf]
    %v6954 = vld [vmem:[#allocation6 + $0x10] sm:$0xf]
    %v6955 = vld [vmem:[#allocation6 + $0x14] sm:$0xf]
    %v6956 = vld [vmem:[#allocation6 + $0x18] sm:$0xf]
    %v6957 = vld [vmem:[#allocation6 + $0x1c] sm:$0xf]
    %v6958 = vld [vmem:[#allocation6 + $0x20] sm:$0xf]
    %v6959 = vld [vmem:[#allocation6 + $0x24] sm:$0xf]
    %v6960 = vld [vmem:[#allocation6 + $0x28] sm:$0xf]
    %v6961 = vld [vmem:[#allocation6 + $0x2c] sm:$0xf]
    %v6962 = vld [vmem:[#allocation6 + $0x30] sm:$0xf]
    %v6963 = vld [vmem:[#allocation6 + $0x34] sm:$0xf]
    %v6964 = vld [vmem:[#allocation6 + $0x38] sm:$0xf]
    %v6965 = vld [vmem:[#allocation6 + $0x3c] sm:$0xf]
    %v6966 = vld [vmem:[#allocation6 + $0x40] sm:$0xf]
    %v6967 = vld [vmem:[#allocation6 + $0x44] sm:$0xf]
    %v6968 = vld [vmem:[#allocation6 + $0x48] sm:$0xf]
    %v6969 = vld [vmem:[#allocation6 + $0x4c] sm:$0xf]
    %v6970 = vld [vmem:[#allocation6 + $0x50] sm:$0xf]
    %v6971 = vld [vmem:[#allocation6 + $0x54] sm:$0xf]
    %v6972 = vld [vmem:[#allocation6 + $0x58] sm:$0xf]
    %v6973 = vld [vmem:[#allocation6 + $0x5c] sm:$0xf]
    %v6974 = vld [vmem:[#allocation6 + $0x60] sm:$0xf]
    %v6975 = vld [vmem:[#allocation6 + $0x64] sm:$0xf]
    %v6976 = vld [vmem:[#allocation6 + $0x68] sm:$0xf]
    %v6977 = vld [vmem:[#allocation6 + $0x6c] sm:$0xf]
    %v6978 = vld [vmem:[#allocation6 + $0x70] sm:$0xf]
    %v6979 = vld [vmem:[#allocation6 + $0x74] sm:$0xf]
    %v6980 = vld [vmem:[#allocation6 + $0x78] sm:$0xf]
    %v6981 = vld [vmem:[#allocation6 + $0x7c] sm:$0xf]
    %v6982 = vld [vmem:[#allocation6 + $0x80] sm:$0xf]
    %v6983 = vld [vmem:[#allocation6 + $0x84] sm:$0xf]
    %v6984 = vld [vmem:[#allocation6 + $0x88] sm:$0xf]
    %v6985 = vld [vmem:[#allocation6 + $0x8c] sm:$0xf]
    %v6986 = vld [vmem:[#allocation6 + $0x90] sm:$0xf]
    %v6987 = vld [vmem:[#allocation6 + $0x94] sm:$0xf]
    %v6988 = vld [vmem:[#allocation6 + $0x98] sm:$0xf]
    %v6989 = vld [vmem:[#allocation6 + $0x9c] sm:$0xf]
    %v6990 = vld [vmem:[#allocation6 + $0xa0] sm:$0xf]
    %v6991 = vld [vmem:[#allocation6 + $0xa4] sm:$0xf]
    %v6992 = vld [vmem:[#allocation6 + $0xa8] sm:$0xf]
    %v6993 = vld [vmem:[#allocation6 + $0xac] sm:$0xf]
    %v6994 = vld [vmem:[#allocation6 + $0xb0] sm:$0xf]
    %v6995 = vld [vmem:[#allocation6 + $0xb4] sm:$0xf]
    %v6996 = vld [vmem:[#allocation6 + $0xb8] sm:$0xf]
    %v6997 = vld [vmem:[#allocation6 + $0xbc] sm:$0xf]
    %v6998 = vld [vmem:[#allocation6 + $0xc0] sm:$0xf]
    %v6999 = vld [vmem:[#allocation6 + $0xc4] sm:$0xf]
    %v7000 = vld [vmem:[#allocation6 + $0xc8] sm:$0xf]
    %v7001 = vld [vmem:[#allocation6 + $0xcc] sm:$0xf]
    %v7002 = vld [vmem:[#allocation6 + $0xd0] sm:$0xf]
    %v7003 = vld [vmem:[#allocation6 + $0xd4] sm:$0xf]
    %v7004 = vld [vmem:[#allocation6 + $0xd8] sm:$0xf]
    %v7005 = vld [vmem:[#allocation6 + $0xdc] sm:$0xf]
    %v7006 = vld [vmem:[#allocation6 + $0xe0] sm:$0xf]
    %v7007 = vld [vmem:[#allocation6 + $0xe4] sm:$0xf]
    %v7008 = vld [vmem:[#allocation6 + $0xe8] sm:$0xf]
    %v7009 = vld [vmem:[#allocation6 + $0xec] sm:$0xf]
    %v7010 = vld [vmem:[#allocation6 + $0xf0] sm:$0xf]
    %v7011 = vld [vmem:[#allocation6 + $0xf4] sm:$0xf]
    %v7012 = vld [vmem:[#allocation6 + $0xf8] sm:$0xf]
    %v7013 = vld [vmem:[#allocation6 + $0xfc] sm:$0xf]
    %v7014 = vld [vmem:[%s17] sm:$0x1]
    %v7016 = vlaneseq
    %v7017 = vshrl.u32 %v7016, 7
    %v7018 = vsub.s32 0, %v7017
    %v7019 = vrot.slane %v7014, %v7018
    %v7085 = vunpack.c.l.b16 %v6950
    %v7086 = vunpack.c.l.b16 %v6951
    %v7087 = vunpack.c.l.b16 %v6952
    %v7088 = vunpack.c.l.b16 %v6953
    %v7089 = vunpack.c.l.b16 %v6954
    %v7090 = vunpack.c.l.b16 %v6955
    %v7091 = vunpack.c.l.b16 %v6956
    %v7092 = vunpack.c.l.b16 %v6957
    %v7093 = vunpack.c.l.b16 %v6958
    %v7094 = vunpack.c.l.b16 %v6959
    %v7095 = vunpack.c.l.b16 %v6960
    %v7096 = vunpack.c.l.b16 %v6961
    %v7097 = vunpack.c.l.b16 %v6962
    %v7098 = vunpack.c.l.b16 %v6963
    %v7099 = vunpack.c.l.b16 %v6964
    %v7100 = vunpack.c.l.b16 %v6965
    %v7101 = vunpack.c.l.b16 %v6966
    %v7102 = vunpack.c.l.b16 %v6967
    %v7103 = vunpack.c.l.b16 %v6968
    %v7104 = vunpack.c.l.b16 %v6969
    %v7105 = vunpack.c.l.b16 %v6970
    %v7106 = vunpack.c.l.b16 %v6971
    %v7107 = vunpack.c.l.b16 %v6972
    %v7108 = vunpack.c.l.b16 %v6973
    %v7109 = vunpack.c.l.b16 %v6974
    %v7110 = vunpack.c.l.b16 %v6975
    %v7111 = vunpack.c.l.b16 %v6976
    %v7112 = vunpack.c.l.b16 %v6977
    %v7113 = vunpack.c.l.b16 %v6978
    %v7114 = vunpack.c.l.b16 %v6979
    %v7115 = vunpack.c.l.b16 %v6980
    %v7116 = vunpack.c.l.b16 %v6981
    %v7117 = vunpack.c.l.b16 %v6982
    %v7118 = vunpack.c.l.b16 %v6983
    %v7119 = vunpack.c.l.b16 %v6984
    %v7120 = vunpack.c.l.b16 %v6985
    %v7121 = vunpack.c.l.b16 %v6986
    %v7122 = vunpack.c.l.b16 %v6987
    %v7123 = vunpack.c.l.b16 %v6988
    %v7124 = vunpack.c.l.b16 %v6989
    %v7125 = vunpack.c.l.b16 %v6990
    %v7126 = vunpack.c.l.b16 %v6991
    %v7127 = vunpack.c.l.b16 %v6992
    %v7128 = vunpack.c.l.b16 %v6993
    %v7129 = vunpack.c.l.b16 %v6994
    %v7130 = vunpack.c.l.b16 %v6995
    %v7131 = vunpack.c.l.b16 %v6996
    %v7132 = vunpack.c.l.b16 %v6997
    %v7133 = vunpack.c.l.b16 %v6998
    %v7134 = vunpack.c.l.b16 %v6999
    %v7135 = vunpack.c.l.b16 %v7000
    %v7136 = vunpack.c.l.b16 %v7001
    %v7137 = vunpack.c.l.b16 %v7002
    %v7138 = vunpack.c.l.b16 %v7003
    %v7139 = vunpack.c.l.b16 %v7004
    %v7140 = vunpack.c.l.b16 %v7005
    %v7141 = vunpack.c.l.b16 %v7006
    %v7142 = vunpack.c.l.b16 %v7007
    %v7143 = vunpack.c.l.b16 %v7008
    %v7144 = vunpack.c.l.b16 %v7009
    %v7145 = vunpack.c.l.b16 %v7010
    %v7146 = vunpack.c.l.b16 %v7011
    %v7147 = vunpack.c.l.b16 %v7012
    %v7148 = vunpack.c.l.b16 %v7013
    %v7149 = vpack.c.b16 %v7086, %v7085
    %v7150 = vpack.c.b16 %v7088, %v7087
    %v7151 = vpack.c.b16 %v7090, %v7089
    %v7152 = vpack.c.b16 %v7092, %v7091
    %v7153 = vpack.c.b16 %v7094, %v7093
    %v7154 = vpack.c.b16 %v7096, %v7095
    %v7155 = vpack.c.b16 %v7098, %v7097
    %v7156 = vpack.c.b16 %v7100, %v7099
    %v7157 = vpack.c.b16 %v7102, %v7101
    %v7158 = vpack.c.b16 %v7104, %v7103
    %v7159 = vpack.c.b16 %v7106, %v7105
    %v7160 = vpack.c.b16 %v7108, %v7107
    %v7161 = vpack.c.b16 %v7110, %v7109
    %v7162 = vpack.c.b16 %v7112, %v7111
    %v7163 = vpack.c.b16 %v7114, %v7113
    %v7164 = vpack.c.b16 %v7116, %v7115
    %v7165 = vpack.c.b16 %v7118, %v7117
    %v7166 = vpack.c.b16 %v7120, %v7119
    %v7167 = vpack.c.b16 %v7122, %v7121
    %v7168 = vpack.c.b16 %v7124, %v7123
    %v7169 = vpack.c.b16 %v7126, %v7125
    %v7170 = vpack.c.b16 %v7128, %v7127
    %v7171 = vpack.c.b16 %v7130, %v7129
    %v7172 = vpack.c.b16 %v7132, %v7131
    %v7173 = vpack.c.b16 %v7134, %v7133
    %v7174 = vpack.c.b16 %v7136, %v7135
    %v7175 = vpack.c.b16 %v7138, %v7137
    %v7176 = vpack.c.b16 %v7140, %v7139
    %v7177 = vpack.c.b16 %v7142, %v7141
    %v7178 = vpack.c.b16 %v7144, %v7143
    %v7179 = vpack.c.b16 %v7146, %v7145
    %v7180 = vpack.c.b16 %v7148, %v7147
    %7213 = vmatprep.subr.bf16.mxu0 0
    %7214 = vmatpush1.bf16.msra.mxu0 %v7156
    %7215 = vmatprep.subr.bf16.mxu0 0
    %7216 = vmatpush1.bf16.msra.mxu0 %v7155
    %7217 = vmatprep.subr.bf16.mxu0 0
    %7218 = vmatpush1.bf16.msra.mxu0 %v7154
    %7219 = vmatprep.subr.bf16.mxu0 0
    %7220 = vmatpush1.bf16.msra.mxu0 %v7153
    %7221 = vmatprep.subr.bf16.mxu0 0
    %7222 = vmatpush1.bf16.msra.mxu0 %v7152
    %7223 = vmatprep.subr.bf16.mxu0 0
    %7224 = vmatpush1.bf16.msra.mxu0 %v7151
    %7225 = vmatprep.subr.bf16.mxu0 0
    %7226 = vmatpush1.bf16.msra.mxu0 %v7150
    %7227 = vmatprep.subr.bf16.mxu0 0
    %7228 = vmatpush1.bf16.msra.mxu0 %v7149
    %7229 = vmatprep.subr.bf16.mxu0 0
    %7230 = vmatpush2.bf16.msra.mxu0 %v7164
    %7231 = vmatprep.subr.bf16.mxu0 0
    %7232 = vmatpush2.bf16.msra.mxu0 %v7163
    %7233 = vmatprep.subr.bf16.mxu0 0
    %7234 = vmatpush2.bf16.msra.mxu0 %v7162
    %7235 = vmatprep.subr.bf16.mxu0 0
    %7236 = vmatpush2.bf16.msra.mxu0 %v7161
    %7237 = vmatprep.subr.bf16.mxu0 0
    %7238 = vmatpush2.bf16.msra.mxu0 %v7160
    %7239 = vmatprep.subr.bf16.mxu0 0
    %7240 = vmatpush2.bf16.msra.mxu0 %v7159
    %7241 = vmatprep.subr.bf16.mxu0 0
    %7242 = vmatpush2.bf16.msra.mxu0 %v7158
    %7243 = vmatprep.subr.bf16.mxu0 0
    %7244 = vmatpush2.bf16.msra.mxu0 %v7157
    %7245 = vmatprep.mubr.f32.mxu0 %v6944
    %7246 = vmatmul.mubr.f32.gmra.mxu0 %v6943
    %v7247 = vpop.f32.mrf.mxu0
    %v7248 = vadd.f32 %v7019, %v7247
    %v7249 = vpop.f32.mrf.mxu0
    %7250 = vdwg.mxu0
    %7251 = vmatprep.subr.bf16.mxu0 0
    %7252 = vmatpush1.bf16.msra.mxu0 %v7172
    %7253 = vmatprep.subr.bf16.mxu0 0
    %7254 = vmatpush1.bf16.msra.mxu0 %v7171
    %7255 = vmatprep.subr.bf16.mxu0 0
    %7256 = vmatpush1.bf16.msra.mxu0 %v7170
    %7257 = vmatprep.subr.bf16.mxu0 0
    %7258 = vmatpush1.bf16.msra.mxu0 %v7169
    %7259 = vmatprep.subr.bf16.mxu0 0
    %7260 = vmatpush1.bf16.msra.mxu0 %v7168
    %7261 = vmatprep.subr.bf16.mxu0 0
    %7262 = vmatpush1.bf16.msra.mxu0 %v7167
    %7263 = vmatprep.subr.bf16.mxu0 0
    %7264 = vmatpush1.bf16.msra.mxu0 %v7166
    %7265 = vmatprep.subr.bf16.mxu0 0
    %7266 = vmatpush1.bf16.msra.mxu0 %v7165
    %7267 = vmatprep.subr.bf16.mxu0 0
    %7268 = vmatpush2.bf16.msra.mxu0 %v7180
    %7269 = vmatprep.subr.bf16.mxu0 0
    %7270 = vmatpush2.bf16.msra.mxu0 %v7179
    %7271 = vmatprep.subr.bf16.mxu0 0
    %7272 = vmatpush2.bf16.msra.mxu0 %v7178
    %7273 = vmatprep.subr.bf16.mxu0 0
    %7274 = vmatpush2.bf16.msra.mxu0 %v7177
    %7275 = vmatprep.subr.bf16.mxu0 0
    %7276 = vmatpush2.bf16.msra.mxu0 %v7176
    %7277 = vmatprep.subr.bf16.mxu0 0
    %7278 = vmatpush2.bf16.msra.mxu0 %v7175
    %7279 = vmatprep.subr.bf16.mxu0 0
    %7280 = vmatpush2.bf16.msra.mxu0 %v7174
    %7281 = vmatprep.subr.bf16.mxu0 0
    %7282 = vmatpush2.bf16.msra.mxu0 %v7173
    %7283 = vmatprep.mubr.f32.mxu0 %v6946
    %7284 = vmatmul.mubr.f32.gmra.mxu0 %v6945
    %v7285 = vpop.f32.mrf.mxu0
    %v7286 = vadd.f32 %v7248, %v7285
    %v7287 = vpop.f32.mrf.mxu0
    %7288 = vdwg.mxu0
    %7289 = vst [vmem:[%s18] sm:$0xff] %v7286
    %vm7290 = vcmask 7168
    %v7291 = vsel %vm7290, %v7286, -inf
    %v7292 = vrot.slane %v7291, 4
    %v7293 = vmax.f32 %v7291, %v7292
    %v7294 = vrot.slane %v7293, 2
    %v7295 = vmax.f32 %v7293, %v7294
    %v7296 = vrot.slane %v7295, 1
    %v7297 = vmax.f32 %v7295, %v7296
    %v7298 = vlaneseq
    %v7299 = vshrl.u32 %v7298, 7
    %v7300 = vcvt.s32.f32 %v7299
    %vm7301 = vcmp.eq.f32.partialorder %v7286, %v7297
    %v7302 = vsel %vm7301, %v7300, 8.0
    %v7303 = vsel %vm7290, %v7302, inf
    %v7304 = vrot.slane %v7303, 4
    %v7305 = vmin.f32 %v7303, %v7304
    %v7306 = vrot.slane %v7305, 2
    %v7307 = vmin.f32 %v7305, %v7306
    %v7308 = vrot.slane %v7307, 1
    %v7309 = vmin.f32 %v7307, %v7308
    %v7310 = vcvt.f32.s32.to.zero.pseudo %v7309
    %vm7311 = vcmask 0
    %7312 = vst.msk [vmem:[#allocation22] sm:$0x1] %vm7311, %v7310
    // Predicated region
    $region106: #{landlord_lstm_forward.1} parent=1 // pred_check
      _
    $region107: #{landlord_lstm_forward.1} parent=1 // pred_check_branch
      %7314 = sbr.rel (0) target = $region109
    $region108: #{landlord_lstm_forward.1} parent=1 // pred_region
      _
    $region109: #{landlord_lstm_forward.1} parent=1 // pred_fallthru
      _
    // Predicated region
    $region110: #{landlord_lstm_forward.1} parent=1 // pred_check
      _
    $region111: #{landlord_lstm_forward.1} parent=1 // pred_check_branch
      %7316 = sbr.rel (0) target = $region113
    $region112: #{landlord_lstm_forward.1} parent=1 // pred_region
      %s7318 = ssub.s32 16, 16
      %7319 = vsyncadd [#allocation10], %s7318
      %s7321 = sshll.u32 [#allocation22], 4
      %s7322 = int_to_ptr.vmem [resolvable:$true] %s7321
      %7324 = dma.vmem_to_hbm [thread:$0]  %s7322, 16, %s19, [#allocation10]
    $region113: #{landlord_lstm_forward.1} parent=1 // pred_fallthru
      _
    // Predicated region
    $region114: #{landlord_lstm_forward.1} parent=1 // pred_check
      _
    $region115: #{landlord_lstm_forward.1} parent=1 // pred_check_branch
      %7326 = sbr.rel (0) target = $region117
    $region116: #{landlord_lstm_forward.1} parent=1 // pred_region
      _
    $region117: #{landlord_lstm_forward.1} parent=1 // pred_fallthru
      _
    // Predicated region
    $region118: #{landlord_lstm_forward.1} parent=1 // pred_check
      _
    $region119: #{landlord_lstm_forward.1} parent=1 // pred_check_branch
      %7328 = sbr.rel (0) target = $region121
    $region120: #{landlord_lstm_forward.1} parent=1 // pred_region
      %7329 = dma.done [#allocation10], 16
    $region121: #{landlord_lstm_forward.1} parent=1 // pred_fallthru
      _
    %7330 = vsyncpa [#allocation9], 1
    %7331 = vsyncpa [#allocation12], 1
    %7332 = vsyncpa [#allocation15], 1
    %7333 = vsyncpa [#allocation18], 1
    %7334 = vsyncpa [#allocation21], 1
    %7335 = vsyncpa [#allocation10], 1
  %7336 = vsyncmov [#allocation7]
  %s7337 = vpop.sfrf %7336
  %p7338 = scmp.eq.s32.totalorder %s7337, 0
  %p7339 = pneg %p7338
  %7341 = shalt.err (%p7339)
  %s7342 = scalar_lea.sflag [#allocation7], 1
  %7343 = vsyncmov %s7342
  %s7344 = vpop.sfrf %7343
  %p7345 = scmp.eq.s32.totalorder %s7344, 0
  %p7346 = pneg %p7345
  %7348 = shalt.err (%p7346)
  %s7349 = scalar_lea.sflag [#allocation7], 2
  %7350 = vsyncmov %s7349
  %s7351 = vpop.sfrf %7350
  %p7352 = scmp.eq.s32.totalorder %s7351, 0
  %p7353 = pneg %p7352
  %7355 = shalt.err (%p7353)
  %s7356 = scalar_lea.sflag [#allocation7], 3
  %7357 = vsyncmov %s7356
  %s7358 = vpop.sfrf %7357
  %p7359 = scmp.eq.s32.totalorder %s7358, 0
  %p7360 = pneg %p7359
  %7362 = shalt.err (%p7360)
  %s7363 = scalar_lea.sflag [#allocation7], 4
  %7364 = vsyncmov %s7363
  %s7365 = vpop.sfrf %7364
  %p7366 = scmp.eq.s32.totalorder %s7365, 0
  %p7367 = pneg %p7366
  %7369 = shalt.err (%p7367)

</llo_original>
